<compile_context>
chip_gen: v7x
topology: tpu7x:2x2x1
jax: 0.10.0
libtpu: 0.0.40
codegen_flags: <defaults>
</compile_context>

<pallas_src>
import functools

import jax
import jax.numpy as jnp
from jax.experimental import pallas as pl
from jax.experimental.pallas import tpu as pltpu

EPS = 1e-5  # BatchNorm1d default eps


# ----------------------------------------------------------------------------
# Fused LGConv forward kernel (one row tile of queries per grid step).
#   vec_ref rows (each row zero-padded to 3C lanes):
#     0: b_in (3C, q-third pre-scaled by 1/sqrt(Dh))   1: b1 (2C)
#     2: b_out (C)    3: b2 (C)
#     4: bn2_scale    5: bn2_shift    6: bn3_scale    7: bn3_shift
# ----------------------------------------------------------------------------
def _lgconv_kernel(xt_ref, xf_ref, wint_ref, wot_ref, w1t_ref, w2t_ref,
                   vec_ref, o_ref, attn_ref, *, C, H, n_valid):
    Dh = C // H
    bf16 = jnp.bfloat16
    f32 = jnp.float32
    n_keys = xf_ref.shape[0]

    x_tile = xt_ref[...]                         # (TM, C)  f32 residual/query rows
    xt_bf = x_tile.astype(bf16)
    xf_bf = xf_ref[...].astype(bf16)             # (Npad, C) full x for keys/values

    w_in = wint_ref[...]                         # (C, 3C) bf16

    # ---- MultiheadAttention in-projection (bf16 operands, f32 accumulate) ---
    # q for this row tile only (1/sqrt(Dh) already folded into weight + bias).
    q = (jnp.dot(xt_bf, w_in[:, 0:C], preferred_element_type=f32)
         + vec_ref[0:1, 0:C])                    # (TM, C)
    # k, v for all (padded) rows.
    kv = (jnp.dot(xf_bf, w_in[:, C:3 * C], preferred_element_type=f32)
          + vec_ref[0:1, C:3 * C])               # (Npad, 2C)

    q_bf = q.astype(bf16)
    k_bf = kv[:, 0:C].astype(bf16)
    v_bf = kv[:, C:2 * C].astype(bf16)

    # Mask padded key columns (only the first n_valid nodes are real).
    key_ids = jax.lax.broadcasted_iota(jnp.int32, (1, n_keys), 1)
    neg = jnp.where(key_ids < n_valid, 0.0, -1e30).astype(f32)   # (1, Npad)

    # ---- per-head attention; heads concatenated into VMEM scratch ----------
    for hh in range(H):                          # H=8, static unroll
        lo = hh * Dh
        s = jax.lax.dot_general(q_bf[:, lo:lo + Dh], k_bf[:, lo:lo + Dh],
                                (((1,), (1,)), ((), ())),
                                preferred_element_type=f32)       # (TM, Npad)
        s = s + neg
        s = s - jnp.max(s, axis=-1, keepdims=True)
        p = jnp.exp(s)
        p = p / jnp.sum(p, axis=-1, keepdims=True)
        attn_ref[:, lo:lo + Dh] = jnp.dot(p.astype(bf16), v_bf[:, lo:lo + Dh],
                                          preferred_element_type=f32)

    # ---- single K=C out-projection over the concatenated heads -------------
    attn = (jnp.dot(attn_ref[...].astype(bf16), wot_ref[...],
                    preferred_element_type=f32)
            + vec_ref[2:3, 0:C])                 # (TM, C)

    # ---- residual + norm2 (BatchNorm1d eval, pre-folded scale/shift) -------
    h = x_tile + attn
    h = h * vec_ref[4:5, 0:C] + vec_ref[5:6, 0:C]

    # ---- out = h + mlp(h); mlp = Linear(C,2C) -> ReLU -> Linear(2C,C) ------
    hid = jnp.maximum(
        jnp.dot(h.astype(bf16), w1t_ref[...], preferred_element_type=f32)
        + vec_ref[1:2, 0:2 * C], 0.0)
    out = h + (jnp.dot(hid.astype(bf16), w2t_ref[...], preferred_element_type=f32)
               + vec_ref[3:4, 0:C])

    # ---- norm3 (BatchNorm1d eval, pre-folded) -------------------------------
    o_ref[...] = out * vec_ref[6:7, 0:C] + vec_ref[7:8, 0:C]


# ----------------------------------------------------------------------------
# Parameter folding / packing helpers.
# ----------------------------------------------------------------------------
def _fold_bn(bn):
    gamma, beta, mean, var = bn[0], bn[1], bn[2], bn[3]
    s = gamma / jnp.sqrt(var + EPS)
    return s, beta - mean * s


def _pack_vectors(p, b_in_scaled, C):
    bn2_s, bn2_b = _fold_bn(p["bn2"])
    bn3_s, bn3_b = _fold_bn(p["bn3"])

    def row(v):
        v = v.reshape(-1).astype(jnp.float32)
        return jnp.pad(v, (0, 3 * C - v.shape[0]))

    return jnp.stack([row(b_in_scaled), row(p["b1"]), row(p["b_out"]),
                      row(p["b2"]), row(bn2_s), row(bn2_b),
                      row(bn3_s), row(bn3_b)], axis=0)                # (8, 3C)


# ----------------------------------------------------------------------------
# Wrapper: fold constants, cast weights to bf16, pad rows, single launch.
# ----------------------------------------------------------------------------
def lgconv_forward(x, params, *, heads, tile_m=128):
    N, C = x.shape
    p = params
    Dh = C // heads
    scale = 1.0 / (Dh ** 0.5)
    bf16 = jnp.bfloat16

    n_pad = pl.cdiv(N, tile_m) * tile_m
    grid_t = n_pad // tile_m
    x_p = jnp.pad(x, ((0, n_pad - N), (0, 0)))

    # Fold the softmax 1/sqrt(Dh) into the q-columns of the in-projection.
    w_in = jnp.concatenate([p["w_in_t"][:, :C] * scale, p["w_in_t"][:, C:]], axis=1)
    b_in = jnp.concatenate([p["b_in"][:C] * scale, p["b_in"][C:]])
    vec = _pack_vectors(p, b_in, C)

    flops = (2 * n_pad * C * C                        # q projection
             + grid_t * 2 * n_pad * C * 2 * C         # k/v (recomputed per tile)
             + 4 * heads * n_pad * n_pad * Dh         # scores + p@v
             + 2 * n_pad * C * C                      # out projection
             + 4 * n_pad * C * 2 * C)                 # MLP
    bytes_accessed = (3 * n_pad * C * 4               # x (twice) + out
                      + 2 * (3 * C * C + C * C + 2 * C * C + 2 * C * C)  # bf16 weights
                      + 8 * 3 * C * 4)                # packed vectors
    cost = pl.CostEstimate(flops=int(flops),
                           transcendentals=int(heads * n_pad * n_pad),
                           bytes_accessed=int(bytes_accessed))

    out = pl.pallas_call(
        functools.partial(_lgconv_kernel, C=C, H=heads, n_valid=N),
        out_shape=jax.ShapeDtypeStruct((n_pad, C), jnp.float32),
        grid_spec=pltpu.PrefetchScalarGridSpec(
            num_scalar_prefetch=0,
            grid=(grid_t,),
            in_specs=[
                pl.BlockSpec((tile_m, C), lambda i: (i, 0)),   # query/residual rows
                pl.BlockSpec((n_pad, C), lambda i: (0, 0)),    # full x for K/V (resident)
                pl.BlockSpec((C, 3 * C), lambda i: (0, 0)),    # W_in^T  (bf16, resident)
                pl.BlockSpec((C, C), lambda i: (0, 0)),        # W_out^T (bf16, resident)
                pl.BlockSpec((C, 2 * C), lambda i: (0, 0)),    # W1^T    (bf16, resident)
                pl.BlockSpec((2 * C, C), lambda i: (0, 0)),    # W2^T    (bf16, resident)
                pl.BlockSpec((8, 3 * C), lambda i: (0, 0)),    # packed vectors
            ],
            out_specs=pl.BlockSpec((tile_m, C), lambda i: (i, 0)),
            scratch_shapes=[pltpu.VMEM((tile_m, C), jnp.float32)],  # concat'd heads
        ),
        compiler_params=pltpu.CompilerParams(
            dimension_semantics=("parallel",)),                # v7x: split rows on 2 TCs
        cost_estimate=cost,
    )(x_p, x_p, w_in.astype(bf16), p["w_out_t"].astype(bf16),
      p["w1_t"].astype(bf16), p["w2_t"].astype(bf16), vec)
    return out[:N]


# ----------------------------------------------------------------------------
# Pure-JAX reference with matched numerics (bf16 matmul operands, f32 accumulate,
# exact softmax) so the comparison validates structure, not rounding modes.
# ----------------------------------------------------------------------------
def lgconv_reference(x, p, *, heads):
    N, C = x.shape
    Dh = C // heads
    bf16 = jnp.bfloat16
    f32 = jnp.float32

    def mm(a, b):
        return jnp.dot(a.astype(bf16), b.astype(bf16), preferred_element_type=f32)

    qkv = mm(x, p["w_in_t"]) + p["b_in"]
    q, k, v = qkv[:, :C], qkv[:, C:2 * C], qkv[:, 2 * C:]
    outs = []
    for hh in range(heads):
        sl = slice(hh * Dh, (hh + 1) * Dh)
        s = mm(q[:, sl] * (1.0 / (Dh ** 0.5)), k[:, sl].T)
        s = s - jnp.max(s, axis=-1, keepdims=True)
        pm = jnp.exp(s)
        pm = pm / jnp.sum(pm, axis=-1, keepdims=True)
        outs.append(mm(pm, v[:, sl]))
    attn = mm(jnp.concatenate(outs, axis=-1), p["w_out_t"]) + p["b_out"]

    h = attn + x
    bn2 = p["bn2"]
    h = (h - bn2[2]) / jnp.sqrt(bn2[3] + EPS) * bn2[0] + bn2[1]
    hid = jnp.maximum(mm(h, p["w1_t"]) + p["b1"], 0.0)
    out = h + (mm(hid, p["w2_t"]) + p["b2"])
    bn3 = p["bn3"]
    out = (out - bn3[2]) / jnp.sqrt(bn3[3] + EPS) * bn3[0] + bn3[1]
    return out


def init_params(key, C):
    ks = jax.random.split(key, 10)
    f32 = jnp.float32

    def bn_params(k):
        k1, k2, k3, k4 = jax.random.split(k, 4)
        gamma = 1.0 + 0.1 * jax.random.normal(k1, (C,), f32)
        beta = 0.1 * jax.random.normal(k2, (C,), f32)
        mean = 0.1 * jax.random.normal(k3, (C,), f32)
        var = 0.5 + jnp.abs(jax.random.normal(k4, (C,), f32))
        return jnp.stack([gamma, beta, mean, var], axis=0)            # (4, C)

    return {
        # MultiheadAttention packed in-projection (stored transposed: x @ W^T)
        "w_in_t": (0.1 * jax.random.normal(ks[0], (3 * C, C), f32)).T,   # (C, 3C)
        "b_in": 0.05 * jax.random.normal(ks[1], (3 * C,), f32),
        "w_out_t": (0.1 * jax.random.normal(ks[2], (C, C), f32)).T,      # (C, C)
        "b_out": 0.05 * jax.random.normal(ks[3], (C,), f32),
        # MLP: Linear(C, 2C) -> ReLU -> Linear(2C, C)
        "w1_t": (0.1 * jax.random.normal(ks[4], (2 * C, C), f32)).T,     # (C, 2C)
        "b1": 0.05 * jax.random.normal(ks[5], (2 * C,), f32),
        "w2_t": (0.1 * jax.random.normal(ks[6], (C, 2 * C), f32)).T,     # (2C, C)
        "b2": 0.05 * jax.random.normal(ks[7], (C,), f32),
        # BatchNorm1d (eval mode) affine + running stats for norm2 / norm3
        "bn2": bn_params(ks[8]),
        "bn3": bn_params(ks[9]),
    }


if __name__ == "__main__":
    # Small graph: 200 nodes; CGNN's encoder uses channels=128, heads=8.
    # N=200 pads to 256 -> a 2-step row-tiled grid exercises tiling + masking.
    N, C, HEADS = 200, 128, 8
    key = jax.random.PRNGKey(0)
    kx, kp = jax.random.split(key)
    x = jax.random.normal(kx, (N, C), jnp.float32)
    params = init_params(kp, C)

    out = jax.block_until_ready(lgconv_forward(x, params, heads=HEADS))
    ref = lgconv_reference(x, params, heads=HEADS)

    assert out.shape == (N, C)
    # bf16-operand matmuls (f32 accumulate) in both kernel and reference;
    # tolerance covers accumulation-order / transcendental implementation deltas.
    assert jnp.allclose(out, ref, atol=2e-2, rtol=2e-2), "mismatch vs reference"

    print("KERNEL_OK")
</pallas_src>

<mosaic_0001>
module attributes {stable_mosaic.version = 11 : i64} {
  func.func @_lgconv_kernel(%arg0: i32, %arg1: memref<128x128xf32, #tpu.memory_space<vmem>>, %arg2: memref<256x128xf32, #tpu.memory_space<vmem>>, %arg3: memref<128x384xbf16, #tpu.memory_space<vmem>>, %arg4: memref<128x128xbf16, #tpu.memory_space<vmem>>, %arg5: memref<128x256xbf16, #tpu.memory_space<vmem>>, %arg6: memref<256x128xbf16, #tpu.memory_space<vmem>>, %arg7: memref<8x384xf32, #tpu.memory_space<vmem>>, %arg8: memref<128x128xf32, #tpu.memory_space<vmem>>, %arg9: memref<128x128xf32, #tpu.memory_space<vmem>>) attributes {dimension_semantics = [#tpu.dimension_semantics<parallel>], iteration_bounds = array<i64: 2>, scalar_prefetch = 0 : i64, scratch_operands = 1 : i64, tpu.core_type = #tpu.core_type<tc>, window_params = [{transform_indices = @transform_0, window_bounds = array<i64: 128, 128>}, {pipeline_mode = #tpu.pipeline_mode<synchronous>, transform_indices = @transform_1, window_bounds = array<i64: 256, 128>}, {pipeline_mode = #tpu.pipeline_mode<synchronous>, transform_indices = @transform_2, window_bounds = array<i64: 128, 384>}, {pipeline_mode = #tpu.pipeline_mode<synchronous>, transform_indices = @transform_3, window_bounds = array<i64: 128, 128>}, {pipeline_mode = #tpu.pipeline_mode<synchronous>, transform_indices = @transform_4, window_bounds = array<i64: 128, 256>}, {pipeline_mode = #tpu.pipeline_mode<synchronous>, transform_indices = @transform_5, window_bounds = array<i64: 256, 128>}, {pipeline_mode = #tpu.pipeline_mode<synchronous>, transform_indices = @transform_6, window_bounds = array<i64: 8, 384>}, {transform_indices = @transform_7, window_bounds = array<i64: 128, 128>}]} {
    %c0 = arith.constant 0 : index
    %c0_0 = arith.constant 0 : index
    %0 = vector.load %arg1[%c0, %c0_0] : memref<128x128xf32, #tpu.memory_space<vmem>>, vector<128x128xf32>
    %1 = arith.truncf %0 : vector<128x128xf32> to vector<128x128xbf16>
    %c0_1 = arith.constant 0 : index
    %c0_2 = arith.constant 0 : index
    %2 = vector.load %arg2[%c0_1, %c0_2] : memref<256x128xf32, #tpu.memory_space<vmem>>, vector<256x128xf32>
    %3 = arith.truncf %2 : vector<256x128xf32> to vector<256x128xbf16>
    %c0_3 = arith.constant 0 : index
    %c0_4 = arith.constant 0 : index
    %4 = vector.load %arg3[%c0_3, %c0_4] : memref<128x384xbf16, #tpu.memory_space<vmem>>, vector<128x384xbf16>
    %5 = vector.extract_strided_slice %4 {offsets = [0, 0], sizes = [128, 128], strides = [1, 1]} : vector<128x384xbf16> to vector<128x128xbf16>
    %cst = arith.constant dense<0.000000e+00> : vector<128x128xf32>
    %6 = tpu.matmul %1, %5, %cst {dimension_numbers = #tpu.dot_dimension_numbers<[1], [0], [0], [1], [0, 0, 1, 1], [], []>} : vector<128x128xbf16>, vector<128x128xbf16>, vector<128x128xf32> -> vector<128x128xf32>
    %c0_5 = arith.constant 0 : index
    %c0_6 = arith.constant 0 : index
    %7 = vector.load %arg7[%c0_5, %c0_6] : memref<8x384xf32, #tpu.memory_space<vmem>>, vector<1x128xf32>
    %8 = vector.broadcast %7 : vector<1x128xf32> to vector<128x128xf32>
    %9 = arith.addf %6, %8 : vector<128x128xf32>
    %10 = vector.extract_strided_slice %4 {offsets = [0, 128], sizes = [128, 256], strides = [1, 1]} : vector<128x384xbf16> to vector<128x256xbf16>
    %cst_7 = arith.constant dense<0.000000e+00> : vector<256x256xf32>
    %11 = tpu.matmul %3, %10, %cst_7 {dimension_numbers = #tpu.dot_dimension_numbers<[1], [0], [0], [1], [0, 0, 1, 1], [], []>} : vector<256x128xbf16>, vector<128x256xbf16>, vector<256x256xf32> -> vector<256x256xf32>
    %c0_8 = arith.constant 0 : index
    %c128 = arith.constant 128 : index
    %12 = vector.load %arg7[%c0_8, %c128] : memref<8x384xf32, #tpu.memory_space<vmem>>, vector<1x256xf32>
    %13 = vector.broadcast %12 : vector<1x256xf32> to vector<256x256xf32>
    %14 = arith.addf %11, %13 : vector<256x256xf32>
    %15 = arith.truncf %9 : vector<128x128xf32> to vector<128x128xbf16>
    %16 = vector.extract_strided_slice %14 {offsets = [0, 0], sizes = [256, 128], strides = [1, 1]} : vector<256x256xf32> to vector<256x128xf32>
    %17 = arith.truncf %16 : vector<256x128xf32> to vector<256x128xbf16>
    %18 = vector.extract_strided_slice %14 {offsets = [0, 128], sizes = [256, 128], strides = [1, 1]} : vector<256x256xf32> to vector<256x128xf32>
    %19 = arith.truncf %18 : vector<256x128xf32> to vector<256x128xbf16>
    %20 = tpu.iota {dimensions = array<i32: 1>} : vector<1x256xi32>
    %c200_i32 = arith.constant 200 : i32
    %21 = vector.broadcast %c200_i32 : i32 to vector<1x256xi32>
    %22 = arith.cmpi slt, %20, %21 : vector<1x256xi32>
    %cst_9 = arith.constant 0.000000e+00 : f32
    %cst_10 = arith.constant -1.000000e+30 : f32
    %23 = vector.broadcast %cst_9 : f32 to vector<1x256xf32>
    %24 = vector.broadcast %cst_10 : f32 to vector<1x256xf32>
    %25 = arith.select %22, %23, %24 : vector<1x256xi1>, vector<1x256xf32>
    %26 = vector.extract_strided_slice %15 {offsets = [0, 0], sizes = [128, 16], strides = [1, 1]} : vector<128x128xbf16> to vector<128x16xbf16>
    %27 = vector.extract_strided_slice %17 {offsets = [0, 0], sizes = [256, 16], strides = [1, 1]} : vector<256x128xbf16> to vector<256x16xbf16>
    %cst_11 = arith.constant dense<0.000000e+00> : vector<128x256xf32>
    %28 = tpu.matmul %26, %27, %cst_11 {dimension_numbers = #tpu.dot_dimension_numbers<[1], [1], [0], [0], [0, 0, 1, 0], [], []>} : vector<128x16xbf16>, vector<256x16xbf16>, vector<128x256xf32> -> vector<128x256xf32>
    %29 = vector.broadcast %25 : vector<1x256xf32> to vector<128x256xf32>
    %30 = arith.addf %28, %29 : vector<128x256xf32>
    %cst_12 = arith.constant dense<0xFF800000> : vector<128xf32>
    %31 = vector.multi_reduction <maximumf>, %30, %cst_12 [1] : vector<128x256xf32> to vector<128xf32>
    %32 = vector.shape_cast %31 : vector<128xf32> to vector<128x1xf32>
    %33 = vector.broadcast %32 : vector<128x1xf32> to vector<128x256xf32>
    %34 = arith.subf %30, %33 : vector<128x256xf32>
    %35 = math.exp %34 : vector<128x256xf32>
    %cst_13 = arith.constant dense<0.000000e+00> : vector<128xf32>
    %36 = vector.multi_reduction <add>, %35, %cst_13 [1] : vector<128x256xf32> to vector<128xf32>
    %37 = vector.shape_cast %36 : vector<128xf32> to vector<128x1xf32>
    %38 = vector.broadcast %37 : vector<128x1xf32> to vector<128x256xf32>
    %39 = arith.divf %35, %38 : vector<128x256xf32>
    %40 = arith.truncf %39 : vector<128x256xf32> to vector<128x256xbf16>
    %41 = vector.extract_strided_slice %19 {offsets = [0, 0], sizes = [256, 16], strides = [1, 1]} : vector<256x128xbf16> to vector<256x16xbf16>
    %cst_14 = arith.constant dense<0.000000e+00> : vector<128x16xf32>
    %42 = tpu.matmul %40, %41, %cst_14 {dimension_numbers = #tpu.dot_dimension_numbers<[1], [0], [0], [1], [0, 0, 1, 1], [], []>} : vector<128x256xbf16>, vector<256x16xbf16>, vector<128x16xf32> -> vector<128x16xf32>
    %c0_15 = arith.constant 0 : index
    %c0_16 = arith.constant 0 : index
    %43 = vector.load %arg9[%c0_15, %c0_16] : memref<128x128xf32, #tpu.memory_space<vmem>>, vector<128x16xf32>
    tpu.vector_store %arg9[%c0_15, %c0_16], %42 {strides = array<i32>} : memref<128x128xf32, #tpu.memory_space<vmem>>, vector<128x16xf32>,
    %44 = vector.extract_strided_slice %15 {offsets = [0, 16], sizes = [128, 16], strides = [1, 1]} : vector<128x128xbf16> to vector<128x16xbf16>
    %45 = vector.extract_strided_slice %17 {offsets = [0, 16], sizes = [256, 16], strides = [1, 1]} : vector<256x128xbf16> to vector<256x16xbf16>
    %cst_17 = arith.constant dense<0.000000e+00> : vector<128x256xf32>
    %46 = tpu.matmul %44, %45, %cst_17 {dimension_numbers = #tpu.dot_dimension_numbers<[1], [1], [0], [0], [0, 0, 1, 0], [], []>} : vector<128x16xbf16>, vector<256x16xbf16>, vector<128x256xf32> -> vector<128x256xf32>
    %47 = vector.broadcast %25 : vector<1x256xf32> to vector<128x256xf32>
    %48 = arith.addf %46, %47 : vector<128x256xf32>
    %cst_18 = arith.constant dense<0xFF800000> : vector<128xf32>
    %49 = vector.multi_reduction <maximumf>, %48, %cst_18 [1] : vector<128x256xf32> to vector<128xf32>
    %50 = vector.shape_cast %49 : vector<128xf32> to vector<128x1xf32>
    %51 = vector.broadcast %50 : vector<128x1xf32> to vector<128x256xf32>
    %52 = arith.subf %48, %51 : vector<128x256xf32>
    %53 = math.exp %52 : vector<128x256xf32>
    %cst_19 = arith.constant dense<0.000000e+00> : vector<128xf32>
    %54 = vector.multi_reduction <add>, %53, %cst_19 [1] : vector<128x256xf32> to vector<128xf32>
    %55 = vector.shape_cast %54 : vector<128xf32> to vector<128x1xf32>
    %56 = vector.broadcast %55 : vector<128x1xf32> to vector<128x256xf32>
    %57 = arith.divf %53, %56 : vector<128x256xf32>
    %58 = arith.truncf %57 : vector<128x256xf32> to vector<128x256xbf16>
    %59 = vector.extract_strided_slice %19 {offsets = [0, 16], sizes = [256, 16], strides = [1, 1]} : vector<256x128xbf16> to vector<256x16xbf16>
    %cst_20 = arith.constant dense<0.000000e+00> : vector<128x16xf32>
    %60 = tpu.matmul %58, %59, %cst_20 {dimension_numbers = #tpu.dot_dimension_numbers<[1], [0], [0], [1], [0, 0, 1, 1], [], []>} : vector<128x256xbf16>, vector<256x16xbf16>, vector<128x16xf32> -> vector<128x16xf32>
    %c0_21 = arith.constant 0 : index
    %c16 = arith.constant 16 : index
    %61 = vector.load %arg9[%c0_21, %c16] : memref<128x128xf32, #tpu.memory_space<vmem>>, vector<128x16xf32>
    tpu.vector_store %arg9[%c0_21, %c16], %60 {strides = array<i32>} : memref<128x128xf32, #tpu.memory_space<vmem>>, vector<128x16xf32>,
    %62 = vector.extract_strided_slice %15 {offsets = [0, 32], sizes = [128, 16], strides = [1, 1]} : vector<128x128xbf16> to vector<128x16xbf16>
    %63 = vector.extract_strided_slice %17 {offsets = [0, 32], sizes = [256, 16], strides = [1, 1]} : vector<256x128xbf16> to vector<256x16xbf16>
    %cst_22 = arith.constant dense<0.000000e+00> : vector<128x256xf32>
    %64 = tpu.matmul %62, %63, %cst_22 {dimension_numbers = #tpu.dot_dimension_numbers<[1], [1], [0], [0], [0, 0, 1, 0], [], []>} : vector<128x16xbf16>, vector<256x16xbf16>, vector<128x256xf32> -> vector<128x256xf32>
    %65 = vector.broadcast %25 : vector<1x256xf32> to vector<128x256xf32>
    %66 = arith.addf %64, %65 : vector<128x256xf32>
    %cst_23 = arith.constant dense<0xFF800000> : vector<128xf32>
    %67 = vector.multi_reduction <maximumf>, %66, %cst_23 [1] : vector<128x256xf32> to vector<128xf32>
    %68 = vector.shape_cast %67 : vector<128xf32> to vector<128x1xf32>
    %69 = vector.broadcast %68 : vector<128x1xf32> to vector<128x256xf32>
    %70 = arith.subf %66, %69 : vector<128x256xf32>
    %71 = math.exp %70 : vector<128x256xf32>
    %cst_24 = arith.constant dense<0.000000e+00> : vector<128xf32>
    %72 = vector.multi_reduction <add>, %71, %cst_24 [1] : vector<128x256xf32> to vector<128xf32>
    %73 = vector.shape_cast %72 : vector<128xf32> to vector<128x1xf32>
    %74 = vector.broadcast %73 : vector<128x1xf32> to vector<128x256xf32>
    %75 = arith.divf %71, %74 : vector<128x256xf32>
    %76 = arith.truncf %75 : vector<128x256xf32> to vector<128x256xbf16>
    %77 = vector.extract_strided_slice %19 {offsets = [0, 32], sizes = [256, 16], strides = [1, 1]} : vector<256x128xbf16> to vector<256x16xbf16>
    %cst_25 = arith.constant dense<0.000000e+00> : vector<128x16xf32>
    %78 = tpu.matmul %76, %77, %cst_25 {dimension_numbers = #tpu.dot_dimension_numbers<[1], [0], [0], [1], [0, 0, 1, 1], [], []>} : vector<128x256xbf16>, vector<256x16xbf16>, vector<128x16xf32> -> vector<128x16xf32>
    %c0_26 = arith.constant 0 : index
    %c32 = arith.constant 32 : index
    %79 = vector.load %arg9[%c0_26, %c32] : memref<128x128xf32, #tpu.memory_space<vmem>>, vector<128x16xf32>
    tpu.vector_store %arg9[%c0_26, %c32], %78 {strides = array<i32>} : memref<128x128xf32, #tpu.memory_space<vmem>>, vector<128x16xf32>,
    %80 = vector.extract_strided_slice %15 {offsets = [0, 48], sizes = [128, 16], strides = [1, 1]} : vector<128x128xbf16> to vector<128x16xbf16>
    %81 = vector.extract_strided_slice %17 {offsets = [0, 48], sizes = [256, 16], strides = [1, 1]} : vector<256x128xbf16> to vector<256x16xbf16>
    %cst_27 = arith.constant dense<0.000000e+00> : vector<128x256xf32>
    %82 = tpu.matmul %80, %81, %cst_27 {dimension_numbers = #tpu.dot_dimension_numbers<[1], [1], [0], [0], [0, 0, 1, 0], [], []>} : vector<128x16xbf16>, vector<256x16xbf16>, vector<128x256xf32> -> vector<128x256xf32>
    %83 = vector.broadcast %25 : vector<1x256xf32> to vector<128x256xf32>
    %84 = arith.addf %82, %83 : vector<128x256xf32>
    %cst_28 = arith.constant dense<0xFF800000> : vector<128xf32>
    %85 = vector.multi_reduction <maximumf>, %84, %cst_28 [1] : vector<128x256xf32> to vector<128xf32>
    %86 = vector.shape_cast %85 : vector<128xf32> to vector<128x1xf32>
    %87 = vector.broadcast %86 : vector<128x1xf32> to vector<128x256xf32>
    %88 = arith.subf %84, %87 : vector<128x256xf32>
    %89 = math.exp %88 : vector<128x256xf32>
    %cst_29 = arith.constant dense<0.000000e+00> : vector<128xf32>
    %90 = vector.multi_reduction <add>, %89, %cst_29 [1] : vector<128x256xf32> to vector<128xf32>
    %91 = vector.shape_cast %90 : vector<128xf32> to vector<128x1xf32>
    %92 = vector.broadcast %91 : vector<128x1xf32> to vector<128x256xf32>
    %93 = arith.divf %89, %92 : vector<128x256xf32>
    %94 = arith.truncf %93 : vector<128x256xf32> to vector<128x256xbf16>
    %95 = vector.extract_strided_slice %19 {offsets = [0, 48], sizes = [256, 16], strides = [1, 1]} : vector<256x128xbf16> to vector<256x16xbf16>
    %cst_30 = arith.constant dense<0.000000e+00> : vector<128x16xf32>
    %96 = tpu.matmul %94, %95, %cst_30 {dimension_numbers = #tpu.dot_dimension_numbers<[1], [0], [0], [1], [0, 0, 1, 1], [], []>} : vector<128x256xbf16>, vector<256x16xbf16>, vector<128x16xf32> -> vector<128x16xf32>
    %c0_31 = arith.constant 0 : index
    %c48 = arith.constant 48 : index
    %97 = vector.load %arg9[%c0_31, %c48] : memref<128x128xf32, #tpu.memory_space<vmem>>, vector<128x16xf32>
    tpu.vector_store %arg9[%c0_31, %c48], %96 {strides = array<i32>} : memref<128x128xf32, #tpu.memory_space<vmem>>, vector<128x16xf32>,
    %98 = vector.extract_strided_slice %15 {offsets = [0, 64], sizes = [128, 16], strides = [1, 1]} : vector<128x128xbf16> to vector<128x16xbf16>
    %99 = vector.extract_strided_slice %17 {offsets = [0, 64], sizes = [256, 16], strides = [1, 1]} : vector<256x128xbf16> to vector<256x16xbf16>
    %cst_32 = arith.constant dense<0.000000e+00> : vector<128x256xf32>
    %100 = tpu.matmul %98, %99, %cst_32 {dimension_numbers = #tpu.dot_dimension_numbers<[1], [1], [0], [0], [0, 0, 1, 0], [], []>} : vector<128x16xbf16>, vector<256x16xbf16>, vector<128x256xf32> -> vector<128x256xf32>
    %101 = vector.broadcast %25 : vector<1x256xf32> to vector<128x256xf32>
    %102 = arith.addf %100, %101 : vector<128x256xf32>
    %cst_33 = arith.constant dense<0xFF800000> : vector<128xf32>
    %103 = vector.multi_reduction <maximumf>, %102, %cst_33 [1] : vector<128x256xf32> to vector<128xf32>
    %104 = vector.shape_cast %103 : vector<128xf32> to vector<128x1xf32>
    %105 = vector.broadcast %104 : vector<128x1xf32> to vector<128x256xf32>
    %106 = arith.subf %102, %105 : vector<128x256xf32>
    %107 = math.exp %106 : vector<128x256xf32>
    %cst_34 = arith.constant dense<0.000000e+00> : vector<128xf32>
    %108 = vector.multi_reduction <add>, %107, %cst_34 [1] : vector<128x256xf32> to vector<128xf32>
    %109 = vector.shape_cast %108 : vector<128xf32> to vector<128x1xf32>
    %110 = vector.broadcast %109 : vector<128x1xf32> to vector<128x256xf32>
    %111 = arith.divf %107, %110 : vector<128x256xf32>
    %112 = arith.truncf %111 : vector<128x256xf32> to vector<128x256xbf16>
    %113 = vector.extract_strided_slice %19 {offsets = [0, 64], sizes = [256, 16], strides = [1, 1]} : vector<256x128xbf16> to vector<256x16xbf16>
    %cst_35 = arith.constant dense<0.000000e+00> : vector<128x16xf32>
    %114 = tpu.matmul %112, %113, %cst_35 {dimension_numbers = #tpu.dot_dimension_numbers<[1], [0], [0], [1], [0, 0, 1, 1], [], []>} : vector<128x256xbf16>, vector<256x16xbf16>, vector<128x16xf32> -> vector<128x16xf32>
    %c0_36 = arith.constant 0 : index
    %c64 = arith.constant 64 : index
    %115 = vector.load %arg9[%c0_36, %c64] : memref<128x128xf32, #tpu.memory_space<vmem>>, vector<128x16xf32>
    tpu.vector_store %arg9[%c0_36, %c64], %114 {strides = array<i32>} : memref<128x128xf32, #tpu.memory_space<vmem>>, vector<128x16xf32>,
    %116 = vector.extract_strided_slice %15 {offsets = [0, 80], sizes = [128, 16], strides = [1, 1]} : vector<128x128xbf16> to vector<128x16xbf16>
    %117 = vector.extract_strided_slice %17 {offsets = [0, 80], sizes = [256, 16], strides = [1, 1]} : vector<256x128xbf16> to vector<256x16xbf16>
    %cst_37 = arith.constant dense<0.000000e+00> : vector<128x256xf32>
    %118 = tpu.matmul %116, %117, %cst_37 {dimension_numbers = #tpu.dot_dimension_numbers<[1], [1], [0], [0], [0, 0, 1, 0], [], []>} : vector<128x16xbf16>, vector<256x16xbf16>, vector<128x256xf32> -> vector<128x256xf32>
    %119 = vector.broadcast %25 : vector<1x256xf32> to vector<128x256xf32>
    %120 = arith.addf %118, %119 : vector<128x256xf32>
    %cst_38 = arith.constant dense<0xFF800000> : vector<128xf32>
    %121 = vector.multi_reduction <maximumf>, %120, %cst_38 [1] : vector<128x256xf32> to vector<128xf32>
    %122 = vector.shape_cast %121 : vector<128xf32> to vector<128x1xf32>
    %123 = vector.broadcast %122 : vector<128x1xf32> to vector<128x256xf32>
    %124 = arith.subf %120, %123 : vector<128x256xf32>
    %125 = math.exp %124 : vector<128x256xf32>
    %cst_39 = arith.constant dense<0.000000e+00> : vector<128xf32>
    %126 = vector.multi_reduction <add>, %125, %cst_39 [1] : vector<128x256xf32> to vector<128xf32>
    %127 = vector.shape_cast %126 : vector<128xf32> to vector<128x1xf32>
    %128 = vector.broadcast %127 : vector<128x1xf32> to vector<128x256xf32>
    %129 = arith.divf %125, %128 : vector<128x256xf32>
    %130 = arith.truncf %129 : vector<128x256xf32> to vector<128x256xbf16>
    %131 = vector.extract_strided_slice %19 {offsets = [0, 80], sizes = [256, 16], strides = [1, 1]} : vector<256x128xbf16> to vector<256x16xbf16>
    %cst_40 = arith.constant dense<0.000000e+00> : vector<128x16xf32>
    %132 = tpu.matmul %130, %131, %cst_40 {dimension_numbers = #tpu.dot_dimension_numbers<[1], [0], [0], [1], [0, 0, 1, 1], [], []>} : vector<128x256xbf16>, vector<256x16xbf16>, vector<128x16xf32> -> vector<128x16xf32>
    %c0_41 = arith.constant 0 : index
    %c80 = arith.constant 80 : index
    %133 = vector.load %arg9[%c0_41, %c80] : memref<128x128xf32, #tpu.memory_space<vmem>>, vector<128x16xf32>
    tpu.vector_store %arg9[%c0_41, %c80], %132 {strides = array<i32>} : memref<128x128xf32, #tpu.memory_space<vmem>>, vector<128x16xf32>,
    %134 = vector.extract_strided_slice %15 {offsets = [0, 96], sizes = [128, 16], strides = [1, 1]} : vector<128x128xbf16> to vector<128x16xbf16>
    %135 = vector.extract_strided_slice %17 {offsets = [0, 96], sizes = [256, 16], strides = [1, 1]} : vector<256x128xbf16> to vector<256x16xbf16>
    %cst_42 = arith.constant dense<0.000000e+00> : vector<128x256xf32>
    %136 = tpu.matmul %134, %135, %cst_42 {dimension_numbers = #tpu.dot_dimension_numbers<[1], [1], [0], [0], [0, 0, 1, 0], [], []>} : vector<128x16xbf16>, vector<256x16xbf16>, vector<128x256xf32> -> vector<128x256xf32>
    %137 = vector.broadcast %25 : vector<1x256xf32> to vector<128x256xf32>
    %138 = arith.addf %136, %137 : vector<128x256xf32>
    %cst_43 = arith.constant dense<0xFF800000> : vector<128xf32>
    %139 = vector.multi_reduction <maximumf>, %138, %cst_43 [1] : vector<128x256xf32> to vector<128xf32>
    %140 = vector.shape_cast %139 : vector<128xf32> to vector<128x1xf32>
    %141 = vector.broadcast %140 : vector<128x1xf32> to vector<128x256xf32>
    %142 = arith.subf %138, %141 : vector<128x256xf32>
    %143 = math.exp %142 : vector<128x256xf32>
    %cst_44 = arith.constant dense<0.000000e+00> : vector<128xf32>
    %144 = vector.multi_reduction <add>, %143, %cst_44 [1] : vector<128x256xf32> to vector<128xf32>
    %145 = vector.shape_cast %144 : vector<128xf32> to vector<128x1xf32>
    %146 = vector.broadcast %145 : vector<128x1xf32> to vector<128x256xf32>
    %147 = arith.divf %143, %146 : vector<128x256xf32>
    %148 = arith.truncf %147 : vector<128x256xf32> to vector<128x256xbf16>
    %149 = vector.extract_strided_slice %19 {offsets = [0, 96], sizes = [256, 16], strides = [1, 1]} : vector<256x128xbf16> to vector<256x16xbf16>
    %cst_45 = arith.constant dense<0.000000e+00> : vector<128x16xf32>
    %150 = tpu.matmul %148, %149, %cst_45 {dimension_numbers = #tpu.dot_dimension_numbers<[1], [0], [0], [1], [0, 0, 1, 1], [], []>} : vector<128x256xbf16>, vector<256x16xbf16>, vector<128x16xf32> -> vector<128x16xf32>
    %c0_46 = arith.constant 0 : index
    %c96 = arith.constant 96 : index
    %151 = vector.load %arg9[%c0_46, %c96] : memref<128x128xf32, #tpu.memory_space<vmem>>, vector<128x16xf32>
    tpu.vector_store %arg9[%c0_46, %c96], %150 {strides = array<i32>} : memref<128x128xf32, #tpu.memory_space<vmem>>, vector<128x16xf32>,
    %152 = vector.extract_strided_slice %15 {offsets = [0, 112], sizes = [128, 16], strides = [1, 1]} : vector<128x128xbf16> to vector<128x16xbf16>
    %153 = vector.extract_strided_slice %17 {offsets = [0, 112], sizes = [256, 16], strides = [1, 1]} : vector<256x128xbf16> to vector<256x16xbf16>
    %cst_47 = arith.constant dense<0.000000e+00> : vector<128x256xf32>
    %154 = tpu.matmul %152, %153, %cst_47 {dimension_numbers = #tpu.dot_dimension_numbers<[1], [1], [0], [0], [0, 0, 1, 0], [], []>} : vector<128x16xbf16>, vector<256x16xbf16>, vector<128x256xf32> -> vector<128x256xf32>
    %155 = vector.broadcast %25 : vector<1x256xf32> to vector<128x256xf32>
    %156 = arith.addf %154, %155 : vector<128x256xf32>
    %cst_48 = arith.constant dense<0xFF800000> : vector<128xf32>
    %157 = vector.multi_reduction <maximumf>, %156, %cst_48 [1] : vector<128x256xf32> to vector<128xf32>
    %158 = vector.shape_cast %157 : vector<128xf32> to vector<128x1xf32>
    %159 = vector.broadcast %158 : vector<128x1xf32> to vector<128x256xf32>
    %160 = arith.subf %156, %159 : vector<128x256xf32>
    %161 = math.exp %160 : vector<128x256xf32>
    %cst_49 = arith.constant dense<0.000000e+00> : vector<128xf32>
    %162 = vector.multi_reduction <add>, %161, %cst_49 [1] : vector<128x256xf32> to vector<128xf32>
    %163 = vector.shape_cast %162 : vector<128xf32> to vector<128x1xf32>
    %164 = vector.broadcast %163 : vector<128x1xf32> to vector<128x256xf32>
    %165 = arith.divf %161, %164 : vector<128x256xf32>
    %166 = arith.truncf %165 : vector<128x256xf32> to vector<128x256xbf16>
    %167 = vector.extract_strided_slice %19 {offsets = [0, 112], sizes = [256, 16], strides = [1, 1]} : vector<256x128xbf16> to vector<256x16xbf16>
    %cst_50 = arith.constant dense<0.000000e+00> : vector<128x16xf32>
    %168 = tpu.matmul %166, %167, %cst_50 {dimension_numbers = #tpu.dot_dimension_numbers<[1], [0], [0], [1], [0, 0, 1, 1], [], []>} : vector<128x256xbf16>, vector<256x16xbf16>, vector<128x16xf32> -> vector<128x16xf32>
    %c0_51 = arith.constant 0 : index
    %c112 = arith.constant 112 : index
    %169 = vector.load %arg9[%c0_51, %c112] : memref<128x128xf32, #tpu.memory_space<vmem>>, vector<128x16xf32>
    tpu.vector_store %arg9[%c0_51, %c112], %168 {strides = array<i32>} : memref<128x128xf32, #tpu.memory_space<vmem>>, vector<128x16xf32>,
    %c0_52 = arith.constant 0 : index
    %c0_53 = arith.constant 0 : index
    %170 = vector.load %arg9[%c0_52, %c0_53] : memref<128x128xf32, #tpu.memory_space<vmem>>, vector<128x128xf32>
    %171 = arith.truncf %170 : vector<128x128xf32> to vector<128x128xbf16>
    %c0_54 = arith.constant 0 : index
    %c0_55 = arith.constant 0 : index
    %172 = vector.load %arg4[%c0_54, %c0_55] : memref<128x128xbf16, #tpu.memory_space<vmem>>, vector<128x128xbf16>
    %cst_56 = arith.constant dense<0.000000e+00> : vector<128x128xf32>
    %173 = tpu.matmul %171, %172, %cst_56 {dimension_numbers = #tpu.dot_dimension_numbers<[1], [0], [0], [1], [0, 0, 1, 1], [], []>} : vector<128x128xbf16>, vector<128x128xbf16>, vector<128x128xf32> -> vector<128x128xf32>
    %c2 = arith.constant 2 : index
    %c0_57 = arith.constant 0 : index
    %174 = vector.load %arg7[%c2, %c0_57] : memref<8x384xf32, #tpu.memory_space<vmem>>, vector<1x128xf32>
    %175 = vector.broadcast %174 : vector<1x128xf32> to vector<128x128xf32>
    %176 = arith.addf %173, %175 : vector<128x128xf32>
    %177 = arith.addf %0, %176 : vector<128x128xf32>
    %c4 = arith.constant 4 : index
    %c0_58 = arith.constant 0 : index
    %178 = vector.load %arg7[%c4, %c0_58] : memref<8x384xf32, #tpu.memory_space<vmem>>, vector<1x128xf32>
    %179 = vector.broadcast %178 : vector<1x128xf32> to vector<128x128xf32>
    %180 = arith.mulf %177, %179 : vector<128x128xf32>
    %c5 = arith.constant 5 : index
    %c0_59 = arith.constant 0 : index
    %181 = vector.load %arg7[%c5, %c0_59] : memref<8x384xf32, #tpu.memory_space<vmem>>, vector<1x128xf32>
    %182 = vector.broadcast %181 : vector<1x128xf32> to vector<128x128xf32>
    %183 = arith.addf %180, %182 : vector<128x128xf32>
    %184 = arith.truncf %183 : vector<128x128xf32> to vector<128x128xbf16>
    %c0_60 = arith.constant 0 : index
    %c0_61 = arith.constant 0 : index
    %185 = vector.load %arg5[%c0_60, %c0_61] : memref<128x256xbf16, #tpu.memory_space<vmem>>, vector<128x256xbf16>
    %cst_62 = arith.constant dense<0.000000e+00> : vector<128x256xf32>
    %186 = tpu.matmul %184, %185, %cst_62 {dimension_numbers = #tpu.dot_dimension_numbers<[1], [0], [0], [1], [0, 0, 1, 1], [], []>} : vector<128x128xbf16>, vector<128x256xbf16>, vector<128x256xf32> -> vector<128x256xf32>
    %c1 = arith.constant 1 : index
    %c0_63 = arith.constant 0 : index
    %187 = vector.load %arg7[%c1, %c0_63] : memref<8x384xf32, #tpu.memory_space<vmem>>, vector<1x256xf32>
    %188 = vector.broadcast %187 : vector<1x256xf32> to vector<128x256xf32>
    %189 = arith.addf %186, %188 : vector<128x256xf32>
    %cst_64 = arith.constant 0.000000e+00 : f32
    %190 = vector.broadcast %cst_64 : f32 to vector<128x256xf32>
    %191 = arith.maximumf %189, %190 : vector<128x256xf32>
    %192 = arith.truncf %191 : vector<128x256xf32> to vector<128x256xbf16>
    %c0_65 = arith.constant 0 : index
    %c0_66 = arith.constant 0 : index
    %193 = vector.load %arg6[%c0_65, %c0_66] : memref<256x128xbf16, #tpu.memory_space<vmem>>, vector<256x128xbf16>
    %cst_67 = arith.constant dense<0.000000e+00> : vector<128x128xf32>
    %194 = tpu.matmul %192, %193, %cst_67 {dimension_numbers = #tpu.dot_dimension_numbers<[1], [0], [0], [1], [0, 0, 1, 1], [], []>} : vector<128x256xbf16>, vector<256x128xbf16>, vector<128x128xf32> -> vector<128x128xf32>
    %c3 = arith.constant 3 : index
    %c0_68 = arith.constant 0 : index
    %195 = vector.load %arg7[%c3, %c0_68] : memref<8x384xf32, #tpu.memory_space<vmem>>, vector<1x128xf32>
    %196 = vector.broadcast %195 : vector<1x128xf32> to vector<128x128xf32>
    %197 = arith.addf %194, %196 : vector<128x128xf32>
    %198 = arith.addf %183, %197 : vector<128x128xf32>
    %c6 = arith.constant 6 : index
    %c0_69 = arith.constant 0 : index
    %199 = vector.load %arg7[%c6, %c0_69] : memref<8x384xf32, #tpu.memory_space<vmem>>, vector<1x128xf32>
    %200 = vector.broadcast %199 : vector<1x128xf32> to vector<128x128xf32>
    %201 = arith.mulf %198, %200 : vector<128x128xf32>
    %c7 = arith.constant 7 : index
    %c0_70 = arith.constant 0 : index
    %202 = vector.load %arg7[%c7, %c0_70] : memref<8x384xf32, #tpu.memory_space<vmem>>, vector<1x128xf32>
    %203 = vector.broadcast %202 : vector<1x128xf32> to vector<128x128xf32>
    %204 = arith.addf %201, %203 : vector<128x128xf32>
    %c0_71 = arith.constant 0 : index
    %c0_72 = arith.constant 0 : index
    %205 = vector.load %arg8[%c0_71, %c0_72] : memref<128x128xf32, #tpu.memory_space<vmem>>, vector<128x128xf32>
    tpu.vector_store %arg8[%c0_71, %c0_72], %204 {strides = array<i32>} : memref<128x128xf32, #tpu.memory_space<vmem>>, vector<128x128xf32>,
    return
  }
  func.func @transform_0(%arg0: i32) -> (i32, i32) {
    %c0_i32 = arith.constant 0 : i32
    %c0_i32_0 = arith.constant 0 : i32
    return %arg0, %c0_i32 : i32, i32
  }
  func.func @transform_1(%arg0: i32) -> (i32, i32) {
    %c0_i32 = arith.constant 0 : i32
    %c0_i32_0 = arith.constant 0 : i32
    %c0_i32_1 = arith.constant 0 : i32
    return %c0_i32, %c0_i32_0 : i32, i32
  }
  func.func @transform_2(%arg0: i32) -> (i32, i32) {
    %c0_i32 = arith.constant 0 : i32
    %c0_i32_0 = arith.constant 0 : i32
    %c0_i32_1 = arith.constant 0 : i32
    return %c0_i32, %c0_i32_0 : i32, i32
  }
  func.func @transform_3(%arg0: i32) -> (i32, i32) {
    %c0_i32 = arith.constant 0 : i32
    %c0_i32_0 = arith.constant 0 : i32
    %c0_i32_1 = arith.constant 0 : i32
    return %c0_i32, %c0_i32_0 : i32, i32
  }
  func.func @transform_4(%arg0: i32) -> (i32, i32) {
    %c0_i32 = arith.constant 0 : i32
    %c0_i32_0 = arith.constant 0 : i32
    %c0_i32_1 = arith.constant 0 : i32
    return %c0_i32, %c0_i32_0 : i32, i32
  }
  func.func @transform_5(%arg0: i32) -> (i32, i32) {
    %c0_i32 = arith.constant 0 : i32
    %c0_i32_0 = arith.constant 0 : i32
    %c0_i32_1 = arith.constant 0 : i32
    return %c0_i32, %c0_i32_0 : i32, i32
  }
  func.func @transform_6(%arg0: i32) -> (i32, i32) {
    %c0_i32 = arith.constant 0 : i32
    %c0_i32_0 = arith.constant 0 : i32
    %c0_i32_1 = arith.constant 0 : i32
    return %c0_i32, %c0_i32_0 : i32, i32
  }
  func.func @transform_7(%arg0: i32) -> (i32, i32) {
    %c0_i32 = arith.constant 0 : i32
    %c0_i32_0 = arith.constant 0 : i32
    return %arg0, %c0_i32 : i32, i32
  }
}

</mosaic_0001>

<llo_original>
// kernel: tpu_custom_call.1
$region0: #{tpu_custom_call.1}
  #allocation0 [shape = 'u32[]', space=smem, size = 0x4, offset = 0x4, fixed_abs, tag = 'smem constant byte address 0x4 - core index']
  #allocation1 [shape = 'u32[144,128]{1,0:T(1,128)}', space=vmem, size = 0x12000, scoped, tag = 'internal scratch']
  #allocation2 [shape = 'f32[128,128]{1,0:T(8,128)}', space=vmem, size = 0x10000, scoped, tag = 'scratch operand']
  %s0 = inlined_call_operand.hbm [shape: f32[256,128], index: 0, kind: input, shape index: {}]
  %s1 = inlined_call_operand.hbm [shape: f32[256,128], index: 1, kind: input, shape index: {}]
  %s2 = inlined_call_operand.hbm [shape: bf16[128,384], index: 2, kind: input, shape index: {}]
  %s3 = inlined_call_operand.hbm [shape: bf16[128,128], index: 3, kind: input, shape index: {}]
  %s4 = inlined_call_operand.hbm [shape: bf16[128,256], index: 4, kind: input, shape index: {}]
  %s5 = inlined_call_operand.hbm [shape: bf16[256,128], index: 5, kind: input, shape index: {}]
  %s6 = inlined_call_operand.hbm [shape: f32[8,384], index: 6, kind: input, shape index: {}]
  %s7 = inlined_call_operand.hbm [shape: f32[256,128], index: 7, kind: output, shape index: {}]
  %s8 = sld [smem:[#allocation0]]
  $region89: #{tpu_custom_call.1} parent=0
    _
  %s10 = ssub.s32 1, %s8
  %s11 = scalar_select 0, %s10, %s8
  $region1: #{tpu_custom_call.1} parent=0
    #allocation3 [shape = 'u8[131072]{0}', space=vmem, size = 0x20000, scoped, tag = 'input window, operand 0']
    #allocation4 [shape = 's32[2]{0}', space=sflag, size = 0x8, scoped, tag = 'scoped memory for tpu_custom_call.1']
    #allocation5 [shape = 's32[2]{0}', space=sflag, size = 0x8, scoped, tag = 'scoped memory for tpu_custom_call.1']
    #allocation6 [shape = 'u8[131072]{0}', space=vmem, size = 0x20000, scoped, tag = 'input window, operand 1, single buffered']
    #allocation7 [shape = 's32[1]{0}', space=sflag, size = 0x4, scoped, tag = 'scoped memory for tpu_custom_call.1']
    #allocation8 [shape = 'u8[98304]{0}', space=vmem, size = 0x18000, scoped, tag = 'input window, operand 2, single buffered']
    #allocation9 [shape = 'u8[32768]{0}', space=vmem, size = 0x8000, scoped, tag = 'input window, operand 3, single buffered']
    #allocation10 [shape = 's32[1]{0}', space=sflag, size = 0x4, scoped, tag = 'scoped memory for tpu_custom_call.1']
    #allocation11 [shape = 'u8[65536]{0}', space=vmem, size = 0x10000, scoped, tag = 'input window, operand 4, single buffered']
    #allocation12 [shape = 'u8[65536]{0}', space=vmem, size = 0x10000, scoped, tag = 'input window, operand 5, single buffered']
    #allocation13 [shape = 's32[1]{0}', space=sflag, size = 0x4, scoped, tag = 'scoped memory for tpu_custom_call.1']
    #allocation14 [shape = 'u8[12288]{0}', space=vmem, size = 0x3000, scoped, tag = 'input window, operand 6, single buffered']
    #allocation15 [shape = 'u8[131072]{0}', space=vmem, size = 0x20000, scoped, tag = 'output window, operand 0']
    %12 = vsyncpa [#allocation4], 0
    %s13 = scalar_lea.sflag [#allocation4], 1
    %14 = vsyncpa %s13, 0
    %15 = vsyncpa [#allocation7], 0
    %16 = vsyncpa [#allocation10], 0
    %17 = vsyncpa [#allocation13], 0
    %18 = vsyncpa [#allocation5], 0
    %s19 = scalar_lea.sflag [#allocation5], 1
    %20 = vsyncpa %s19, 0
    loop: start=0, step=1, limit=4
    $region2: #{tpu_custom_call.1} parent=1 // loop_pre_header
      _
    $region3: #{tpu_custom_call.1} parent=1 // loop_header
      %s22 = sphi 0, %s26
      %p23 = scmp.ge.s32.totalorder %s22, 4
      %s32 = sphi 0, %s34
      %s35 = sphi 0, %s32
      %s36 = sphi 0, %s35
      %s52 = sphi 0, %s36
      %s56 = sphi 0, %s56
      %s58 = sphi 0, %s56
      %s59 = sphi 0, %s58
      %s73 = sphi 0, %s59
      %s77 = sphi 0, %s77
      %s79 = sphi 0, %s77
      %s80 = sphi 0, %s79
      %s94 = sphi 0, %s80
      %s98 = sphi 0, %s98
      %s100 = sphi 0, %s98
      %s101 = sphi 0, %s100
      %s115 = sphi 0, %s101
      %s119 = sphi 0, %s119
      %s121 = sphi 0, %s119
      %s122 = sphi 0, %s121
      %s136 = sphi 0, %s122
      %s140 = sphi 0, %s140
      %s142 = sphi 0, %s140
      %s143 = sphi 0, %s142
      %s157 = sphi 0, %s143
      %s161 = sphi 0, %s161
      %s163 = sphi 0, %s161
      %s164 = sphi 0, %s163
      %s178 = sphi 0, %s164
      %s184 = sphi 0, %s186
      %s187 = sphi 0, %s184
      %s188 = sphi 0, %s187
      %s204 = sphi 0, %s188
    $region4: #{tpu_custom_call.1} parent=1 // loop_header_branch
      %25 = sbr.rel (%p23) target = $region8
    $region5: #{tpu_custom_call.1} parent=1 // loop_body
      %s27 = ssub.s32 %s22, 1
      %s28 = ssub.s32 %s22, 2
      %s29 = sadd.s32 %s22, 1
      %s30 = ssub.s32 %s22, %s29
      %p31 = scmp.eq.s32.totalorder %s30, 0
      %s33 = sadd.s32 %s32, 1
      %s34 = scalar_select %p31, %s32, %s33
      %p37 = pneg %p31
      %p38 = scmp.eq.s32.totalorder %s22, 1
      %p39 = por %p37, %p38
      %p40 = scmp.ne.s32.totalorder %s32, %s35
      %p41 = scmp.eq.s32.totalorder %s22, 0
      %p42 = por %p40, %p41
      %p43 = scmp.ne.s32.totalorder %s32, %s35
      %p44 = scmp.eq.s32.totalorder %s27, 1
      %p45 = por %p43, %p44
      %p46 = scmp.ne.s32.totalorder %s35, %s36
      %p47 = scmp.eq.s32.totalorder %s27, 0
      %p48 = por %p46, %p47
      %p49 = scmp.ne.s32.totalorder %s35, %s36
      %p50 = scmp.eq.s32.totalorder %s28, 1
      %p51 = por %p49, %p50
      %p53 = scmp.ne.s32.totalorder %s36, %s52
      %p54 = scmp.eq.s32.totalorder %s28, 0
      %p55 = por %p53, %p54
      %s57 = sadd.s32 %s56, 1
      %p60 = scmp.eq.s32.totalorder %s22, 1
      %p61 = scmp.ne.s32.totalorder %s56, %s58
      %p62 = scmp.eq.s32.totalorder %s22, 0
      %p63 = por %p61, %p62
      %p64 = scmp.ne.s32.totalorder %s56, %s58
      %p65 = scmp.eq.s32.totalorder %s27, 1
      %p66 = por %p64, %p65
      %p67 = scmp.ne.s32.totalorder %s58, %s59
      %p68 = scmp.eq.s32.totalorder %s27, 0
      %p69 = por %p67, %p68
      %p70 = scmp.ne.s32.totalorder %s58, %s59
      %p71 = scmp.eq.s32.totalorder %s28, 1
      %p72 = por %p70, %p71
      %p74 = scmp.ne.s32.totalorder %s59, %s73
      %p75 = scmp.eq.s32.totalorder %s28, 0
      %p76 = por %p74, %p75
      %s78 = sadd.s32 %s77, 1
      %p81 = scmp.eq.s32.totalorder %s22, 1
      %p82 = scmp.ne.s32.totalorder %s77, %s79
      %p83 = scmp.eq.s32.totalorder %s22, 0
      %p84 = por %p82, %p83
      %p85 = scmp.ne.s32.totalorder %s77, %s79
      %p86 = scmp.eq.s32.totalorder %s27, 1
      %p87 = por %p85, %p86
      %p88 = scmp.ne.s32.totalorder %s79, %s80
      %p89 = scmp.eq.s32.totalorder %s27, 0
      %p90 = por %p88, %p89
      %p91 = scmp.ne.s32.totalorder %s79, %s80
      %p92 = scmp.eq.s32.totalorder %s28, 1
      %p93 = por %p91, %p92
      %p95 = scmp.ne.s32.totalorder %s80, %s94
      %p96 = scmp.eq.s32.totalorder %s28, 0
      %p97 = por %p95, %p96
      %s99 = sadd.s32 %s98, 1
      %p102 = scmp.eq.s32.totalorder %s22, 1
      %p103 = scmp.ne.s32.totalorder %s98, %s100
      %p104 = scmp.eq.s32.totalorder %s22, 0
      %p105 = por %p103, %p104
      %p106 = scmp.ne.s32.totalorder %s98, %s100
      %p107 = scmp.eq.s32.totalorder %s27, 1
      %p108 = por %p106, %p107
      %p109 = scmp.ne.s32.totalorder %s100, %s101
      %p110 = scmp.eq.s32.totalorder %s27, 0
      %p111 = por %p109, %p110
      %p112 = scmp.ne.s32.totalorder %s100, %s101
      %p113 = scmp.eq.s32.totalorder %s28, 1
      %p114 = por %p112, %p113
      %p116 = scmp.ne.s32.totalorder %s101, %s115
      %p117 = scmp.eq.s32.totalorder %s28, 0
      %p118 = por %p116, %p117
      %s120 = sadd.s32 %s119, 1
      %p123 = scmp.eq.s32.totalorder %s22, 1
      %p124 = scmp.ne.s32.totalorder %s119, %s121
      %p125 = scmp.eq.s32.totalorder %s22, 0
      %p126 = por %p124, %p125
      %p127 = scmp.ne.s32.totalorder %s119, %s121
      %p128 = scmp.eq.s32.totalorder %s27, 1
      %p129 = por %p127, %p128
      %p130 = scmp.ne.s32.totalorder %s121, %s122
      %p131 = scmp.eq.s32.totalorder %s27, 0
      %p132 = por %p130, %p131
      %p133 = scmp.ne.s32.totalorder %s121, %s122
      %p134 = scmp.eq.s32.totalorder %s28, 1
      %p135 = por %p133, %p134
      %p137 = scmp.ne.s32.totalorder %s122, %s136
      %p138 = scmp.eq.s32.totalorder %s28, 0
      %p139 = por %p137, %p138
      %s141 = sadd.s32 %s140, 1
      %p144 = scmp.eq.s32.totalorder %s22, 1
      %p145 = scmp.ne.s32.totalorder %s140, %s142
      %p146 = scmp.eq.s32.totalorder %s22, 0
      %p147 = por %p145, %p146
      %p148 = scmp.ne.s32.totalorder %s140, %s142
      %p149 = scmp.eq.s32.totalorder %s27, 1
      %p150 = por %p148, %p149
      %p151 = scmp.ne.s32.totalorder %s142, %s143
      %p152 = scmp.eq.s32.totalorder %s27, 0
      %p153 = por %p151, %p152
      %p154 = scmp.ne.s32.totalorder %s142, %s143
      %p155 = scmp.eq.s32.totalorder %s28, 1
      %p156 = por %p154, %p155
      %p158 = scmp.ne.s32.totalorder %s143, %s157
      %p159 = scmp.eq.s32.totalorder %s28, 0
      %p160 = por %p158, %p159
      %s162 = sadd.s32 %s161, 1
      %p165 = scmp.eq.s32.totalorder %s22, 1
      %p166 = scmp.ne.s32.totalorder %s161, %s163
      %p167 = scmp.eq.s32.totalorder %s22, 0
      %p168 = por %p166, %p167
      %p169 = scmp.ne.s32.totalorder %s161, %s163
      %p170 = scmp.eq.s32.totalorder %s27, 1
      %p171 = por %p169, %p170
      %p172 = scmp.ne.s32.totalorder %s163, %s164
      %p173 = scmp.eq.s32.totalorder %s27, 0
      %p174 = por %p172, %p173
      %p175 = scmp.ne.s32.totalorder %s163, %s164
      %p176 = scmp.eq.s32.totalorder %s28, 1
      %p177 = por %p175, %p176
      %p179 = scmp.ne.s32.totalorder %s164, %s178
      %p180 = scmp.eq.s32.totalorder %s28, 0
      %p181 = por %p179, %p180
      %s182 = ssub.s32 %s22, %s29
      %p183 = scmp.eq.s32.totalorder %s182, 0
      %s185 = sadd.s32 %s184, 1
      %s186 = scalar_select %p183, %s184, %s185
      %p189 = pneg %p183
      %p190 = scmp.eq.s32.totalorder %s22, 1
      %p191 = por %p189, %p190
      %p192 = scmp.ne.s32.totalorder %s184, %s187
      %p193 = scmp.eq.s32.totalorder %s22, 0
      %p194 = por %p192, %p193
      %p195 = scmp.ne.s32.totalorder %s184, %s187
      %p196 = scmp.eq.s32.totalorder %s27, 1
      %p197 = por %p195, %p196
      %p198 = scmp.ne.s32.totalorder %s187, %s188
      %p199 = scmp.eq.s32.totalorder %s27, 0
      %p200 = por %p198, %p199
      %p201 = scmp.ne.s32.totalorder %s187, %s188
      %p202 = scmp.eq.s32.totalorder %s28, 1
      %p203 = por %p201, %p202
      %p205 = scmp.ne.s32.totalorder %s188, %s204
      %p206 = scmp.eq.s32.totalorder %s28, 0
      %p207 = por %p205, %p206
      %p208 = scmp.le.s32.totalorder 1, %s22
      %p209 = scmp.lt.s32.totalorder %s22, 3
      %p210 = pnand %p208, %p209
      %p211 = pneg %p210
      // Predicated region
      $region9: #{tpu_custom_call.1} parent=5 // pred_check
        _
      $region10: #{tpu_custom_call.1} parent=5 // pred_check_branch
        %213 = sbr.rel (%p210) target = $region12
      $region11: #{tpu_custom_call.1} parent=5 // pred_region
        %s214 = ssub.s32 %s22, 1
        // Predicated region
        $region13: #{tpu_custom_call.1} parent=11 // pred_check
          %p215 = pneg %p69
        $region14: #{tpu_custom_call.1} parent=11 // pred_check_branch
          %217 = sbr.rel (%p215) target = $region16
        $region15: #{tpu_custom_call.1} parent=11 // pred_region
          %s219 = ssub.s32 4096, 4096
          %220 = vsyncadd [#allocation7], %s219
          %s221 = sshll.u32 [#allocation6], 4
          %s222 = int_to_ptr.vmem [resolvable:$true] %s221
          %227 = dma.hbm_to_vmem [thread:$0]  %s1, 4096, %s222, [#allocation7], 128, 128, 8
        $region16: #{tpu_custom_call.1} parent=11 // pred_fallthru
          _
        // Predicated region
        $region17: #{tpu_custom_call.1} parent=11 // pred_check
          %p228 = pneg %p90
        $region18: #{tpu_custom_call.1} parent=11 // pred_check_branch
          %230 = sbr.rel (%p228) target = $region20
        $region19: #{tpu_custom_call.1} parent=11 // pred_region
          %s232 = ssub.s32 3072, 3072
          %233 = vsyncadd [#allocation7], %s232
          %s234 = sshll.u32 [#allocation8], 4
          %s235 = int_to_ptr.vmem [resolvable:$true] %s234
          %240 = dma.hbm_to_vmem [thread:$0]  %s2, 3072, %s235, [#allocation7], 192, 192, 12
        $region20: #{tpu_custom_call.1} parent=11 // pred_fallthru
          _
        // Predicated region
        $region21: #{tpu_custom_call.1} parent=11 // pred_check
          %p241 = pneg %p111
        $region22: #{tpu_custom_call.1} parent=11 // pred_check_branch
          %243 = sbr.rel (%p241) target = $region24
        $region23: #{tpu_custom_call.1} parent=11 // pred_region
          %s245 = ssub.s32 1024, 1024
          %246 = vsyncadd [#allocation10], %s245
          %s247 = sshll.u32 [#allocation9], 4
          %s248 = int_to_ptr.vmem [resolvable:$true] %s247
          %253 = dma.hbm_to_vmem [thread:$0]  %s3, 1024, %s248, [#allocation10], 64, 64, 4
        $region24: #{tpu_custom_call.1} parent=11 // pred_fallthru
          _
        // Predicated region
        $region25: #{tpu_custom_call.1} parent=11 // pred_check
          %p254 = pneg %p132
        $region26: #{tpu_custom_call.1} parent=11 // pred_check_branch
          %256 = sbr.rel (%p254) target = $region28
        $region27: #{tpu_custom_call.1} parent=11 // pred_region
          %s258 = ssub.s32 2048, 2048
          %259 = vsyncadd [#allocation10], %s258
          %s260 = sshll.u32 [#allocation11], 4
          %s261 = int_to_ptr.vmem [resolvable:$true] %s260
          %266 = dma.hbm_to_vmem [thread:$0]  %s4, 2048, %s261, [#allocation10], 128, 128, 8
        $region28: #{tpu_custom_call.1} parent=11 // pred_fallthru
          _
        // Predicated region
        $region29: #{tpu_custom_call.1} parent=11 // pred_check
          %p267 = pneg %p153
        $region30: #{tpu_custom_call.1} parent=11 // pred_check_branch
          %269 = sbr.rel (%p267) target = $region32
        $region31: #{tpu_custom_call.1} parent=11 // pred_region
          %s271 = ssub.s32 2048, 2048
          %272 = vsyncadd [#allocation13], %s271
          %s273 = sshll.u32 [#allocation12], 4
          %s274 = int_to_ptr.vmem [resolvable:$true] %s273
          %279 = dma.hbm_to_vmem [thread:$0]  %s5, 2048, %s274, [#allocation13], 64, 64, 4
        $region32: #{tpu_custom_call.1} parent=11 // pred_fallthru
          _
        // Predicated region
        $region33: #{tpu_custom_call.1} parent=11 // pred_check
          %p280 = pneg %p174
        $region34: #{tpu_custom_call.1} parent=11 // pred_check_branch
          %282 = sbr.rel (%p280) target = $region36
        $region35: #{tpu_custom_call.1} parent=11 // pred_region
          %s284 = ssub.s32 384, 384
          %285 = vsyncadd [#allocation13], %s284
          %s287 = sshll.u32 [#allocation14], 4
          %s288 = int_to_ptr.vmem [resolvable:$true] %s287
          %290 = dma.hbm_to_vmem [thread:$0]  %s6, 384, %s288, [#allocation13]
        $region36: #{tpu_custom_call.1} parent=11 // pred_fallthru
          _
      $region12: #{tpu_custom_call.1} parent=5 // pred_fallthru
        _
      %p291 = scmp.lt.s32.totalorder %s22, 2
      // Predicated region
      $region37: #{tpu_custom_call.1} parent=5 // pred_check
        %p292 = pneg %p291
      $region38: #{tpu_custom_call.1} parent=5 // pred_check_branch
        %294 = sbr.rel (%p292) target = $region40
      $region39: #{tpu_custom_call.1} parent=5 // pred_region
        // Predicated region
        $region41: #{tpu_custom_call.1} parent=39 // pred_check
          %p295 = pneg %p42
        $region42: #{tpu_custom_call.1} parent=39 // pred_check_branch
          %297 = sbr.rel (%p295) target = $region44
        $region43: #{tpu_custom_call.1} parent=39 // pred_region
          %s298 = sand.u32 %s32, 1
          %s299 = scalar_lea.sflag [#allocation4], %s298
          %s300 = sand.u32 %s32, 1
          %s301 = smul.addr %s300, 128
          %s302 = scalar_lea.vmem [#allocation3], %s301
          %s303 = smul.u32 16, %s22
          %s305 = ssub.s32 2048, 2048
          %306 = vsyncadd %s299, %s305
          %s307 = smul.addr %s303, 128
          %s308 = scalar_lea.hbm %s0, %s307
          %s309 = sshll.u32 %s302, 4
          %s310 = int_to_ptr.vmem [resolvable:$true] %s309
          %315 = dma.hbm_to_vmem [thread:$0]  %s308, 2048, %s310, %s299, 128, 128, 8
        $region44: #{tpu_custom_call.1} parent=39 // pred_fallthru
          _
      $region40: #{tpu_custom_call.1} parent=5 // pred_fallthru
        _
      %p316 = scmp.le.s32.totalorder 1, %s22
      %p317 = scmp.lt.s32.totalorder %s22, 3
      %p318 = pnand %p316, %p317
      %p319 = pneg %p318
      // Predicated region
      $region45: #{tpu_custom_call.1} parent=5 // pred_check
        _
      $region46: #{tpu_custom_call.1} parent=5 // pred_check_branch
        %321 = sbr.rel (%p318) target = $region48
      $region47: #{tpu_custom_call.1} parent=5 // pred_region
        %s322 = ssub.s32 %s22, 1
        %s323 = sand.u32 %s35, 1
        %s324 = scalar_lea.sflag [#allocation4], %s323
        %s325 = sand.u32 %s35, 1
        %s326 = smul.addr %s325, 128
        %s327 = scalar_lea.vmem [#allocation3], %s326
        // Predicated region
        $region49: #{tpu_custom_call.1} parent=47 // pred_check
          %p328 = pneg %p48
        $region50: #{tpu_custom_call.1} parent=47 // pred_check_branch
          %330 = sbr.rel (%p328) target = $region52
        $region51: #{tpu_custom_call.1} parent=47 // pred_region
          %331 = dma.done %s324, 2048
        $region52: #{tpu_custom_call.1} parent=47 // pred_fallthru
          _
        // Predicated region
        $region53: #{tpu_custom_call.1} parent=47 // pred_check
          %p332 = pneg %p69
        $region54: #{tpu_custom_call.1} parent=47 // pred_check_branch
          %334 = sbr.rel (%p332) target = $region56
        $region55: #{tpu_custom_call.1} parent=47 // pred_region
          %335 = dma.done [#allocation7], 4096
        $region56: #{tpu_custom_call.1} parent=47 // pred_fallthru
          _
        // Predicated region
        $region57: #{tpu_custom_call.1} parent=47 // pred_check
          %p336 = pneg %p90
        $region58: #{tpu_custom_call.1} parent=47 // pred_check_branch
          %338 = sbr.rel (%p336) target = $region60
        $region59: #{tpu_custom_call.1} parent=47 // pred_region
          %339 = dma.done [#allocation7], 3072
        $region60: #{tpu_custom_call.1} parent=47 // pred_fallthru
          _
        // Predicated region
        $region61: #{tpu_custom_call.1} parent=47 // pred_check
          %p340 = pneg %p111
        $region62: #{tpu_custom_call.1} parent=47 // pred_check_branch
          %342 = sbr.rel (%p340) target = $region64
        $region63: #{tpu_custom_call.1} parent=47 // pred_region
          %343 = dma.done [#allocation10], 1024
        $region64: #{tpu_custom_call.1} parent=47 // pred_fallthru
          _
        // Predicated region
        $region65: #{tpu_custom_call.1} parent=47 // pred_check
          %p344 = pneg %p132
        $region66: #{tpu_custom_call.1} parent=47 // pred_check_branch
          %346 = sbr.rel (%p344) target = $region68
        $region67: #{tpu_custom_call.1} parent=47 // pred_region
          %347 = dma.done [#allocation10], 2048
        $region68: #{tpu_custom_call.1} parent=47 // pred_fallthru
          _
        // Predicated region
        $region69: #{tpu_custom_call.1} parent=47 // pred_check
          %p348 = pneg %p153
        $region70: #{tpu_custom_call.1} parent=47 // pred_check_branch
          %350 = sbr.rel (%p348) target = $region72
        $region71: #{tpu_custom_call.1} parent=47 // pred_region
          %351 = dma.done [#allocation13], 2048
        $region72: #{tpu_custom_call.1} parent=47 // pred_fallthru
          _
        // Predicated region
        $region73: #{tpu_custom_call.1} parent=47 // pred_check
          %p352 = pneg %p174
        $region74: #{tpu_custom_call.1} parent=47 // pred_check_branch
          %354 = sbr.rel (%p352) target = $region76
        $region75: #{tpu_custom_call.1} parent=47 // pred_region
          %355 = dma.done [#allocation13], 384
        $region76: #{tpu_custom_call.1} parent=47 // pred_fallthru
          _
        %s356 = sand.u32 %s35, 1
        %s357 = scalar_lea.sflag [#allocation4], %s356
        %s358 = sand.u32 %s35, 1
        %s359 = smul.addr %s358, 128
        %s360 = scalar_lea.vmem [#allocation3], %s359
        %p361 = pneg %p48
        %p362 = pneg %p45
        %p363 = pneg %p69
        %p364 = pneg %p66
        %p365 = pneg %p90
        %p366 = pneg %p87
        %p367 = pneg %p111
        %p368 = pneg %p108
        %p369 = pneg %p132
        %p370 = pneg %p129
        %p371 = pneg %p153
        %p372 = pneg %p150
        %p373 = pneg %p174
        %p374 = pneg %p171
        %p375 = pneg %p200
        %p376 = pneg %p197
        %s377 = sand.u32 %s187, 1
        %s378 = scalar_lea.sflag [#allocation5], %s377
        %s379 = sand.u32 %s187, 1
        %s380 = smul.addr %s379, 128
        %s381 = scalar_lea.vmem [#allocation15], %s380
        %s382 = smul.u32 16, %s27
        %s383 = smul.u32 16, %s27
        %v385 = vld [vmem:[%s327] sm:$0xff]
        %v386 = vld [vmem:[%s327 + $0x8] sm:$0xff]
        %v387 = vld [vmem:[%s327 + $0x10] sm:$0xff]
        %v388 = vld [vmem:[%s327 + $0x18] sm:$0xff]
        %v389 = vld [vmem:[%s327 + $0x20] sm:$0xff]
        %v390 = vld [vmem:[%s327 + $0x28] sm:$0xff]
        %v391 = vld [vmem:[%s327 + $0x30] sm:$0xff]
        %v392 = vld [vmem:[%s327 + $0x38] sm:$0xff]
        %v393 = vld [vmem:[%s327 + $0x40] sm:$0xff]
        %v394 = vld [vmem:[%s327 + $0x48] sm:$0xff]
        %v395 = vld [vmem:[%s327 + $0x50] sm:$0xff]
        %v396 = vld [vmem:[%s327 + $0x58] sm:$0xff]
        %v397 = vld [vmem:[%s327 + $0x60] sm:$0xff]
        %v398 = vld [vmem:[%s327 + $0x68] sm:$0xff]
        %v399 = vld [vmem:[%s327 + $0x70] sm:$0xff]
        %v400 = vld [vmem:[%s327 + $0x78] sm:$0xff]
        %v401 = vpack.c.bf16 %v386, %v385
        %v402 = vpack.c.bf16 %v388, %v387
        %v403 = vpack.c.bf16 %v390, %v389
        %v404 = vpack.c.bf16 %v392, %v391
        %v405 = vpack.c.bf16 %v394, %v393
        %v406 = vpack.c.bf16 %v396, %v395
        %v407 = vpack.c.bf16 %v398, %v397
        %v408 = vpack.c.bf16 %v400, %v399
        %v409 = vld [vmem:[#allocation6] sm:$0xff]
        %v410 = vld [vmem:[#allocation6 + $0x8] sm:$0xff]
        %v411 = vld [vmem:[#allocation6 + $0x10] sm:$0xff]
        %v412 = vld [vmem:[#allocation6 + $0x18] sm:$0xff]
        %v413 = vld [vmem:[#allocation6 + $0x20] sm:$0xff]
        %v414 = vld [vmem:[#allocation6 + $0x28] sm:$0xff]
        %v415 = vld [vmem:[#allocation6 + $0x30] sm:$0xff]
        %v416 = vld [vmem:[#allocation6 + $0x38] sm:$0xff]
        %v417 = vld [vmem:[#allocation6 + $0x40] sm:$0xff]
        %v418 = vld [vmem:[#allocation6 + $0x48] sm:$0xff]
        %v419 = vld [vmem:[#allocation6 + $0x50] sm:$0xff]
        %v420 = vld [vmem:[#allocation6 + $0x58] sm:$0xff]
        %v421 = vld [vmem:[#allocation6 + $0x60] sm:$0xff]
        %v422 = vld [vmem:[#allocation6 + $0x68] sm:$0xff]
        %v423 = vld [vmem:[#allocation6 + $0x70] sm:$0xff]
        %v424 = vld [vmem:[#allocation6 + $0x78] sm:$0xff]
        %v425 = vld [vmem:[#allocation6 + $0x80] sm:$0xff]
        %v426 = vld [vmem:[#allocation6 + $0x88] sm:$0xff]
        %v427 = vld [vmem:[#allocation6 + $0x90] sm:$0xff]
        %v428 = vld [vmem:[#allocation6 + $0x98] sm:$0xff]
        %v429 = vld [vmem:[#allocation6 + $0xa0] sm:$0xff]
        %v430 = vld [vmem:[#allocation6 + $0xa8] sm:$0xff]
        %v431 = vld [vmem:[#allocation6 + $0xb0] sm:$0xff]
        %v432 = vld [vmem:[#allocation6 + $0xb8] sm:$0xff]
        %v433 = vld [vmem:[#allocation6 + $0xc0] sm:$0xff]
        %v434 = vld [vmem:[#allocation6 + $0xc8] sm:$0xff]
        %v435 = vld [vmem:[#allocation6 + $0xd0] sm:$0xff]
        %v436 = vld [vmem:[#allocation6 + $0xd8] sm:$0xff]
        %v437 = vld [vmem:[#allocation6 + $0xe0] sm:$0xff]
        %v438 = vld [vmem:[#allocation6 + $0xe8] sm:$0xff]
        %v439 = vld [vmem:[#allocation6 + $0xf0] sm:$0xff]
        %v440 = vld [vmem:[#allocation6 + $0xf8] sm:$0xff]
        %v441 = vpack.c.bf16 %v410, %v409
        %v442 = vpack.c.bf16 %v412, %v411
        %v443 = vpack.c.bf16 %v414, %v413
        %v444 = vpack.c.bf16 %v416, %v415
        %v445 = vpack.c.bf16 %v418, %v417
        %v446 = vpack.c.bf16 %v420, %v419
        %v447 = vpack.c.bf16 %v422, %v421
        %v448 = vpack.c.bf16 %v424, %v423
        %v449 = vpack.c.bf16 %v426, %v425
        %v450 = vpack.c.bf16 %v428, %v427
        %v451 = vpack.c.bf16 %v430, %v429
        %v452 = vpack.c.bf16 %v432, %v431
        %v453 = vpack.c.bf16 %v434, %v433
        %v454 = vpack.c.bf16 %v436, %v435
        %v455 = vpack.c.bf16 %v438, %v437
        %v456 = vpack.c.bf16 %v440, %v439
        %v457 = vld [vmem:[#allocation8] sm:$0xff]
        %v458 = vld [vmem:[#allocation8 + $0x8] sm:$0xf]
        %v459 = vld [vmem:[#allocation8 + $0xc] sm:$0xff]
        %v460 = vld [vmem:[#allocation8 + $0x14] sm:$0xf]
        %v461 = vld [vmem:[#allocation8 + $0x18] sm:$0xff]
        %v462 = vld [vmem:[#allocation8 + $0x20] sm:$0xf]
        %v463 = vld [vmem:[#allocation8 + $0x24] sm:$0xff]
        %v464 = vld [vmem:[#allocation8 + $0x2c] sm:$0xf]
        %v465 = vld [vmem:[#allocation8 + $0x30] sm:$0xff]
        %v466 = vld [vmem:[#allocation8 + $0x38] sm:$0xf]
        %v467 = vld [vmem:[#allocation8 + $0x3c] sm:$0xff]
        %v468 = vld [vmem:[#allocation8 + $0x44] sm:$0xf]
        %v469 = vld [vmem:[#allocation8 + $0x48] sm:$0xff]
        %v470 = vld [vmem:[#allocation8 + $0x50] sm:$0xf]
        %v471 = vld [vmem:[#allocation8 + $0x54] sm:$0xff]
        %v472 = vld [vmem:[#allocation8 + $0x5c] sm:$0xf]
        %v473 = vld [vmem:[#allocation8 + $0x60] sm:$0xff]
        %v474 = vld [vmem:[#allocation8 + $0x68] sm:$0xf]
        %v475 = vld [vmem:[#allocation8 + $0x6c] sm:$0xff]
        %v476 = vld [vmem:[#allocation8 + $0x74] sm:$0xf]
        %v477 = vld [vmem:[#allocation8 + $0x78] sm:$0xff]
        %v478 = vld [vmem:[#allocation8 + $0x80] sm:$0xf]
        %v479 = vld [vmem:[#allocation8 + $0x84] sm:$0xff]
        %v480 = vld [vmem:[#allocation8 + $0x8c] sm:$0xf]
        %v481 = vld [vmem:[#allocation8 + $0x90] sm:$0xff]
        %v482 = vld [vmem:[#allocation8 + $0x98] sm:$0xf]
        %v483 = vld [vmem:[#allocation8 + $0x9c] sm:$0xff]
        %v484 = vld [vmem:[#allocation8 + $0xa4] sm:$0xf]
        %v485 = vld [vmem:[#allocation8 + $0xa8] sm:$0xff]
        %v486 = vld [vmem:[#allocation8 + $0xb0] sm:$0xf]
        %v487 = vld [vmem:[#allocation8 + $0xb4] sm:$0xff]
        %v488 = vld [vmem:[#allocation8 + $0xbc] sm:$0xf]
        %v489 = vld [vmem:[#allocation14] ss:$0 sm:$0xff]
        %v506 = vunpack.c.l.b16 %v457
        %v507 = vunpack.c.l.b16 %v459
        %v508 = vunpack.c.l.b16 %v461
        %v509 = vunpack.c.l.b16 %v463
        %v510 = vunpack.c.l.b16 %v465
        %v511 = vunpack.c.l.b16 %v467
        %v512 = vunpack.c.l.b16 %v469
        %v513 = vunpack.c.l.b16 %v471
        %v514 = vunpack.c.l.b16 %v473
        %v515 = vunpack.c.l.b16 %v475
        %v516 = vunpack.c.l.b16 %v477
        %v517 = vunpack.c.l.b16 %v479
        %v518 = vunpack.c.l.b16 %v481
        %v519 = vunpack.c.l.b16 %v483
        %v520 = vunpack.c.l.b16 %v485
        %v521 = vunpack.c.l.b16 %v487
        %v522 = vpack.c.b16 %v507, %v506
        %v523 = vpack.c.b16 %v509, %v508
        %v524 = vpack.c.b16 %v511, %v510
        %v525 = vpack.c.b16 %v513, %v512
        %v526 = vpack.c.b16 %v515, %v514
        %v527 = vpack.c.b16 %v517, %v516
        %v528 = vpack.c.b16 %v519, %v518
        %v529 = vpack.c.b16 %v521, %v520
        %538 = vmatprep.subr.bf16.mxu0 0
        %539 = vmatpush1.bf16.msra.mxu0 %v522
        %540 = vmatprep.subr.bf16.mxu0 0
        %541 = vmatpush1.bf16.msra.mxu0 %v523
        %542 = vmatprep.subr.bf16.mxu0 0
        %543 = vmatpush1.bf16.msra.mxu0 %v524
        %544 = vmatprep.subr.bf16.mxu0 0
        %545 = vmatpush1.bf16.msra.mxu0 %v525
        %546 = vmatprep.subr.bf16.mxu0 0
        %547 = vmatpush1.bf16.msra.mxu0 %v526
        %548 = vmatprep.subr.bf16.mxu0 0
        %549 = vmatpush1.bf16.msra.mxu0 %v527
        %550 = vmatprep.subr.bf16.mxu0 0
        %551 = vmatpush1.bf16.msra.mxu0 %v528
        %552 = vmatprep.subr.bf16.mxu0 0
        %553 = vmatpush1.bf16.msra.mxu0 %v529
        %554 = vmatprep.subr.bf16.mxu0 0
        %555 = vmatpush1.bf16.msra.mxu0 0
        %556 = vmatprep.subr.bf16.mxu0 0
        %557 = vmatpush1.bf16.msra.mxu0 0
        %558 = vmatprep.subr.bf16.mxu0 0
        %559 = vmatpush1.bf16.msra.mxu0 0
        %560 = vmatprep.subr.bf16.mxu0 0
        %561 = vmatpush1.bf16.msra.mxu0 0
        %562 = vmatprep.subr.bf16.mxu0 0
        %563 = vmatpush1.bf16.msra.mxu0 0
        %564 = vmatprep.subr.bf16.mxu0 0
        %565 = vmatpush1.bf16.msra.mxu0 0
        %566 = vmatprep.subr.bf16.mxu0 0
        %567 = vmatpush1.bf16.msra.mxu0 0
        %568 = vmatprep.subr.bf16.mxu0 0
        %569 = vmatpush1.bf16.msra.mxu0 0
        %570 = vmatprep.mubr.bf16.mxu0 0
        %571 = vmatmul.mubr.bf16.gmra.mrb[0].mxu0 %v401
        %v572 = vpop.f32.mrb[0].mxu0
        %v573 = vadd.f32 %v489, %v572
        %v574 = vpop.f32.mrb[0].mxu0
        %v575 = vpop.f32.mrb[0].mxu0
        %v576 = vadd.f32 %v489, %v575
        %v577 = vpop.f32.mrb[0].mxu0
        %578 = vmatprep.mubr.bf16.mxu0 0
        %579 = vmatmul.mubr.bf16.gmra.mrb[0].mxu0 %v402
        %v580 = vpop.f32.mrb[0].mxu0
        %v581 = vadd.f32 %v489, %v580
        %v582 = vpop.f32.mrb[0].mxu0
        %v583 = vpop.f32.mrb[0].mxu0
        %v584 = vadd.f32 %v489, %v583
        %v585 = vpop.f32.mrb[0].mxu0
        %586 = vmatprep.mubr.bf16.mxu0 0
        %587 = vmatmul.mubr.bf16.gmra.mrb[0].mxu0 %v403
        %v588 = vpop.f32.mrb[0].mxu0
        %v589 = vadd.f32 %v489, %v588
        %v590 = vpop.f32.mrb[0].mxu0
        %v591 = vpop.f32.mrb[0].mxu0
        %v592 = vadd.f32 %v489, %v591
        %v593 = vpop.f32.mrb[0].mxu0
        %594 = vmatprep.mubr.bf16.mxu0 0
        %595 = vmatmul.mubr.bf16.gmra.mrb[0].mxu0 %v404
        %v596 = vpop.f32.mrb[0].mxu0
        %v597 = vadd.f32 %v489, %v596
        %v598 = vpop.f32.mrb[0].mxu0
        %v599 = vpop.f32.mrb[0].mxu0
        %v600 = vadd.f32 %v489, %v599
        %v601 = vpop.f32.mrb[0].mxu0
        %602 = vmatprep.mubr.bf16.mxu0 0
        %603 = vmatmul.mubr.bf16.gmra.mrb[0].mxu0 %v405
        %v604 = vpop.f32.mrb[0].mxu0
        %v605 = vadd.f32 %v489, %v604
        %v606 = vpop.f32.mrb[0].mxu0
        %v607 = vpop.f32.mrb[0].mxu0
        %v608 = vadd.f32 %v489, %v607
        %v609 = vpop.f32.mrb[0].mxu0
        %610 = vmatprep.mubr.bf16.mxu0 0
        %611 = vmatmul.mubr.bf16.gmra.mrb[0].mxu0 %v406
        %v612 = vpop.f32.mrb[0].mxu0
        %v613 = vadd.f32 %v489, %v612
        %v614 = vpop.f32.mrb[0].mxu0
        %v615 = vpop.f32.mrb[0].mxu0
        %v616 = vadd.f32 %v489, %v615
        %v617 = vpop.f32.mrb[0].mxu0
        %618 = vmatprep.mubr.bf16.mxu0 0
        %619 = vmatmul.mubr.bf16.gmra.mrb[0].mxu0 %v407
        %v620 = vpop.f32.mrb[0].mxu0
        %v621 = vadd.f32 %v489, %v620
        %v622 = vpop.f32.mrb[0].mxu0
        %v623 = vpop.f32.mrb[0].mxu0
        %v624 = vadd.f32 %v489, %v623
        %v625 = vpop.f32.mrb[0].mxu0
        %626 = vmatprep.mubr.bf16.mxu0 0
        %627 = vmatmul.mubr.bf16.gmra.mrb[0].mxu0 %v408
        %v628 = vpop.f32.mrb[0].mxu0
        %v629 = vadd.f32 %v489, %v628
        %v630 = vpop.f32.mrb[0].mxu0
        %v631 = vpop.f32.mrb[0].mxu0
        %v632 = vadd.f32 %v489, %v631
        %v633 = vpop.f32.mrb[0].mxu0
        %634 = vdwg.mxu0
        %s635 = scalar_lea.vmem [#allocation14], 8
        %v636 = vld [vmem:[%s635] ss:$8 sm:$0x3]
        %v638 = vlaneseq
        %v639 = vshrl.u32 %v638, 7
        %v640 = vsub.s32 0, %v639
        %v641 = vrot.slane %v636, %v640
        %v642 = vlaneseq
        %v643 = vshrl.u32 %v642, 7
        %v644 = vsub.s32 1, %v643
        %v645 = vrot.slane %v636, %v644
        %v664 = vunpack.c.h.b16 %v457
        %v665 = vunpack.c.l.b16 %v458
        %v666 = vunpack.c.h.b16 %v459
        %v667 = vunpack.c.l.b16 %v460
        %v668 = vunpack.c.h.b16 %v461
        %v669 = vunpack.c.l.b16 %v462
        %v670 = vunpack.c.h.b16 %v463
        %v671 = vunpack.c.l.b16 %v464
        %v672 = vunpack.c.h.b16 %v465
        %v673 = vunpack.c.l.b16 %v466
        %v674 = vunpack.c.h.b16 %v467
        %v675 = vunpack.c.l.b16 %v468
        %v676 = vunpack.c.h.b16 %v469
        %v677 = vunpack.c.l.b16 %v470
        %v678 = vunpack.c.h.b16 %v471
        %v679 = vunpack.c.l.b16 %v472
        %v680 = vunpack.c.h.b16 %v473
        %v681 = vunpack.c.l.b16 %v474
        %v682 = vunpack.c.h.b16 %v475
        %v683 = vunpack.c.l.b16 %v476
        %v684 = vunpack.c.h.b16 %v477
        %v685 = vunpack.c.l.b16 %v478
        %v686 = vunpack.c.h.b16 %v479
        %v687 = vunpack.c.l.b16 %v480
        %v688 = vunpack.c.h.b16 %v481
        %v689 = vunpack.c.l.b16 %v482
        %v690 = vunpack.c.h.b16 %v483
        %v691 = vunpack.c.l.b16 %v484
        %v692 = vunpack.c.h.b16 %v485
        %v693 = vunpack.c.l.b16 %v486
        %v694 = vunpack.c.h.b16 %v487
        %v695 = vunpack.c.l.b16 %v488
        %v696 = vpack.c.b16 %v666, %v664
        %v697 = vpack.c.b16 %v667, %v665
        %v698 = vpack.c.b16 %v670, %v668
        %v699 = vpack.c.b16 %v671, %v669
        %v700 = vpack.c.b16 %v674, %v672
        %v701 = vpack.c.b16 %v675, %v673
        %v702 = vpack.c.b16 %v678, %v676
        %v703 = vpack.c.b16 %v679, %v677
        %v704 = vpack.c.b16 %v682, %v680
        %v705 = vpack.c.b16 %v683, %v681
        %v706 = vpack.c.b16 %v686, %v684
        %v707 = vpack.c.b16 %v687, %v685
        %v708 = vpack.c.b16 %v690, %v688
        %v709 = vpack.c.b16 %v691, %v689
        %v710 = vpack.c.b16 %v694, %v692
        %v711 = vpack.c.b16 %v695, %v693
        %728 = vmatprep.subr.bf16.mxu0 %v697
        %729 = vmatpush1.bf16.msra.mxu0 %v696
        %730 = vmatprep.subr.bf16.mxu0 %v699
        %731 = vmatpush1.bf16.msra.mxu0 %v698
        %732 = vmatprep.subr.bf16.mxu0 %v701
        %733 = vmatpush1.bf16.msra.mxu0 %v700
        %734 = vmatprep.subr.bf16.mxu0 %v703
        %735 = vmatpush1.bf16.msra.mxu0 %v702
        %736 = vmatprep.subr.bf16.mxu0 %v705
        %737 = vmatpush1.bf16.msra.mxu0 %v704
        %738 = vmatprep.subr.bf16.mxu0 %v707
        %739 = vmatpush1.bf16.msra.mxu0 %v706
        %740 = vmatprep.subr.bf16.mxu0 %v709
        %741 = vmatpush1.bf16.msra.mxu0 %v708
        %742 = vmatprep.subr.bf16.mxu0 %v711
        %743 = vmatpush1.bf16.msra.mxu0 %v710
        %744 = vmatprep.subr.bf16.mxu0 0
        %745 = vmatpush1.bf16.msra.mxu0 0
        %746 = vmatprep.subr.bf16.mxu0 0
        %747 = vmatpush1.bf16.msra.mxu0 0
        %748 = vmatprep.subr.bf16.mxu0 0
        %749 = vmatpush1.bf16.msra.mxu0 0
        %750 = vmatprep.subr.bf16.mxu0 0
        %751 = vmatpush1.bf16.msra.mxu0 0
        %752 = vmatprep.subr.bf16.mxu0 0
        %753 = vmatpush1.bf16.msra.mxu0 0
        %754 = vmatprep.subr.bf16.mxu0 0
        %755 = vmatpush1.bf16.msra.mxu0 0
        %756 = vmatprep.subr.bf16.mxu0 0
        %757 = vmatpush1.bf16.msra.mxu0 0
        %758 = vmatprep.subr.bf16.mxu0 0
        %759 = vmatpush1.bf16.msra.mxu0 0
        %760 = vmatprep.mubr.bf16.mxu0 0
        %761 = vmatmul.mubr.bf16.gmra.mrb[0].mxu0 %v441
        %v762 = vpop.f32.mrb[0].mxu0
        %v763 = vadd.f32 %v641, %v762
        %v764 = vpop.f32.mrb[0].mxu0
        %v765 = vadd.f32 %v645, %v764
        %v766 = vpop.f32.mrb[0].mxu0
        %v767 = vadd.f32 %v641, %v766
        %v768 = vpop.f32.mrb[0].mxu0
        %v769 = vadd.f32 %v645, %v768
        %770 = vmatprep.mubr.bf16.mxu0 0
        %771 = vmatmul.mubr.bf16.gmra.mrb[0].mxu0 %v442
        %v772 = vpop.f32.mrb[0].mxu0
        %v773 = vadd.f32 %v641, %v772
        %v774 = vpop.f32.mrb[0].mxu0
        %v775 = vadd.f32 %v645, %v774
        %v776 = vpop.f32.mrb[0].mxu0
        %v777 = vadd.f32 %v641, %v776
        %v778 = vpop.f32.mrb[0].mxu0
        %v779 = vadd.f32 %v645, %v778
        %780 = vmatprep.mubr.bf16.mxu0 0
        %781 = vmatmul.mubr.bf16.gmra.mrb[0].mxu0 %v443
        %v782 = vpop.f32.mrb[0].mxu0
        %v783 = vadd.f32 %v641, %v782
        %v784 = vpop.f32.mrb[0].mxu0
        %v785 = vadd.f32 %v645, %v784
        %v786 = vpop.f32.mrb[0].mxu0
        %v787 = vadd.f32 %v641, %v786
        %v788 = vpop.f32.mrb[0].mxu0
        %v789 = vadd.f32 %v645, %v788
        %790 = vmatprep.mubr.bf16.mxu0 0
        %791 = vmatmul.mubr.bf16.gmra.mrb[0].mxu0 %v444
        %v792 = vpop.f32.mrb[0].mxu0
        %v793 = vadd.f32 %v641, %v792
        %v794 = vpop.f32.mrb[0].mxu0
        %v795 = vadd.f32 %v645, %v794
        %v796 = vpop.f32.mrb[0].mxu0
        %v797 = vadd.f32 %v641, %v796
        %v798 = vpop.f32.mrb[0].mxu0
        %v799 = vadd.f32 %v645, %v798
        %800 = vmatprep.mubr.bf16.mxu0 0
        %801 = vmatmul.mubr.bf16.gmra.mrb[0].mxu0 %v445
        %v802 = vpop.f32.mrb[0].mxu0
        %v803 = vadd.f32 %v641, %v802
        %v804 = vpop.f32.mrb[0].mxu0
        %v805 = vadd.f32 %v645, %v804
        %v806 = vpop.f32.mrb[0].mxu0
        %v807 = vadd.f32 %v641, %v806
        %v808 = vpop.f32.mrb[0].mxu0
        %v809 = vadd.f32 %v645, %v808
        %810 = vmatprep.mubr.bf16.mxu0 0
        %811 = vmatmul.mubr.bf16.gmra.mrb[0].mxu0 %v446
        %v812 = vpop.f32.mrb[0].mxu0
        %v813 = vadd.f32 %v641, %v812
        %v814 = vpop.f32.mrb[0].mxu0
        %v815 = vadd.f32 %v645, %v814
        %v816 = vpop.f32.mrb[0].mxu0
        %v817 = vadd.f32 %v641, %v816
        %v818 = vpop.f32.mrb[0].mxu0
        %v819 = vadd.f32 %v645, %v818
        %820 = vmatprep.mubr.bf16.mxu0 0
        %821 = vmatmul.mubr.bf16.gmra.mrb[0].mxu0 %v447
        %v822 = vpop.f32.mrb[0].mxu0
        %v823 = vadd.f32 %v641, %v822
        %v824 = vpop.f32.mrb[0].mxu0
        %v825 = vadd.f32 %v645, %v824
        %v826 = vpop.f32.mrb[0].mxu0
        %v827 = vadd.f32 %v641, %v826
        %v828 = vpop.f32.mrb[0].mxu0
        %v829 = vadd.f32 %v645, %v828
        %830 = vmatprep.mubr.bf16.mxu0 0
        %831 = vmatmul.mubr.bf16.gmra.mrb[0].mxu0 %v448
        %v832 = vpop.f32.mrb[0].mxu0
        %v833 = vadd.f32 %v641, %v832
        %v834 = vpop.f32.mrb[0].mxu0
        %v835 = vadd.f32 %v645, %v834
        %v836 = vpop.f32.mrb[0].mxu0
        %v837 = vadd.f32 %v641, %v836
        %v838 = vpop.f32.mrb[0].mxu0
        %v839 = vadd.f32 %v645, %v838
        %840 = vmatprep.mubr.bf16.mxu0 0
        %841 = vmatmul.mubr.bf16.gmra.mrb[0].mxu0 %v449
        %v842 = vpop.f32.mrb[0].mxu0
        %v843 = vadd.f32 %v641, %v842
        %v844 = vpop.f32.mrb[0].mxu0
        %v845 = vadd.f32 %v645, %v844
        %v846 = vpop.f32.mrb[0].mxu0
        %v847 = vadd.f32 %v641, %v846
        %v848 = vpop.f32.mrb[0].mxu0
        %v849 = vadd.f32 %v645, %v848
        %850 = vmatprep.mubr.bf16.mxu0 0
        %851 = vmatmul.mubr.bf16.gmra.mrb[0].mxu0 %v450
        %v852 = vpop.f32.mrb[0].mxu0
        %v853 = vadd.f32 %v641, %v852
        %v854 = vpop.f32.mrb[0].mxu0
        %v855 = vadd.f32 %v645, %v854
        %v856 = vpop.f32.mrb[0].mxu0
        %v857 = vadd.f32 %v641, %v856
        %v858 = vpop.f32.mrb[0].mxu0
        %v859 = vadd.f32 %v645, %v858
        %860 = vmatprep.mubr.bf16.mxu0 0
        %861 = vmatmul.mubr.bf16.gmra.mrb[0].mxu0 %v451
        %v862 = vpop.f32.mrb[0].mxu0
        %v863 = vadd.f32 %v641, %v862
        %v864 = vpop.f32.mrb[0].mxu0
        %v865 = vadd.f32 %v645, %v864
        %v866 = vpop.f32.mrb[0].mxu0
        %v867 = vadd.f32 %v641, %v866
        %v868 = vpop.f32.mrb[0].mxu0
        %v869 = vadd.f32 %v645, %v868
        %870 = vmatprep.mubr.bf16.mxu0 0
        %871 = vmatmul.mubr.bf16.gmra.mrb[0].mxu0 %v452
        %v872 = vpop.f32.mrb[0].mxu0
        %v873 = vadd.f32 %v641, %v872
        %v874 = vpop.f32.mrb[0].mxu0
        %v875 = vadd.f32 %v645, %v874
        %v876 = vpop.f32.mrb[0].mxu0
        %v877 = vadd.f32 %v641, %v876
        %v878 = vpop.f32.mrb[0].mxu0
        %v879 = vadd.f32 %v645, %v878
        %880 = vmatprep.mubr.bf16.mxu0 0
        %881 = vmatmul.mubr.bf16.gmra.mrb[0].mxu0 %v453
        %v882 = vpop.f32.mrb[0].mxu0
        %v883 = vadd.f32 %v641, %v882
        %v884 = vpop.f32.mrb[0].mxu0
        %v885 = vadd.f32 %v645, %v884
        %v886 = vpop.f32.mrb[0].mxu0
        %v887 = vadd.f32 %v641, %v886
        %v888 = vpop.f32.mrb[0].mxu0
        %v889 = vadd.f32 %v645, %v888
        %890 = vmatprep.mubr.bf16.mxu0 0
        %891 = vmatmul.mubr.bf16.gmra.mrb[0].mxu0 %v454
        %v892 = vpop.f32.mrb[0].mxu0
        %v893 = vadd.f32 %v641, %v892
        %v894 = vpop.f32.mrb[0].mxu0
        %v895 = vadd.f32 %v645, %v894
        %v896 = vpop.f32.mrb[0].mxu0
        %v897 = vadd.f32 %v641, %v896
        %v898 = vpop.f32.mrb[0].mxu0
        %v899 = vadd.f32 %v645, %v898
        %900 = vmatprep.mubr.bf16.mxu0 0
        %901 = vmatmul.mubr.bf16.gmra.mrb[0].mxu0 %v455
        %v902 = vpop.f32.mrb[0].mxu0
        %v903 = vadd.f32 %v641, %v902
        %v904 = vpop.f32.mrb[0].mxu0
        %v905 = vadd.f32 %v645, %v904
        %v906 = vpop.f32.mrb[0].mxu0
        %v907 = vadd.f32 %v641, %v906
        %v908 = vpop.f32.mrb[0].mxu0
        %v909 = vadd.f32 %v645, %v908
        %910 = vmatprep.mubr.bf16.mxu0 0
        %911 = vmatmul.mubr.bf16.gmra.mrb[0].mxu0 %v456
        %v912 = vpop.f32.mrb[0].mxu0
        %v913 = vadd.f32 %v641, %v912
        %v914 = vpop.f32.mrb[0].mxu0
        %v915 = vadd.f32 %v645, %v914
        %v916 = vpop.f32.mrb[0].mxu0
        %v917 = vadd.f32 %v641, %v916
        %v918 = vpop.f32.mrb[0].mxu0
        %v919 = vadd.f32 %v645, %v918
        %920 = vdwg.mxu0
        %v921 = vpack.c.bf16 %v576, %v573
        %v922 = vpack.c.bf16 %v584, %v581
        %v923 = vpack.c.bf16 %v592, %v589
        %v924 = vpack.c.bf16 %v600, %v597
        %v925 = vpack.c.bf16 %v608, %v605
        %v926 = vpack.c.bf16 %v616, %v613
        %v927 = vpack.c.bf16 %v624, %v621
        %v928 = vpack.c.bf16 %v632, %v629
        %v929 = vpack.c.bf16 %v767, %v763
        %v930 = vpack.c.bf16 %v777, %v773
        %v931 = vpack.c.bf16 %v787, %v783
        %v932 = vpack.c.bf16 %v797, %v793
        %v933 = vpack.c.bf16 %v807, %v803
        %v934 = vpack.c.bf16 %v817, %v813
        %v935 = vpack.c.bf16 %v827, %v823
        %v936 = vpack.c.bf16 %v837, %v833
        %v937 = vpack.c.bf16 %v847, %v843
        %v938 = vpack.c.bf16 %v857, %v853
        %v939 = vpack.c.bf16 %v867, %v863
        %v940 = vpack.c.bf16 %v877, %v873
        %v941 = vpack.c.bf16 %v887, %v883
        %v942 = vpack.c.bf16 %v897, %v893
        %v943 = vpack.c.bf16 %v907, %v903
        %v944 = vpack.c.bf16 %v917, %v913
        %v945 = vpack.c.bf16 %v769, %v765
        %v946 = vpack.c.bf16 %v779, %v775
        %v947 = vpack.c.bf16 %v789, %v785
        %v948 = vpack.c.bf16 %v799, %v795
        %v949 = vpack.c.bf16 %v809, %v805
        %v950 = vpack.c.bf16 %v819, %v815
        %v951 = vpack.c.bf16 %v829, %v825
        %v952 = vpack.c.bf16 %v839, %v835
        %v953 = vpack.c.bf16 %v849, %v845
        %v954 = vpack.c.bf16 %v859, %v855
        %v955 = vpack.c.bf16 %v869, %v865
        %v956 = vpack.c.bf16 %v879, %v875
        %v957 = vpack.c.bf16 %v889, %v885
        %v958 = vpack.c.bf16 %v899, %v895
        %v959 = vpack.c.bf16 %v909, %v905
        %v960 = vpack.c.bf16 %v919, %v915
        %v961 = vlaneseq
        %v962 = vand.u32 %v961, 127
        %v963 = vadd.s32 %v962, 128
        %vm964 = vcmp.lt.s32.totalorder %v962, 200
        %vm965 = vcmp.lt.s32.totalorder %v963, 200
        %v966 = vsel %vm964, 0.0, -1e+30
        %v967 = vsel %vm965, 0.0, -1e+30
        %vm968 = vcmask 130048
        %v970 = vsel %vm968, %v921, 0
        %v973 = vsel %vm968, %v922, 0
        %v976 = vsel %vm968, %v923, 0
        %v979 = vsel %vm968, %v924, 0
        %v982 = vsel %vm968, %v925, 0
        %v985 = vsel %vm968, %v926, 0
        %v988 = vsel %vm968, %v927, 0
        %v991 = vsel %vm968, %v928, 0
        %v994 = vsel %vm968, %v929, 0
        %v997 = vsel %vm968, %v930, 0
        %v1000 = vsel %vm968, %v931, 0
        %v1003 = vsel %vm968, %v932, 0
        %v1006 = vsel %vm968, %v933, 0
        %v1009 = vsel %vm968, %v934, 0
        %v1012 = vsel %vm968, %v935, 0
        %v1015 = vsel %vm968, %v936, 0
        %v1018 = vsel %vm968, %v937, 0
        %v1021 = vsel %vm968, %v938, 0
        %v1024 = vsel %vm968, %v939, 0
        %v1027 = vsel %vm968, %v940, 0
        %v1030 = vsel %vm968, %v941, 0
        %v1033 = vsel %vm968, %v942, 0
        %v1036 = vsel %vm968, %v943, 0
        %v1039 = vsel %vm968, %v944, 0
        %1041 = vmatprep.subr.bf16.mxu0 0
        %1042 = vmatpush1.bf16.xpose.msra.mxu0 %v994
        %1043 = vmatprep.subr.bf16.mxu0 0
        %1044 = vmatpush1.bf16.xpose.msra.mxu0 %v997
        %1045 = vmatprep.subr.bf16.mxu0 0
        %1046 = vmatpush1.bf16.xpose.msra.mxu0 %v1000
        %1047 = vmatprep.subr.bf16.mxu0 0
        %1048 = vmatpush1.bf16.xpose.msra.mxu0 %v1003
        %1049 = vmatprep.subr.bf16.mxu0 0
        %1050 = vmatpush1.bf16.xpose.msra.mxu0 %v1006
        %1051 = vmatprep.subr.bf16.mxu0 0
        %1052 = vmatpush1.bf16.xpose.msra.mxu0 %v1009
        %1053 = vmatprep.subr.bf16.mxu0 0
        %1054 = vmatpush1.bf16.xpose.msra.mxu0 %v1012
        %1055 = vmatprep.subr.bf16.mxu0 0
        %1056 = vmatpush1.bf16.xpose.msra.mxu0 %v1015
        %1057 = vmatprep.subr.bf16.mxu0 0
        %1058 = vmatpush1.bf16.xpose.msra.mxu0 %v1018
        %1059 = vmatprep.subr.bf16.mxu0 0
        %1060 = vmatpush1.bf16.xpose.msra.mxu0 %v1021
        %1061 = vmatprep.subr.bf16.mxu0 0
        %1062 = vmatpush1.bf16.xpose.msra.mxu0 %v1024
        %1063 = vmatprep.subr.bf16.mxu0 0
        %1064 = vmatpush1.bf16.xpose.msra.mxu0 %v1027
        %1065 = vmatprep.subr.bf16.mxu0 0
        %1066 = vmatpush1.bf16.xpose.msra.mxu0 %v1030
        %1067 = vmatprep.subr.bf16.mxu0 0
        %1068 = vmatpush1.bf16.xpose.msra.mxu0 %v1033
        %1069 = vmatprep.subr.bf16.mxu0 0
        %1070 = vmatpush1.bf16.xpose.msra.mxu0 %v1036
        %1071 = vmatprep.subr.bf16.mxu0 0
        %1072 = vmatpush1.bf16.xpose.msra.mxu0 %v1039
        %1073 = vmatprep.mubr.bf16.mxu0 0
        %1074 = vmatmul.mubr.bf16.gmra.mrb[0].mxu0 %v970
        %v1075 = vpop.f32.mrb[0].mxu0
        %v1076 = vadd.f32 %v966, %v1075
        %v1077 = vpop.f32.mrb[0].mxu0
        %v1078 = vadd.f32 %v967, %v1077
        %v1079 = vpop.f32.mrb[0].mxu0
        %v1080 = vadd.f32 %v966, %v1079
        %v1081 = vpop.f32.mrb[0].mxu0
        %v1082 = vadd.f32 %v967, %v1081
        %1083 = vmatprep.mubr.bf16.mxu0 0
        %1084 = vmatmul.mubr.bf16.gmra.mrb[0].mxu0 %v973
        %v1085 = vpop.f32.mrb[0].mxu0
        %v1086 = vadd.f32 %v966, %v1085
        %v1087 = vpop.f32.mrb[0].mxu0
        %v1088 = vadd.f32 %v967, %v1087
        %v1089 = vpop.f32.mrb[0].mxu0
        %v1090 = vadd.f32 %v966, %v1089
        %v1091 = vpop.f32.mrb[0].mxu0
        %v1092 = vadd.f32 %v967, %v1091
        %1093 = vmatprep.mubr.bf16.mxu0 0
        %1094 = vmatmul.mubr.bf16.gmra.mrb[0].mxu0 %v976
        %v1095 = vpop.f32.mrb[0].mxu0
        %v1096 = vadd.f32 %v966, %v1095
        %v1097 = vpop.f32.mrb[0].mxu0
        %v1098 = vadd.f32 %v967, %v1097
        %v1099 = vpop.f32.mrb[0].mxu0
        %v1100 = vadd.f32 %v966, %v1099
        %v1101 = vpop.f32.mrb[0].mxu0
        %v1102 = vadd.f32 %v967, %v1101
        %1103 = vmatprep.mubr.bf16.mxu0 0
        %1104 = vmatmul.mubr.bf16.gmra.mrb[0].mxu0 %v979
        %v1105 = vpop.f32.mrb[0].mxu0
        %v1106 = vadd.f32 %v966, %v1105
        %v1107 = vpop.f32.mrb[0].mxu0
        %v1108 = vadd.f32 %v967, %v1107
        %v1109 = vpop.f32.mrb[0].mxu0
        %v1110 = vadd.f32 %v966, %v1109
        %v1111 = vpop.f32.mrb[0].mxu0
        %v1112 = vadd.f32 %v967, %v1111
        %1113 = vmatprep.mubr.bf16.mxu0 0
        %1114 = vmatmul.mubr.bf16.gmra.mrb[0].mxu0 %v982
        %v1115 = vpop.f32.mrb[0].mxu0
        %v1116 = vadd.f32 %v966, %v1115
        %v1117 = vpop.f32.mrb[0].mxu0
        %v1118 = vadd.f32 %v967, %v1117
        %v1119 = vpop.f32.mrb[0].mxu0
        %v1120 = vadd.f32 %v966, %v1119
        %v1121 = vpop.f32.mrb[0].mxu0
        %v1122 = vadd.f32 %v967, %v1121
        %1123 = vmatprep.mubr.bf16.mxu0 0
        %1124 = vmatmul.mubr.bf16.gmra.mrb[0].mxu0 %v985
        %v1125 = vpop.f32.mrb[0].mxu0
        %v1126 = vadd.f32 %v966, %v1125
        %v1127 = vpop.f32.mrb[0].mxu0
        %v1128 = vadd.f32 %v967, %v1127
        %v1129 = vpop.f32.mrb[0].mxu0
        %v1130 = vadd.f32 %v966, %v1129
        %v1131 = vpop.f32.mrb[0].mxu0
        %v1132 = vadd.f32 %v967, %v1131
        %1133 = vmatprep.mubr.bf16.mxu0 0
        %1134 = vmatmul.mubr.bf16.gmra.mrb[0].mxu0 %v988
        %v1135 = vpop.f32.mrb[0].mxu0
        %v1136 = vadd.f32 %v966, %v1135
        %v1137 = vpop.f32.mrb[0].mxu0
        %v1138 = vadd.f32 %v967, %v1137
        %v1139 = vpop.f32.mrb[0].mxu0
        %v1140 = vadd.f32 %v966, %v1139
        %v1141 = vpop.f32.mrb[0].mxu0
        %v1142 = vadd.f32 %v967, %v1141
        %1143 = vmatprep.mubr.bf16.mxu0 0
        %1144 = vmatmul.mubr.bf16.gmra.mrb[0].mxu0 %v991
        %v1145 = vpop.f32.mrb[0].mxu0
        %v1146 = vadd.f32 %v966, %v1145
        %v1147 = vpop.f32.mrb[0].mxu0
        %v1148 = vadd.f32 %v967, %v1147
        %v1149 = vpop.f32.mrb[0].mxu0
        %v1150 = vadd.f32 %v966, %v1149
        %v1151 = vpop.f32.mrb[0].mxu0
        %v1152 = vadd.f32 %v967, %v1151
        %1153 = vdwg.mxu0
        %v1154 = vmax.f32 %v1076, %v1078
        %1155 = vmax.xlane.f32.xlu0 %v1154
        %v1156 = vpop.xlane.xlu0 %1155
        %v1157 = vmax.f32 %v1080, %v1082
        %1158 = vmax.xlane.f32.xlu0 %v1157
        %v1159 = vpop.xlane.xlu0 %1158
        %v1160 = vmax.f32 %v1086, %v1088
        %1161 = vmax.xlane.f32.xlu0 %v1160
        %v1162 = vpop.xlane.xlu0 %1161
        %v1163 = vmax.f32 %v1090, %v1092
        %1164 = vmax.xlane.f32.xlu0 %v1163
        %v1165 = vpop.xlane.xlu0 %1164
        %v1166 = vmax.f32 %v1096, %v1098
        %1167 = vmax.xlane.f32.xlu0 %v1166
        %v1168 = vpop.xlane.xlu0 %1167
        %v1169 = vmax.f32 %v1100, %v1102
        %1170 = vmax.xlane.f32.xlu0 %v1169
        %v1171 = vpop.xlane.xlu0 %1170
        %v1172 = vmax.f32 %v1106, %v1108
        %1173 = vmax.xlane.f32.xlu0 %v1172
        %v1174 = vpop.xlane.xlu0 %1173
        %v1175 = vmax.f32 %v1110, %v1112
        %1176 = vmax.xlane.f32.xlu0 %v1175
        %v1177 = vpop.xlane.xlu0 %1176
        %v1178 = vmax.f32 %v1116, %v1118
        %1179 = vmax.xlane.f32.xlu0 %v1178
        %v1180 = vpop.xlane.xlu0 %1179
        %v1181 = vmax.f32 %v1120, %v1122
        %1182 = vmax.xlane.f32.xlu0 %v1181
        %v1183 = vpop.xlane.xlu0 %1182
        %v1184 = vmax.f32 %v1126, %v1128
        %1185 = vmax.xlane.f32.xlu0 %v1184
        %v1186 = vpop.xlane.xlu0 %1185
        %v1187 = vmax.f32 %v1130, %v1132
        %1188 = vmax.xlane.f32.xlu0 %v1187
        %v1189 = vpop.xlane.xlu0 %1188
        %v1190 = vmax.f32 %v1136, %v1138
        %1191 = vmax.xlane.f32.xlu0 %v1190
        %v1192 = vpop.xlane.xlu0 %1191
        %v1193 = vmax.f32 %v1140, %v1142
        %1194 = vmax.xlane.f32.xlu0 %v1193
        %v1195 = vpop.xlane.xlu0 %1194
        %v1196 = vmax.f32 %v1146, %v1148
        %1197 = vmax.xlane.f32.xlu0 %v1196
        %v1198 = vpop.xlane.xlu0 %1197
        %v1199 = vmax.f32 %v1150, %v1152
        %1200 = vmax.xlane.f32.xlu0 %v1199
        %v1201 = vpop.xlane.xlu0 %1200
        %v1202 = vsub.f32 %v1076, %v1156
        %v1203 = vsub.f32 %v1078, %v1156
        %v1204 = vsub.f32 %v1080, %v1159
        %v1205 = vsub.f32 %v1082, %v1159
        %v1206 = vsub.f32 %v1086, %v1162
        %v1207 = vsub.f32 %v1088, %v1162
        %v1208 = vsub.f32 %v1090, %v1165
        %v1209 = vsub.f32 %v1092, %v1165
        %v1210 = vsub.f32 %v1096, %v1168
        %v1211 = vsub.f32 %v1098, %v1168
        %v1212 = vsub.f32 %v1100, %v1171
        %v1213 = vsub.f32 %v1102, %v1171
        %v1214 = vsub.f32 %v1106, %v1174
        %v1215 = vsub.f32 %v1108, %v1174
        %v1216 = vsub.f32 %v1110, %v1177
        %v1217 = vsub.f32 %v1112, %v1177
        %v1218 = vsub.f32 %v1116, %v1180
        %v1219 = vsub.f32 %v1118, %v1180
        %v1220 = vsub.f32 %v1120, %v1183
        %v1221 = vsub.f32 %v1122, %v1183
        %v1222 = vsub.f32 %v1126, %v1186
        %v1223 = vsub.f32 %v1128, %v1186
        %v1224 = vsub.f32 %v1130, %v1189
        %v1225 = vsub.f32 %v1132, %v1189
        %v1226 = vsub.f32 %v1136, %v1192
        %v1227 = vsub.f32 %v1138, %v1192
        %v1228 = vsub.f32 %v1140, %v1195
        %v1229 = vsub.f32 %v1142, %v1195
        %v1230 = vsub.f32 %v1146, %v1198
        %v1231 = vsub.f32 %v1148, %v1198
        %v1232 = vsub.f32 %v1150, %v1201
        %v1233 = vsub.f32 %v1152, %v1201
        %v1234 = vmul.f32 %v1202, 1.442695
        %v1235 = vpow.pop %v1234
        %v1236 = vmul.f32 %v1203, 1.442695
        %v1237 = vpow.pop %v1236
        %v1238 = vmul.f32 %v1204, 1.442695
        %v1239 = vpow.pop %v1238
        %v1240 = vmul.f32 %v1205, 1.442695
        %v1241 = vpow.pop %v1240
        %v1242 = vmul.f32 %v1206, 1.442695
        %v1243 = vpow.pop %v1242
        %v1244 = vmul.f32 %v1207, 1.442695
        %v1245 = vpow.pop %v1244
        %v1246 = vmul.f32 %v1208, 1.442695
        %v1247 = vpow.pop %v1246
        %v1248 = vmul.f32 %v1209, 1.442695
        %v1249 = vpow.pop %v1248
        %v1250 = vmul.f32 %v1210, 1.442695
        %v1251 = vpow.pop %v1250
        %v1252 = vmul.f32 %v1211, 1.442695
        %v1253 = vpow.pop %v1252
        %v1254 = vmul.f32 %v1212, 1.442695
        %v1255 = vpow.pop %v1254
        %v1256 = vmul.f32 %v1213, 1.442695
        %v1257 = vpow.pop %v1256
        %v1258 = vmul.f32 %v1214, 1.442695
        %v1259 = vpow.pop %v1258
        %v1260 = vmul.f32 %v1215, 1.442695
        %v1261 = vpow.pop %v1260
        %v1262 = vmul.f32 %v1216, 1.442695
        %v1263 = vpow.pop %v1262
        %v1264 = vmul.f32 %v1217, 1.442695
        %v1265 = vpow.pop %v1264
        %v1266 = vmul.f32 %v1218, 1.442695
        %v1267 = vpow.pop %v1266
        %v1268 = vmul.f32 %v1219, 1.442695
        %v1269 = vpow.pop %v1268
        %v1270 = vmul.f32 %v1220, 1.442695
        %v1271 = vpow.pop %v1270
        %v1272 = vmul.f32 %v1221, 1.442695
        %v1273 = vpow.pop %v1272
        %v1274 = vmul.f32 %v1222, 1.442695
        %v1275 = vpow.pop %v1274
        %v1276 = vmul.f32 %v1223, 1.442695
        %v1277 = vpow.pop %v1276
        %v1278 = vmul.f32 %v1224, 1.442695
        %v1279 = vpow.pop %v1278
        %v1280 = vmul.f32 %v1225, 1.442695
        %v1281 = vpow.pop %v1280
        %v1282 = vmul.f32 %v1226, 1.442695
        %v1283 = vpow.pop %v1282
        %v1284 = vmul.f32 %v1227, 1.442695
        %v1285 = vpow.pop %v1284
        %v1286 = vmul.f32 %v1228, 1.442695
        %v1287 = vpow.pop %v1286
        %v1288 = vmul.f32 %v1229, 1.442695
        %v1289 = vpow.pop %v1288
        %v1290 = vmul.f32 %v1230, 1.442695
        %v1291 = vpow.pop %v1290
        %v1292 = vmul.f32 %v1231, 1.442695
        %v1293 = vpow.pop %v1292
        %v1294 = vmul.f32 %v1232, 1.442695
        %v1295 = vpow.pop %v1294
        %v1296 = vmul.f32 %v1233, 1.442695
        %v1297 = vpow.pop %v1296
        %v1298 = vadd.f32 %v1235, %v1237
        %1299 = vadd.xlane.f32.xlu0 %v1298
        %v1300 = vpop.xlane.xlu0 %1299
        %v1301 = vadd.f32 %v1239, %v1241
        %1302 = vadd.xlane.f32.xlu0 %v1301
        %v1303 = vpop.xlane.xlu0 %1302
        %v1304 = vadd.f32 %v1243, %v1245
        %1305 = vadd.xlane.f32.xlu0 %v1304
        %v1306 = vpop.xlane.xlu0 %1305
        %v1307 = vadd.f32 %v1247, %v1249
        %1308 = vadd.xlane.f32.xlu0 %v1307
        %v1309 = vpop.xlane.xlu0 %1308
        %v1310 = vadd.f32 %v1251, %v1253
        %1311 = vadd.xlane.f32.xlu0 %v1310
        %v1312 = vpop.xlane.xlu0 %1311
        %v1313 = vadd.f32 %v1255, %v1257
        %1314 = vadd.xlane.f32.xlu0 %v1313
        %v1315 = vpop.xlane.xlu0 %1314
        %v1316 = vadd.f32 %v1259, %v1261
        %1317 = vadd.xlane.f32.xlu0 %v1316
        %v1318 = vpop.xlane.xlu0 %1317
        %v1319 = vadd.f32 %v1263, %v1265
        %1320 = vadd.xlane.f32.xlu0 %v1319
        %v1321 = vpop.xlane.xlu0 %1320
        %v1322 = vadd.f32 %v1267, %v1269
        %1323 = vadd.xlane.f32.xlu0 %v1322
        %v1324 = vpop.xlane.xlu0 %1323
        %v1325 = vadd.f32 %v1271, %v1273
        %1326 = vadd.xlane.f32.xlu0 %v1325
        %v1327 = vpop.xlane.xlu0 %1326
        %v1328 = vadd.f32 %v1275, %v1277
        %1329 = vadd.xlane.f32.xlu0 %v1328
        %v1330 = vpop.xlane.xlu0 %1329
        %v1331 = vadd.f32 %v1279, %v1281
        %1332 = vadd.xlane.f32.xlu0 %v1331
        %v1333 = vpop.xlane.xlu0 %1332
        %v1334 = vadd.f32 %v1283, %v1285
        %1335 = vadd.xlane.f32.xlu0 %v1334
        %v1336 = vpop.xlane.xlu0 %1335
        %v1337 = vadd.f32 %v1287, %v1289
        %1338 = vadd.xlane.f32.xlu0 %v1337
        %v1339 = vpop.xlane.xlu0 %1338
        %v1340 = vadd.f32 %v1291, %v1293
        %1341 = vadd.xlane.f32.xlu0 %v1340
        %v1342 = vpop.xlane.xlu0 %1341
        %v1343 = vadd.f32 %v1295, %v1297
        %1344 = vadd.xlane.f32.xlu0 %v1343
        %v1345 = vpop.xlane.xlu0 %1344
        %v1346 = vrcp.pop %v1300
        %v1347 = vmul.f32 %v1235, %v1346
        %v1348 = vmul.f32 %v1237, %v1346
        %v1349 = vrcp.pop %v1303
        %v1350 = vmul.f32 %v1239, %v1349
        %v1351 = vmul.f32 %v1241, %v1349
        %v1352 = vrcp.pop %v1306
        %v1353 = vmul.f32 %v1243, %v1352
        %v1354 = vmul.f32 %v1245, %v1352
        %v1355 = vrcp.pop %v1309
        %v1356 = vmul.f32 %v1247, %v1355
        %v1357 = vmul.f32 %v1249, %v1355
        %v1358 = vrcp.pop %v1312
        %v1359 = vmul.f32 %v1251, %v1358
        %v1360 = vmul.f32 %v1253, %v1358
        %v1361 = vrcp.pop %v1315
        %v1362 = vmul.f32 %v1255, %v1361
        %v1363 = vmul.f32 %v1257, %v1361
        %v1364 = vrcp.pop %v1318
        %v1365 = vmul.f32 %v1259, %v1364
        %v1366 = vmul.f32 %v1261, %v1364
        %v1367 = vrcp.pop %v1321
        %v1368 = vmul.f32 %v1263, %v1367
        %v1369 = vmul.f32 %v1265, %v1367
        %v1370 = vrcp.pop %v1324
        %v1371 = vmul.f32 %v1267, %v1370
        %v1372 = vmul.f32 %v1269, %v1370
        %v1373 = vrcp.pop %v1327
        %v1374 = vmul.f32 %v1271, %v1373
        %v1375 = vmul.f32 %v1273, %v1373
        %v1376 = vrcp.pop %v1330
        %v1377 = vmul.f32 %v1275, %v1376
        %v1378 = vmul.f32 %v1277, %v1376
        %v1379 = vrcp.pop %v1333
        %v1380 = vmul.f32 %v1279, %v1379
        %v1381 = vmul.f32 %v1281, %v1379
        %v1382 = vrcp.pop %v1336
        %v1383 = vmul.f32 %v1283, %v1382
        %v1384 = vmul.f32 %v1285, %v1382
        %v1385 = vrcp.pop %v1339
        %v1386 = vmul.f32 %v1287, %v1385
        %v1387 = vmul.f32 %v1289, %v1385
        %v1388 = vrcp.pop %v1342
        %v1389 = vmul.f32 %v1291, %v1388
        %v1390 = vmul.f32 %v1293, %v1388
        %v1391 = vrcp.pop %v1345
        %v1392 = vmul.f32 %v1295, %v1391
        %v1393 = vmul.f32 %v1297, %v1391
        %v1394 = vpack.c.bf16 %v1350, %v1347
        %v1395 = vpack.c.bf16 %v1351, %v1348
        %v1396 = vpack.c.bf16 %v1356, %v1353
        %v1397 = vpack.c.bf16 %v1357, %v1354
        %v1398 = vpack.c.bf16 %v1362, %v1359
        %v1399 = vpack.c.bf16 %v1363, %v1360
        %v1400 = vpack.c.bf16 %v1368, %v1365
        %v1401 = vpack.c.bf16 %v1369, %v1366
        %v1402 = vpack.c.bf16 %v1374, %v1371
        %v1403 = vpack.c.bf16 %v1375, %v1372
        %v1404 = vpack.c.bf16 %v1380, %v1377
        %v1405 = vpack.c.bf16 %v1381, %v1378
        %v1406 = vpack.c.bf16 %v1386, %v1383
        %v1407 = vpack.c.bf16 %v1387, %v1384
        %v1408 = vpack.c.bf16 %v1392, %v1389
        %v1409 = vpack.c.bf16 %v1393, %v1390
        %1410 = vmatprep.subr.bf16.mxu0 0
        %1411 = vmatpush1.bf16.msra.mxu0 %v945
        %1412 = vmatprep.subr.bf16.mxu0 0
        %1413 = vmatpush1.bf16.msra.mxu0 %v946
        %1414 = vmatprep.subr.bf16.mxu0 0
        %1415 = vmatpush1.bf16.msra.mxu0 %v947
        %1416 = vmatprep.subr.bf16.mxu0 0
        %1417 = vmatpush1.bf16.msra.mxu0 %v948
        %1418 = vmatprep.subr.bf16.mxu0 0
        %1419 = vmatpush1.bf16.msra.mxu0 %v949
        %1420 = vmatprep.subr.bf16.mxu0 0
        %1421 = vmatpush1.bf16.msra.mxu0 %v950
        %1422 = vmatprep.subr.bf16.mxu0 0
        %1423 = vmatpush1.bf16.msra.mxu0 %v951
        %1424 = vmatprep.subr.bf16.mxu0 0
        %1425 = vmatpush1.bf16.msra.mxu0 %v952
        %1426 = vmatprep.subr.bf16.mxu0 0
        %1427 = vmatpush1.bf16.msra.mxu0 %v953
        %1428 = vmatprep.subr.bf16.mxu0 0
        %1429 = vmatpush1.bf16.msra.mxu0 %v954
        %1430 = vmatprep.subr.bf16.mxu0 0
        %1431 = vmatpush1.bf16.msra.mxu0 %v955
        %1432 = vmatprep.subr.bf16.mxu0 0
        %1433 = vmatpush1.bf16.msra.mxu0 %v956
        %1434 = vmatprep.subr.bf16.mxu0 0
        %1435 = vmatpush1.bf16.msra.mxu0 %v957
        %1436 = vmatprep.subr.bf16.mxu0 0
        %1437 = vmatpush1.bf16.msra.mxu0 %v958
        %1438 = vmatprep.subr.bf16.mxu0 0
        %1439 = vmatpush1.bf16.msra.mxu0 %v959
        %1440 = vmatprep.subr.bf16.mxu0 0
        %1441 = vmatpush1.bf16.msra.mxu0 %v960
        %1442 = vmatprep.mubr.bf16.mxu0 %v1395
        %1443 = vmatmul.mubr.bf16.gmra.mrb[0].mxu0 %v1394
        %v1444 = vpop.f32.mrb[0].mxu0
        %v1445 = vadd.f32 0.0, %v1444
        %v1446 = vpop.f32.mrb[0].mxu0
        %v1447 = vpop.f32.mrb[0].mxu0
        %v1448 = vadd.f32 0.0, %v1447
        %v1449 = vpop.f32.mrb[0].mxu0
        %1450 = vmatprep.mubr.bf16.mxu0 %v1397
        %1451 = vmatmul.mubr.bf16.gmra.mrb[0].mxu0 %v1396
        %v1452 = vpop.f32.mrb[0].mxu0
        %v1453 = vadd.f32 0.0, %v1452
        %v1454 = vpop.f32.mrb[0].mxu0
        %v1455 = vpop.f32.mrb[0].mxu0
        %v1456 = vadd.f32 0.0, %v1455
        %v1457 = vpop.f32.mrb[0].mxu0
        %1458 = vmatprep.mubr.bf16.mxu0 %v1399
        %1459 = vmatmul.mubr.bf16.gmra.mrb[0].mxu0 %v1398
        %v1460 = vpop.f32.mrb[0].mxu0
        %v1461 = vadd.f32 0.0, %v1460
        %v1462 = vpop.f32.mrb[0].mxu0
        %v1463 = vpop.f32.mrb[0].mxu0
        %v1464 = vadd.f32 0.0, %v1463
        %v1465 = vpop.f32.mrb[0].mxu0
        %1466 = vmatprep.mubr.bf16.mxu0 %v1401
        %1467 = vmatmul.mubr.bf16.gmra.mrb[0].mxu0 %v1400
        %v1468 = vpop.f32.mrb[0].mxu0
        %v1469 = vadd.f32 0.0, %v1468
        %v1470 = vpop.f32.mrb[0].mxu0
        %v1471 = vpop.f32.mrb[0].mxu0
        %v1472 = vadd.f32 0.0, %v1471
        %v1473 = vpop.f32.mrb[0].mxu0
        %1474 = vmatprep.mubr.bf16.mxu0 %v1403
        %1475 = vmatmul.mubr.bf16.gmra.mrb[0].mxu0 %v1402
        %v1476 = vpop.f32.mrb[0].mxu0
        %v1477 = vadd.f32 0.0, %v1476
        %v1478 = vpop.f32.mrb[0].mxu0
        %v1479 = vpop.f32.mrb[0].mxu0
        %v1480 = vadd.f32 0.0, %v1479
        %v1481 = vpop.f32.mrb[0].mxu0
        %1482 = vmatprep.mubr.bf16.mxu0 %v1405
        %1483 = vmatmul.mubr.bf16.gmra.mrb[0].mxu0 %v1404
        %v1484 = vpop.f32.mrb[0].mxu0
        %v1485 = vadd.f32 0.0, %v1484
        %v1486 = vpop.f32.mrb[0].mxu0
        %v1487 = vpop.f32.mrb[0].mxu0
        %v1488 = vadd.f32 0.0, %v1487
        %v1489 = vpop.f32.mrb[0].mxu0
        %1490 = vmatprep.mubr.bf16.mxu0 %v1407
        %1491 = vmatmul.mubr.bf16.gmra.mrb[0].mxu0 %v1406
        %v1492 = vpop.f32.mrb[0].mxu0
        %v1493 = vadd.f32 0.0, %v1492
        %v1494 = vpop.f32.mrb[0].mxu0
        %v1495 = vpop.f32.mrb[0].mxu0
        %v1496 = vadd.f32 0.0, %v1495
        %v1497 = vpop.f32.mrb[0].mxu0
        %1498 = vmatprep.mubr.bf16.mxu0 %v1409
        %1499 = vmatmul.mubr.bf16.gmra.mrb[0].mxu0 %v1408
        %v1500 = vpop.f32.mrb[0].mxu0
        %v1501 = vadd.f32 0.0, %v1500
        %v1502 = vpop.f32.mrb[0].mxu0
        %v1503 = vpop.f32.mrb[0].mxu0
        %v1504 = vadd.f32 0.0, %v1503
        %v1505 = vpop.f32.mrb[0].mxu0
        %1506 = vdwg.mxu0
        %1507 = vst.msk [vmem:[#allocation2] sm:$0xff] %vm968, %v1445
        %1508 = vst.msk [vmem:[#allocation2 + $0x8] sm:$0xff] %vm968, %v1448
        %1509 = vst.msk [vmem:[#allocation2 + $0x10] sm:$0xff] %vm968, %v1453
        %1510 = vst.msk [vmem:[#allocation2 + $0x18] sm:$0xff] %vm968, %v1456
        %1511 = vst.msk [vmem:[#allocation2 + $0x20] sm:$0xff] %vm968, %v1461
        %1512 = vst.msk [vmem:[#allocation2 + $0x28] sm:$0xff] %vm968, %v1464
        %1513 = vst.msk [vmem:[#allocation2 + $0x30] sm:$0xff] %vm968, %v1469
        %1514 = vst.msk [vmem:[#allocation2 + $0x38] sm:$0xff] %vm968, %v1472
        %1515 = vst.msk [vmem:[#allocation2 + $0x40] sm:$0xff] %vm968, %v1477
        %1516 = vst.msk [vmem:[#allocation2 + $0x48] sm:$0xff] %vm968, %v1480
        %1517 = vst.msk [vmem:[#allocation2 + $0x50] sm:$0xff] %vm968, %v1485
        %1518 = vst.msk [vmem:[#allocation2 + $0x58] sm:$0xff] %vm968, %v1488
        %1519 = vst.msk [vmem:[#allocation2 + $0x60] sm:$0xff] %vm968, %v1493
        %1520 = vst.msk [vmem:[#allocation2 + $0x68] sm:$0xff] %vm968, %v1496
        %1521 = vst.msk [vmem:[#allocation2 + $0x70] sm:$0xff] %vm968, %v1501
        %1522 = vst.msk [vmem:[#allocation2 + $0x78] sm:$0xff] %vm968, %v1504
        %1531 = vrot.lane.b32.xlu0 %v921, 112
        %v1532 = vpop.permute.xlu0 %1531
        %1533 = vrot.lane.b32.xlu0 %v922, 112
        %v1534 = vpop.permute.xlu0 %1533
        %1535 = vrot.lane.b32.xlu0 %v923, 112
        %v1536 = vpop.permute.xlu0 %1535
        %1537 = vrot.lane.b32.xlu0 %v924, 112
        %v1538 = vpop.permute.xlu0 %1537
        %1539 = vrot.lane.b32.xlu0 %v925, 112
        %v1540 = vpop.permute.xlu0 %1539
        %1541 = vrot.lane.b32.xlu0 %v926, 112
        %v1542 = vpop.permute.xlu0 %1541
        %1543 = vrot.lane.b32.xlu0 %v927, 112
        %v1544 = vpop.permute.xlu0 %1543
        %1545 = vrot.lane.b32.xlu0 %v928, 112
        %v1546 = vpop.permute.xlu0 %1545
        %1563 = vrot.lane.b32.xlu0 %v929, 112
        %v1564 = vpop.permute.xlu0 %1563
        %1565 = vrot.lane.b32.xlu0 %v930, 112
        %v1566 = vpop.permute.xlu0 %1565
        %1567 = vrot.lane.b32.xlu0 %v931, 112
        %v1568 = vpop.permute.xlu0 %1567
        %1569 = vrot.lane.b32.xlu0 %v932, 112
        %v1570 = vpop.permute.xlu0 %1569
        %1571 = vrot.lane.b32.xlu0 %v933, 112
        %v1572 = vpop.permute.xlu0 %1571
        %1573 = vrot.lane.b32.xlu0 %v934, 112
        %v1574 = vpop.permute.xlu0 %1573
        %1575 = vrot.lane.b32.xlu0 %v935, 112
        %v1576 = vpop.permute.xlu0 %1575
        %1577 = vrot.lane.b32.xlu0 %v936, 112
        %v1578 = vpop.permute.xlu0 %1577
        %1579 = vrot.lane.b32.xlu0 %v937, 112
        %v1580 = vpop.permute.xlu0 %1579
        %1581 = vrot.lane.b32.xlu0 %v938, 112
        %v1582 = vpop.permute.xlu0 %1581
        %1583 = vrot.lane.b32.xlu0 %v939, 112
        %v1584 = vpop.permute.xlu0 %1583
        %1585 = vrot.lane.b32.xlu0 %v940, 112
        %v1586 = vpop.permute.xlu0 %1585
        %1587 = vrot.lane.b32.xlu0 %v941, 112
        %v1588 = vpop.permute.xlu0 %1587
        %1589 = vrot.lane.b32.xlu0 %v942, 112
        %v1590 = vpop.permute.xlu0 %1589
        %1591 = vrot.lane.b32.xlu0 %v943, 112
        %v1592 = vpop.permute.xlu0 %1591
        %1593 = vrot.lane.b32.xlu0 %v944, 112
        %v1594 = vpop.permute.xlu0 %1593
        %v1596 = vsel %vm968, %v1532, 0
        %v1599 = vsel %vm968, %v1534, 0
        %v1602 = vsel %vm968, %v1536, 0
        %v1605 = vsel %vm968, %v1538, 0
        %v1608 = vsel %vm968, %v1540, 0
        %v1611 = vsel %vm968, %v1542, 0
        %v1614 = vsel %vm968, %v1544, 0
        %v1617 = vsel %vm968, %v1546, 0
        %v1620 = vsel %vm968, %v1564, 0
        %v1623 = vsel %vm968, %v1566, 0
        %v1626 = vsel %vm968, %v1568, 0
        %v1629 = vsel %vm968, %v1570, 0
        %v1632 = vsel %vm968, %v1572, 0
        %v1635 = vsel %vm968, %v1574, 0
        %v1638 = vsel %vm968, %v1576, 0
        %v1641 = vsel %vm968, %v1578, 0
        %v1644 = vsel %vm968, %v1580, 0
        %v1647 = vsel %vm968, %v1582, 0
        %v1650 = vsel %vm968, %v1584, 0
        %v1653 = vsel %vm968, %v1586, 0
        %v1656 = vsel %vm968, %v1588, 0
        %v1659 = vsel %vm968, %v1590, 0
        %v1662 = vsel %vm968, %v1592, 0
        %v1665 = vsel %vm968, %v1594, 0
        %1667 = vmatprep.subr.bf16.mxu0 0
        %1668 = vmatpush1.bf16.xpose.msra.mxu0 %v1620
        %1669 = vmatprep.subr.bf16.mxu0 0
        %1670 = vmatpush1.bf16.xpose.msra.mxu0 %v1623
        %1671 = vmatprep.subr.bf16.mxu0 0
        %1672 = vmatpush1.bf16.xpose.msra.mxu0 %v1626
        %1673 = vmatprep.subr.bf16.mxu0 0
        %1674 = vmatpush1.bf16.xpose.msra.mxu0 %v1629
        %1675 = vmatprep.subr.bf16.mxu0 0
        %1676 = vmatpush1.bf16.xpose.msra.mxu0 %v1632
        %1677 = vmatprep.subr.bf16.mxu0 0
        %1678 = vmatpush1.bf16.xpose.msra.mxu0 %v1635
        %1679 = vmatprep.subr.bf16.mxu0 0
        %1680 = vmatpush1.bf16.xpose.msra.mxu0 %v1638
        %1681 = vmatprep.subr.bf16.mxu0 0
        %1682 = vmatpush1.bf16.xpose.msra.mxu0 %v1641
        %1683 = vmatprep.subr.bf16.mxu0 0
        %1684 = vmatpush1.bf16.xpose.msra.mxu0 %v1644
        %1685 = vmatprep.subr.bf16.mxu0 0
        %1686 = vmatpush1.bf16.xpose.msra.mxu0 %v1647
        %1687 = vmatprep.subr.bf16.mxu0 0
        %1688 = vmatpush1.bf16.xpose.msra.mxu0 %v1650
        %1689 = vmatprep.subr.bf16.mxu0 0
        %1690 = vmatpush1.bf16.xpose.msra.mxu0 %v1653
        %1691 = vmatprep.subr.bf16.mxu0 0
        %1692 = vmatpush1.bf16.xpose.msra.mxu0 %v1656
        %1693 = vmatprep.subr.bf16.mxu0 0
        %1694 = vmatpush1.bf16.xpose.msra.mxu0 %v1659
        %1695 = vmatprep.subr.bf16.mxu0 0
        %1696 = vmatpush1.bf16.xpose.msra.mxu0 %v1662
        %1697 = vmatprep.subr.bf16.mxu0 0
        %1698 = vmatpush1.bf16.xpose.msra.mxu0 %v1665
        %1699 = vmatprep.mubr.bf16.mxu0 0
        %1700 = vmatmul.mubr.bf16.gmra.mrb[0].mxu0 %v1596
        %v1701 = vpop.f32.mrb[0].mxu0
        %v1702 = vadd.f32 %v966, %v1701
        %v1703 = vpop.f32.mrb[0].mxu0
        %v1704 = vadd.f32 %v967, %v1703
        %v1705 = vpop.f32.mrb[0].mxu0
        %v1706 = vadd.f32 %v966, %v1705
        %v1707 = vpop.f32.mrb[0].mxu0
        %v1708 = vadd.f32 %v967, %v1707
        %1709 = vmatprep.mubr.bf16.mxu0 0
        %1710 = vmatmul.mubr.bf16.gmra.mrb[0].mxu0 %v1599
        %v1711 = vpop.f32.mrb[0].mxu0
        %v1712 = vadd.f32 %v966, %v1711
        %v1713 = vpop.f32.mrb[0].mxu0
        %v1714 = vadd.f32 %v967, %v1713
        %v1715 = vpop.f32.mrb[0].mxu0
        %v1716 = vadd.f32 %v966, %v1715
        %v1717 = vpop.f32.mrb[0].mxu0
        %v1718 = vadd.f32 %v967, %v1717
        %1719 = vmatprep.mubr.bf16.mxu0 0
        %1720 = vmatmul.mubr.bf16.gmra.mrb[0].mxu0 %v1602
        %v1721 = vpop.f32.mrb[0].mxu0
        %v1722 = vadd.f32 %v966, %v1721
        %v1723 = vpop.f32.mrb[0].mxu0
        %v1724 = vadd.f32 %v967, %v1723
        %v1725 = vpop.f32.mrb[0].mxu0
        %v1726 = vadd.f32 %v966, %v1725
        %v1727 = vpop.f32.mrb[0].mxu0
        %v1728 = vadd.f32 %v967, %v1727
        %1729 = vmatprep.mubr.bf16.mxu0 0
        %1730 = vmatmul.mubr.bf16.gmra.mrb[0].mxu0 %v1605
        %v1731 = vpop.f32.mrb[0].mxu0
        %v1732 = vadd.f32 %v966, %v1731
        %v1733 = vpop.f32.mrb[0].mxu0
        %v1734 = vadd.f32 %v967, %v1733
        %v1735 = vpop.f32.mrb[0].mxu0
        %v1736 = vadd.f32 %v966, %v1735
        %v1737 = vpop.f32.mrb[0].mxu0
        %v1738 = vadd.f32 %v967, %v1737
        %1739 = vmatprep.mubr.bf16.mxu0 0
        %1740 = vmatmul.mubr.bf16.gmra.mrb[0].mxu0 %v1608
        %v1741 = vpop.f32.mrb[0].mxu0
        %v1742 = vadd.f32 %v966, %v1741
        %v1743 = vpop.f32.mrb[0].mxu0
        %v1744 = vadd.f32 %v967, %v1743
        %v1745 = vpop.f32.mrb[0].mxu0
        %v1746 = vadd.f32 %v966, %v1745
        %v1747 = vpop.f32.mrb[0].mxu0
        %v1748 = vadd.f32 %v967, %v1747
        %1749 = vmatprep.mubr.bf16.mxu0 0
        %1750 = vmatmul.mubr.bf16.gmra.mrb[0].mxu0 %v1611
        %v1751 = vpop.f32.mrb[0].mxu0
        %v1752 = vadd.f32 %v966, %v1751
        %v1753 = vpop.f32.mrb[0].mxu0
        %v1754 = vadd.f32 %v967, %v1753
        %v1755 = vpop.f32.mrb[0].mxu0
        %v1756 = vadd.f32 %v966, %v1755
        %v1757 = vpop.f32.mrb[0].mxu0
        %v1758 = vadd.f32 %v967, %v1757
        %1759 = vmatprep.mubr.bf16.mxu0 0
        %1760 = vmatmul.mubr.bf16.gmra.mrb[0].mxu0 %v1614
        %v1761 = vpop.f32.mrb[0].mxu0
        %v1762 = vadd.f32 %v966, %v1761
        %v1763 = vpop.f32.mrb[0].mxu0
        %v1764 = vadd.f32 %v967, %v1763
        %v1765 = vpop.f32.mrb[0].mxu0
        %v1766 = vadd.f32 %v966, %v1765
        %v1767 = vpop.f32.mrb[0].mxu0
        %v1768 = vadd.f32 %v967, %v1767
        %1769 = vmatprep.mubr.bf16.mxu0 0
        %1770 = vmatmul.mubr.bf16.gmra.mrb[0].mxu0 %v1617
        %v1771 = vpop.f32.mrb[0].mxu0
        %v1772 = vadd.f32 %v966, %v1771
        %v1773 = vpop.f32.mrb[0].mxu0
        %v1774 = vadd.f32 %v967, %v1773
        %v1775 = vpop.f32.mrb[0].mxu0
        %v1776 = vadd.f32 %v966, %v1775
        %v1777 = vpop.f32.mrb[0].mxu0
        %v1778 = vadd.f32 %v967, %v1777
        %1779 = vdwg.mxu0
        %v1780 = vmax.f32 %v1702, %v1704
        %1781 = vmax.xlane.f32.xlu0 %v1780
        %v1782 = vpop.xlane.xlu0 %1781
        %v1783 = vmax.f32 %v1706, %v1708
        %1784 = vmax.xlane.f32.xlu0 %v1783
        %v1785 = vpop.xlane.xlu0 %1784
        %v1786 = vmax.f32 %v1712, %v1714
        %1787 = vmax.xlane.f32.xlu0 %v1786
        %v1788 = vpop.xlane.xlu0 %1787
        %v1789 = vmax.f32 %v1716, %v1718
        %1790 = vmax.xlane.f32.xlu0 %v1789
        %v1791 = vpop.xlane.xlu0 %1790
        %v1792 = vmax.f32 %v1722, %v1724
        %1793 = vmax.xlane.f32.xlu0 %v1792
        %v1794 = vpop.xlane.xlu0 %1793
        %v1795 = vmax.f32 %v1726, %v1728
        %1796 = vmax.xlane.f32.xlu0 %v1795
        %v1797 = vpop.xlane.xlu0 %1796
        %v1798 = vmax.f32 %v1732, %v1734
        %1799 = vmax.xlane.f32.xlu0 %v1798
        %v1800 = vpop.xlane.xlu0 %1799
        %v1801 = vmax.f32 %v1736, %v1738
        %1802 = vmax.xlane.f32.xlu0 %v1801
        %v1803 = vpop.xlane.xlu0 %1802
        %v1804 = vmax.f32 %v1742, %v1744
        %1805 = vmax.xlane.f32.xlu0 %v1804
        %v1806 = vpop.xlane.xlu0 %1805
        %v1807 = vmax.f32 %v1746, %v1748
        %1808 = vmax.xlane.f32.xlu0 %v1807
        %v1809 = vpop.xlane.xlu0 %1808
        %v1810 = vmax.f32 %v1752, %v1754
        %1811 = vmax.xlane.f32.xlu0 %v1810
        %v1812 = vpop.xlane.xlu0 %1811
        %v1813 = vmax.f32 %v1756, %v1758
        %1814 = vmax.xlane.f32.xlu0 %v1813
        %v1815 = vpop.xlane.xlu0 %1814
        %v1816 = vmax.f32 %v1762, %v1764
        %1817 = vmax.xlane.f32.xlu0 %v1816
        %v1818 = vpop.xlane.xlu0 %1817
        %v1819 = vmax.f32 %v1766, %v1768
        %1820 = vmax.xlane.f32.xlu0 %v1819
        %v1821 = vpop.xlane.xlu0 %1820
        %v1822 = vmax.f32 %v1772, %v1774
        %1823 = vmax.xlane.f32.xlu0 %v1822
        %v1824 = vpop.xlane.xlu0 %1823
        %v1825 = vmax.f32 %v1776, %v1778
        %1826 = vmax.xlane.f32.xlu0 %v1825
        %v1827 = vpop.xlane.xlu0 %1826
        %v1828 = vsub.f32 %v1702, %v1782
        %v1829 = vsub.f32 %v1704, %v1782
        %v1830 = vsub.f32 %v1706, %v1785
        %v1831 = vsub.f32 %v1708, %v1785
        %v1832 = vsub.f32 %v1712, %v1788
        %v1833 = vsub.f32 %v1714, %v1788
        %v1834 = vsub.f32 %v1716, %v1791
        %v1835 = vsub.f32 %v1718, %v1791
        %v1836 = vsub.f32 %v1722, %v1794
        %v1837 = vsub.f32 %v1724, %v1794
        %v1838 = vsub.f32 %v1726, %v1797
        %v1839 = vsub.f32 %v1728, %v1797
        %v1840 = vsub.f32 %v1732, %v1800
        %v1841 = vsub.f32 %v1734, %v1800
        %v1842 = vsub.f32 %v1736, %v1803
        %v1843 = vsub.f32 %v1738, %v1803
        %v1844 = vsub.f32 %v1742, %v1806
        %v1845 = vsub.f32 %v1744, %v1806
        %v1846 = vsub.f32 %v1746, %v1809
        %v1847 = vsub.f32 %v1748, %v1809
        %v1848 = vsub.f32 %v1752, %v1812
        %v1849 = vsub.f32 %v1754, %v1812
        %v1850 = vsub.f32 %v1756, %v1815
        %v1851 = vsub.f32 %v1758, %v1815
        %v1852 = vsub.f32 %v1762, %v1818
        %v1853 = vsub.f32 %v1764, %v1818
        %v1854 = vsub.f32 %v1766, %v1821
        %v1855 = vsub.f32 %v1768, %v1821
        %v1856 = vsub.f32 %v1772, %v1824
        %v1857 = vsub.f32 %v1774, %v1824
        %v1858 = vsub.f32 %v1776, %v1827
        %v1859 = vsub.f32 %v1778, %v1827
        %v1860 = vmul.f32 %v1828, 1.442695
        %v1861 = vpow.pop %v1860
        %v1862 = vmul.f32 %v1829, 1.442695
        %v1863 = vpow.pop %v1862
        %v1864 = vmul.f32 %v1830, 1.442695
        %v1865 = vpow.pop %v1864
        %v1866 = vmul.f32 %v1831, 1.442695
        %v1867 = vpow.pop %v1866
        %v1868 = vmul.f32 %v1832, 1.442695
        %v1869 = vpow.pop %v1868
        %v1870 = vmul.f32 %v1833, 1.442695
        %v1871 = vpow.pop %v1870
        %v1872 = vmul.f32 %v1834, 1.442695
        %v1873 = vpow.pop %v1872
        %v1874 = vmul.f32 %v1835, 1.442695
        %v1875 = vpow.pop %v1874
        %v1876 = vmul.f32 %v1836, 1.442695
        %v1877 = vpow.pop %v1876
        %v1878 = vmul.f32 %v1837, 1.442695
        %v1879 = vpow.pop %v1878
        %v1880 = vmul.f32 %v1838, 1.442695
        %v1881 = vpow.pop %v1880
        %v1882 = vmul.f32 %v1839, 1.442695
        %v1883 = vpow.pop %v1882
        %v1884 = vmul.f32 %v1840, 1.442695
        %v1885 = vpow.pop %v1884
        %v1886 = vmul.f32 %v1841, 1.442695
        %v1887 = vpow.pop %v1886
        %v1888 = vmul.f32 %v1842, 1.442695
        %v1889 = vpow.pop %v1888
        %v1890 = vmul.f32 %v1843, 1.442695
        %v1891 = vpow.pop %v1890
        %v1892 = vmul.f32 %v1844, 1.442695
        %v1893 = vpow.pop %v1892
        %v1894 = vmul.f32 %v1845, 1.442695
        %v1895 = vpow.pop %v1894
        %v1896 = vmul.f32 %v1846, 1.442695
        %v1897 = vpow.pop %v1896
        %v1898 = vmul.f32 %v1847, 1.442695
        %v1899 = vpow.pop %v1898
        %v1900 = vmul.f32 %v1848, 1.442695
        %v1901 = vpow.pop %v1900
        %v1902 = vmul.f32 %v1849, 1.442695
        %v1903 = vpow.pop %v1902
        %v1904 = vmul.f32 %v1850, 1.442695
        %v1905 = vpow.pop %v1904
        %v1906 = vmul.f32 %v1851, 1.442695
        %v1907 = vpow.pop %v1906
        %v1908 = vmul.f32 %v1852, 1.442695
        %v1909 = vpow.pop %v1908
        %v1910 = vmul.f32 %v1853, 1.442695
        %v1911 = vpow.pop %v1910
        %v1912 = vmul.f32 %v1854, 1.442695
        %v1913 = vpow.pop %v1912
        %v1914 = vmul.f32 %v1855, 1.442695
        %v1915 = vpow.pop %v1914
        %v1916 = vmul.f32 %v1856, 1.442695
        %v1917 = vpow.pop %v1916
        %v1918 = vmul.f32 %v1857, 1.442695
        %v1919 = vpow.pop %v1918
        %v1920 = vmul.f32 %v1858, 1.442695
        %v1921 = vpow.pop %v1920
        %v1922 = vmul.f32 %v1859, 1.442695
        %v1923 = vpow.pop %v1922
        %v1924 = vadd.f32 %v1861, %v1863
        %1925 = vadd.xlane.f32.xlu0 %v1924
        %v1926 = vpop.xlane.xlu0 %1925
        %v1927 = vadd.f32 %v1865, %v1867
        %1928 = vadd.xlane.f32.xlu0 %v1927
        %v1929 = vpop.xlane.xlu0 %1928
        %v1930 = vadd.f32 %v1869, %v1871
        %1931 = vadd.xlane.f32.xlu0 %v1930
        %v1932 = vpop.xlane.xlu0 %1931
        %v1933 = vadd.f32 %v1873, %v1875
        %1934 = vadd.xlane.f32.xlu0 %v1933
        %v1935 = vpop.xlane.xlu0 %1934
        %v1936 = vadd.f32 %v1877, %v1879
        %1937 = vadd.xlane.f32.xlu0 %v1936
        %v1938 = vpop.xlane.xlu0 %1937
        %v1939 = vadd.f32 %v1881, %v1883
        %1940 = vadd.xlane.f32.xlu0 %v1939
        %v1941 = vpop.xlane.xlu0 %1940
        %v1942 = vadd.f32 %v1885, %v1887
        %1943 = vadd.xlane.f32.xlu0 %v1942
        %v1944 = vpop.xlane.xlu0 %1943
        %v1945 = vadd.f32 %v1889, %v1891
        %1946 = vadd.xlane.f32.xlu0 %v1945
        %v1947 = vpop.xlane.xlu0 %1946
        %v1948 = vadd.f32 %v1893, %v1895
        %1949 = vadd.xlane.f32.xlu0 %v1948
        %v1950 = vpop.xlane.xlu0 %1949
        %v1951 = vadd.f32 %v1897, %v1899
        %1952 = vadd.xlane.f32.xlu0 %v1951
        %v1953 = vpop.xlane.xlu0 %1952
        %v1954 = vadd.f32 %v1901, %v1903
        %1955 = vadd.xlane.f32.xlu0 %v1954
        %v1956 = vpop.xlane.xlu0 %1955
        %v1957 = vadd.f32 %v1905, %v1907
        %1958 = vadd.xlane.f32.xlu0 %v1957
        %v1959 = vpop.xlane.xlu0 %1958
        %v1960 = vadd.f32 %v1909, %v1911
        %1961 = vadd.xlane.f32.xlu0 %v1960
        %v1962 = vpop.xlane.xlu0 %1961
        %v1963 = vadd.f32 %v1913, %v1915
        %1964 = vadd.xlane.f32.xlu0 %v1963
        %v1965 = vpop.xlane.xlu0 %1964
        %v1966 = vadd.f32 %v1917, %v1919
        %1967 = vadd.xlane.f32.xlu0 %v1966
        %v1968 = vpop.xlane.xlu0 %1967
        %v1969 = vadd.f32 %v1921, %v1923
        %1970 = vadd.xlane.f32.xlu0 %v1969
        %v1971 = vpop.xlane.xlu0 %1970
        %v1972 = vrcp.pop %v1926
        %v1973 = vmul.f32 %v1861, %v1972
        %v1974 = vmul.f32 %v1863, %v1972
        %v1975 = vrcp.pop %v1929
        %v1976 = vmul.f32 %v1865, %v1975
        %v1977 = vmul.f32 %v1867, %v1975
        %v1978 = vrcp.pop %v1932
        %v1979 = vmul.f32 %v1869, %v1978
        %v1980 = vmul.f32 %v1871, %v1978
        %v1981 = vrcp.pop %v1935
        %v1982 = vmul.f32 %v1873, %v1981
        %v1983 = vmul.f32 %v1875, %v1981
        %v1984 = vrcp.pop %v1938
        %v1985 = vmul.f32 %v1877, %v1984
        %v1986 = vmul.f32 %v1879, %v1984
        %v1987 = vrcp.pop %v1941
        %v1988 = vmul.f32 %v1881, %v1987
        %v1989 = vmul.f32 %v1883, %v1987
        %v1990 = vrcp.pop %v1944
        %v1991 = vmul.f32 %v1885, %v1990
        %v1992 = vmul.f32 %v1887, %v1990
        %v1993 = vrcp.pop %v1947
        %v1994 = vmul.f32 %v1889, %v1993
        %v1995 = vmul.f32 %v1891, %v1993
        %v1996 = vrcp.pop %v1950
        %v1997 = vmul.f32 %v1893, %v1996
        %v1998 = vmul.f32 %v1895, %v1996
        %v1999 = vrcp.pop %v1953
        %v2000 = vmul.f32 %v1897, %v1999
        %v2001 = vmul.f32 %v1899, %v1999
        %v2002 = vrcp.pop %v1956
        %v2003 = vmul.f32 %v1901, %v2002
        %v2004 = vmul.f32 %v1903, %v2002
        %v2005 = vrcp.pop %v1959
        %v2006 = vmul.f32 %v1905, %v2005
        %v2007 = vmul.f32 %v1907, %v2005
        %v2008 = vrcp.pop %v1962
        %v2009 = vmul.f32 %v1909, %v2008
        %v2010 = vmul.f32 %v1911, %v2008
        %v2011 = vrcp.pop %v1965
        %v2012 = vmul.f32 %v1913, %v2011
        %v2013 = vmul.f32 %v1915, %v2011
        %v2014 = vrcp.pop %v1968
        %v2015 = vmul.f32 %v1917, %v2014
        %v2016 = vmul.f32 %v1919, %v2014
        %v2017 = vrcp.pop %v1971
        %v2018 = vmul.f32 %v1921, %v2017
        %v2019 = vmul.f32 %v1923, %v2017
        %v2020 = vpack.c.bf16 %v1976, %v1973
        %v2021 = vpack.c.bf16 %v1977, %v1974
        %v2022 = vpack.c.bf16 %v1982, %v1979
        %v2023 = vpack.c.bf16 %v1983, %v1980
        %v2024 = vpack.c.bf16 %v1988, %v1985
        %v2025 = vpack.c.bf16 %v1989, %v1986
        %v2026 = vpack.c.bf16 %v1994, %v1991
        %v2027 = vpack.c.bf16 %v1995, %v1992
        %v2028 = vpack.c.bf16 %v2000, %v1997
        %v2029 = vpack.c.bf16 %v2001, %v1998
        %v2030 = vpack.c.bf16 %v2006, %v2003
        %v2031 = vpack.c.bf16 %v2007, %v2004
        %v2032 = vpack.c.bf16 %v2012, %v2009
        %v2033 = vpack.c.bf16 %v2013, %v2010
        %v2034 = vpack.c.bf16 %v2018, %v2015
        %v2035 = vpack.c.bf16 %v2019, %v2016
        %2052 = vrot.lane.b32.xlu0 %v945, 112
        %v2053 = vpop.permute.xlu0 %2052
        %2054 = vrot.lane.b32.xlu0 %v946, 112
        %v2055 = vpop.permute.xlu0 %2054
        %2056 = vrot.lane.b32.xlu0 %v947, 112
        %v2057 = vpop.permute.xlu0 %2056
        %2058 = vrot.lane.b32.xlu0 %v948, 112
        %v2059 = vpop.permute.xlu0 %2058
        %2060 = vrot.lane.b32.xlu0 %v949, 112
        %v2061 = vpop.permute.xlu0 %2060
        %2062 = vrot.lane.b32.xlu0 %v950, 112
        %v2063 = vpop.permute.xlu0 %2062
        %2064 = vrot.lane.b32.xlu0 %v951, 112
        %v2065 = vpop.permute.xlu0 %2064
        %2066 = vrot.lane.b32.xlu0 %v952, 112
        %v2067 = vpop.permute.xlu0 %2066
        %2068 = vrot.lane.b32.xlu0 %v953, 112
        %v2069 = vpop.permute.xlu0 %2068
        %2070 = vrot.lane.b32.xlu0 %v954, 112
        %v2071 = vpop.permute.xlu0 %2070
        %2072 = vrot.lane.b32.xlu0 %v955, 112
        %v2073 = vpop.permute.xlu0 %2072
        %2074 = vrot.lane.b32.xlu0 %v956, 112
        %v2075 = vpop.permute.xlu0 %2074
        %2076 = vrot.lane.b32.xlu0 %v957, 112
        %v2077 = vpop.permute.xlu0 %2076
        %2078 = vrot.lane.b32.xlu0 %v958, 112
        %v2079 = vpop.permute.xlu0 %2078
        %2080 = vrot.lane.b32.xlu0 %v959, 112
        %v2081 = vpop.permute.xlu0 %2080
        %2082 = vrot.lane.b32.xlu0 %v960, 112
        %v2083 = vpop.permute.xlu0 %2082
        %2100 = vmatprep.subr.bf16.mxu0 0
        %2101 = vmatpush1.bf16.msra.mxu0 %v2053
        %2102 = vmatprep.subr.bf16.mxu0 0
        %2103 = vmatpush1.bf16.msra.mxu0 %v2055
        %2104 = vmatprep.subr.bf16.mxu0 0
        %2105 = vmatpush1.bf16.msra.mxu0 %v2057
        %2106 = vmatprep.subr.bf16.mxu0 0
        %2107 = vmatpush1.bf16.msra.mxu0 %v2059
        %2108 = vmatprep.subr.bf16.mxu0 0
        %2109 = vmatpush1.bf16.msra.mxu0 %v2061
        %2110 = vmatprep.subr.bf16.mxu0 0
        %2111 = vmatpush1.bf16.msra.mxu0 %v2063
        %2112 = vmatprep.subr.bf16.mxu0 0
        %2113 = vmatpush1.bf16.msra.mxu0 %v2065
        %2114 = vmatprep.subr.bf16.mxu0 0
        %2115 = vmatpush1.bf16.msra.mxu0 %v2067
        %2116 = vmatprep.subr.bf16.mxu0 0
        %2117 = vmatpush1.bf16.msra.mxu0 %v2069
        %2118 = vmatprep.subr.bf16.mxu0 0
        %2119 = vmatpush1.bf16.msra.mxu0 %v2071
        %2120 = vmatprep.subr.bf16.mxu0 0
        %2121 = vmatpush1.bf16.msra.mxu0 %v2073
        %2122 = vmatprep.subr.bf16.mxu0 0
        %2123 = vmatpush1.bf16.msra.mxu0 %v2075
        %2124 = vmatprep.subr.bf16.mxu0 0
        %2125 = vmatpush1.bf16.msra.mxu0 %v2077
        %2126 = vmatprep.subr.bf16.mxu0 0
        %2127 = vmatpush1.bf16.msra.mxu0 %v2079
        %2128 = vmatprep.subr.bf16.mxu0 0
        %2129 = vmatpush1.bf16.msra.mxu0 %v2081
        %2130 = vmatprep.subr.bf16.mxu0 0
        %2131 = vmatpush1.bf16.msra.mxu0 %v2083
        %2132 = vmatprep.mubr.bf16.mxu0 %v2021
        %2133 = vmatmul.mubr.bf16.gmra.mrb[0].mxu0 %v2020
        %v2134 = vpop.f32.mrb[0].mxu0
        %v2135 = vadd.f32 0.0, %v2134
        %v2136 = vpop.f32.mrb[0].mxu0
        %v2137 = vpop.f32.mrb[0].mxu0
        %v2138 = vadd.f32 0.0, %v2137
        %v2139 = vpop.f32.mrb[0].mxu0
        %2140 = vmatprep.mubr.bf16.mxu0 %v2023
        %2141 = vmatmul.mubr.bf16.gmra.mrb[0].mxu0 %v2022
        %v2142 = vpop.f32.mrb[0].mxu0
        %v2143 = vadd.f32 0.0, %v2142
        %v2144 = vpop.f32.mrb[0].mxu0
        %v2145 = vpop.f32.mrb[0].mxu0
        %v2146 = vadd.f32 0.0, %v2145
        %v2147 = vpop.f32.mrb[0].mxu0
        %2148 = vmatprep.mubr.bf16.mxu0 %v2025
        %2149 = vmatmul.mubr.bf16.gmra.mrb[0].mxu0 %v2024
        %v2150 = vpop.f32.mrb[0].mxu0
        %v2151 = vadd.f32 0.0, %v2150
        %v2152 = vpop.f32.mrb[0].mxu0
        %v2153 = vpop.f32.mrb[0].mxu0
        %v2154 = vadd.f32 0.0, %v2153
        %v2155 = vpop.f32.mrb[0].mxu0
        %2156 = vmatprep.mubr.bf16.mxu0 %v2027
        %2157 = vmatmul.mubr.bf16.gmra.mrb[0].mxu0 %v2026
        %v2158 = vpop.f32.mrb[0].mxu0
        %v2159 = vadd.f32 0.0, %v2158
        %v2160 = vpop.f32.mrb[0].mxu0
        %v2161 = vpop.f32.mrb[0].mxu0
        %v2162 = vadd.f32 0.0, %v2161
        %v2163 = vpop.f32.mrb[0].mxu0
        %2164 = vmatprep.mubr.bf16.mxu0 %v2029
        %2165 = vmatmul.mubr.bf16.gmra.mrb[0].mxu0 %v2028
        %v2166 = vpop.f32.mrb[0].mxu0
        %v2167 = vadd.f32 0.0, %v2166
        %v2168 = vpop.f32.mrb[0].mxu0
        %v2169 = vpop.f32.mrb[0].mxu0
        %v2170 = vadd.f32 0.0, %v2169
        %v2171 = vpop.f32.mrb[0].mxu0
        %2172 = vmatprep.mubr.bf16.mxu0 %v2031
        %2173 = vmatmul.mubr.bf16.gmra.mrb[0].mxu0 %v2030
        %v2174 = vpop.f32.mrb[0].mxu0
        %v2175 = vadd.f32 0.0, %v2174
        %v2176 = vpop.f32.mrb[0].mxu0
        %v2177 = vpop.f32.mrb[0].mxu0
        %v2178 = vadd.f32 0.0, %v2177
        %v2179 = vpop.f32.mrb[0].mxu0
        %2180 = vmatprep.mubr.bf16.mxu0 %v2033
        %2181 = vmatmul.mubr.bf16.gmra.mrb[0].mxu0 %v2032
        %v2182 = vpop.f32.mrb[0].mxu0
        %v2183 = vadd.f32 0.0, %v2182
        %v2184 = vpop.f32.mrb[0].mxu0
        %v2185 = vpop.f32.mrb[0].mxu0
        %v2186 = vadd.f32 0.0, %v2185
        %v2187 = vpop.f32.mrb[0].mxu0
        %2188 = vmatprep.mubr.bf16.mxu0 %v2035
        %2189 = vmatmul.mubr.bf16.gmra.mrb[0].mxu0 %v2034
        %v2190 = vpop.f32.mrb[0].mxu0
        %v2191 = vadd.f32 0.0, %v2190
        %v2192 = vpop.f32.mrb[0].mxu0
        %v2193 = vpop.f32.mrb[0].mxu0
        %v2194 = vadd.f32 0.0, %v2193
        %v2195 = vpop.f32.mrb[0].mxu0
        %2196 = vdwg.mxu0
        %2213 = vrot.lane.b32.xlu0 %v2135, 16
        %v2214 = vpop.permute.xlu0 %2213
        %2215 = vrot.lane.b32.xlu0 %v2138, 16
        %v2216 = vpop.permute.xlu0 %2215
        %2217 = vrot.lane.b32.xlu0 %v2143, 16
        %v2218 = vpop.permute.xlu0 %2217
        %2219 = vrot.lane.b32.xlu0 %v2146, 16
        %v2220 = vpop.permute.xlu0 %2219
        %2221 = vrot.lane.b32.xlu0 %v2151, 16
        %v2222 = vpop.permute.xlu0 %2221
        %2223 = vrot.lane.b32.xlu0 %v2154, 16
        %v2224 = vpop.permute.xlu0 %2223
        %2225 = vrot.lane.b32.xlu0 %v2159, 16
        %v2226 = vpop.permute.xlu0 %2225
        %2227 = vrot.lane.b32.xlu0 %v2162, 16
        %v2228 = vpop.permute.xlu0 %2227
        %2229 = vrot.lane.b32.xlu0 %v2167, 16
        %v2230 = vpop.permute.xlu0 %2229
        %2231 = vrot.lane.b32.xlu0 %v2170, 16
        %v2232 = vpop.permute.xlu0 %2231
        %2233 = vrot.lane.b32.xlu0 %v2175, 16
        %v2234 = vpop.permute.xlu0 %2233
        %2235 = vrot.lane.b32.xlu0 %v2178, 16
        %v2236 = vpop.permute.xlu0 %2235
        %2237 = vrot.lane.b32.xlu0 %v2183, 16
        %v2238 = vpop.permute.xlu0 %2237
        %2239 = vrot.lane.b32.xlu0 %v2186, 16
        %v2240 = vpop.permute.xlu0 %2239
        %2241 = vrot.lane.b32.xlu0 %v2191, 16
        %v2242 = vpop.permute.xlu0 %2241
        %2243 = vrot.lane.b32.xlu0 %v2194, 16
        %v2244 = vpop.permute.xlu0 %2243
        %vm2261 = vcmask 261248
        %2262 = vst.msk [vmem:[#allocation2] sm:$0xff] %vm2261, %v2214
        %2263 = vst.msk [vmem:[#allocation2 + $0x8] sm:$0xff] %vm2261, %v2216
        %2264 = vst.msk [vmem:[#allocation2 + $0x10] sm:$0xff] %vm2261, %v2218
        %2265 = vst.msk [vmem:[#allocation2 + $0x18] sm:$0xff] %vm2261, %v2220
        %2266 = vst.msk [vmem:[#allocation2 + $0x20] sm:$0xff] %vm2261, %v2222
        %2267 = vst.msk [vmem:[#allocation2 + $0x28] sm:$0xff] %vm2261, %v2224
        %2268 = vst.msk [vmem:[#allocation2 + $0x30] sm:$0xff] %vm2261, %v2226
        %2269 = vst.msk [vmem:[#allocation2 + $0x38] sm:$0xff] %vm2261, %v2228
        %2270 = vst.msk [vmem:[#allocation2 + $0x40] sm:$0xff] %vm2261, %v2230
        %2271 = vst.msk [vmem:[#allocation2 + $0x48] sm:$0xff] %vm2261, %v2232
        %2272 = vst.msk [vmem:[#allocation2 + $0x50] sm:$0xff] %vm2261, %v2234
        %2273 = vst.msk [vmem:[#allocation2 + $0x58] sm:$0xff] %vm2261, %v2236
        %2274 = vst.msk [vmem:[#allocation2 + $0x60] sm:$0xff] %vm2261, %v2238
        %2275 = vst.msk [vmem:[#allocation2 + $0x68] sm:$0xff] %vm2261, %v2240
        %2276 = vst.msk [vmem:[#allocation2 + $0x70] sm:$0xff] %vm2261, %v2242
        %2277 = vst.msk [vmem:[#allocation2 + $0x78] sm:$0xff] %vm2261, %v2244
        %2278 = vrot.lane.b32.xlu0 %v921, 96
        %v2279 = vpop.permute.xlu0 %2278
        %2280 = vrot.lane.b32.xlu0 %v922, 96
        %v2281 = vpop.permute.xlu0 %2280
        %2282 = vrot.lane.b32.xlu0 %v923, 96
        %v2283 = vpop.permute.xlu0 %2282
        %2284 = vrot.lane.b32.xlu0 %v924, 96
        %v2285 = vpop.permute.xlu0 %2284
        %2286 = vrot.lane.b32.xlu0 %v925, 96
        %v2287 = vpop.permute.xlu0 %2286
        %2288 = vrot.lane.b32.xlu0 %v926, 96
        %v2289 = vpop.permute.xlu0 %2288
        %2290 = vrot.lane.b32.xlu0 %v927, 96
        %v2291 = vpop.permute.xlu0 %2290
        %2292 = vrot.lane.b32.xlu0 %v928, 96
        %v2293 = vpop.permute.xlu0 %2292
        %2294 = vrot.lane.b32.xlu0 %v929, 96
        %v2295 = vpop.permute.xlu0 %2294
        %2296 = vrot.lane.b32.xlu0 %v930, 96
        %v2297 = vpop.permute.xlu0 %2296
        %2298 = vrot.lane.b32.xlu0 %v931, 96
        %v2299 = vpop.permute.xlu0 %2298
        %2300 = vrot.lane.b32.xlu0 %v932, 96
        %v2301 = vpop.permute.xlu0 %2300
        %2302 = vrot.lane.b32.xlu0 %v933, 96
        %v2303 = vpop.permute.xlu0 %2302
        %2304 = vrot.lane.b32.xlu0 %v934, 96
        %v2305 = vpop.permute.xlu0 %2304
        %2306 = vrot.lane.b32.xlu0 %v935, 96
        %v2307 = vpop.permute.xlu0 %2306
        %2308 = vrot.lane.b32.xlu0 %v936, 96
        %v2309 = vpop.permute.xlu0 %2308
        %2310 = vrot.lane.b32.xlu0 %v937, 96
        %v2311 = vpop.permute.xlu0 %2310
        %2312 = vrot.lane.b32.xlu0 %v938, 96
        %v2313 = vpop.permute.xlu0 %2312
        %2314 = vrot.lane.b32.xlu0 %v939, 96
        %v2315 = vpop.permute.xlu0 %2314
        %2316 = vrot.lane.b32.xlu0 %v940, 96
        %v2317 = vpop.permute.xlu0 %2316
        %2318 = vrot.lane.b32.xlu0 %v941, 96
        %v2319 = vpop.permute.xlu0 %2318
        %2320 = vrot.lane.b32.xlu0 %v942, 96
        %v2321 = vpop.permute.xlu0 %2320
        %2322 = vrot.lane.b32.xlu0 %v943, 96
        %v2323 = vpop.permute.xlu0 %2322
        %2324 = vrot.lane.b32.xlu0 %v944, 96
        %v2325 = vpop.permute.xlu0 %2324
        %v2327 = vsel %vm968, %v2279, 0
        %v2330 = vsel %vm968, %v2281, 0
        %v2333 = vsel %vm968, %v2283, 0
        %v2336 = vsel %vm968, %v2285, 0
        %v2339 = vsel %vm968, %v2287, 0
        %v2342 = vsel %vm968, %v2289, 0
        %v2345 = vsel %vm968, %v2291, 0
        %v2348 = vsel %vm968, %v2293, 0
        %v2351 = vsel %vm968, %v2295, 0
        %v2354 = vsel %vm968, %v2297, 0
        %v2357 = vsel %vm968, %v2299, 0
        %v2360 = vsel %vm968, %v2301, 0
        %v2363 = vsel %vm968, %v2303, 0
        %v2366 = vsel %vm968, %v2305, 0
        %v2369 = vsel %vm968, %v2307, 0
        %v2372 = vsel %vm968, %v2309, 0
        %v2375 = vsel %vm968, %v2311, 0
        %v2378 = vsel %vm968, %v2313, 0
        %v2381 = vsel %vm968, %v2315, 0
        %v2384 = vsel %vm968, %v2317, 0
        %v2387 = vsel %vm968, %v2319, 0
        %v2390 = vsel %vm968, %v2321, 0
        %v2393 = vsel %vm968, %v2323, 0
        %v2396 = vsel %vm968, %v2325, 0
        %2398 = vmatprep.subr.bf16.mxu0 0
        %2399 = vmatpush1.bf16.xpose.msra.mxu0 %v2351
        %2400 = vmatprep.subr.bf16.mxu0 0
        %2401 = vmatpush1.bf16.xpose.msra.mxu0 %v2354
        %2402 = vmatprep.subr.bf16.mxu0 0
        %2403 = vmatpush1.bf16.xpose.msra.mxu0 %v2357
        %2404 = vmatprep.subr.bf16.mxu0 0
        %2405 = vmatpush1.bf16.xpose.msra.mxu0 %v2360
        %2406 = vmatprep.subr.bf16.mxu0 0
        %2407 = vmatpush1.bf16.xpose.msra.mxu0 %v2363
        %2408 = vmatprep.subr.bf16.mxu0 0
        %2409 = vmatpush1.bf16.xpose.msra.mxu0 %v2366
        %2410 = vmatprep.subr.bf16.mxu0 0
        %2411 = vmatpush1.bf16.xpose.msra.mxu0 %v2369
        %2412 = vmatprep.subr.bf16.mxu0 0
        %2413 = vmatpush1.bf16.xpose.msra.mxu0 %v2372
        %2414 = vmatprep.subr.bf16.mxu0 0
        %2415 = vmatpush1.bf16.xpose.msra.mxu0 %v2375
        %2416 = vmatprep.subr.bf16.mxu0 0
        %2417 = vmatpush1.bf16.xpose.msra.mxu0 %v2378
        %2418 = vmatprep.subr.bf16.mxu0 0
        %2419 = vmatpush1.bf16.xpose.msra.mxu0 %v2381
        %2420 = vmatprep.subr.bf16.mxu0 0
        %2421 = vmatpush1.bf16.xpose.msra.mxu0 %v2384
        %2422 = vmatprep.subr.bf16.mxu0 0
        %2423 = vmatpush1.bf16.xpose.msra.mxu0 %v2387
        %2424 = vmatprep.subr.bf16.mxu0 0
        %2425 = vmatpush1.bf16.xpose.msra.mxu0 %v2390
        %2426 = vmatprep.subr.bf16.mxu0 0
        %2427 = vmatpush1.bf16.xpose.msra.mxu0 %v2393
        %2428 = vmatprep.subr.bf16.mxu0 0
        %2429 = vmatpush1.bf16.xpose.msra.mxu0 %v2396
        %2430 = vmatprep.mubr.bf16.mxu0 0
        %2431 = vmatmul.mubr.bf16.gmra.mrb[0].mxu0 %v2327
        %v2432 = vpop.f32.mrb[0].mxu0
        %v2433 = vadd.f32 %v966, %v2432
        %v2434 = vpop.f32.mrb[0].mxu0
        %v2435 = vadd.f32 %v967, %v2434
        %v2436 = vpop.f32.mrb[0].mxu0
        %v2437 = vadd.f32 %v966, %v2436
        %v2438 = vpop.f32.mrb[0].mxu0
        %v2439 = vadd.f32 %v967, %v2438
        %2440 = vmatprep.mubr.bf16.mxu0 0
        %2441 = vmatmul.mubr.bf16.gmra.mrb[0].mxu0 %v2330
        %v2442 = vpop.f32.mrb[0].mxu0
        %v2443 = vadd.f32 %v966, %v2442
        %v2444 = vpop.f32.mrb[0].mxu0
        %v2445 = vadd.f32 %v967, %v2444
        %v2446 = vpop.f32.mrb[0].mxu0
        %v2447 = vadd.f32 %v966, %v2446
        %v2448 = vpop.f32.mrb[0].mxu0
        %v2449 = vadd.f32 %v967, %v2448
        %2450 = vmatprep.mubr.bf16.mxu0 0
        %2451 = vmatmul.mubr.bf16.gmra.mrb[0].mxu0 %v2333
        %v2452 = vpop.f32.mrb[0].mxu0
        %v2453 = vadd.f32 %v966, %v2452
        %v2454 = vpop.f32.mrb[0].mxu0
        %v2455 = vadd.f32 %v967, %v2454
        %v2456 = vpop.f32.mrb[0].mxu0
        %v2457 = vadd.f32 %v966, %v2456
        %v2458 = vpop.f32.mrb[0].mxu0
        %v2459 = vadd.f32 %v967, %v2458
        %2460 = vmatprep.mubr.bf16.mxu0 0
        %2461 = vmatmul.mubr.bf16.gmra.mrb[0].mxu0 %v2336
        %v2462 = vpop.f32.mrb[0].mxu0
        %v2463 = vadd.f32 %v966, %v2462
        %v2464 = vpop.f32.mrb[0].mxu0
        %v2465 = vadd.f32 %v967, %v2464
        %v2466 = vpop.f32.mrb[0].mxu0
        %v2467 = vadd.f32 %v966, %v2466
        %v2468 = vpop.f32.mrb[0].mxu0
        %v2469 = vadd.f32 %v967, %v2468
        %2470 = vmatprep.mubr.bf16.mxu0 0
        %2471 = vmatmul.mubr.bf16.gmra.mrb[0].mxu0 %v2339
        %v2472 = vpop.f32.mrb[0].mxu0
        %v2473 = vadd.f32 %v966, %v2472
        %v2474 = vpop.f32.mrb[0].mxu0
        %v2475 = vadd.f32 %v967, %v2474
        %v2476 = vpop.f32.mrb[0].mxu0
        %v2477 = vadd.f32 %v966, %v2476
        %v2478 = vpop.f32.mrb[0].mxu0
        %v2479 = vadd.f32 %v967, %v2478
        %2480 = vmatprep.mubr.bf16.mxu0 0
        %2481 = vmatmul.mubr.bf16.gmra.mrb[0].mxu0 %v2342
        %v2482 = vpop.f32.mrb[0].mxu0
        %v2483 = vadd.f32 %v966, %v2482
        %v2484 = vpop.f32.mrb[0].mxu0
        %v2485 = vadd.f32 %v967, %v2484
        %v2486 = vpop.f32.mrb[0].mxu0
        %v2487 = vadd.f32 %v966, %v2486
        %v2488 = vpop.f32.mrb[0].mxu0
        %v2489 = vadd.f32 %v967, %v2488
        %2490 = vmatprep.mubr.bf16.mxu0 0
        %2491 = vmatmul.mubr.bf16.gmra.mrb[0].mxu0 %v2345
        %v2492 = vpop.f32.mrb[0].mxu0
        %v2493 = vadd.f32 %v966, %v2492
        %v2494 = vpop.f32.mrb[0].mxu0
        %v2495 = vadd.f32 %v967, %v2494
        %v2496 = vpop.f32.mrb[0].mxu0
        %v2497 = vadd.f32 %v966, %v2496
        %v2498 = vpop.f32.mrb[0].mxu0
        %v2499 = vadd.f32 %v967, %v2498
        %2500 = vmatprep.mubr.bf16.mxu0 0
        %2501 = vmatmul.mubr.bf16.gmra.mrb[0].mxu0 %v2348
        %v2502 = vpop.f32.mrb[0].mxu0
        %v2503 = vadd.f32 %v966, %v2502
        %v2504 = vpop.f32.mrb[0].mxu0
        %v2505 = vadd.f32 %v967, %v2504
        %v2506 = vpop.f32.mrb[0].mxu0
        %v2507 = vadd.f32 %v966, %v2506
        %v2508 = vpop.f32.mrb[0].mxu0
        %v2509 = vadd.f32 %v967, %v2508
        %2510 = vdwg.mxu0
        %v2511 = vmax.f32 %v2433, %v2435
        %2512 = vmax.xlane.f32.xlu0 %v2511
        %v2513 = vpop.xlane.xlu0 %2512
        %v2514 = vmax.f32 %v2437, %v2439
        %2515 = vmax.xlane.f32.xlu0 %v2514
        %v2516 = vpop.xlane.xlu0 %2515
        %v2517 = vmax.f32 %v2443, %v2445
        %2518 = vmax.xlane.f32.xlu0 %v2517
        %v2519 = vpop.xlane.xlu0 %2518
        %v2520 = vmax.f32 %v2447, %v2449
        %2521 = vmax.xlane.f32.xlu0 %v2520
        %v2522 = vpop.xlane.xlu0 %2521
        %v2523 = vmax.f32 %v2453, %v2455
        %2524 = vmax.xlane.f32.xlu0 %v2523
        %v2525 = vpop.xlane.xlu0 %2524
        %v2526 = vmax.f32 %v2457, %v2459
        %2527 = vmax.xlane.f32.xlu0 %v2526
        %v2528 = vpop.xlane.xlu0 %2527
        %v2529 = vmax.f32 %v2463, %v2465
        %2530 = vmax.xlane.f32.xlu0 %v2529
        %v2531 = vpop.xlane.xlu0 %2530
        %v2532 = vmax.f32 %v2467, %v2469
        %2533 = vmax.xlane.f32.xlu0 %v2532
        %v2534 = vpop.xlane.xlu0 %2533
        %v2535 = vmax.f32 %v2473, %v2475
        %2536 = vmax.xlane.f32.xlu0 %v2535
        %v2537 = vpop.xlane.xlu0 %2536
        %v2538 = vmax.f32 %v2477, %v2479
        %2539 = vmax.xlane.f32.xlu0 %v2538
        %v2540 = vpop.xlane.xlu0 %2539
        %v2541 = vmax.f32 %v2483, %v2485
        %2542 = vmax.xlane.f32.xlu0 %v2541
        %v2543 = vpop.xlane.xlu0 %2542
        %v2544 = vmax.f32 %v2487, %v2489
        %2545 = vmax.xlane.f32.xlu0 %v2544
        %v2546 = vpop.xlane.xlu0 %2545
        %v2547 = vmax.f32 %v2493, %v2495
        %2548 = vmax.xlane.f32.xlu0 %v2547
        %v2549 = vpop.xlane.xlu0 %2548
        %v2550 = vmax.f32 %v2497, %v2499
        %2551 = vmax.xlane.f32.xlu0 %v2550
        %v2552 = vpop.xlane.xlu0 %2551
        %v2553 = vmax.f32 %v2503, %v2505
        %2554 = vmax.xlane.f32.xlu0 %v2553
        %v2555 = vpop.xlane.xlu0 %2554
        %v2556 = vmax.f32 %v2507, %v2509
        %2557 = vmax.xlane.f32.xlu0 %v2556
        %v2558 = vpop.xlane.xlu0 %2557
        %v2559 = vsub.f32 %v2433, %v2513
        %v2560 = vsub.f32 %v2435, %v2513
        %v2561 = vsub.f32 %v2437, %v2516
        %v2562 = vsub.f32 %v2439, %v2516
        %v2563 = vsub.f32 %v2443, %v2519
        %v2564 = vsub.f32 %v2445, %v2519
        %v2565 = vsub.f32 %v2447, %v2522
        %v2566 = vsub.f32 %v2449, %v2522
        %v2567 = vsub.f32 %v2453, %v2525
        %v2568 = vsub.f32 %v2455, %v2525
        %v2569 = vsub.f32 %v2457, %v2528
        %v2570 = vsub.f32 %v2459, %v2528
        %v2571 = vsub.f32 %v2463, %v2531
        %v2572 = vsub.f32 %v2465, %v2531
        %v2573 = vsub.f32 %v2467, %v2534
        %v2574 = vsub.f32 %v2469, %v2534
        %v2575 = vsub.f32 %v2473, %v2537
        %v2576 = vsub.f32 %v2475, %v2537
        %v2577 = vsub.f32 %v2477, %v2540
        %v2578 = vsub.f32 %v2479, %v2540
        %v2579 = vsub.f32 %v2483, %v2543
        %v2580 = vsub.f32 %v2485, %v2543
        %v2581 = vsub.f32 %v2487, %v2546
        %v2582 = vsub.f32 %v2489, %v2546
        %v2583 = vsub.f32 %v2493, %v2549
        %v2584 = vsub.f32 %v2495, %v2549
        %v2585 = vsub.f32 %v2497, %v2552
        %v2586 = vsub.f32 %v2499, %v2552
        %v2587 = vsub.f32 %v2503, %v2555
        %v2588 = vsub.f32 %v2505, %v2555
        %v2589 = vsub.f32 %v2507, %v2558
        %v2590 = vsub.f32 %v2509, %v2558
        %v2591 = vmul.f32 %v2559, 1.442695
        %v2592 = vpow.pop %v2591
        %v2593 = vmul.f32 %v2560, 1.442695
        %v2594 = vpow.pop %v2593
        %v2595 = vmul.f32 %v2561, 1.442695
        %v2596 = vpow.pop %v2595
        %v2597 = vmul.f32 %v2562, 1.442695
        %v2598 = vpow.pop %v2597
        %v2599 = vmul.f32 %v2563, 1.442695
        %v2600 = vpow.pop %v2599
        %v2601 = vmul.f32 %v2564, 1.442695
        %v2602 = vpow.pop %v2601
        %v2603 = vmul.f32 %v2565, 1.442695
        %v2604 = vpow.pop %v2603
        %v2605 = vmul.f32 %v2566, 1.442695
        %v2606 = vpow.pop %v2605
        %v2607 = vmul.f32 %v2567, 1.442695
        %v2608 = vpow.pop %v2607
        %v2609 = vmul.f32 %v2568, 1.442695
        %v2610 = vpow.pop %v2609
        %v2611 = vmul.f32 %v2569, 1.442695
        %v2612 = vpow.pop %v2611
        %v2613 = vmul.f32 %v2570, 1.442695
        %v2614 = vpow.pop %v2613
        %v2615 = vmul.f32 %v2571, 1.442695
        %v2616 = vpow.pop %v2615
        %v2617 = vmul.f32 %v2572, 1.442695
        %v2618 = vpow.pop %v2617
        %v2619 = vmul.f32 %v2573, 1.442695
        %v2620 = vpow.pop %v2619
        %v2621 = vmul.f32 %v2574, 1.442695
        %v2622 = vpow.pop %v2621
        %v2623 = vmul.f32 %v2575, 1.442695
        %v2624 = vpow.pop %v2623
        %v2625 = vmul.f32 %v2576, 1.442695
        %v2626 = vpow.pop %v2625
        %v2627 = vmul.f32 %v2577, 1.442695
        %v2628 = vpow.pop %v2627
        %v2629 = vmul.f32 %v2578, 1.442695
        %v2630 = vpow.pop %v2629
        %v2631 = vmul.f32 %v2579, 1.442695
        %v2632 = vpow.pop %v2631
        %v2633 = vmul.f32 %v2580, 1.442695
        %v2634 = vpow.pop %v2633
        %v2635 = vmul.f32 %v2581, 1.442695
        %v2636 = vpow.pop %v2635
        %v2637 = vmul.f32 %v2582, 1.442695
        %v2638 = vpow.pop %v2637
        %v2639 = vmul.f32 %v2583, 1.442695
        %v2640 = vpow.pop %v2639
        %v2641 = vmul.f32 %v2584, 1.442695
        %v2642 = vpow.pop %v2641
        %v2643 = vmul.f32 %v2585, 1.442695
        %v2644 = vpow.pop %v2643
        %v2645 = vmul.f32 %v2586, 1.442695
        %v2646 = vpow.pop %v2645
        %v2647 = vmul.f32 %v2587, 1.442695
        %v2648 = vpow.pop %v2647
        %v2649 = vmul.f32 %v2588, 1.442695
        %v2650 = vpow.pop %v2649
        %v2651 = vmul.f32 %v2589, 1.442695
        %v2652 = vpow.pop %v2651
        %v2653 = vmul.f32 %v2590, 1.442695
        %v2654 = vpow.pop %v2653
        %v2655 = vadd.f32 %v2592, %v2594
        %2656 = vadd.xlane.f32.xlu0 %v2655
        %v2657 = vpop.xlane.xlu0 %2656
        %v2658 = vadd.f32 %v2596, %v2598
        %2659 = vadd.xlane.f32.xlu0 %v2658
        %v2660 = vpop.xlane.xlu0 %2659
        %v2661 = vadd.f32 %v2600, %v2602
        %2662 = vadd.xlane.f32.xlu0 %v2661
        %v2663 = vpop.xlane.xlu0 %2662
        %v2664 = vadd.f32 %v2604, %v2606
        %2665 = vadd.xlane.f32.xlu0 %v2664
        %v2666 = vpop.xlane.xlu0 %2665
        %v2667 = vadd.f32 %v2608, %v2610
        %2668 = vadd.xlane.f32.xlu0 %v2667
        %v2669 = vpop.xlane.xlu0 %2668
        %v2670 = vadd.f32 %v2612, %v2614
        %2671 = vadd.xlane.f32.xlu0 %v2670
        %v2672 = vpop.xlane.xlu0 %2671
        %v2673 = vadd.f32 %v2616, %v2618
        %2674 = vadd.xlane.f32.xlu0 %v2673
        %v2675 = vpop.xlane.xlu0 %2674
        %v2676 = vadd.f32 %v2620, %v2622
        %2677 = vadd.xlane.f32.xlu0 %v2676
        %v2678 = vpop.xlane.xlu0 %2677
        %v2679 = vadd.f32 %v2624, %v2626
        %2680 = vadd.xlane.f32.xlu0 %v2679
        %v2681 = vpop.xlane.xlu0 %2680
        %v2682 = vadd.f32 %v2628, %v2630
        %2683 = vadd.xlane.f32.xlu0 %v2682
        %v2684 = vpop.xlane.xlu0 %2683
        %v2685 = vadd.f32 %v2632, %v2634
        %2686 = vadd.xlane.f32.xlu0 %v2685
        %v2687 = vpop.xlane.xlu0 %2686
        %v2688 = vadd.f32 %v2636, %v2638
        %2689 = vadd.xlane.f32.xlu0 %v2688
        %v2690 = vpop.xlane.xlu0 %2689
        %v2691 = vadd.f32 %v2640, %v2642
        %2692 = vadd.xlane.f32.xlu0 %v2691
        %v2693 = vpop.xlane.xlu0 %2692
        %v2694 = vadd.f32 %v2644, %v2646
        %2695 = vadd.xlane.f32.xlu0 %v2694
        %v2696 = vpop.xlane.xlu0 %2695
        %v2697 = vadd.f32 %v2648, %v2650
        %2698 = vadd.xlane.f32.xlu0 %v2697
        %v2699 = vpop.xlane.xlu0 %2698
        %v2700 = vadd.f32 %v2652, %v2654
        %2701 = vadd.xlane.f32.xlu0 %v2700
        %v2702 = vpop.xlane.xlu0 %2701
        %v2703 = vrcp.pop %v2657
        %v2704 = vmul.f32 %v2592, %v2703
        %v2705 = vmul.f32 %v2594, %v2703
        %v2706 = vrcp.pop %v2660
        %v2707 = vmul.f32 %v2596, %v2706
        %v2708 = vmul.f32 %v2598, %v2706
        %v2709 = vrcp.pop %v2663
        %v2710 = vmul.f32 %v2600, %v2709
        %v2711 = vmul.f32 %v2602, %v2709
        %v2712 = vrcp.pop %v2666
        %v2713 = vmul.f32 %v2604, %v2712
        %v2714 = vmul.f32 %v2606, %v2712
        %v2715 = vrcp.pop %v2669
        %v2716 = vmul.f32 %v2608, %v2715
        %v2717 = vmul.f32 %v2610, %v2715
        %v2718 = vrcp.pop %v2672
        %v2719 = vmul.f32 %v2612, %v2718
        %v2720 = vmul.f32 %v2614, %v2718
        %v2721 = vrcp.pop %v2675
        %v2722 = vmul.f32 %v2616, %v2721
        %v2723 = vmul.f32 %v2618, %v2721
        %v2724 = vrcp.pop %v2678
        %v2725 = vmul.f32 %v2620, %v2724
        %v2726 = vmul.f32 %v2622, %v2724
        %v2727 = vrcp.pop %v2681
        %v2728 = vmul.f32 %v2624, %v2727
        %v2729 = vmul.f32 %v2626, %v2727
        %v2730 = vrcp.pop %v2684
        %v2731 = vmul.f32 %v2628, %v2730
        %v2732 = vmul.f32 %v2630, %v2730
        %v2733 = vrcp.pop %v2687
        %v2734 = vmul.f32 %v2632, %v2733
        %v2735 = vmul.f32 %v2634, %v2733
        %v2736 = vrcp.pop %v2690
        %v2737 = vmul.f32 %v2636, %v2736
        %v2738 = vmul.f32 %v2638, %v2736
        %v2739 = vrcp.pop %v2693
        %v2740 = vmul.f32 %v2640, %v2739
        %v2741 = vmul.f32 %v2642, %v2739
        %v2742 = vrcp.pop %v2696
        %v2743 = vmul.f32 %v2644, %v2742
        %v2744 = vmul.f32 %v2646, %v2742
        %v2745 = vrcp.pop %v2699
        %v2746 = vmul.f32 %v2648, %v2745
        %v2747 = vmul.f32 %v2650, %v2745
        %v2748 = vrcp.pop %v2702
        %v2749 = vmul.f32 %v2652, %v2748
        %v2750 = vmul.f32 %v2654, %v2748
        %v2751 = vpack.c.bf16 %v2707, %v2704
        %v2752 = vpack.c.bf16 %v2708, %v2705
        %v2753 = vpack.c.bf16 %v2713, %v2710
        %v2754 = vpack.c.bf16 %v2714, %v2711
        %v2755 = vpack.c.bf16 %v2719, %v2716
        %v2756 = vpack.c.bf16 %v2720, %v2717
        %v2757 = vpack.c.bf16 %v2725, %v2722
        %v2758 = vpack.c.bf16 %v2726, %v2723
        %v2759 = vpack.c.bf16 %v2731, %v2728
        %v2760 = vpack.c.bf16 %v2732, %v2729
        %v2761 = vpack.c.bf16 %v2737, %v2734
        %v2762 = vpack.c.bf16 %v2738, %v2735
        %v2763 = vpack.c.bf16 %v2743, %v2740
        %v2764 = vpack.c.bf16 %v2744, %v2741
        %v2765 = vpack.c.bf16 %v2749, %v2746
        %v2766 = vpack.c.bf16 %v2750, %v2747
        %2767 = vrot.lane.b32.xlu0 %v945, 96
        %v2768 = vpop.permute.xlu0 %2767
        %2769 = vrot.lane.b32.xlu0 %v946, 96
        %v2770 = vpop.permute.xlu0 %2769
        %2771 = vrot.lane.b32.xlu0 %v947, 96
        %v2772 = vpop.permute.xlu0 %2771
        %2773 = vrot.lane.b32.xlu0 %v948, 96
        %v2774 = vpop.permute.xlu0 %2773
        %2775 = vrot.lane.b32.xlu0 %v949, 96
        %v2776 = vpop.permute.xlu0 %2775
        %2777 = vrot.lane.b32.xlu0 %v950, 96
        %v2778 = vpop.permute.xlu0 %2777
        %2779 = vrot.lane.b32.xlu0 %v951, 96
        %v2780 = vpop.permute.xlu0 %2779
        %2781 = vrot.lane.b32.xlu0 %v952, 96
        %v2782 = vpop.permute.xlu0 %2781
        %2783 = vrot.lane.b32.xlu0 %v953, 96
        %v2784 = vpop.permute.xlu0 %2783
        %2785 = vrot.lane.b32.xlu0 %v954, 96
        %v2786 = vpop.permute.xlu0 %2785
        %2787 = vrot.lane.b32.xlu0 %v955, 96
        %v2788 = vpop.permute.xlu0 %2787
        %2789 = vrot.lane.b32.xlu0 %v956, 96
        %v2790 = vpop.permute.xlu0 %2789
        %2791 = vrot.lane.b32.xlu0 %v957, 96
        %v2792 = vpop.permute.xlu0 %2791
        %2793 = vrot.lane.b32.xlu0 %v958, 96
        %v2794 = vpop.permute.xlu0 %2793
        %2795 = vrot.lane.b32.xlu0 %v959, 96
        %v2796 = vpop.permute.xlu0 %2795
        %2797 = vrot.lane.b32.xlu0 %v960, 96
        %v2798 = vpop.permute.xlu0 %2797
        %2815 = vmatprep.subr.bf16.mxu0 0
        %2816 = vmatpush1.bf16.msra.mxu0 %v2768
        %2817 = vmatprep.subr.bf16.mxu0 0
        %2818 = vmatpush1.bf16.msra.mxu0 %v2770
        %2819 = vmatprep.subr.bf16.mxu0 0
        %2820 = vmatpush1.bf16.msra.mxu0 %v2772
        %2821 = vmatprep.subr.bf16.mxu0 0
        %2822 = vmatpush1.bf16.msra.mxu0 %v2774
        %2823 = vmatprep.subr.bf16.mxu0 0
        %2824 = vmatpush1.bf16.msra.mxu0 %v2776
        %2825 = vmatprep.subr.bf16.mxu0 0
        %2826 = vmatpush1.bf16.msra.mxu0 %v2778
        %2827 = vmatprep.subr.bf16.mxu0 0
        %2828 = vmatpush1.bf16.msra.mxu0 %v2780
        %2829 = vmatprep.subr.bf16.mxu0 0
        %2830 = vmatpush1.bf16.msra.mxu0 %v2782
        %2831 = vmatprep.subr.bf16.mxu0 0
        %2832 = vmatpush1.bf16.msra.mxu0 %v2784
        %2833 = vmatprep.subr.bf16.mxu0 0
        %2834 = vmatpush1.bf16.msra.mxu0 %v2786
        %2835 = vmatprep.subr.bf16.mxu0 0
        %2836 = vmatpush1.bf16.msra.mxu0 %v2788
        %2837 = vmatprep.subr.bf16.mxu0 0
        %2838 = vmatpush1.bf16.msra.mxu0 %v2790
        %2839 = vmatprep.subr.bf16.mxu0 0
        %2840 = vmatpush1.bf16.msra.mxu0 %v2792
        %2841 = vmatprep.subr.bf16.mxu0 0
        %2842 = vmatpush1.bf16.msra.mxu0 %v2794
        %2843 = vmatprep.subr.bf16.mxu0 0
        %2844 = vmatpush1.bf16.msra.mxu0 %v2796
        %2845 = vmatprep.subr.bf16.mxu0 0
        %2846 = vmatpush1.bf16.msra.mxu0 %v2798
        %2847 = vmatprep.mubr.bf16.mxu0 %v2752
        %2848 = vmatmul.mubr.bf16.gmra.mrb[0].mxu0 %v2751
        %v2849 = vpop.f32.mrb[0].mxu0
        %v2850 = vadd.f32 0.0, %v2849
        %v2851 = vpop.f32.mrb[0].mxu0
        %v2852 = vpop.f32.mrb[0].mxu0
        %v2853 = vadd.f32 0.0, %v2852
        %v2854 = vpop.f32.mrb[0].mxu0
        %2855 = vmatprep.mubr.bf16.mxu0 %v2754
        %2856 = vmatmul.mubr.bf16.gmra.mrb[0].mxu0 %v2753
        %v2857 = vpop.f32.mrb[0].mxu0
        %v2858 = vadd.f32 0.0, %v2857
        %v2859 = vpop.f32.mrb[0].mxu0
        %v2860 = vpop.f32.mrb[0].mxu0
        %v2861 = vadd.f32 0.0, %v2860
        %v2862 = vpop.f32.mrb[0].mxu0
        %2863 = vmatprep.mubr.bf16.mxu0 %v2756
        %2864 = vmatmul.mubr.bf16.gmra.mrb[0].mxu0 %v2755
        %v2865 = vpop.f32.mrb[0].mxu0
        %v2866 = vadd.f32 0.0, %v2865
        %v2867 = vpop.f32.mrb[0].mxu0
        %v2868 = vpop.f32.mrb[0].mxu0
        %v2869 = vadd.f32 0.0, %v2868
        %v2870 = vpop.f32.mrb[0].mxu0
        %2871 = vmatprep.mubr.bf16.mxu0 %v2758
        %2872 = vmatmul.mubr.bf16.gmra.mrb[0].mxu0 %v2757
        %v2873 = vpop.f32.mrb[0].mxu0
        %v2874 = vadd.f32 0.0, %v2873
        %v2875 = vpop.f32.mrb[0].mxu0
        %v2876 = vpop.f32.mrb[0].mxu0
        %v2877 = vadd.f32 0.0, %v2876
        %v2878 = vpop.f32.mrb[0].mxu0
        %2879 = vmatprep.mubr.bf16.mxu0 %v2760
        %2880 = vmatmul.mubr.bf16.gmra.mrb[0].mxu0 %v2759
        %v2881 = vpop.f32.mrb[0].mxu0
        %v2882 = vadd.f32 0.0, %v2881
        %v2883 = vpop.f32.mrb[0].mxu0
        %v2884 = vpop.f32.mrb[0].mxu0
        %v2885 = vadd.f32 0.0, %v2884
        %v2886 = vpop.f32.mrb[0].mxu0
        %2887 = vmatprep.mubr.bf16.mxu0 %v2762
        %2888 = vmatmul.mubr.bf16.gmra.mrb[0].mxu0 %v2761
        %v2889 = vpop.f32.mrb[0].mxu0
        %v2890 = vadd.f32 0.0, %v2889
        %v2891 = vpop.f32.mrb[0].mxu0
        %v2892 = vpop.f32.mrb[0].mxu0
        %v2893 = vadd.f32 0.0, %v2892
        %v2894 = vpop.f32.mrb[0].mxu0
        %2895 = vmatprep.mubr.bf16.mxu0 %v2764
        %2896 = vmatmul.mubr.bf16.gmra.mrb[0].mxu0 %v2763
        %v2897 = vpop.f32.mrb[0].mxu0
        %v2898 = vadd.f32 0.0, %v2897
        %v2899 = vpop.f32.mrb[0].mxu0
        %v2900 = vpop.f32.mrb[0].mxu0
        %v2901 = vadd.f32 0.0, %v2900
        %v2902 = vpop.f32.mrb[0].mxu0
        %2903 = vmatprep.mubr.bf16.mxu0 %v2766
        %2904 = vmatmul.mubr.bf16.gmra.mrb[0].mxu0 %v2765
        %v2905 = vpop.f32.mrb[0].mxu0
        %v2906 = vadd.f32 0.0, %v2905
        %v2907 = vpop.f32.mrb[0].mxu0
        %v2908 = vpop.f32.mrb[0].mxu0
        %v2909 = vadd.f32 0.0, %v2908
        %v2910 = vpop.f32.mrb[0].mxu0
        %2911 = vdwg.mxu0
        %2928 = vrot.lane.b32.xlu0 %v2850, 32
        %v2929 = vpop.permute.xlu0 %2928
        %2930 = vrot.lane.b32.xlu0 %v2853, 32
        %v2931 = vpop.permute.xlu0 %2930
        %2932 = vrot.lane.b32.xlu0 %v2858, 32
        %v2933 = vpop.permute.xlu0 %2932
        %2934 = vrot.lane.b32.xlu0 %v2861, 32
        %v2935 = vpop.permute.xlu0 %2934
        %2936 = vrot.lane.b32.xlu0 %v2866, 32
        %v2937 = vpop.permute.xlu0 %2936
        %2938 = vrot.lane.b32.xlu0 %v2869, 32
        %v2939 = vpop.permute.xlu0 %2938
        %2940 = vrot.lane.b32.xlu0 %v2874, 32
        %v2941 = vpop.permute.xlu0 %2940
        %2942 = vrot.lane.b32.xlu0 %v2877, 32
        %v2943 = vpop.permute.xlu0 %2942
        %2944 = vrot.lane.b32.xlu0 %v2882, 32
        %v2945 = vpop.permute.xlu0 %2944
        %2946 = vrot.lane.b32.xlu0 %v2885, 32
        %v2947 = vpop.permute.xlu0 %2946
        %2948 = vrot.lane.b32.xlu0 %v2890, 32
        %v2949 = vpop.permute.xlu0 %2948
        %2950 = vrot.lane.b32.xlu0 %v2893, 32
        %v2951 = vpop.permute.xlu0 %2950
        %2952 = vrot.lane.b32.xlu0 %v2898, 32
        %v2953 = vpop.permute.xlu0 %2952
        %2954 = vrot.lane.b32.xlu0 %v2901, 32
        %v2955 = vpop.permute.xlu0 %2954
        %2956 = vrot.lane.b32.xlu0 %v2906, 32
        %v2957 = vpop.permute.xlu0 %2956
        %2958 = vrot.lane.b32.xlu0 %v2909, 32
        %v2959 = vpop.permute.xlu0 %2958
        %vm2976 = vcmask 392448
        %2977 = vst.msk [vmem:[#allocation2] sm:$0xff] %vm2976, %v2929
        %2978 = vst.msk [vmem:[#allocation2 + $0x8] sm:$0xff] %vm2976, %v2931
        %2979 = vst.msk [vmem:[#allocation2 + $0x10] sm:$0xff] %vm2976, %v2933
        %2980 = vst.msk [vmem:[#allocation2 + $0x18] sm:$0xff] %vm2976, %v2935
        %2981 = vst.msk [vmem:[#allocation2 + $0x20] sm:$0xff] %vm2976, %v2937
        %2982 = vst.msk [vmem:[#allocation2 + $0x28] sm:$0xff] %vm2976, %v2939
        %2983 = vst.msk [vmem:[#allocation2 + $0x30] sm:$0xff] %vm2976, %v2941
        %2984 = vst.msk [vmem:[#allocation2 + $0x38] sm:$0xff] %vm2976, %v2943
        %2985 = vst.msk [vmem:[#allocation2 + $0x40] sm:$0xff] %vm2976, %v2945
        %2986 = vst.msk [vmem:[#allocation2 + $0x48] sm:$0xff] %vm2976, %v2947
        %2987 = vst.msk [vmem:[#allocation2 + $0x50] sm:$0xff] %vm2976, %v2949
        %2988 = vst.msk [vmem:[#allocation2 + $0x58] sm:$0xff] %vm2976, %v2951
        %2989 = vst.msk [vmem:[#allocation2 + $0x60] sm:$0xff] %vm2976, %v2953
        %2990 = vst.msk [vmem:[#allocation2 + $0x68] sm:$0xff] %vm2976, %v2955
        %2991 = vst.msk [vmem:[#allocation2 + $0x70] sm:$0xff] %vm2976, %v2957
        %2992 = vst.msk [vmem:[#allocation2 + $0x78] sm:$0xff] %vm2976, %v2959
        %2993 = vrot.lane.b32.xlu0 %v921, 80
        %v2994 = vpop.permute.xlu0 %2993
        %2995 = vrot.lane.b32.xlu0 %v922, 80
        %v2996 = vpop.permute.xlu0 %2995
        %2997 = vrot.lane.b32.xlu0 %v923, 80
        %v2998 = vpop.permute.xlu0 %2997
        %2999 = vrot.lane.b32.xlu0 %v924, 80
        %v3000 = vpop.permute.xlu0 %2999
        %3001 = vrot.lane.b32.xlu0 %v925, 80
        %v3002 = vpop.permute.xlu0 %3001
        %3003 = vrot.lane.b32.xlu0 %v926, 80
        %v3004 = vpop.permute.xlu0 %3003
        %3005 = vrot.lane.b32.xlu0 %v927, 80
        %v3006 = vpop.permute.xlu0 %3005
        %3007 = vrot.lane.b32.xlu0 %v928, 80
        %v3008 = vpop.permute.xlu0 %3007
        %3009 = vrot.lane.b32.xlu0 %v929, 80
        %v3010 = vpop.permute.xlu0 %3009
        %3011 = vrot.lane.b32.xlu0 %v930, 80
        %v3012 = vpop.permute.xlu0 %3011
        %3013 = vrot.lane.b32.xlu0 %v931, 80
        %v3014 = vpop.permute.xlu0 %3013
        %3015 = vrot.lane.b32.xlu0 %v932, 80
        %v3016 = vpop.permute.xlu0 %3015
        %3017 = vrot.lane.b32.xlu0 %v933, 80
        %v3018 = vpop.permute.xlu0 %3017
        %3019 = vrot.lane.b32.xlu0 %v934, 80
        %v3020 = vpop.permute.xlu0 %3019
        %3021 = vrot.lane.b32.xlu0 %v935, 80
        %v3022 = vpop.permute.xlu0 %3021
        %3023 = vrot.lane.b32.xlu0 %v936, 80
        %v3024 = vpop.permute.xlu0 %3023
        %3025 = vrot.lane.b32.xlu0 %v937, 80
        %v3026 = vpop.permute.xlu0 %3025
        %3027 = vrot.lane.b32.xlu0 %v938, 80
        %v3028 = vpop.permute.xlu0 %3027
        %3029 = vrot.lane.b32.xlu0 %v939, 80
        %v3030 = vpop.permute.xlu0 %3029
        %3031 = vrot.lane.b32.xlu0 %v940, 80
        %v3032 = vpop.permute.xlu0 %3031
        %3033 = vrot.lane.b32.xlu0 %v941, 80
        %v3034 = vpop.permute.xlu0 %3033
        %3035 = vrot.lane.b32.xlu0 %v942, 80
        %v3036 = vpop.permute.xlu0 %3035
        %3037 = vrot.lane.b32.xlu0 %v943, 80
        %v3038 = vpop.permute.xlu0 %3037
        %3039 = vrot.lane.b32.xlu0 %v944, 80
        %v3040 = vpop.permute.xlu0 %3039
        %v3042 = vsel %vm968, %v2994, 0
        %v3045 = vsel %vm968, %v2996, 0
        %v3048 = vsel %vm968, %v2998, 0
        %v3051 = vsel %vm968, %v3000, 0
        %v3054 = vsel %vm968, %v3002, 0
        %v3057 = vsel %vm968, %v3004, 0
        %v3060 = vsel %vm968, %v3006, 0
        %v3063 = vsel %vm968, %v3008, 0
        %v3066 = vsel %vm968, %v3010, 0
        %v3069 = vsel %vm968, %v3012, 0
        %v3072 = vsel %vm968, %v3014, 0
        %v3075 = vsel %vm968, %v3016, 0
        %v3078 = vsel %vm968, %v3018, 0
        %v3081 = vsel %vm968, %v3020, 0
        %v3084 = vsel %vm968, %v3022, 0
        %v3087 = vsel %vm968, %v3024, 0
        %v3090 = vsel %vm968, %v3026, 0
        %v3093 = vsel %vm968, %v3028, 0
        %v3096 = vsel %vm968, %v3030, 0
        %v3099 = vsel %vm968, %v3032, 0
        %v3102 = vsel %vm968, %v3034, 0
        %v3105 = vsel %vm968, %v3036, 0
        %v3108 = vsel %vm968, %v3038, 0
        %v3111 = vsel %vm968, %v3040, 0
        %3113 = vmatprep.subr.bf16.mxu0 0
        %3114 = vmatpush1.bf16.xpose.msra.mxu0 %v3066
        %3115 = vmatprep.subr.bf16.mxu0 0
        %3116 = vmatpush1.bf16.xpose.msra.mxu0 %v3069
        %3117 = vmatprep.subr.bf16.mxu0 0
        %3118 = vmatpush1.bf16.xpose.msra.mxu0 %v3072
        %3119 = vmatprep.subr.bf16.mxu0 0
        %3120 = vmatpush1.bf16.xpose.msra.mxu0 %v3075
        %3121 = vmatprep.subr.bf16.mxu0 0
        %3122 = vmatpush1.bf16.xpose.msra.mxu0 %v3078
        %3123 = vmatprep.subr.bf16.mxu0 0
        %3124 = vmatpush1.bf16.xpose.msra.mxu0 %v3081
        %3125 = vmatprep.subr.bf16.mxu0 0
        %3126 = vmatpush1.bf16.xpose.msra.mxu0 %v3084
        %3127 = vmatprep.subr.bf16.mxu0 0
        %3128 = vmatpush1.bf16.xpose.msra.mxu0 %v3087
        %3129 = vmatprep.subr.bf16.mxu0 0
        %3130 = vmatpush1.bf16.xpose.msra.mxu0 %v3090
        %3131 = vmatprep.subr.bf16.mxu0 0
        %3132 = vmatpush1.bf16.xpose.msra.mxu0 %v3093
        %3133 = vmatprep.subr.bf16.mxu0 0
        %3134 = vmatpush1.bf16.xpose.msra.mxu0 %v3096
        %3135 = vmatprep.subr.bf16.mxu0 0
        %3136 = vmatpush1.bf16.xpose.msra.mxu0 %v3099
        %3137 = vmatprep.subr.bf16.mxu0 0
        %3138 = vmatpush1.bf16.xpose.msra.mxu0 %v3102
        %3139 = vmatprep.subr.bf16.mxu0 0
        %3140 = vmatpush1.bf16.xpose.msra.mxu0 %v3105
        %3141 = vmatprep.subr.bf16.mxu0 0
        %3142 = vmatpush1.bf16.xpose.msra.mxu0 %v3108
        %3143 = vmatprep.subr.bf16.mxu0 0
        %3144 = vmatpush1.bf16.xpose.msra.mxu0 %v3111
        %3145 = vmatprep.mubr.bf16.mxu0 0
        %3146 = vmatmul.mubr.bf16.gmra.mrb[0].mxu0 %v3042
        %v3147 = vpop.f32.mrb[0].mxu0
        %v3148 = vadd.f32 %v966, %v3147
        %v3149 = vpop.f32.mrb[0].mxu0
        %v3150 = vadd.f32 %v967, %v3149
        %v3151 = vpop.f32.mrb[0].mxu0
        %v3152 = vadd.f32 %v966, %v3151
        %v3153 = vpop.f32.mrb[0].mxu0
        %v3154 = vadd.f32 %v967, %v3153
        %3155 = vmatprep.mubr.bf16.mxu0 0
        %3156 = vmatmul.mubr.bf16.gmra.mrb[0].mxu0 %v3045
        %v3157 = vpop.f32.mrb[0].mxu0
        %v3158 = vadd.f32 %v966, %v3157
        %v3159 = vpop.f32.mrb[0].mxu0
        %v3160 = vadd.f32 %v967, %v3159
        %v3161 = vpop.f32.mrb[0].mxu0
        %v3162 = vadd.f32 %v966, %v3161
        %v3163 = vpop.f32.mrb[0].mxu0
        %v3164 = vadd.f32 %v967, %v3163
        %3165 = vmatprep.mubr.bf16.mxu0 0
        %3166 = vmatmul.mubr.bf16.gmra.mrb[0].mxu0 %v3048
        %v3167 = vpop.f32.mrb[0].mxu0
        %v3168 = vadd.f32 %v966, %v3167
        %v3169 = vpop.f32.mrb[0].mxu0
        %v3170 = vadd.f32 %v967, %v3169
        %v3171 = vpop.f32.mrb[0].mxu0
        %v3172 = vadd.f32 %v966, %v3171
        %v3173 = vpop.f32.mrb[0].mxu0
        %v3174 = vadd.f32 %v967, %v3173
        %3175 = vmatprep.mubr.bf16.mxu0 0
        %3176 = vmatmul.mubr.bf16.gmra.mrb[0].mxu0 %v3051
        %v3177 = vpop.f32.mrb[0].mxu0
        %v3178 = vadd.f32 %v966, %v3177
        %v3179 = vpop.f32.mrb[0].mxu0
        %v3180 = vadd.f32 %v967, %v3179
        %v3181 = vpop.f32.mrb[0].mxu0
        %v3182 = vadd.f32 %v966, %v3181
        %v3183 = vpop.f32.mrb[0].mxu0
        %v3184 = vadd.f32 %v967, %v3183
        %3185 = vmatprep.mubr.bf16.mxu0 0
        %3186 = vmatmul.mubr.bf16.gmra.mrb[0].mxu0 %v3054
        %v3187 = vpop.f32.mrb[0].mxu0
        %v3188 = vadd.f32 %v966, %v3187
        %v3189 = vpop.f32.mrb[0].mxu0
        %v3190 = vadd.f32 %v967, %v3189
        %v3191 = vpop.f32.mrb[0].mxu0
        %v3192 = vadd.f32 %v966, %v3191
        %v3193 = vpop.f32.mrb[0].mxu0
        %v3194 = vadd.f32 %v967, %v3193
        %3195 = vmatprep.mubr.bf16.mxu0 0
        %3196 = vmatmul.mubr.bf16.gmra.mrb[0].mxu0 %v3057
        %v3197 = vpop.f32.mrb[0].mxu0
        %v3198 = vadd.f32 %v966, %v3197
        %v3199 = vpop.f32.mrb[0].mxu0
        %v3200 = vadd.f32 %v967, %v3199
        %v3201 = vpop.f32.mrb[0].mxu0
        %v3202 = vadd.f32 %v966, %v3201
        %v3203 = vpop.f32.mrb[0].mxu0
        %v3204 = vadd.f32 %v967, %v3203
        %3205 = vmatprep.mubr.bf16.mxu0 0
        %3206 = vmatmul.mubr.bf16.gmra.mrb[0].mxu0 %v3060
        %v3207 = vpop.f32.mrb[0].mxu0
        %v3208 = vadd.f32 %v966, %v3207
        %v3209 = vpop.f32.mrb[0].mxu0
        %v3210 = vadd.f32 %v967, %v3209
        %v3211 = vpop.f32.mrb[0].mxu0
        %v3212 = vadd.f32 %v966, %v3211
        %v3213 = vpop.f32.mrb[0].mxu0
        %v3214 = vadd.f32 %v967, %v3213
        %3215 = vmatprep.mubr.bf16.mxu0 0
        %3216 = vmatmul.mubr.bf16.gmra.mrb[0].mxu0 %v3063
        %v3217 = vpop.f32.mrb[0].mxu0
        %v3218 = vadd.f32 %v966, %v3217
        %v3219 = vpop.f32.mrb[0].mxu0
        %v3220 = vadd.f32 %v967, %v3219
        %v3221 = vpop.f32.mrb[0].mxu0
        %v3222 = vadd.f32 %v966, %v3221
        %v3223 = vpop.f32.mrb[0].mxu0
        %v3224 = vadd.f32 %v967, %v3223
        %3225 = vdwg.mxu0
        %v3226 = vmax.f32 %v3148, %v3150
        %3227 = vmax.xlane.f32.xlu0 %v3226
        %v3228 = vpop.xlane.xlu0 %3227
        %v3229 = vmax.f32 %v3152, %v3154
        %3230 = vmax.xlane.f32.xlu0 %v3229
        %v3231 = vpop.xlane.xlu0 %3230
        %v3232 = vmax.f32 %v3158, %v3160
        %3233 = vmax.xlane.f32.xlu0 %v3232
        %v3234 = vpop.xlane.xlu0 %3233
        %v3235 = vmax.f32 %v3162, %v3164
        %3236 = vmax.xlane.f32.xlu0 %v3235
        %v3237 = vpop.xlane.xlu0 %3236
        %v3238 = vmax.f32 %v3168, %v3170
        %3239 = vmax.xlane.f32.xlu0 %v3238
        %v3240 = vpop.xlane.xlu0 %3239
        %v3241 = vmax.f32 %v3172, %v3174
        %3242 = vmax.xlane.f32.xlu0 %v3241
        %v3243 = vpop.xlane.xlu0 %3242
        %v3244 = vmax.f32 %v3178, %v3180
        %3245 = vmax.xlane.f32.xlu0 %v3244
        %v3246 = vpop.xlane.xlu0 %3245
        %v3247 = vmax.f32 %v3182, %v3184
        %3248 = vmax.xlane.f32.xlu0 %v3247
        %v3249 = vpop.xlane.xlu0 %3248
        %v3250 = vmax.f32 %v3188, %v3190
        %3251 = vmax.xlane.f32.xlu0 %v3250
        %v3252 = vpop.xlane.xlu0 %3251
        %v3253 = vmax.f32 %v3192, %v3194
        %3254 = vmax.xlane.f32.xlu0 %v3253
        %v3255 = vpop.xlane.xlu0 %3254
        %v3256 = vmax.f32 %v3198, %v3200
        %3257 = vmax.xlane.f32.xlu0 %v3256
        %v3258 = vpop.xlane.xlu0 %3257
        %v3259 = vmax.f32 %v3202, %v3204
        %3260 = vmax.xlane.f32.xlu0 %v3259
        %v3261 = vpop.xlane.xlu0 %3260
        %v3262 = vmax.f32 %v3208, %v3210
        %3263 = vmax.xlane.f32.xlu0 %v3262
        %v3264 = vpop.xlane.xlu0 %3263
        %v3265 = vmax.f32 %v3212, %v3214
        %3266 = vmax.xlane.f32.xlu0 %v3265
        %v3267 = vpop.xlane.xlu0 %3266
        %v3268 = vmax.f32 %v3218, %v3220
        %3269 = vmax.xlane.f32.xlu0 %v3268
        %v3270 = vpop.xlane.xlu0 %3269
        %v3271 = vmax.f32 %v3222, %v3224
        %3272 = vmax.xlane.f32.xlu0 %v3271
        %v3273 = vpop.xlane.xlu0 %3272
        %v3274 = vsub.f32 %v3148, %v3228
        %v3275 = vsub.f32 %v3150, %v3228
        %v3276 = vsub.f32 %v3152, %v3231
        %v3277 = vsub.f32 %v3154, %v3231
        %v3278 = vsub.f32 %v3158, %v3234
        %v3279 = vsub.f32 %v3160, %v3234
        %v3280 = vsub.f32 %v3162, %v3237
        %v3281 = vsub.f32 %v3164, %v3237
        %v3282 = vsub.f32 %v3168, %v3240
        %v3283 = vsub.f32 %v3170, %v3240
        %v3284 = vsub.f32 %v3172, %v3243
        %v3285 = vsub.f32 %v3174, %v3243
        %v3286 = vsub.f32 %v3178, %v3246
        %v3287 = vsub.f32 %v3180, %v3246
        %v3288 = vsub.f32 %v3182, %v3249
        %v3289 = vsub.f32 %v3184, %v3249
        %v3290 = vsub.f32 %v3188, %v3252
        %v3291 = vsub.f32 %v3190, %v3252
        %v3292 = vsub.f32 %v3192, %v3255
        %v3293 = vsub.f32 %v3194, %v3255
        %v3294 = vsub.f32 %v3198, %v3258
        %v3295 = vsub.f32 %v3200, %v3258
        %v3296 = vsub.f32 %v3202, %v3261
        %v3297 = vsub.f32 %v3204, %v3261
        %v3298 = vsub.f32 %v3208, %v3264
        %v3299 = vsub.f32 %v3210, %v3264
        %v3300 = vsub.f32 %v3212, %v3267
        %v3301 = vsub.f32 %v3214, %v3267
        %v3302 = vsub.f32 %v3218, %v3270
        %v3303 = vsub.f32 %v3220, %v3270
        %v3304 = vsub.f32 %v3222, %v3273
        %v3305 = vsub.f32 %v3224, %v3273
        %v3306 = vmul.f32 %v3274, 1.442695
        %v3307 = vpow.pop %v3306
        %v3308 = vmul.f32 %v3275, 1.442695
        %v3309 = vpow.pop %v3308
        %v3310 = vmul.f32 %v3276, 1.442695
        %v3311 = vpow.pop %v3310
        %v3312 = vmul.f32 %v3277, 1.442695
        %v3313 = vpow.pop %v3312
        %v3314 = vmul.f32 %v3278, 1.442695
        %v3315 = vpow.pop %v3314
        %v3316 = vmul.f32 %v3279, 1.442695
        %v3317 = vpow.pop %v3316
        %v3318 = vmul.f32 %v3280, 1.442695
        %v3319 = vpow.pop %v3318
        %v3320 = vmul.f32 %v3281, 1.442695
        %v3321 = vpow.pop %v3320
        %v3322 = vmul.f32 %v3282, 1.442695
        %v3323 = vpow.pop %v3322
        %v3324 = vmul.f32 %v3283, 1.442695
        %v3325 = vpow.pop %v3324
        %v3326 = vmul.f32 %v3284, 1.442695
        %v3327 = vpow.pop %v3326
        %v3328 = vmul.f32 %v3285, 1.442695
        %v3329 = vpow.pop %v3328
        %v3330 = vmul.f32 %v3286, 1.442695
        %v3331 = vpow.pop %v3330
        %v3332 = vmul.f32 %v3287, 1.442695
        %v3333 = vpow.pop %v3332
        %v3334 = vmul.f32 %v3288, 1.442695
        %v3335 = vpow.pop %v3334
        %v3336 = vmul.f32 %v3289, 1.442695
        %v3337 = vpow.pop %v3336
        %v3338 = vmul.f32 %v3290, 1.442695
        %v3339 = vpow.pop %v3338
        %v3340 = vmul.f32 %v3291, 1.442695
        %v3341 = vpow.pop %v3340
        %v3342 = vmul.f32 %v3292, 1.442695
        %v3343 = vpow.pop %v3342
        %v3344 = vmul.f32 %v3293, 1.442695
        %v3345 = vpow.pop %v3344
        %v3346 = vmul.f32 %v3294, 1.442695
        %v3347 = vpow.pop %v3346
        %v3348 = vmul.f32 %v3295, 1.442695
        %v3349 = vpow.pop %v3348
        %v3350 = vmul.f32 %v3296, 1.442695
        %v3351 = vpow.pop %v3350
        %v3352 = vmul.f32 %v3297, 1.442695
        %v3353 = vpow.pop %v3352
        %v3354 = vmul.f32 %v3298, 1.442695
        %v3355 = vpow.pop %v3354
        %v3356 = vmul.f32 %v3299, 1.442695
        %v3357 = vpow.pop %v3356
        %v3358 = vmul.f32 %v3300, 1.442695
        %v3359 = vpow.pop %v3358
        %v3360 = vmul.f32 %v3301, 1.442695
        %v3361 = vpow.pop %v3360
        %v3362 = vmul.f32 %v3302, 1.442695
        %v3363 = vpow.pop %v3362
        %v3364 = vmul.f32 %v3303, 1.442695
        %v3365 = vpow.pop %v3364
        %v3366 = vmul.f32 %v3304, 1.442695
        %v3367 = vpow.pop %v3366
        %v3368 = vmul.f32 %v3305, 1.442695
        %v3369 = vpow.pop %v3368
        %v3370 = vadd.f32 %v3307, %v3309
        %3371 = vadd.xlane.f32.xlu0 %v3370
        %v3372 = vpop.xlane.xlu0 %3371
        %v3373 = vadd.f32 %v3311, %v3313
        %3374 = vadd.xlane.f32.xlu0 %v3373
        %v3375 = vpop.xlane.xlu0 %3374
        %v3376 = vadd.f32 %v3315, %v3317
        %3377 = vadd.xlane.f32.xlu0 %v3376
        %v3378 = vpop.xlane.xlu0 %3377
        %v3379 = vadd.f32 %v3319, %v3321
        %3380 = vadd.xlane.f32.xlu0 %v3379
        %v3381 = vpop.xlane.xlu0 %3380
        %v3382 = vadd.f32 %v3323, %v3325
        %3383 = vadd.xlane.f32.xlu0 %v3382
        %v3384 = vpop.xlane.xlu0 %3383
        %v3385 = vadd.f32 %v3327, %v3329
        %3386 = vadd.xlane.f32.xlu0 %v3385
        %v3387 = vpop.xlane.xlu0 %3386
        %v3388 = vadd.f32 %v3331, %v3333
        %3389 = vadd.xlane.f32.xlu0 %v3388
        %v3390 = vpop.xlane.xlu0 %3389
        %v3391 = vadd.f32 %v3335, %v3337
        %3392 = vadd.xlane.f32.xlu0 %v3391
        %v3393 = vpop.xlane.xlu0 %3392
        %v3394 = vadd.f32 %v3339, %v3341
        %3395 = vadd.xlane.f32.xlu0 %v3394
        %v3396 = vpop.xlane.xlu0 %3395
        %v3397 = vadd.f32 %v3343, %v3345
        %3398 = vadd.xlane.f32.xlu0 %v3397
        %v3399 = vpop.xlane.xlu0 %3398
        %v3400 = vadd.f32 %v3347, %v3349
        %3401 = vadd.xlane.f32.xlu0 %v3400
        %v3402 = vpop.xlane.xlu0 %3401
        %v3403 = vadd.f32 %v3351, %v3353
        %3404 = vadd.xlane.f32.xlu0 %v3403
        %v3405 = vpop.xlane.xlu0 %3404
        %v3406 = vadd.f32 %v3355, %v3357
        %3407 = vadd.xlane.f32.xlu0 %v3406
        %v3408 = vpop.xlane.xlu0 %3407
        %v3409 = vadd.f32 %v3359, %v3361
        %3410 = vadd.xlane.f32.xlu0 %v3409
        %v3411 = vpop.xlane.xlu0 %3410
        %v3412 = vadd.f32 %v3363, %v3365
        %3413 = vadd.xlane.f32.xlu0 %v3412
        %v3414 = vpop.xlane.xlu0 %3413
        %v3415 = vadd.f32 %v3367, %v3369
        %3416 = vadd.xlane.f32.xlu0 %v3415
        %v3417 = vpop.xlane.xlu0 %3416
        %v3418 = vrcp.pop %v3372
        %v3419 = vmul.f32 %v3307, %v3418
        %v3420 = vmul.f32 %v3309, %v3418
        %v3421 = vrcp.pop %v3375
        %v3422 = vmul.f32 %v3311, %v3421
        %v3423 = vmul.f32 %v3313, %v3421
        %v3424 = vrcp.pop %v3378
        %v3425 = vmul.f32 %v3315, %v3424
        %v3426 = vmul.f32 %v3317, %v3424
        %v3427 = vrcp.pop %v3381
        %v3428 = vmul.f32 %v3319, %v3427
        %v3429 = vmul.f32 %v3321, %v3427
        %v3430 = vrcp.pop %v3384
        %v3431 = vmul.f32 %v3323, %v3430
        %v3432 = vmul.f32 %v3325, %v3430
        %v3433 = vrcp.pop %v3387
        %v3434 = vmul.f32 %v3327, %v3433
        %v3435 = vmul.f32 %v3329, %v3433
        %v3436 = vrcp.pop %v3390
        %v3437 = vmul.f32 %v3331, %v3436
        %v3438 = vmul.f32 %v3333, %v3436
        %v3439 = vrcp.pop %v3393
        %v3440 = vmul.f32 %v3335, %v3439
        %v3441 = vmul.f32 %v3337, %v3439
        %v3442 = vrcp.pop %v3396
        %v3443 = vmul.f32 %v3339, %v3442
        %v3444 = vmul.f32 %v3341, %v3442
        %v3445 = vrcp.pop %v3399
        %v3446 = vmul.f32 %v3343, %v3445
        %v3447 = vmul.f32 %v3345, %v3445
        %v3448 = vrcp.pop %v3402
        %v3449 = vmul.f32 %v3347, %v3448
        %v3450 = vmul.f32 %v3349, %v3448
        %v3451 = vrcp.pop %v3405
        %v3452 = vmul.f32 %v3351, %v3451
        %v3453 = vmul.f32 %v3353, %v3451
        %v3454 = vrcp.pop %v3408
        %v3455 = vmul.f32 %v3355, %v3454
        %v3456 = vmul.f32 %v3357, %v3454
        %v3457 = vrcp.pop %v3411
        %v3458 = vmul.f32 %v3359, %v3457
        %v3459 = vmul.f32 %v3361, %v3457
        %v3460 = vrcp.pop %v3414
        %v3461 = vmul.f32 %v3363, %v3460
        %v3462 = vmul.f32 %v3365, %v3460
        %v3463 = vrcp.pop %v3417
        %v3464 = vmul.f32 %v3367, %v3463
        %v3465 = vmul.f32 %v3369, %v3463
        %v3466 = vpack.c.bf16 %v3422, %v3419
        %v3467 = vpack.c.bf16 %v3423, %v3420
        %v3468 = vpack.c.bf16 %v3428, %v3425
        %v3469 = vpack.c.bf16 %v3429, %v3426
        %v3470 = vpack.c.bf16 %v3434, %v3431
        %v3471 = vpack.c.bf16 %v3435, %v3432
        %v3472 = vpack.c.bf16 %v3440, %v3437
        %v3473 = vpack.c.bf16 %v3441, %v3438
        %v3474 = vpack.c.bf16 %v3446, %v3443
        %v3475 = vpack.c.bf16 %v3447, %v3444
        %v3476 = vpack.c.bf16 %v3452, %v3449
        %v3477 = vpack.c.bf16 %v3453, %v3450
        %v3478 = vpack.c.bf16 %v3458, %v3455
        %v3479 = vpack.c.bf16 %v3459, %v3456
        %v3480 = vpack.c.bf16 %v3464, %v3461
        %v3481 = vpack.c.bf16 %v3465, %v3462
        %3482 = vrot.lane.b32.xlu0 %v945, 80
        %v3483 = vpop.permute.xlu0 %3482
        %3484 = vrot.lane.b32.xlu0 %v946, 80
        %v3485 = vpop.permute.xlu0 %3484
        %3486 = vrot.lane.b32.xlu0 %v947, 80
        %v3487 = vpop.permute.xlu0 %3486
        %3488 = vrot.lane.b32.xlu0 %v948, 80
        %v3489 = vpop.permute.xlu0 %3488
        %3490 = vrot.lane.b32.xlu0 %v949, 80
        %v3491 = vpop.permute.xlu0 %3490
        %3492 = vrot.lane.b32.xlu0 %v950, 80
        %v3493 = vpop.permute.xlu0 %3492
        %3494 = vrot.lane.b32.xlu0 %v951, 80
        %v3495 = vpop.permute.xlu0 %3494
        %3496 = vrot.lane.b32.xlu0 %v952, 80
        %v3497 = vpop.permute.xlu0 %3496
        %3498 = vrot.lane.b32.xlu0 %v953, 80
        %v3499 = vpop.permute.xlu0 %3498
        %3500 = vrot.lane.b32.xlu0 %v954, 80
        %v3501 = vpop.permute.xlu0 %3500
        %3502 = vrot.lane.b32.xlu0 %v955, 80
        %v3503 = vpop.permute.xlu0 %3502
        %3504 = vrot.lane.b32.xlu0 %v956, 80
        %v3505 = vpop.permute.xlu0 %3504
        %3506 = vrot.lane.b32.xlu0 %v957, 80
        %v3507 = vpop.permute.xlu0 %3506
        %3508 = vrot.lane.b32.xlu0 %v958, 80
        %v3509 = vpop.permute.xlu0 %3508
        %3510 = vrot.lane.b32.xlu0 %v959, 80
        %v3511 = vpop.permute.xlu0 %3510
        %3512 = vrot.lane.b32.xlu0 %v960, 80
        %v3513 = vpop.permute.xlu0 %3512
        %3530 = vmatprep.subr.bf16.mxu0 0
        %3531 = vmatpush1.bf16.msra.mxu0 %v3483
        %3532 = vmatprep.subr.bf16.mxu0 0
        %3533 = vmatpush1.bf16.msra.mxu0 %v3485
        %3534 = vmatprep.subr.bf16.mxu0 0
        %3535 = vmatpush1.bf16.msra.mxu0 %v3487
        %3536 = vmatprep.subr.bf16.mxu0 0
        %3537 = vmatpush1.bf16.msra.mxu0 %v3489
        %3538 = vmatprep.subr.bf16.mxu0 0
        %3539 = vmatpush1.bf16.msra.mxu0 %v3491
        %3540 = vmatprep.subr.bf16.mxu0 0
        %3541 = vmatpush1.bf16.msra.mxu0 %v3493
        %3542 = vmatprep.subr.bf16.mxu0 0
        %3543 = vmatpush1.bf16.msra.mxu0 %v3495
        %3544 = vmatprep.subr.bf16.mxu0 0
        %3545 = vmatpush1.bf16.msra.mxu0 %v3497
        %3546 = vmatprep.subr.bf16.mxu0 0
        %3547 = vmatpush1.bf16.msra.mxu0 %v3499
        %3548 = vmatprep.subr.bf16.mxu0 0
        %3549 = vmatpush1.bf16.msra.mxu0 %v3501
        %3550 = vmatprep.subr.bf16.mxu0 0
        %3551 = vmatpush1.bf16.msra.mxu0 %v3503
        %3552 = vmatprep.subr.bf16.mxu0 0
        %3553 = vmatpush1.bf16.msra.mxu0 %v3505
        %3554 = vmatprep.subr.bf16.mxu0 0
        %3555 = vmatpush1.bf16.msra.mxu0 %v3507
        %3556 = vmatprep.subr.bf16.mxu0 0
        %3557 = vmatpush1.bf16.msra.mxu0 %v3509
        %3558 = vmatprep.subr.bf16.mxu0 0
        %3559 = vmatpush1.bf16.msra.mxu0 %v3511
        %3560 = vmatprep.subr.bf16.mxu0 0
        %3561 = vmatpush1.bf16.msra.mxu0 %v3513
        %3562 = vmatprep.mubr.bf16.mxu0 %v3467
        %3563 = vmatmul.mubr.bf16.gmra.mrb[0].mxu0 %v3466
        %v3564 = vpop.f32.mrb[0].mxu0
        %v3565 = vadd.f32 0.0, %v3564
        %v3566 = vpop.f32.mrb[0].mxu0
        %v3567 = vpop.f32.mrb[0].mxu0
        %v3568 = vadd.f32 0.0, %v3567
        %v3569 = vpop.f32.mrb[0].mxu0
        %3570 = vmatprep.mubr.bf16.mxu0 %v3469
        %3571 = vmatmul.mubr.bf16.gmra.mrb[0].mxu0 %v3468
        %v3572 = vpop.f32.mrb[0].mxu0
        %v3573 = vadd.f32 0.0, %v3572
        %v3574 = vpop.f32.mrb[0].mxu0
        %v3575 = vpop.f32.mrb[0].mxu0
        %v3576 = vadd.f32 0.0, %v3575
        %v3577 = vpop.f32.mrb[0].mxu0
        %3578 = vmatprep.mubr.bf16.mxu0 %v3471
        %3579 = vmatmul.mubr.bf16.gmra.mrb[0].mxu0 %v3470
        %v3580 = vpop.f32.mrb[0].mxu0
        %v3581 = vadd.f32 0.0, %v3580
        %v3582 = vpop.f32.mrb[0].mxu0
        %v3583 = vpop.f32.mrb[0].mxu0
        %v3584 = vadd.f32 0.0, %v3583
        %v3585 = vpop.f32.mrb[0].mxu0
        %3586 = vmatprep.mubr.bf16.mxu0 %v3473
        %3587 = vmatmul.mubr.bf16.gmra.mrb[0].mxu0 %v3472
        %v3588 = vpop.f32.mrb[0].mxu0
        %v3589 = vadd.f32 0.0, %v3588
        %v3590 = vpop.f32.mrb[0].mxu0
        %v3591 = vpop.f32.mrb[0].mxu0
        %v3592 = vadd.f32 0.0, %v3591
        %v3593 = vpop.f32.mrb[0].mxu0
        %3594 = vmatprep.mubr.bf16.mxu0 %v3475
        %3595 = vmatmul.mubr.bf16.gmra.mrb[0].mxu0 %v3474
        %v3596 = vpop.f32.mrb[0].mxu0
        %v3597 = vadd.f32 0.0, %v3596
        %v3598 = vpop.f32.mrb[0].mxu0
        %v3599 = vpop.f32.mrb[0].mxu0
        %v3600 = vadd.f32 0.0, %v3599
        %v3601 = vpop.f32.mrb[0].mxu0
        %3602 = vmatprep.mubr.bf16.mxu0 %v3477
        %3603 = vmatmul.mubr.bf16.gmra.mrb[0].mxu0 %v3476
        %v3604 = vpop.f32.mrb[0].mxu0
        %v3605 = vadd.f32 0.0, %v3604
        %v3606 = vpop.f32.mrb[0].mxu0
        %v3607 = vpop.f32.mrb[0].mxu0
        %v3608 = vadd.f32 0.0, %v3607
        %v3609 = vpop.f32.mrb[0].mxu0
        %3610 = vmatprep.mubr.bf16.mxu0 %v3479
        %3611 = vmatmul.mubr.bf16.gmra.mrb[0].mxu0 %v3478
        %v3612 = vpop.f32.mrb[0].mxu0
        %v3613 = vadd.f32 0.0, %v3612
        %v3614 = vpop.f32.mrb[0].mxu0
        %v3615 = vpop.f32.mrb[0].mxu0
        %v3616 = vadd.f32 0.0, %v3615
        %v3617 = vpop.f32.mrb[0].mxu0
        %3618 = vmatprep.mubr.bf16.mxu0 %v3481
        %3619 = vmatmul.mubr.bf16.gmra.mrb[0].mxu0 %v3480
        %v3620 = vpop.f32.mrb[0].mxu0
        %v3621 = vadd.f32 0.0, %v3620
        %v3622 = vpop.f32.mrb[0].mxu0
        %v3623 = vpop.f32.mrb[0].mxu0
        %v3624 = vadd.f32 0.0, %v3623
        %v3625 = vpop.f32.mrb[0].mxu0
        %3626 = vdwg.mxu0
        %3643 = vrot.lane.b32.xlu0 %v3565, 48
        %v3644 = vpop.permute.xlu0 %3643
        %3645 = vrot.lane.b32.xlu0 %v3568, 48
        %v3646 = vpop.permute.xlu0 %3645
        %3647 = vrot.lane.b32.xlu0 %v3573, 48
        %v3648 = vpop.permute.xlu0 %3647
        %3649 = vrot.lane.b32.xlu0 %v3576, 48
        %v3650 = vpop.permute.xlu0 %3649
        %3651 = vrot.lane.b32.xlu0 %v3581, 48
        %v3652 = vpop.permute.xlu0 %3651
        %3653 = vrot.lane.b32.xlu0 %v3584, 48
        %v3654 = vpop.permute.xlu0 %3653
        %3655 = vrot.lane.b32.xlu0 %v3589, 48
        %v3656 = vpop.permute.xlu0 %3655
        %3657 = vrot.lane.b32.xlu0 %v3592, 48
        %v3658 = vpop.permute.xlu0 %3657
        %3659 = vrot.lane.b32.xlu0 %v3597, 48
        %v3660 = vpop.permute.xlu0 %3659
        %3661 = vrot.lane.b32.xlu0 %v3600, 48
        %v3662 = vpop.permute.xlu0 %3661
        %3663 = vrot.lane.b32.xlu0 %v3605, 48
        %v3664 = vpop.permute.xlu0 %3663
        %3665 = vrot.lane.b32.xlu0 %v3608, 48
        %v3666 = vpop.permute.xlu0 %3665
        %3667 = vrot.lane.b32.xlu0 %v3613, 48
        %v3668 = vpop.permute.xlu0 %3667
        %3669 = vrot.lane.b32.xlu0 %v3616, 48
        %v3670 = vpop.permute.xlu0 %3669
        %3671 = vrot.lane.b32.xlu0 %v3621, 48
        %v3672 = vpop.permute.xlu0 %3671
        %3673 = vrot.lane.b32.xlu0 %v3624, 48
        %v3674 = vpop.permute.xlu0 %3673
        %vm3691 = vcmask 523648
        %3692 = vst.msk [vmem:[#allocation2] sm:$0xff] %vm3691, %v3644
        %3693 = vst.msk [vmem:[#allocation2 + $0x8] sm:$0xff] %vm3691, %v3646
        %3694 = vst.msk [vmem:[#allocation2 + $0x10] sm:$0xff] %vm3691, %v3648
        %3695 = vst.msk [vmem:[#allocation2 + $0x18] sm:$0xff] %vm3691, %v3650
        %3696 = vst.msk [vmem:[#allocation2 + $0x20] sm:$0xff] %vm3691, %v3652
        %3697 = vst.msk [vmem:[#allocation2 + $0x28] sm:$0xff] %vm3691, %v3654
        %3698 = vst.msk [vmem:[#allocation2 + $0x30] sm:$0xff] %vm3691, %v3656
        %3699 = vst.msk [vmem:[#allocation2 + $0x38] sm:$0xff] %vm3691, %v3658
        %3700 = vst.msk [vmem:[#allocation2 + $0x40] sm:$0xff] %vm3691, %v3660
        %3701 = vst.msk [vmem:[#allocation2 + $0x48] sm:$0xff] %vm3691, %v3662
        %3702 = vst.msk [vmem:[#allocation2 + $0x50] sm:$0xff] %vm3691, %v3664
        %3703 = vst.msk [vmem:[#allocation2 + $0x58] sm:$0xff] %vm3691, %v3666
        %3704 = vst.msk [vmem:[#allocation2 + $0x60] sm:$0xff] %vm3691, %v3668
        %3705 = vst.msk [vmem:[#allocation2 + $0x68] sm:$0xff] %vm3691, %v3670
        %3706 = vst.msk [vmem:[#allocation2 + $0x70] sm:$0xff] %vm3691, %v3672
        %3707 = vst.msk [vmem:[#allocation2 + $0x78] sm:$0xff] %vm3691, %v3674
        %3708 = vrot.lane.b32.xlu0 %v921, 64
        %v3709 = vpop.permute.xlu0 %3708
        %3710 = vrot.lane.b32.xlu0 %v922, 64
        %v3711 = vpop.permute.xlu0 %3710
        %3712 = vrot.lane.b32.xlu0 %v923, 64
        %v3713 = vpop.permute.xlu0 %3712
        %3714 = vrot.lane.b32.xlu0 %v924, 64
        %v3715 = vpop.permute.xlu0 %3714
        %3716 = vrot.lane.b32.xlu0 %v925, 64
        %v3717 = vpop.permute.xlu0 %3716
        %3718 = vrot.lane.b32.xlu0 %v926, 64
        %v3719 = vpop.permute.xlu0 %3718
        %3720 = vrot.lane.b32.xlu0 %v927, 64
        %v3721 = vpop.permute.xlu0 %3720
        %3722 = vrot.lane.b32.xlu0 %v928, 64
        %v3723 = vpop.permute.xlu0 %3722
        %3724 = vrot.lane.b32.xlu0 %v929, 64
        %v3725 = vpop.permute.xlu0 %3724
        %3726 = vrot.lane.b32.xlu0 %v930, 64
        %v3727 = vpop.permute.xlu0 %3726
        %3728 = vrot.lane.b32.xlu0 %v931, 64
        %v3729 = vpop.permute.xlu0 %3728
        %3730 = vrot.lane.b32.xlu0 %v932, 64
        %v3731 = vpop.permute.xlu0 %3730
        %3732 = vrot.lane.b32.xlu0 %v933, 64
        %v3733 = vpop.permute.xlu0 %3732
        %3734 = vrot.lane.b32.xlu0 %v934, 64
        %v3735 = vpop.permute.xlu0 %3734
        %3736 = vrot.lane.b32.xlu0 %v935, 64
        %v3737 = vpop.permute.xlu0 %3736
        %3738 = vrot.lane.b32.xlu0 %v936, 64
        %v3739 = vpop.permute.xlu0 %3738
        %3740 = vrot.lane.b32.xlu0 %v937, 64
        %v3741 = vpop.permute.xlu0 %3740
        %3742 = vrot.lane.b32.xlu0 %v938, 64
        %v3743 = vpop.permute.xlu0 %3742
        %3744 = vrot.lane.b32.xlu0 %v939, 64
        %v3745 = vpop.permute.xlu0 %3744
        %3746 = vrot.lane.b32.xlu0 %v940, 64
        %v3747 = vpop.permute.xlu0 %3746
        %3748 = vrot.lane.b32.xlu0 %v941, 64
        %v3749 = vpop.permute.xlu0 %3748
        %3750 = vrot.lane.b32.xlu0 %v942, 64
        %v3751 = vpop.permute.xlu0 %3750
        %3752 = vrot.lane.b32.xlu0 %v943, 64
        %v3753 = vpop.permute.xlu0 %3752
        %3754 = vrot.lane.b32.xlu0 %v944, 64
        %v3755 = vpop.permute.xlu0 %3754
        %v3757 = vsel %vm968, %v3709, 0
        %v3760 = vsel %vm968, %v3711, 0
        %v3763 = vsel %vm968, %v3713, 0
        %v3766 = vsel %vm968, %v3715, 0
        %v3769 = vsel %vm968, %v3717, 0
        %v3772 = vsel %vm968, %v3719, 0
        %v3775 = vsel %vm968, %v3721, 0
        %v3778 = vsel %vm968, %v3723, 0
        %v3781 = vsel %vm968, %v3725, 0
        %v3784 = vsel %vm968, %v3727, 0
        %v3787 = vsel %vm968, %v3729, 0
        %v3790 = vsel %vm968, %v3731, 0
        %v3793 = vsel %vm968, %v3733, 0
        %v3796 = vsel %vm968, %v3735, 0
        %v3799 = vsel %vm968, %v3737, 0
        %v3802 = vsel %vm968, %v3739, 0
        %v3805 = vsel %vm968, %v3741, 0
        %v3808 = vsel %vm968, %v3743, 0
        %v3811 = vsel %vm968, %v3745, 0
        %v3814 = vsel %vm968, %v3747, 0
        %v3817 = vsel %vm968, %v3749, 0
        %v3820 = vsel %vm968, %v3751, 0
        %v3823 = vsel %vm968, %v3753, 0
        %v3826 = vsel %vm968, %v3755, 0
        %3828 = vmatprep.subr.bf16.mxu0 0
        %3829 = vmatpush1.bf16.xpose.msra.mxu0 %v3781
        %3830 = vmatprep.subr.bf16.mxu0 0
        %3831 = vmatpush1.bf16.xpose.msra.mxu0 %v3784
        %3832 = vmatprep.subr.bf16.mxu0 0
        %3833 = vmatpush1.bf16.xpose.msra.mxu0 %v3787
        %3834 = vmatprep.subr.bf16.mxu0 0
        %3835 = vmatpush1.bf16.xpose.msra.mxu0 %v3790
        %3836 = vmatprep.subr.bf16.mxu0 0
        %3837 = vmatpush1.bf16.xpose.msra.mxu0 %v3793
        %3838 = vmatprep.subr.bf16.mxu0 0
        %3839 = vmatpush1.bf16.xpose.msra.mxu0 %v3796
        %3840 = vmatprep.subr.bf16.mxu0 0
        %3841 = vmatpush1.bf16.xpose.msra.mxu0 %v3799
        %3842 = vmatprep.subr.bf16.mxu0 0
        %3843 = vmatpush1.bf16.xpose.msra.mxu0 %v3802
        %3844 = vmatprep.subr.bf16.mxu0 0
        %3845 = vmatpush1.bf16.xpose.msra.mxu0 %v3805
        %3846 = vmatprep.subr.bf16.mxu0 0
        %3847 = vmatpush1.bf16.xpose.msra.mxu0 %v3808
        %3848 = vmatprep.subr.bf16.mxu0 0
        %3849 = vmatpush1.bf16.xpose.msra.mxu0 %v3811
        %3850 = vmatprep.subr.bf16.mxu0 0
        %3851 = vmatpush1.bf16.xpose.msra.mxu0 %v3814
        %3852 = vmatprep.subr.bf16.mxu0 0
        %3853 = vmatpush1.bf16.xpose.msra.mxu0 %v3817
        %3854 = vmatprep.subr.bf16.mxu0 0
        %3855 = vmatpush1.bf16.xpose.msra.mxu0 %v3820
        %3856 = vmatprep.subr.bf16.mxu0 0
        %3857 = vmatpush1.bf16.xpose.msra.mxu0 %v3823
        %3858 = vmatprep.subr.bf16.mxu0 0
        %3859 = vmatpush1.bf16.xpose.msra.mxu0 %v3826
        %3860 = vmatprep.mubr.bf16.mxu0 0
        %3861 = vmatmul.mubr.bf16.gmra.mrb[0].mxu0 %v3757
        %v3862 = vpop.f32.mrb[0].mxu0
        %v3863 = vadd.f32 %v966, %v3862
        %v3864 = vpop.f32.mrb[0].mxu0
        %v3865 = vadd.f32 %v967, %v3864
        %v3866 = vpop.f32.mrb[0].mxu0
        %v3867 = vadd.f32 %v966, %v3866
        %v3868 = vpop.f32.mrb[0].mxu0
        %v3869 = vadd.f32 %v967, %v3868
        %3870 = vmatprep.mubr.bf16.mxu0 0
        %3871 = vmatmul.mubr.bf16.gmra.mrb[0].mxu0 %v3760
        %v3872 = vpop.f32.mrb[0].mxu0
        %v3873 = vadd.f32 %v966, %v3872
        %v3874 = vpop.f32.mrb[0].mxu0
        %v3875 = vadd.f32 %v967, %v3874
        %v3876 = vpop.f32.mrb[0].mxu0
        %v3877 = vadd.f32 %v966, %v3876
        %v3878 = vpop.f32.mrb[0].mxu0
        %v3879 = vadd.f32 %v967, %v3878
        %3880 = vmatprep.mubr.bf16.mxu0 0
        %3881 = vmatmul.mubr.bf16.gmra.mrb[0].mxu0 %v3763
        %v3882 = vpop.f32.mrb[0].mxu0
        %v3883 = vadd.f32 %v966, %v3882
        %v3884 = vpop.f32.mrb[0].mxu0
        %v3885 = vadd.f32 %v967, %v3884
        %v3886 = vpop.f32.mrb[0].mxu0
        %v3887 = vadd.f32 %v966, %v3886
        %v3888 = vpop.f32.mrb[0].mxu0
        %v3889 = vadd.f32 %v967, %v3888
        %3890 = vmatprep.mubr.bf16.mxu0 0
        %3891 = vmatmul.mubr.bf16.gmra.mrb[0].mxu0 %v3766
        %v3892 = vpop.f32.mrb[0].mxu0
        %v3893 = vadd.f32 %v966, %v3892
        %v3894 = vpop.f32.mrb[0].mxu0
        %v3895 = vadd.f32 %v967, %v3894
        %v3896 = vpop.f32.mrb[0].mxu0
        %v3897 = vadd.f32 %v966, %v3896
        %v3898 = vpop.f32.mrb[0].mxu0
        %v3899 = vadd.f32 %v967, %v3898
        %3900 = vmatprep.mubr.bf16.mxu0 0
        %3901 = vmatmul.mubr.bf16.gmra.mrb[0].mxu0 %v3769
        %v3902 = vpop.f32.mrb[0].mxu0
        %v3903 = vadd.f32 %v966, %v3902
        %v3904 = vpop.f32.mrb[0].mxu0
        %v3905 = vadd.f32 %v967, %v3904
        %v3906 = vpop.f32.mrb[0].mxu0
        %v3907 = vadd.f32 %v966, %v3906
        %v3908 = vpop.f32.mrb[0].mxu0
        %v3909 = vadd.f32 %v967, %v3908
        %3910 = vmatprep.mubr.bf16.mxu0 0
        %3911 = vmatmul.mubr.bf16.gmra.mrb[0].mxu0 %v3772
        %v3912 = vpop.f32.mrb[0].mxu0
        %v3913 = vadd.f32 %v966, %v3912
        %v3914 = vpop.f32.mrb[0].mxu0
        %v3915 = vadd.f32 %v967, %v3914
        %v3916 = vpop.f32.mrb[0].mxu0
        %v3917 = vadd.f32 %v966, %v3916
        %v3918 = vpop.f32.mrb[0].mxu0
        %v3919 = vadd.f32 %v967, %v3918
        %3920 = vmatprep.mubr.bf16.mxu0 0
        %3921 = vmatmul.mubr.bf16.gmra.mrb[0].mxu0 %v3775
        %v3922 = vpop.f32.mrb[0].mxu0
        %v3923 = vadd.f32 %v966, %v3922
        %v3924 = vpop.f32.mrb[0].mxu0
        %v3925 = vadd.f32 %v967, %v3924
        %v3926 = vpop.f32.mrb[0].mxu0
        %v3927 = vadd.f32 %v966, %v3926
        %v3928 = vpop.f32.mrb[0].mxu0
        %v3929 = vadd.f32 %v967, %v3928
        %3930 = vmatprep.mubr.bf16.mxu0 0
        %3931 = vmatmul.mubr.bf16.gmra.mrb[0].mxu0 %v3778
        %v3932 = vpop.f32.mrb[0].mxu0
        %v3933 = vadd.f32 %v966, %v3932
        %v3934 = vpop.f32.mrb[0].mxu0
        %v3935 = vadd.f32 %v967, %v3934
        %v3936 = vpop.f32.mrb[0].mxu0
        %v3937 = vadd.f32 %v966, %v3936
        %v3938 = vpop.f32.mrb[0].mxu0
        %v3939 = vadd.f32 %v967, %v3938
        %3940 = vdwg.mxu0
        %v3941 = vmax.f32 %v3863, %v3865
        %3942 = vmax.xlane.f32.xlu0 %v3941
        %v3943 = vpop.xlane.xlu0 %3942
        %v3944 = vmax.f32 %v3867, %v3869
        %3945 = vmax.xlane.f32.xlu0 %v3944
        %v3946 = vpop.xlane.xlu0 %3945
        %v3947 = vmax.f32 %v3873, %v3875
        %3948 = vmax.xlane.f32.xlu0 %v3947
        %v3949 = vpop.xlane.xlu0 %3948
        %v3950 = vmax.f32 %v3877, %v3879
        %3951 = vmax.xlane.f32.xlu0 %v3950
        %v3952 = vpop.xlane.xlu0 %3951
        %v3953 = vmax.f32 %v3883, %v3885
        %3954 = vmax.xlane.f32.xlu0 %v3953
        %v3955 = vpop.xlane.xlu0 %3954
        %v3956 = vmax.f32 %v3887, %v3889
        %3957 = vmax.xlane.f32.xlu0 %v3956
        %v3958 = vpop.xlane.xlu0 %3957
        %v3959 = vmax.f32 %v3893, %v3895
        %3960 = vmax.xlane.f32.xlu0 %v3959
        %v3961 = vpop.xlane.xlu0 %3960
        %v3962 = vmax.f32 %v3897, %v3899
        %3963 = vmax.xlane.f32.xlu0 %v3962
        %v3964 = vpop.xlane.xlu0 %3963
        %v3965 = vmax.f32 %v3903, %v3905
        %3966 = vmax.xlane.f32.xlu0 %v3965
        %v3967 = vpop.xlane.xlu0 %3966
        %v3968 = vmax.f32 %v3907, %v3909
        %3969 = vmax.xlane.f32.xlu0 %v3968
        %v3970 = vpop.xlane.xlu0 %3969
        %v3971 = vmax.f32 %v3913, %v3915
        %3972 = vmax.xlane.f32.xlu0 %v3971
        %v3973 = vpop.xlane.xlu0 %3972
        %v3974 = vmax.f32 %v3917, %v3919
        %3975 = vmax.xlane.f32.xlu0 %v3974
        %v3976 = vpop.xlane.xlu0 %3975
        %v3977 = vmax.f32 %v3923, %v3925
        %3978 = vmax.xlane.f32.xlu0 %v3977
        %v3979 = vpop.xlane.xlu0 %3978
        %v3980 = vmax.f32 %v3927, %v3929
        %3981 = vmax.xlane.f32.xlu0 %v3980
        %v3982 = vpop.xlane.xlu0 %3981
        %v3983 = vmax.f32 %v3933, %v3935
        %3984 = vmax.xlane.f32.xlu0 %v3983
        %v3985 = vpop.xlane.xlu0 %3984
        %v3986 = vmax.f32 %v3937, %v3939
        %3987 = vmax.xlane.f32.xlu0 %v3986
        %v3988 = vpop.xlane.xlu0 %3987
        %v3989 = vsub.f32 %v3863, %v3943
        %v3990 = vsub.f32 %v3865, %v3943
        %v3991 = vsub.f32 %v3867, %v3946
        %v3992 = vsub.f32 %v3869, %v3946
        %v3993 = vsub.f32 %v3873, %v3949
        %v3994 = vsub.f32 %v3875, %v3949
        %v3995 = vsub.f32 %v3877, %v3952
        %v3996 = vsub.f32 %v3879, %v3952
        %v3997 = vsub.f32 %v3883, %v3955
        %v3998 = vsub.f32 %v3885, %v3955
        %v3999 = vsub.f32 %v3887, %v3958
        %v4000 = vsub.f32 %v3889, %v3958
        %v4001 = vsub.f32 %v3893, %v3961
        %v4002 = vsub.f32 %v3895, %v3961
        %v4003 = vsub.f32 %v3897, %v3964
        %v4004 = vsub.f32 %v3899, %v3964
        %v4005 = vsub.f32 %v3903, %v3967
        %v4006 = vsub.f32 %v3905, %v3967
        %v4007 = vsub.f32 %v3907, %v3970
        %v4008 = vsub.f32 %v3909, %v3970
        %v4009 = vsub.f32 %v3913, %v3973
        %v4010 = vsub.f32 %v3915, %v3973
        %v4011 = vsub.f32 %v3917, %v3976
        %v4012 = vsub.f32 %v3919, %v3976
        %v4013 = vsub.f32 %v3923, %v3979
        %v4014 = vsub.f32 %v3925, %v3979
        %v4015 = vsub.f32 %v3927, %v3982
        %v4016 = vsub.f32 %v3929, %v3982
        %v4017 = vsub.f32 %v3933, %v3985
        %v4018 = vsub.f32 %v3935, %v3985
        %v4019 = vsub.f32 %v3937, %v3988
        %v4020 = vsub.f32 %v3939, %v3988
        %v4021 = vmul.f32 %v3989, 1.442695
        %v4022 = vpow.pop %v4021
        %v4023 = vmul.f32 %v3990, 1.442695
        %v4024 = vpow.pop %v4023
        %v4025 = vmul.f32 %v3991, 1.442695
        %v4026 = vpow.pop %v4025
        %v4027 = vmul.f32 %v3992, 1.442695
        %v4028 = vpow.pop %v4027
        %v4029 = vmul.f32 %v3993, 1.442695
        %v4030 = vpow.pop %v4029
        %v4031 = vmul.f32 %v3994, 1.442695
        %v4032 = vpow.pop %v4031
        %v4033 = vmul.f32 %v3995, 1.442695
        %v4034 = vpow.pop %v4033
        %v4035 = vmul.f32 %v3996, 1.442695
        %v4036 = vpow.pop %v4035
        %v4037 = vmul.f32 %v3997, 1.442695
        %v4038 = vpow.pop %v4037
        %v4039 = vmul.f32 %v3998, 1.442695
        %v4040 = vpow.pop %v4039
        %v4041 = vmul.f32 %v3999, 1.442695
        %v4042 = vpow.pop %v4041
        %v4043 = vmul.f32 %v4000, 1.442695
        %v4044 = vpow.pop %v4043
        %v4045 = vmul.f32 %v4001, 1.442695
        %v4046 = vpow.pop %v4045
        %v4047 = vmul.f32 %v4002, 1.442695
        %v4048 = vpow.pop %v4047
        %v4049 = vmul.f32 %v4003, 1.442695
        %v4050 = vpow.pop %v4049
        %v4051 = vmul.f32 %v4004, 1.442695
        %v4052 = vpow.pop %v4051
        %v4053 = vmul.f32 %v4005, 1.442695
        %v4054 = vpow.pop %v4053
        %v4055 = vmul.f32 %v4006, 1.442695
        %v4056 = vpow.pop %v4055
        %v4057 = vmul.f32 %v4007, 1.442695
        %v4058 = vpow.pop %v4057
        %v4059 = vmul.f32 %v4008, 1.442695
        %v4060 = vpow.pop %v4059
        %v4061 = vmul.f32 %v4009, 1.442695
        %v4062 = vpow.pop %v4061
        %v4063 = vmul.f32 %v4010, 1.442695
        %v4064 = vpow.pop %v4063
        %v4065 = vmul.f32 %v4011, 1.442695
        %v4066 = vpow.pop %v4065
        %v4067 = vmul.f32 %v4012, 1.442695
        %v4068 = vpow.pop %v4067
        %v4069 = vmul.f32 %v4013, 1.442695
        %v4070 = vpow.pop %v4069
        %v4071 = vmul.f32 %v4014, 1.442695
        %v4072 = vpow.pop %v4071
        %v4073 = vmul.f32 %v4015, 1.442695
        %v4074 = vpow.pop %v4073
        %v4075 = vmul.f32 %v4016, 1.442695
        %v4076 = vpow.pop %v4075
        %v4077 = vmul.f32 %v4017, 1.442695
        %v4078 = vpow.pop %v4077
        %v4079 = vmul.f32 %v4018, 1.442695
        %v4080 = vpow.pop %v4079
        %v4081 = vmul.f32 %v4019, 1.442695
        %v4082 = vpow.pop %v4081
        %v4083 = vmul.f32 %v4020, 1.442695
        %v4084 = vpow.pop %v4083
        %v4085 = vadd.f32 %v4022, %v4024
        %4086 = vadd.xlane.f32.xlu0 %v4085
        %v4087 = vpop.xlane.xlu0 %4086
        %v4088 = vadd.f32 %v4026, %v4028
        %4089 = vadd.xlane.f32.xlu0 %v4088
        %v4090 = vpop.xlane.xlu0 %4089
        %v4091 = vadd.f32 %v4030, %v4032
        %4092 = vadd.xlane.f32.xlu0 %v4091
        %v4093 = vpop.xlane.xlu0 %4092
        %v4094 = vadd.f32 %v4034, %v4036
        %4095 = vadd.xlane.f32.xlu0 %v4094
        %v4096 = vpop.xlane.xlu0 %4095
        %v4097 = vadd.f32 %v4038, %v4040
        %4098 = vadd.xlane.f32.xlu0 %v4097
        %v4099 = vpop.xlane.xlu0 %4098
        %v4100 = vadd.f32 %v4042, %v4044
        %4101 = vadd.xlane.f32.xlu0 %v4100
        %v4102 = vpop.xlane.xlu0 %4101
        %v4103 = vadd.f32 %v4046, %v4048
        %4104 = vadd.xlane.f32.xlu0 %v4103
        %v4105 = vpop.xlane.xlu0 %4104
        %v4106 = vadd.f32 %v4050, %v4052
        %4107 = vadd.xlane.f32.xlu0 %v4106
        %v4108 = vpop.xlane.xlu0 %4107
        %v4109 = vadd.f32 %v4054, %v4056
        %4110 = vadd.xlane.f32.xlu0 %v4109
        %v4111 = vpop.xlane.xlu0 %4110
        %v4112 = vadd.f32 %v4058, %v4060
        %4113 = vadd.xlane.f32.xlu0 %v4112
        %v4114 = vpop.xlane.xlu0 %4113
        %v4115 = vadd.f32 %v4062, %v4064
        %4116 = vadd.xlane.f32.xlu0 %v4115
        %v4117 = vpop.xlane.xlu0 %4116
        %v4118 = vadd.f32 %v4066, %v4068
        %4119 = vadd.xlane.f32.xlu0 %v4118
        %v4120 = vpop.xlane.xlu0 %4119
        %v4121 = vadd.f32 %v4070, %v4072
        %4122 = vadd.xlane.f32.xlu0 %v4121
        %v4123 = vpop.xlane.xlu0 %4122
        %v4124 = vadd.f32 %v4074, %v4076
        %4125 = vadd.xlane.f32.xlu0 %v4124
        %v4126 = vpop.xlane.xlu0 %4125
        %v4127 = vadd.f32 %v4078, %v4080
        %4128 = vadd.xlane.f32.xlu0 %v4127
        %v4129 = vpop.xlane.xlu0 %4128
        %v4130 = vadd.f32 %v4082, %v4084
        %4131 = vadd.xlane.f32.xlu0 %v4130
        %v4132 = vpop.xlane.xlu0 %4131
        %v4133 = vrcp.pop %v4087
        %v4134 = vmul.f32 %v4022, %v4133
        %v4135 = vmul.f32 %v4024, %v4133
        %v4136 = vrcp.pop %v4090
        %v4137 = vmul.f32 %v4026, %v4136
        %v4138 = vmul.f32 %v4028, %v4136
        %v4139 = vrcp.pop %v4093
        %v4140 = vmul.f32 %v4030, %v4139
        %v4141 = vmul.f32 %v4032, %v4139
        %v4142 = vrcp.pop %v4096
        %v4143 = vmul.f32 %v4034, %v4142
        %v4144 = vmul.f32 %v4036, %v4142
        %v4145 = vrcp.pop %v4099
        %v4146 = vmul.f32 %v4038, %v4145
        %v4147 = vmul.f32 %v4040, %v4145
        %v4148 = vrcp.pop %v4102
        %v4149 = vmul.f32 %v4042, %v4148
        %v4150 = vmul.f32 %v4044, %v4148
        %v4151 = vrcp.pop %v4105
        %v4152 = vmul.f32 %v4046, %v4151
        %v4153 = vmul.f32 %v4048, %v4151
        %v4154 = vrcp.pop %v4108
        %v4155 = vmul.f32 %v4050, %v4154
        %v4156 = vmul.f32 %v4052, %v4154
        %v4157 = vrcp.pop %v4111
        %v4158 = vmul.f32 %v4054, %v4157
        %v4159 = vmul.f32 %v4056, %v4157
        %v4160 = vrcp.pop %v4114
        %v4161 = vmul.f32 %v4058, %v4160
        %v4162 = vmul.f32 %v4060, %v4160
        %v4163 = vrcp.pop %v4117
        %v4164 = vmul.f32 %v4062, %v4163
        %v4165 = vmul.f32 %v4064, %v4163
        %v4166 = vrcp.pop %v4120
        %v4167 = vmul.f32 %v4066, %v4166
        %v4168 = vmul.f32 %v4068, %v4166
        %v4169 = vrcp.pop %v4123
        %v4170 = vmul.f32 %v4070, %v4169
        %v4171 = vmul.f32 %v4072, %v4169
        %v4172 = vrcp.pop %v4126
        %v4173 = vmul.f32 %v4074, %v4172
        %v4174 = vmul.f32 %v4076, %v4172
        %v4175 = vrcp.pop %v4129
        %v4176 = vmul.f32 %v4078, %v4175
        %v4177 = vmul.f32 %v4080, %v4175
        %v4178 = vrcp.pop %v4132
        %v4179 = vmul.f32 %v4082, %v4178
        %v4180 = vmul.f32 %v4084, %v4178
        %v4181 = vpack.c.bf16 %v4137, %v4134
        %v4182 = vpack.c.bf16 %v4138, %v4135
        %v4183 = vpack.c.bf16 %v4143, %v4140
        %v4184 = vpack.c.bf16 %v4144, %v4141
        %v4185 = vpack.c.bf16 %v4149, %v4146
        %v4186 = vpack.c.bf16 %v4150, %v4147
        %v4187 = vpack.c.bf16 %v4155, %v4152
        %v4188 = vpack.c.bf16 %v4156, %v4153
        %v4189 = vpack.c.bf16 %v4161, %v4158
        %v4190 = vpack.c.bf16 %v4162, %v4159
        %v4191 = vpack.c.bf16 %v4167, %v4164
        %v4192 = vpack.c.bf16 %v4168, %v4165
        %v4193 = vpack.c.bf16 %v4173, %v4170
        %v4194 = vpack.c.bf16 %v4174, %v4171
        %v4195 = vpack.c.bf16 %v4179, %v4176
        %v4196 = vpack.c.bf16 %v4180, %v4177
        %4197 = vrot.lane.b32.xlu0 %v945, 64
        %v4198 = vpop.permute.xlu0 %4197
        %4199 = vrot.lane.b32.xlu0 %v946, 64
        %v4200 = vpop.permute.xlu0 %4199
        %4201 = vrot.lane.b32.xlu0 %v947, 64
        %v4202 = vpop.permute.xlu0 %4201
        %4203 = vrot.lane.b32.xlu0 %v948, 64
        %v4204 = vpop.permute.xlu0 %4203
        %4205 = vrot.lane.b32.xlu0 %v949, 64
        %v4206 = vpop.permute.xlu0 %4205
        %4207 = vrot.lane.b32.xlu0 %v950, 64
        %v4208 = vpop.permute.xlu0 %4207
        %4209 = vrot.lane.b32.xlu0 %v951, 64
        %v4210 = vpop.permute.xlu0 %4209
        %4211 = vrot.lane.b32.xlu0 %v952, 64
        %v4212 = vpop.permute.xlu0 %4211
        %4213 = vrot.lane.b32.xlu0 %v953, 64
        %v4214 = vpop.permute.xlu0 %4213
        %4215 = vrot.lane.b32.xlu0 %v954, 64
        %v4216 = vpop.permute.xlu0 %4215
        %4217 = vrot.lane.b32.xlu0 %v955, 64
        %v4218 = vpop.permute.xlu0 %4217
        %4219 = vrot.lane.b32.xlu0 %v956, 64
        %v4220 = vpop.permute.xlu0 %4219
        %4221 = vrot.lane.b32.xlu0 %v957, 64
        %v4222 = vpop.permute.xlu0 %4221
        %4223 = vrot.lane.b32.xlu0 %v958, 64
        %v4224 = vpop.permute.xlu0 %4223
        %4225 = vrot.lane.b32.xlu0 %v959, 64
        %v4226 = vpop.permute.xlu0 %4225
        %4227 = vrot.lane.b32.xlu0 %v960, 64
        %v4228 = vpop.permute.xlu0 %4227
        %4245 = vmatprep.subr.bf16.mxu0 0
        %4246 = vmatpush1.bf16.msra.mxu0 %v4198
        %4247 = vmatprep.subr.bf16.mxu0 0
        %4248 = vmatpush1.bf16.msra.mxu0 %v4200
        %4249 = vmatprep.subr.bf16.mxu0 0
        %4250 = vmatpush1.bf16.msra.mxu0 %v4202
        %4251 = vmatprep.subr.bf16.mxu0 0
        %4252 = vmatpush1.bf16.msra.mxu0 %v4204
        %4253 = vmatprep.subr.bf16.mxu0 0
        %4254 = vmatpush1.bf16.msra.mxu0 %v4206
        %4255 = vmatprep.subr.bf16.mxu0 0
        %4256 = vmatpush1.bf16.msra.mxu0 %v4208
        %4257 = vmatprep.subr.bf16.mxu0 0
        %4258 = vmatpush1.bf16.msra.mxu0 %v4210
        %4259 = vmatprep.subr.bf16.mxu0 0
        %4260 = vmatpush1.bf16.msra.mxu0 %v4212
        %4261 = vmatprep.subr.bf16.mxu0 0
        %4262 = vmatpush1.bf16.msra.mxu0 %v4214
        %4263 = vmatprep.subr.bf16.mxu0 0
        %4264 = vmatpush1.bf16.msra.mxu0 %v4216
        %4265 = vmatprep.subr.bf16.mxu0 0
        %4266 = vmatpush1.bf16.msra.mxu0 %v4218
        %4267 = vmatprep.subr.bf16.mxu0 0
        %4268 = vmatpush1.bf16.msra.mxu0 %v4220
        %4269 = vmatprep.subr.bf16.mxu0 0
        %4270 = vmatpush1.bf16.msra.mxu0 %v4222
        %4271 = vmatprep.subr.bf16.mxu0 0
        %4272 = vmatpush1.bf16.msra.mxu0 %v4224
        %4273 = vmatprep.subr.bf16.mxu0 0
        %4274 = vmatpush1.bf16.msra.mxu0 %v4226
        %4275 = vmatprep.subr.bf16.mxu0 0
        %4276 = vmatpush1.bf16.msra.mxu0 %v4228
        %4277 = vmatprep.mubr.bf16.mxu0 %v4182
        %4278 = vmatmul.mubr.bf16.gmra.mrb[0].mxu0 %v4181
        %v4279 = vpop.f32.mrb[0].mxu0
        %v4280 = vadd.f32 0.0, %v4279
        %v4281 = vpop.f32.mrb[0].mxu0
        %v4282 = vpop.f32.mrb[0].mxu0
        %v4283 = vadd.f32 0.0, %v4282
        %v4284 = vpop.f32.mrb[0].mxu0
        %4285 = vmatprep.mubr.bf16.mxu0 %v4184
        %4286 = vmatmul.mubr.bf16.gmra.mrb[0].mxu0 %v4183
        %v4287 = vpop.f32.mrb[0].mxu0
        %v4288 = vadd.f32 0.0, %v4287
        %v4289 = vpop.f32.mrb[0].mxu0
        %v4290 = vpop.f32.mrb[0].mxu0
        %v4291 = vadd.f32 0.0, %v4290
        %v4292 = vpop.f32.mrb[0].mxu0
        %4293 = vmatprep.mubr.bf16.mxu0 %v4186
        %4294 = vmatmul.mubr.bf16.gmra.mrb[0].mxu0 %v4185
        %v4295 = vpop.f32.mrb[0].mxu0
        %v4296 = vadd.f32 0.0, %v4295
        %v4297 = vpop.f32.mrb[0].mxu0
        %v4298 = vpop.f32.mrb[0].mxu0
        %v4299 = vadd.f32 0.0, %v4298
        %v4300 = vpop.f32.mrb[0].mxu0
        %4301 = vmatprep.mubr.bf16.mxu0 %v4188
        %4302 = vmatmul.mubr.bf16.gmra.mrb[0].mxu0 %v4187
        %v4303 = vpop.f32.mrb[0].mxu0
        %v4304 = vadd.f32 0.0, %v4303
        %v4305 = vpop.f32.mrb[0].mxu0
        %v4306 = vpop.f32.mrb[0].mxu0
        %v4307 = vadd.f32 0.0, %v4306
        %v4308 = vpop.f32.mrb[0].mxu0
        %4309 = vmatprep.mubr.bf16.mxu0 %v4190
        %4310 = vmatmul.mubr.bf16.gmra.mrb[0].mxu0 %v4189
        %v4311 = vpop.f32.mrb[0].mxu0
        %v4312 = vadd.f32 0.0, %v4311
        %v4313 = vpop.f32.mrb[0].mxu0
        %v4314 = vpop.f32.mrb[0].mxu0
        %v4315 = vadd.f32 0.0, %v4314
        %v4316 = vpop.f32.mrb[0].mxu0
        %4317 = vmatprep.mubr.bf16.mxu0 %v4192
        %4318 = vmatmul.mubr.bf16.gmra.mrb[0].mxu0 %v4191
        %v4319 = vpop.f32.mrb[0].mxu0
        %v4320 = vadd.f32 0.0, %v4319
        %v4321 = vpop.f32.mrb[0].mxu0
        %v4322 = vpop.f32.mrb[0].mxu0
        %v4323 = vadd.f32 0.0, %v4322
        %v4324 = vpop.f32.mrb[0].mxu0
        %4325 = vmatprep.mubr.bf16.mxu0 %v4194
        %4326 = vmatmul.mubr.bf16.gmra.mrb[0].mxu0 %v4193
        %v4327 = vpop.f32.mrb[0].mxu0
        %v4328 = vadd.f32 0.0, %v4327
        %v4329 = vpop.f32.mrb[0].mxu0
        %v4330 = vpop.f32.mrb[0].mxu0
        %v4331 = vadd.f32 0.0, %v4330
        %v4332 = vpop.f32.mrb[0].mxu0
        %4333 = vmatprep.mubr.bf16.mxu0 %v4196
        %4334 = vmatmul.mubr.bf16.gmra.mrb[0].mxu0 %v4195
        %v4335 = vpop.f32.mrb[0].mxu0
        %v4336 = vadd.f32 0.0, %v4335
        %v4337 = vpop.f32.mrb[0].mxu0
        %v4338 = vpop.f32.mrb[0].mxu0
        %v4339 = vadd.f32 0.0, %v4338
        %v4340 = vpop.f32.mrb[0].mxu0
        %4341 = vdwg.mxu0
        %4358 = vrot.lane.b32.xlu0 %v4280, 64
        %v4359 = vpop.permute.xlu0 %4358
        %4360 = vrot.lane.b32.xlu0 %v4283, 64
        %v4361 = vpop.permute.xlu0 %4360
        %4362 = vrot.lane.b32.xlu0 %v4288, 64
        %v4363 = vpop.permute.xlu0 %4362
        %4364 = vrot.lane.b32.xlu0 %v4291, 64
        %v4365 = vpop.permute.xlu0 %4364
        %4366 = vrot.lane.b32.xlu0 %v4296, 64
        %v4367 = vpop.permute.xlu0 %4366
        %4368 = vrot.lane.b32.xlu0 %v4299, 64
        %v4369 = vpop.permute.xlu0 %4368
        %4370 = vrot.lane.b32.xlu0 %v4304, 64
        %v4371 = vpop.permute.xlu0 %4370
        %4372 = vrot.lane.b32.xlu0 %v4307, 64
        %v4373 = vpop.permute.xlu0 %4372
        %4374 = vrot.lane.b32.xlu0 %v4312, 64
        %v4375 = vpop.permute.xlu0 %4374
        %4376 = vrot.lane.b32.xlu0 %v4315, 64
        %v4377 = vpop.permute.xlu0 %4376
        %4378 = vrot.lane.b32.xlu0 %v4320, 64
        %v4379 = vpop.permute.xlu0 %4378
        %4380 = vrot.lane.b32.xlu0 %v4323, 64
        %v4381 = vpop.permute.xlu0 %4380
        %4382 = vrot.lane.b32.xlu0 %v4328, 64
        %v4383 = vpop.permute.xlu0 %4382
        %4384 = vrot.lane.b32.xlu0 %v4331, 64
        %v4385 = vpop.permute.xlu0 %4384
        %4386 = vrot.lane.b32.xlu0 %v4336, 64
        %v4387 = vpop.permute.xlu0 %4386
        %4388 = vrot.lane.b32.xlu0 %v4339, 64
        %v4389 = vpop.permute.xlu0 %4388
        %vm4406 = vcmask 654848
        %4407 = vst.msk [vmem:[#allocation2] sm:$0xff] %vm4406, %v4359
        %4408 = vst.msk [vmem:[#allocation2 + $0x8] sm:$0xff] %vm4406, %v4361
        %4409 = vst.msk [vmem:[#allocation2 + $0x10] sm:$0xff] %vm4406, %v4363
        %4410 = vst.msk [vmem:[#allocation2 + $0x18] sm:$0xff] %vm4406, %v4365
        %4411 = vst.msk [vmem:[#allocation2 + $0x20] sm:$0xff] %vm4406, %v4367
        %4412 = vst.msk [vmem:[#allocation2 + $0x28] sm:$0xff] %vm4406, %v4369
        %4413 = vst.msk [vmem:[#allocation2 + $0x30] sm:$0xff] %vm4406, %v4371
        %4414 = vst.msk [vmem:[#allocation2 + $0x38] sm:$0xff] %vm4406, %v4373
        %4415 = vst.msk [vmem:[#allocation2 + $0x40] sm:$0xff] %vm4406, %v4375
        %4416 = vst.msk [vmem:[#allocation2 + $0x48] sm:$0xff] %vm4406, %v4377
        %4417 = vst.msk [vmem:[#allocation2 + $0x50] sm:$0xff] %vm4406, %v4379
        %4418 = vst.msk [vmem:[#allocation2 + $0x58] sm:$0xff] %vm4406, %v4381
        %4419 = vst.msk [vmem:[#allocation2 + $0x60] sm:$0xff] %vm4406, %v4383
        %4420 = vst.msk [vmem:[#allocation2 + $0x68] sm:$0xff] %vm4406, %v4385
        %4421 = vst.msk [vmem:[#allocation2 + $0x70] sm:$0xff] %vm4406, %v4387
        %4422 = vst.msk [vmem:[#allocation2 + $0x78] sm:$0xff] %vm4406, %v4389
        %4423 = vrot.lane.b32.xlu0 %v921, 48
        %v4424 = vpop.permute.xlu0 %4423
        %4425 = vrot.lane.b32.xlu0 %v922, 48
        %v4426 = vpop.permute.xlu0 %4425
        %4427 = vrot.lane.b32.xlu0 %v923, 48
        %v4428 = vpop.permute.xlu0 %4427
        %4429 = vrot.lane.b32.xlu0 %v924, 48
        %v4430 = vpop.permute.xlu0 %4429
        %4431 = vrot.lane.b32.xlu0 %v925, 48
        %v4432 = vpop.permute.xlu0 %4431
        %4433 = vrot.lane.b32.xlu0 %v926, 48
        %v4434 = vpop.permute.xlu0 %4433
        %4435 = vrot.lane.b32.xlu0 %v927, 48
        %v4436 = vpop.permute.xlu0 %4435
        %4437 = vrot.lane.b32.xlu0 %v928, 48
        %v4438 = vpop.permute.xlu0 %4437
        %4439 = vrot.lane.b32.xlu0 %v929, 48
        %v4440 = vpop.permute.xlu0 %4439
        %4441 = vrot.lane.b32.xlu0 %v930, 48
        %v4442 = vpop.permute.xlu0 %4441
        %4443 = vrot.lane.b32.xlu0 %v931, 48
        %v4444 = vpop.permute.xlu0 %4443
        %4445 = vrot.lane.b32.xlu0 %v932, 48
        %v4446 = vpop.permute.xlu0 %4445
        %4447 = vrot.lane.b32.xlu0 %v933, 48
        %v4448 = vpop.permute.xlu0 %4447
        %4449 = vrot.lane.b32.xlu0 %v934, 48
        %v4450 = vpop.permute.xlu0 %4449
        %4451 = vrot.lane.b32.xlu0 %v935, 48
        %v4452 = vpop.permute.xlu0 %4451
        %4453 = vrot.lane.b32.xlu0 %v936, 48
        %v4454 = vpop.permute.xlu0 %4453
        %4455 = vrot.lane.b32.xlu0 %v937, 48
        %v4456 = vpop.permute.xlu0 %4455
        %4457 = vrot.lane.b32.xlu0 %v938, 48
        %v4458 = vpop.permute.xlu0 %4457
        %4459 = vrot.lane.b32.xlu0 %v939, 48
        %v4460 = vpop.permute.xlu0 %4459
        %4461 = vrot.lane.b32.xlu0 %v940, 48
        %v4462 = vpop.permute.xlu0 %4461
        %4463 = vrot.lane.b32.xlu0 %v941, 48
        %v4464 = vpop.permute.xlu0 %4463
        %4465 = vrot.lane.b32.xlu0 %v942, 48
        %v4466 = vpop.permute.xlu0 %4465
        %4467 = vrot.lane.b32.xlu0 %v943, 48
        %v4468 = vpop.permute.xlu0 %4467
        %4469 = vrot.lane.b32.xlu0 %v944, 48
        %v4470 = vpop.permute.xlu0 %4469
        %v4472 = vsel %vm968, %v4424, 0
        %v4475 = vsel %vm968, %v4426, 0
        %v4478 = vsel %vm968, %v4428, 0
        %v4481 = vsel %vm968, %v4430, 0
        %v4484 = vsel %vm968, %v4432, 0
        %v4487 = vsel %vm968, %v4434, 0
        %v4490 = vsel %vm968, %v4436, 0
        %v4493 = vsel %vm968, %v4438, 0
        %v4496 = vsel %vm968, %v4440, 0
        %v4499 = vsel %vm968, %v4442, 0
        %v4502 = vsel %vm968, %v4444, 0
        %v4505 = vsel %vm968, %v4446, 0
        %v4508 = vsel %vm968, %v4448, 0
        %v4511 = vsel %vm968, %v4450, 0
        %v4514 = vsel %vm968, %v4452, 0
        %v4517 = vsel %vm968, %v4454, 0
        %v4520 = vsel %vm968, %v4456, 0
        %v4523 = vsel %vm968, %v4458, 0
        %v4526 = vsel %vm968, %v4460, 0
        %v4529 = vsel %vm968, %v4462, 0
        %v4532 = vsel %vm968, %v4464, 0
        %v4535 = vsel %vm968, %v4466, 0
        %v4538 = vsel %vm968, %v4468, 0
        %v4541 = vsel %vm968, %v4470, 0
        %4543 = vmatprep.subr.bf16.mxu0 0
        %4544 = vmatpush1.bf16.xpose.msra.mxu0 %v4496
        %4545 = vmatprep.subr.bf16.mxu0 0
        %4546 = vmatpush1.bf16.xpose.msra.mxu0 %v4499
        %4547 = vmatprep.subr.bf16.mxu0 0
        %4548 = vmatpush1.bf16.xpose.msra.mxu0 %v4502
        %4549 = vmatprep.subr.bf16.mxu0 0
        %4550 = vmatpush1.bf16.xpose.msra.mxu0 %v4505
        %4551 = vmatprep.subr.bf16.mxu0 0
        %4552 = vmatpush1.bf16.xpose.msra.mxu0 %v4508
        %4553 = vmatprep.subr.bf16.mxu0 0
        %4554 = vmatpush1.bf16.xpose.msra.mxu0 %v4511
        %4555 = vmatprep.subr.bf16.mxu0 0
        %4556 = vmatpush1.bf16.xpose.msra.mxu0 %v4514
        %4557 = vmatprep.subr.bf16.mxu0 0
        %4558 = vmatpush1.bf16.xpose.msra.mxu0 %v4517
        %4559 = vmatprep.subr.bf16.mxu0 0
        %4560 = vmatpush1.bf16.xpose.msra.mxu0 %v4520
        %4561 = vmatprep.subr.bf16.mxu0 0
        %4562 = vmatpush1.bf16.xpose.msra.mxu0 %v4523
        %4563 = vmatprep.subr.bf16.mxu0 0
        %4564 = vmatpush1.bf16.xpose.msra.mxu0 %v4526
        %4565 = vmatprep.subr.bf16.mxu0 0
        %4566 = vmatpush1.bf16.xpose.msra.mxu0 %v4529
        %4567 = vmatprep.subr.bf16.mxu0 0
        %4568 = vmatpush1.bf16.xpose.msra.mxu0 %v4532
        %4569 = vmatprep.subr.bf16.mxu0 0
        %4570 = vmatpush1.bf16.xpose.msra.mxu0 %v4535
        %4571 = vmatprep.subr.bf16.mxu0 0
        %4572 = vmatpush1.bf16.xpose.msra.mxu0 %v4538
        %4573 = vmatprep.subr.bf16.mxu0 0
        %4574 = vmatpush1.bf16.xpose.msra.mxu0 %v4541
        %4575 = vmatprep.mubr.bf16.mxu0 0
        %4576 = vmatmul.mubr.bf16.gmra.mrb[0].mxu0 %v4472
        %v4577 = vpop.f32.mrb[0].mxu0
        %v4578 = vadd.f32 %v966, %v4577
        %v4579 = vpop.f32.mrb[0].mxu0
        %v4580 = vadd.f32 %v967, %v4579
        %v4581 = vpop.f32.mrb[0].mxu0
        %v4582 = vadd.f32 %v966, %v4581
        %v4583 = vpop.f32.mrb[0].mxu0
        %v4584 = vadd.f32 %v967, %v4583
        %4585 = vmatprep.mubr.bf16.mxu0 0
        %4586 = vmatmul.mubr.bf16.gmra.mrb[0].mxu0 %v4475
        %v4587 = vpop.f32.mrb[0].mxu0
        %v4588 = vadd.f32 %v966, %v4587
        %v4589 = vpop.f32.mrb[0].mxu0
        %v4590 = vadd.f32 %v967, %v4589
        %v4591 = vpop.f32.mrb[0].mxu0
        %v4592 = vadd.f32 %v966, %v4591
        %v4593 = vpop.f32.mrb[0].mxu0
        %v4594 = vadd.f32 %v967, %v4593
        %4595 = vmatprep.mubr.bf16.mxu0 0
        %4596 = vmatmul.mubr.bf16.gmra.mrb[0].mxu0 %v4478
        %v4597 = vpop.f32.mrb[0].mxu0
        %v4598 = vadd.f32 %v966, %v4597
        %v4599 = vpop.f32.mrb[0].mxu0
        %v4600 = vadd.f32 %v967, %v4599
        %v4601 = vpop.f32.mrb[0].mxu0
        %v4602 = vadd.f32 %v966, %v4601
        %v4603 = vpop.f32.mrb[0].mxu0
        %v4604 = vadd.f32 %v967, %v4603
        %4605 = vmatprep.mubr.bf16.mxu0 0
        %4606 = vmatmul.mubr.bf16.gmra.mrb[0].mxu0 %v4481
        %v4607 = vpop.f32.mrb[0].mxu0
        %v4608 = vadd.f32 %v966, %v4607
        %v4609 = vpop.f32.mrb[0].mxu0
        %v4610 = vadd.f32 %v967, %v4609
        %v4611 = vpop.f32.mrb[0].mxu0
        %v4612 = vadd.f32 %v966, %v4611
        %v4613 = vpop.f32.mrb[0].mxu0
        %v4614 = vadd.f32 %v967, %v4613
        %4615 = vmatprep.mubr.bf16.mxu0 0
        %4616 = vmatmul.mubr.bf16.gmra.mrb[0].mxu0 %v4484
        %v4617 = vpop.f32.mrb[0].mxu0
        %v4618 = vadd.f32 %v966, %v4617
        %v4619 = vpop.f32.mrb[0].mxu0
        %v4620 = vadd.f32 %v967, %v4619
        %v4621 = vpop.f32.mrb[0].mxu0
        %v4622 = vadd.f32 %v966, %v4621
        %v4623 = vpop.f32.mrb[0].mxu0
        %v4624 = vadd.f32 %v967, %v4623
        %4625 = vmatprep.mubr.bf16.mxu0 0
        %4626 = vmatmul.mubr.bf16.gmra.mrb[0].mxu0 %v4487
        %v4627 = vpop.f32.mrb[0].mxu0
        %v4628 = vadd.f32 %v966, %v4627
        %v4629 = vpop.f32.mrb[0].mxu0
        %v4630 = vadd.f32 %v967, %v4629
        %v4631 = vpop.f32.mrb[0].mxu0
        %v4632 = vadd.f32 %v966, %v4631
        %v4633 = vpop.f32.mrb[0].mxu0
        %v4634 = vadd.f32 %v967, %v4633
        %4635 = vmatprep.mubr.bf16.mxu0 0
        %4636 = vmatmul.mubr.bf16.gmra.mrb[0].mxu0 %v4490
        %v4637 = vpop.f32.mrb[0].mxu0
        %v4638 = vadd.f32 %v966, %v4637
        %v4639 = vpop.f32.mrb[0].mxu0
        %v4640 = vadd.f32 %v967, %v4639
        %v4641 = vpop.f32.mrb[0].mxu0
        %v4642 = vadd.f32 %v966, %v4641
        %v4643 = vpop.f32.mrb[0].mxu0
        %v4644 = vadd.f32 %v967, %v4643
        %4645 = vmatprep.mubr.bf16.mxu0 0
        %4646 = vmatmul.mubr.bf16.gmra.mrb[0].mxu0 %v4493
        %v4647 = vpop.f32.mrb[0].mxu0
        %v4648 = vadd.f32 %v966, %v4647
        %v4649 = vpop.f32.mrb[0].mxu0
        %v4650 = vadd.f32 %v967, %v4649
        %v4651 = vpop.f32.mrb[0].mxu0
        %v4652 = vadd.f32 %v966, %v4651
        %v4653 = vpop.f32.mrb[0].mxu0
        %v4654 = vadd.f32 %v967, %v4653
        %4655 = vdwg.mxu0
        %v4656 = vmax.f32 %v4578, %v4580
        %4657 = vmax.xlane.f32.xlu0 %v4656
        %v4658 = vpop.xlane.xlu0 %4657
        %v4659 = vmax.f32 %v4582, %v4584
        %4660 = vmax.xlane.f32.xlu0 %v4659
        %v4661 = vpop.xlane.xlu0 %4660
        %v4662 = vmax.f32 %v4588, %v4590
        %4663 = vmax.xlane.f32.xlu0 %v4662
        %v4664 = vpop.xlane.xlu0 %4663
        %v4665 = vmax.f32 %v4592, %v4594
        %4666 = vmax.xlane.f32.xlu0 %v4665
        %v4667 = vpop.xlane.xlu0 %4666
        %v4668 = vmax.f32 %v4598, %v4600
        %4669 = vmax.xlane.f32.xlu0 %v4668
        %v4670 = vpop.xlane.xlu0 %4669
        %v4671 = vmax.f32 %v4602, %v4604
        %4672 = vmax.xlane.f32.xlu0 %v4671
        %v4673 = vpop.xlane.xlu0 %4672
        %v4674 = vmax.f32 %v4608, %v4610
        %4675 = vmax.xlane.f32.xlu0 %v4674
        %v4676 = vpop.xlane.xlu0 %4675
        %v4677 = vmax.f32 %v4612, %v4614
        %4678 = vmax.xlane.f32.xlu0 %v4677
        %v4679 = vpop.xlane.xlu0 %4678
        %v4680 = vmax.f32 %v4618, %v4620
        %4681 = vmax.xlane.f32.xlu0 %v4680
        %v4682 = vpop.xlane.xlu0 %4681
        %v4683 = vmax.f32 %v4622, %v4624
        %4684 = vmax.xlane.f32.xlu0 %v4683
        %v4685 = vpop.xlane.xlu0 %4684
        %v4686 = vmax.f32 %v4628, %v4630
        %4687 = vmax.xlane.f32.xlu0 %v4686
        %v4688 = vpop.xlane.xlu0 %4687
        %v4689 = vmax.f32 %v4632, %v4634
        %4690 = vmax.xlane.f32.xlu0 %v4689
        %v4691 = vpop.xlane.xlu0 %4690
        %v4692 = vmax.f32 %v4638, %v4640
        %4693 = vmax.xlane.f32.xlu0 %v4692
        %v4694 = vpop.xlane.xlu0 %4693
        %v4695 = vmax.f32 %v4642, %v4644
        %4696 = vmax.xlane.f32.xlu0 %v4695
        %v4697 = vpop.xlane.xlu0 %4696
        %v4698 = vmax.f32 %v4648, %v4650
        %4699 = vmax.xlane.f32.xlu0 %v4698
        %v4700 = vpop.xlane.xlu0 %4699
        %v4701 = vmax.f32 %v4652, %v4654
        %4702 = vmax.xlane.f32.xlu0 %v4701
        %v4703 = vpop.xlane.xlu0 %4702
        %v4704 = vsub.f32 %v4578, %v4658
        %v4705 = vsub.f32 %v4580, %v4658
        %v4706 = vsub.f32 %v4582, %v4661
        %v4707 = vsub.f32 %v4584, %v4661
        %v4708 = vsub.f32 %v4588, %v4664
        %v4709 = vsub.f32 %v4590, %v4664
        %v4710 = vsub.f32 %v4592, %v4667
        %v4711 = vsub.f32 %v4594, %v4667
        %v4712 = vsub.f32 %v4598, %v4670
        %v4713 = vsub.f32 %v4600, %v4670
        %v4714 = vsub.f32 %v4602, %v4673
        %v4715 = vsub.f32 %v4604, %v4673
        %v4716 = vsub.f32 %v4608, %v4676
        %v4717 = vsub.f32 %v4610, %v4676
        %v4718 = vsub.f32 %v4612, %v4679
        %v4719 = vsub.f32 %v4614, %v4679
        %v4720 = vsub.f32 %v4618, %v4682
        %v4721 = vsub.f32 %v4620, %v4682
        %v4722 = vsub.f32 %v4622, %v4685
        %v4723 = vsub.f32 %v4624, %v4685
        %v4724 = vsub.f32 %v4628, %v4688
        %v4725 = vsub.f32 %v4630, %v4688
        %v4726 = vsub.f32 %v4632, %v4691
        %v4727 = vsub.f32 %v4634, %v4691
        %v4728 = vsub.f32 %v4638, %v4694
        %v4729 = vsub.f32 %v4640, %v4694
        %v4730 = vsub.f32 %v4642, %v4697
        %v4731 = vsub.f32 %v4644, %v4697
        %v4732 = vsub.f32 %v4648, %v4700
        %v4733 = vsub.f32 %v4650, %v4700
        %v4734 = vsub.f32 %v4652, %v4703
        %v4735 = vsub.f32 %v4654, %v4703
        %v4736 = vmul.f32 %v4704, 1.442695
        %v4737 = vpow.pop %v4736
        %v4738 = vmul.f32 %v4705, 1.442695
        %v4739 = vpow.pop %v4738
        %v4740 = vmul.f32 %v4706, 1.442695
        %v4741 = vpow.pop %v4740
        %v4742 = vmul.f32 %v4707, 1.442695
        %v4743 = vpow.pop %v4742
        %v4744 = vmul.f32 %v4708, 1.442695
        %v4745 = vpow.pop %v4744
        %v4746 = vmul.f32 %v4709, 1.442695
        %v4747 = vpow.pop %v4746
        %v4748 = vmul.f32 %v4710, 1.442695
        %v4749 = vpow.pop %v4748
        %v4750 = vmul.f32 %v4711, 1.442695
        %v4751 = vpow.pop %v4750
        %v4752 = vmul.f32 %v4712, 1.442695
        %v4753 = vpow.pop %v4752
        %v4754 = vmul.f32 %v4713, 1.442695
        %v4755 = vpow.pop %v4754
        %v4756 = vmul.f32 %v4714, 1.442695
        %v4757 = vpow.pop %v4756
        %v4758 = vmul.f32 %v4715, 1.442695
        %v4759 = vpow.pop %v4758
        %v4760 = vmul.f32 %v4716, 1.442695
        %v4761 = vpow.pop %v4760
        %v4762 = vmul.f32 %v4717, 1.442695
        %v4763 = vpow.pop %v4762
        %v4764 = vmul.f32 %v4718, 1.442695
        %v4765 = vpow.pop %v4764
        %v4766 = vmul.f32 %v4719, 1.442695
        %v4767 = vpow.pop %v4766
        %v4768 = vmul.f32 %v4720, 1.442695
        %v4769 = vpow.pop %v4768
        %v4770 = vmul.f32 %v4721, 1.442695
        %v4771 = vpow.pop %v4770
        %v4772 = vmul.f32 %v4722, 1.442695
        %v4773 = vpow.pop %v4772
        %v4774 = vmul.f32 %v4723, 1.442695
        %v4775 = vpow.pop %v4774
        %v4776 = vmul.f32 %v4724, 1.442695
        %v4777 = vpow.pop %v4776
        %v4778 = vmul.f32 %v4725, 1.442695
        %v4779 = vpow.pop %v4778
        %v4780 = vmul.f32 %v4726, 1.442695
        %v4781 = vpow.pop %v4780
        %v4782 = vmul.f32 %v4727, 1.442695
        %v4783 = vpow.pop %v4782
        %v4784 = vmul.f32 %v4728, 1.442695
        %v4785 = vpow.pop %v4784
        %v4786 = vmul.f32 %v4729, 1.442695
        %v4787 = vpow.pop %v4786
        %v4788 = vmul.f32 %v4730, 1.442695
        %v4789 = vpow.pop %v4788
        %v4790 = vmul.f32 %v4731, 1.442695
        %v4791 = vpow.pop %v4790
        %v4792 = vmul.f32 %v4732, 1.442695
        %v4793 = vpow.pop %v4792
        %v4794 = vmul.f32 %v4733, 1.442695
        %v4795 = vpow.pop %v4794
        %v4796 = vmul.f32 %v4734, 1.442695
        %v4797 = vpow.pop %v4796
        %v4798 = vmul.f32 %v4735, 1.442695
        %v4799 = vpow.pop %v4798
        %v4800 = vadd.f32 %v4737, %v4739
        %4801 = vadd.xlane.f32.xlu0 %v4800
        %v4802 = vpop.xlane.xlu0 %4801
        %v4803 = vadd.f32 %v4741, %v4743
        %4804 = vadd.xlane.f32.xlu0 %v4803
        %v4805 = vpop.xlane.xlu0 %4804
        %v4806 = vadd.f32 %v4745, %v4747
        %4807 = vadd.xlane.f32.xlu0 %v4806
        %v4808 = vpop.xlane.xlu0 %4807
        %v4809 = vadd.f32 %v4749, %v4751
        %4810 = vadd.xlane.f32.xlu0 %v4809
        %v4811 = vpop.xlane.xlu0 %4810
        %v4812 = vadd.f32 %v4753, %v4755
        %4813 = vadd.xlane.f32.xlu0 %v4812
        %v4814 = vpop.xlane.xlu0 %4813
        %v4815 = vadd.f32 %v4757, %v4759
        %4816 = vadd.xlane.f32.xlu0 %v4815
        %v4817 = vpop.xlane.xlu0 %4816
        %v4818 = vadd.f32 %v4761, %v4763
        %4819 = vadd.xlane.f32.xlu0 %v4818
        %v4820 = vpop.xlane.xlu0 %4819
        %v4821 = vadd.f32 %v4765, %v4767
        %4822 = vadd.xlane.f32.xlu0 %v4821
        %v4823 = vpop.xlane.xlu0 %4822
        %v4824 = vadd.f32 %v4769, %v4771
        %4825 = vadd.xlane.f32.xlu0 %v4824
        %v4826 = vpop.xlane.xlu0 %4825
        %v4827 = vadd.f32 %v4773, %v4775
        %4828 = vadd.xlane.f32.xlu0 %v4827
        %v4829 = vpop.xlane.xlu0 %4828
        %v4830 = vadd.f32 %v4777, %v4779
        %4831 = vadd.xlane.f32.xlu0 %v4830
        %v4832 = vpop.xlane.xlu0 %4831
        %v4833 = vadd.f32 %v4781, %v4783
        %4834 = vadd.xlane.f32.xlu0 %v4833
        %v4835 = vpop.xlane.xlu0 %4834
        %v4836 = vadd.f32 %v4785, %v4787
        %4837 = vadd.xlane.f32.xlu0 %v4836
        %v4838 = vpop.xlane.xlu0 %4837
        %v4839 = vadd.f32 %v4789, %v4791
        %4840 = vadd.xlane.f32.xlu0 %v4839
        %v4841 = vpop.xlane.xlu0 %4840
        %v4842 = vadd.f32 %v4793, %v4795
        %4843 = vadd.xlane.f32.xlu0 %v4842
        %v4844 = vpop.xlane.xlu0 %4843
        %v4845 = vadd.f32 %v4797, %v4799
        %4846 = vadd.xlane.f32.xlu0 %v4845
        %v4847 = vpop.xlane.xlu0 %4846
        %v4848 = vrcp.pop %v4802
        %v4849 = vmul.f32 %v4737, %v4848
        %v4850 = vmul.f32 %v4739, %v4848
        %v4851 = vrcp.pop %v4805
        %v4852 = vmul.f32 %v4741, %v4851
        %v4853 = vmul.f32 %v4743, %v4851
        %v4854 = vrcp.pop %v4808
        %v4855 = vmul.f32 %v4745, %v4854
        %v4856 = vmul.f32 %v4747, %v4854
        %v4857 = vrcp.pop %v4811
        %v4858 = vmul.f32 %v4749, %v4857
        %v4859 = vmul.f32 %v4751, %v4857
        %v4860 = vrcp.pop %v4814
        %v4861 = vmul.f32 %v4753, %v4860
        %v4862 = vmul.f32 %v4755, %v4860
        %v4863 = vrcp.pop %v4817
        %v4864 = vmul.f32 %v4757, %v4863
        %v4865 = vmul.f32 %v4759, %v4863
        %v4866 = vrcp.pop %v4820
        %v4867 = vmul.f32 %v4761, %v4866
        %v4868 = vmul.f32 %v4763, %v4866
        %v4869 = vrcp.pop %v4823
        %v4870 = vmul.f32 %v4765, %v4869
        %v4871 = vmul.f32 %v4767, %v4869
        %v4872 = vrcp.pop %v4826
        %v4873 = vmul.f32 %v4769, %v4872
        %v4874 = vmul.f32 %v4771, %v4872
        %v4875 = vrcp.pop %v4829
        %v4876 = vmul.f32 %v4773, %v4875
        %v4877 = vmul.f32 %v4775, %v4875
        %v4878 = vrcp.pop %v4832
        %v4879 = vmul.f32 %v4777, %v4878
        %v4880 = vmul.f32 %v4779, %v4878
        %v4881 = vrcp.pop %v4835
        %v4882 = vmul.f32 %v4781, %v4881
        %v4883 = vmul.f32 %v4783, %v4881
        %v4884 = vrcp.pop %v4838
        %v4885 = vmul.f32 %v4785, %v4884
        %v4886 = vmul.f32 %v4787, %v4884
        %v4887 = vrcp.pop %v4841
        %v4888 = vmul.f32 %v4789, %v4887
        %v4889 = vmul.f32 %v4791, %v4887
        %v4890 = vrcp.pop %v4844
        %v4891 = vmul.f32 %v4793, %v4890
        %v4892 = vmul.f32 %v4795, %v4890
        %v4893 = vrcp.pop %v4847
        %v4894 = vmul.f32 %v4797, %v4893
        %v4895 = vmul.f32 %v4799, %v4893
        %v4896 = vpack.c.bf16 %v4852, %v4849
        %v4897 = vpack.c.bf16 %v4853, %v4850
        %v4898 = vpack.c.bf16 %v4858, %v4855
        %v4899 = vpack.c.bf16 %v4859, %v4856
        %v4900 = vpack.c.bf16 %v4864, %v4861
        %v4901 = vpack.c.bf16 %v4865, %v4862
        %v4902 = vpack.c.bf16 %v4870, %v4867
        %v4903 = vpack.c.bf16 %v4871, %v4868
        %v4904 = vpack.c.bf16 %v4876, %v4873
        %v4905 = vpack.c.bf16 %v4877, %v4874
        %v4906 = vpack.c.bf16 %v4882, %v4879
        %v4907 = vpack.c.bf16 %v4883, %v4880
        %v4908 = vpack.c.bf16 %v4888, %v4885
        %v4909 = vpack.c.bf16 %v4889, %v4886
        %v4910 = vpack.c.bf16 %v4894, %v4891
        %v4911 = vpack.c.bf16 %v4895, %v4892
        %4912 = vrot.lane.b32.xlu0 %v945, 48
        %v4913 = vpop.permute.xlu0 %4912
        %4914 = vrot.lane.b32.xlu0 %v946, 48
        %v4915 = vpop.permute.xlu0 %4914
        %4916 = vrot.lane.b32.xlu0 %v947, 48
        %v4917 = vpop.permute.xlu0 %4916
        %4918 = vrot.lane.b32.xlu0 %v948, 48
        %v4919 = vpop.permute.xlu0 %4918
        %4920 = vrot.lane.b32.xlu0 %v949, 48
        %v4921 = vpop.permute.xlu0 %4920
        %4922 = vrot.lane.b32.xlu0 %v950, 48
        %v4923 = vpop.permute.xlu0 %4922
        %4924 = vrot.lane.b32.xlu0 %v951, 48
        %v4925 = vpop.permute.xlu0 %4924
        %4926 = vrot.lane.b32.xlu0 %v952, 48
        %v4927 = vpop.permute.xlu0 %4926
        %4928 = vrot.lane.b32.xlu0 %v953, 48
        %v4929 = vpop.permute.xlu0 %4928
        %4930 = vrot.lane.b32.xlu0 %v954, 48
        %v4931 = vpop.permute.xlu0 %4930
        %4932 = vrot.lane.b32.xlu0 %v955, 48
        %v4933 = vpop.permute.xlu0 %4932
        %4934 = vrot.lane.b32.xlu0 %v956, 48
        %v4935 = vpop.permute.xlu0 %4934
        %4936 = vrot.lane.b32.xlu0 %v957, 48
        %v4937 = vpop.permute.xlu0 %4936
        %4938 = vrot.lane.b32.xlu0 %v958, 48
        %v4939 = vpop.permute.xlu0 %4938
        %4940 = vrot.lane.b32.xlu0 %v959, 48
        %v4941 = vpop.permute.xlu0 %4940
        %4942 = vrot.lane.b32.xlu0 %v960, 48
        %v4943 = vpop.permute.xlu0 %4942
        %4960 = vmatprep.subr.bf16.mxu0 0
        %4961 = vmatpush1.bf16.msra.mxu0 %v4913
        %4962 = vmatprep.subr.bf16.mxu0 0
        %4963 = vmatpush1.bf16.msra.mxu0 %v4915
        %4964 = vmatprep.subr.bf16.mxu0 0
        %4965 = vmatpush1.bf16.msra.mxu0 %v4917
        %4966 = vmatprep.subr.bf16.mxu0 0
        %4967 = vmatpush1.bf16.msra.mxu0 %v4919
        %4968 = vmatprep.subr.bf16.mxu0 0
        %4969 = vmatpush1.bf16.msra.mxu0 %v4921
        %4970 = vmatprep.subr.bf16.mxu0 0
        %4971 = vmatpush1.bf16.msra.mxu0 %v4923
        %4972 = vmatprep.subr.bf16.mxu0 0
        %4973 = vmatpush1.bf16.msra.mxu0 %v4925
        %4974 = vmatprep.subr.bf16.mxu0 0
        %4975 = vmatpush1.bf16.msra.mxu0 %v4927
        %4976 = vmatprep.subr.bf16.mxu0 0
        %4977 = vmatpush1.bf16.msra.mxu0 %v4929
        %4978 = vmatprep.subr.bf16.mxu0 0
        %4979 = vmatpush1.bf16.msra.mxu0 %v4931
        %4980 = vmatprep.subr.bf16.mxu0 0
        %4981 = vmatpush1.bf16.msra.mxu0 %v4933
        %4982 = vmatprep.subr.bf16.mxu0 0
        %4983 = vmatpush1.bf16.msra.mxu0 %v4935
        %4984 = vmatprep.subr.bf16.mxu0 0
        %4985 = vmatpush1.bf16.msra.mxu0 %v4937
        %4986 = vmatprep.subr.bf16.mxu0 0
        %4987 = vmatpush1.bf16.msra.mxu0 %v4939
        %4988 = vmatprep.subr.bf16.mxu0 0
        %4989 = vmatpush1.bf16.msra.mxu0 %v4941
        %4990 = vmatprep.subr.bf16.mxu0 0
        %4991 = vmatpush1.bf16.msra.mxu0 %v4943
        %4992 = vmatprep.mubr.bf16.mxu0 %v4897
        %4993 = vmatmul.mubr.bf16.gmra.mrb[0].mxu0 %v4896
        %v4994 = vpop.f32.mrb[0].mxu0
        %v4995 = vadd.f32 0.0, %v4994
        %v4996 = vpop.f32.mrb[0].mxu0
        %v4997 = vpop.f32.mrb[0].mxu0
        %v4998 = vadd.f32 0.0, %v4997
        %v4999 = vpop.f32.mrb[0].mxu0
        %5000 = vmatprep.mubr.bf16.mxu0 %v4899
        %5001 = vmatmul.mubr.bf16.gmra.mrb[0].mxu0 %v4898
        %v5002 = vpop.f32.mrb[0].mxu0
        %v5003 = vadd.f32 0.0, %v5002
        %v5004 = vpop.f32.mrb[0].mxu0
        %v5005 = vpop.f32.mrb[0].mxu0
        %v5006 = vadd.f32 0.0, %v5005
        %v5007 = vpop.f32.mrb[0].mxu0
        %5008 = vmatprep.mubr.bf16.mxu0 %v4901
        %5009 = vmatmul.mubr.bf16.gmra.mrb[0].mxu0 %v4900
        %v5010 = vpop.f32.mrb[0].mxu0
        %v5011 = vadd.f32 0.0, %v5010
        %v5012 = vpop.f32.mrb[0].mxu0
        %v5013 = vpop.f32.mrb[0].mxu0
        %v5014 = vadd.f32 0.0, %v5013
        %v5015 = vpop.f32.mrb[0].mxu0
        %5016 = vmatprep.mubr.bf16.mxu0 %v4903
        %5017 = vmatmul.mubr.bf16.gmra.mrb[0].mxu0 %v4902
        %v5018 = vpop.f32.mrb[0].mxu0
        %v5019 = vadd.f32 0.0, %v5018
        %v5020 = vpop.f32.mrb[0].mxu0
        %v5021 = vpop.f32.mrb[0].mxu0
        %v5022 = vadd.f32 0.0, %v5021
        %v5023 = vpop.f32.mrb[0].mxu0
        %5024 = vmatprep.mubr.bf16.mxu0 %v4905
        %5025 = vmatmul.mubr.bf16.gmra.mrb[0].mxu0 %v4904
        %v5026 = vpop.f32.mrb[0].mxu0
        %v5027 = vadd.f32 0.0, %v5026
        %v5028 = vpop.f32.mrb[0].mxu0
        %v5029 = vpop.f32.mrb[0].mxu0
        %v5030 = vadd.f32 0.0, %v5029
        %v5031 = vpop.f32.mrb[0].mxu0
        %5032 = vmatprep.mubr.bf16.mxu0 %v4907
        %5033 = vmatmul.mubr.bf16.gmra.mrb[0].mxu0 %v4906
        %v5034 = vpop.f32.mrb[0].mxu0
        %v5035 = vadd.f32 0.0, %v5034
        %v5036 = vpop.f32.mrb[0].mxu0
        %v5037 = vpop.f32.mrb[0].mxu0
        %v5038 = vadd.f32 0.0, %v5037
        %v5039 = vpop.f32.mrb[0].mxu0
        %5040 = vmatprep.mubr.bf16.mxu0 %v4909
        %5041 = vmatmul.mubr.bf16.gmra.mrb[0].mxu0 %v4908
        %v5042 = vpop.f32.mrb[0].mxu0
        %v5043 = vadd.f32 0.0, %v5042
        %v5044 = vpop.f32.mrb[0].mxu0
        %v5045 = vpop.f32.mrb[0].mxu0
        %v5046 = vadd.f32 0.0, %v5045
        %v5047 = vpop.f32.mrb[0].mxu0
        %5048 = vmatprep.mubr.bf16.mxu0 %v4911
        %5049 = vmatmul.mubr.bf16.gmra.mrb[0].mxu0 %v4910
        %v5050 = vpop.f32.mrb[0].mxu0
        %v5051 = vadd.f32 0.0, %v5050
        %v5052 = vpop.f32.mrb[0].mxu0
        %v5053 = vpop.f32.mrb[0].mxu0
        %v5054 = vadd.f32 0.0, %v5053
        %v5055 = vpop.f32.mrb[0].mxu0
        %5056 = vdwg.mxu0
        %5073 = vrot.lane.b32.xlu0 %v4995, 80
        %v5074 = vpop.permute.xlu0 %5073
        %5075 = vrot.lane.b32.xlu0 %v4998, 80
        %v5076 = vpop.permute.xlu0 %5075
        %5077 = vrot.lane.b32.xlu0 %v5003, 80
        %v5078 = vpop.permute.xlu0 %5077
        %5079 = vrot.lane.b32.xlu0 %v5006, 80
        %v5080 = vpop.permute.xlu0 %5079
        %5081 = vrot.lane.b32.xlu0 %v5011, 80
        %v5082 = vpop.permute.xlu0 %5081
        %5083 = vrot.lane.b32.xlu0 %v5014, 80
        %v5084 = vpop.permute.xlu0 %5083
        %5085 = vrot.lane.b32.xlu0 %v5019, 80
        %v5086 = vpop.permute.xlu0 %5085
        %5087 = vrot.lane.b32.xlu0 %v5022, 80
        %v5088 = vpop.permute.xlu0 %5087
        %5089 = vrot.lane.b32.xlu0 %v5027, 80
        %v5090 = vpop.permute.xlu0 %5089
        %5091 = vrot.lane.b32.xlu0 %v5030, 80
        %v5092 = vpop.permute.xlu0 %5091
        %5093 = vrot.lane.b32.xlu0 %v5035, 80
        %v5094 = vpop.permute.xlu0 %5093
        %5095 = vrot.lane.b32.xlu0 %v5038, 80
        %v5096 = vpop.permute.xlu0 %5095
        %5097 = vrot.lane.b32.xlu0 %v5043, 80
        %v5098 = vpop.permute.xlu0 %5097
        %5099 = vrot.lane.b32.xlu0 %v5046, 80
        %v5100 = vpop.permute.xlu0 %5099
        %5101 = vrot.lane.b32.xlu0 %v5051, 80
        %v5102 = vpop.permute.xlu0 %5101
        %5103 = vrot.lane.b32.xlu0 %v5054, 80
        %v5104 = vpop.permute.xlu0 %5103
        %vm5121 = vcmask 786048
        %5122 = vst.msk [vmem:[#allocation2] sm:$0xff] %vm5121, %v5074
        %5123 = vst.msk [vmem:[#allocation2 + $0x8] sm:$0xff] %vm5121, %v5076
        %5124 = vst.msk [vmem:[#allocation2 + $0x10] sm:$0xff] %vm5121, %v5078
        %5125 = vst.msk [vmem:[#allocation2 + $0x18] sm:$0xff] %vm5121, %v5080
        %5126 = vst.msk [vmem:[#allocation2 + $0x20] sm:$0xff] %vm5121, %v5082
        %5127 = vst.msk [vmem:[#allocation2 + $0x28] sm:$0xff] %vm5121, %v5084
        %5128 = vst.msk [vmem:[#allocation2 + $0x30] sm:$0xff] %vm5121, %v5086
        %5129 = vst.msk [vmem:[#allocation2 + $0x38] sm:$0xff] %vm5121, %v5088
        %5130 = vst.msk [vmem:[#allocation2 + $0x40] sm:$0xff] %vm5121, %v5090
        %5131 = vst.msk [vmem:[#allocation2 + $0x48] sm:$0xff] %vm5121, %v5092
        %5132 = vst.msk [vmem:[#allocation2 + $0x50] sm:$0xff] %vm5121, %v5094
        %5133 = vst.msk [vmem:[#allocation2 + $0x58] sm:$0xff] %vm5121, %v5096
        %5134 = vst.msk [vmem:[#allocation2 + $0x60] sm:$0xff] %vm5121, %v5098
        %5135 = vst.msk [vmem:[#allocation2 + $0x68] sm:$0xff] %vm5121, %v5100
        %5136 = vst.msk [vmem:[#allocation2 + $0x70] sm:$0xff] %vm5121, %v5102
        %5137 = vst.msk [vmem:[#allocation2 + $0x78] sm:$0xff] %vm5121, %v5104
        %5138 = vrot.lane.b32.xlu0 %v921, 32
        %v5139 = vpop.permute.xlu0 %5138
        %5140 = vrot.lane.b32.xlu0 %v922, 32
        %v5141 = vpop.permute.xlu0 %5140
        %5142 = vrot.lane.b32.xlu0 %v923, 32
        %v5143 = vpop.permute.xlu0 %5142
        %5144 = vrot.lane.b32.xlu0 %v924, 32
        %v5145 = vpop.permute.xlu0 %5144
        %5146 = vrot.lane.b32.xlu0 %v925, 32
        %v5147 = vpop.permute.xlu0 %5146
        %5148 = vrot.lane.b32.xlu0 %v926, 32
        %v5149 = vpop.permute.xlu0 %5148
        %5150 = vrot.lane.b32.xlu0 %v927, 32
        %v5151 = vpop.permute.xlu0 %5150
        %5152 = vrot.lane.b32.xlu0 %v928, 32
        %v5153 = vpop.permute.xlu0 %5152
        %5154 = vrot.lane.b32.xlu0 %v929, 32
        %v5155 = vpop.permute.xlu0 %5154
        %5156 = vrot.lane.b32.xlu0 %v930, 32
        %v5157 = vpop.permute.xlu0 %5156
        %5158 = vrot.lane.b32.xlu0 %v931, 32
        %v5159 = vpop.permute.xlu0 %5158
        %5160 = vrot.lane.b32.xlu0 %v932, 32
        %v5161 = vpop.permute.xlu0 %5160
        %5162 = vrot.lane.b32.xlu0 %v933, 32
        %v5163 = vpop.permute.xlu0 %5162
        %5164 = vrot.lane.b32.xlu0 %v934, 32
        %v5165 = vpop.permute.xlu0 %5164
        %5166 = vrot.lane.b32.xlu0 %v935, 32
        %v5167 = vpop.permute.xlu0 %5166
        %5168 = vrot.lane.b32.xlu0 %v936, 32
        %v5169 = vpop.permute.xlu0 %5168
        %5170 = vrot.lane.b32.xlu0 %v937, 32
        %v5171 = vpop.permute.xlu0 %5170
        %5172 = vrot.lane.b32.xlu0 %v938, 32
        %v5173 = vpop.permute.xlu0 %5172
        %5174 = vrot.lane.b32.xlu0 %v939, 32
        %v5175 = vpop.permute.xlu0 %5174
        %5176 = vrot.lane.b32.xlu0 %v940, 32
        %v5177 = vpop.permute.xlu0 %5176
        %5178 = vrot.lane.b32.xlu0 %v941, 32
        %v5179 = vpop.permute.xlu0 %5178
        %5180 = vrot.lane.b32.xlu0 %v942, 32
        %v5181 = vpop.permute.xlu0 %5180
        %5182 = vrot.lane.b32.xlu0 %v943, 32
        %v5183 = vpop.permute.xlu0 %5182
        %5184 = vrot.lane.b32.xlu0 %v944, 32
        %v5185 = vpop.permute.xlu0 %5184
        %v5187 = vsel %vm968, %v5139, 0
        %v5190 = vsel %vm968, %v5141, 0
        %v5193 = vsel %vm968, %v5143, 0
        %v5196 = vsel %vm968, %v5145, 0
        %v5199 = vsel %vm968, %v5147, 0
        %v5202 = vsel %vm968, %v5149, 0
        %v5205 = vsel %vm968, %v5151, 0
        %v5208 = vsel %vm968, %v5153, 0
        %v5211 = vsel %vm968, %v5155, 0
        %v5214 = vsel %vm968, %v5157, 0
        %v5217 = vsel %vm968, %v5159, 0
        %v5220 = vsel %vm968, %v5161, 0
        %v5223 = vsel %vm968, %v5163, 0
        %v5226 = vsel %vm968, %v5165, 0
        %v5229 = vsel %vm968, %v5167, 0
        %v5232 = vsel %vm968, %v5169, 0
        %v5235 = vsel %vm968, %v5171, 0
        %v5238 = vsel %vm968, %v5173, 0
        %v5241 = vsel %vm968, %v5175, 0
        %v5244 = vsel %vm968, %v5177, 0
        %v5247 = vsel %vm968, %v5179, 0
        %v5250 = vsel %vm968, %v5181, 0
        %v5253 = vsel %vm968, %v5183, 0
        %v5256 = vsel %vm968, %v5185, 0
        %5258 = vmatprep.subr.bf16.mxu0 0
        %5259 = vmatpush1.bf16.xpose.msra.mxu0 %v5211
        %5260 = vmatprep.subr.bf16.mxu0 0
        %5261 = vmatpush1.bf16.xpose.msra.mxu0 %v5214
        %5262 = vmatprep.subr.bf16.mxu0 0
        %5263 = vmatpush1.bf16.xpose.msra.mxu0 %v5217
        %5264 = vmatprep.subr.bf16.mxu0 0
        %5265 = vmatpush1.bf16.xpose.msra.mxu0 %v5220
        %5266 = vmatprep.subr.bf16.mxu0 0
        %5267 = vmatpush1.bf16.xpose.msra.mxu0 %v5223
        %5268 = vmatprep.subr.bf16.mxu0 0
        %5269 = vmatpush1.bf16.xpose.msra.mxu0 %v5226
        %5270 = vmatprep.subr.bf16.mxu0 0
        %5271 = vmatpush1.bf16.xpose.msra.mxu0 %v5229
        %5272 = vmatprep.subr.bf16.mxu0 0
        %5273 = vmatpush1.bf16.xpose.msra.mxu0 %v5232
        %5274 = vmatprep.subr.bf16.mxu0 0
        %5275 = vmatpush1.bf16.xpose.msra.mxu0 %v5235
        %5276 = vmatprep.subr.bf16.mxu0 0
        %5277 = vmatpush1.bf16.xpose.msra.mxu0 %v5238
        %5278 = vmatprep.subr.bf16.mxu0 0
        %5279 = vmatpush1.bf16.xpose.msra.mxu0 %v5241
        %5280 = vmatprep.subr.bf16.mxu0 0
        %5281 = vmatpush1.bf16.xpose.msra.mxu0 %v5244
        %5282 = vmatprep.subr.bf16.mxu0 0
        %5283 = vmatpush1.bf16.xpose.msra.mxu0 %v5247
        %5284 = vmatprep.subr.bf16.mxu0 0
        %5285 = vmatpush1.bf16.xpose.msra.mxu0 %v5250
        %5286 = vmatprep.subr.bf16.mxu0 0
        %5287 = vmatpush1.bf16.xpose.msra.mxu0 %v5253
        %5288 = vmatprep.subr.bf16.mxu0 0
        %5289 = vmatpush1.bf16.xpose.msra.mxu0 %v5256
        %5290 = vmatprep.mubr.bf16.mxu0 0
        %5291 = vmatmul.mubr.bf16.gmra.mrb[0].mxu0 %v5187
        %v5292 = vpop.f32.mrb[0].mxu0
        %v5293 = vadd.f32 %v966, %v5292
        %v5294 = vpop.f32.mrb[0].mxu0
        %v5295 = vadd.f32 %v967, %v5294
        %v5296 = vpop.f32.mrb[0].mxu0
        %v5297 = vadd.f32 %v966, %v5296
        %v5298 = vpop.f32.mrb[0].mxu0
        %v5299 = vadd.f32 %v967, %v5298
        %5300 = vmatprep.mubr.bf16.mxu0 0
        %5301 = vmatmul.mubr.bf16.gmra.mrb[0].mxu0 %v5190
        %v5302 = vpop.f32.mrb[0].mxu0
        %v5303 = vadd.f32 %v966, %v5302
        %v5304 = vpop.f32.mrb[0].mxu0
        %v5305 = vadd.f32 %v967, %v5304
        %v5306 = vpop.f32.mrb[0].mxu0
        %v5307 = vadd.f32 %v966, %v5306
        %v5308 = vpop.f32.mrb[0].mxu0
        %v5309 = vadd.f32 %v967, %v5308
        %5310 = vmatprep.mubr.bf16.mxu0 0
        %5311 = vmatmul.mubr.bf16.gmra.mrb[0].mxu0 %v5193
        %v5312 = vpop.f32.mrb[0].mxu0
        %v5313 = vadd.f32 %v966, %v5312
        %v5314 = vpop.f32.mrb[0].mxu0
        %v5315 = vadd.f32 %v967, %v5314
        %v5316 = vpop.f32.mrb[0].mxu0
        %v5317 = vadd.f32 %v966, %v5316
        %v5318 = vpop.f32.mrb[0].mxu0
        %v5319 = vadd.f32 %v967, %v5318
        %5320 = vmatprep.mubr.bf16.mxu0 0
        %5321 = vmatmul.mubr.bf16.gmra.mrb[0].mxu0 %v5196
        %v5322 = vpop.f32.mrb[0].mxu0
        %v5323 = vadd.f32 %v966, %v5322
        %v5324 = vpop.f32.mrb[0].mxu0
        %v5325 = vadd.f32 %v967, %v5324
        %v5326 = vpop.f32.mrb[0].mxu0
        %v5327 = vadd.f32 %v966, %v5326
        %v5328 = vpop.f32.mrb[0].mxu0
        %v5329 = vadd.f32 %v967, %v5328
        %5330 = vmatprep.mubr.bf16.mxu0 0
        %5331 = vmatmul.mubr.bf16.gmra.mrb[0].mxu0 %v5199
        %v5332 = vpop.f32.mrb[0].mxu0
        %v5333 = vadd.f32 %v966, %v5332
        %v5334 = vpop.f32.mrb[0].mxu0
        %v5335 = vadd.f32 %v967, %v5334
        %v5336 = vpop.f32.mrb[0].mxu0
        %v5337 = vadd.f32 %v966, %v5336
        %v5338 = vpop.f32.mrb[0].mxu0
        %v5339 = vadd.f32 %v967, %v5338
        %5340 = vmatprep.mubr.bf16.mxu0 0
        %5341 = vmatmul.mubr.bf16.gmra.mrb[0].mxu0 %v5202
        %v5342 = vpop.f32.mrb[0].mxu0
        %v5343 = vadd.f32 %v966, %v5342
        %v5344 = vpop.f32.mrb[0].mxu0
        %v5345 = vadd.f32 %v967, %v5344
        %v5346 = vpop.f32.mrb[0].mxu0
        %v5347 = vadd.f32 %v966, %v5346
        %v5348 = vpop.f32.mrb[0].mxu0
        %v5349 = vadd.f32 %v967, %v5348
        %5350 = vmatprep.mubr.bf16.mxu0 0
        %5351 = vmatmul.mubr.bf16.gmra.mrb[0].mxu0 %v5205
        %v5352 = vpop.f32.mrb[0].mxu0
        %v5353 = vadd.f32 %v966, %v5352
        %v5354 = vpop.f32.mrb[0].mxu0
        %v5355 = vadd.f32 %v967, %v5354
        %v5356 = vpop.f32.mrb[0].mxu0
        %v5357 = vadd.f32 %v966, %v5356
        %v5358 = vpop.f32.mrb[0].mxu0
        %v5359 = vadd.f32 %v967, %v5358
        %5360 = vmatprep.mubr.bf16.mxu0 0
        %5361 = vmatmul.mubr.bf16.gmra.mrb[0].mxu0 %v5208
        %v5362 = vpop.f32.mrb[0].mxu0
        %v5363 = vadd.f32 %v966, %v5362
        %v5364 = vpop.f32.mrb[0].mxu0
        %v5365 = vadd.f32 %v967, %v5364
        %v5366 = vpop.f32.mrb[0].mxu0
        %v5367 = vadd.f32 %v966, %v5366
        %v5368 = vpop.f32.mrb[0].mxu0
        %v5369 = vadd.f32 %v967, %v5368
        %5370 = vdwg.mxu0
        %v5371 = vmax.f32 %v5293, %v5295
        %5372 = vmax.xlane.f32.xlu0 %v5371
        %v5373 = vpop.xlane.xlu0 %5372
        %v5374 = vmax.f32 %v5297, %v5299
        %5375 = vmax.xlane.f32.xlu0 %v5374
        %v5376 = vpop.xlane.xlu0 %5375
        %v5377 = vmax.f32 %v5303, %v5305
        %5378 = vmax.xlane.f32.xlu0 %v5377
        %v5379 = vpop.xlane.xlu0 %5378
        %v5380 = vmax.f32 %v5307, %v5309
        %5381 = vmax.xlane.f32.xlu0 %v5380
        %v5382 = vpop.xlane.xlu0 %5381
        %v5383 = vmax.f32 %v5313, %v5315
        %5384 = vmax.xlane.f32.xlu0 %v5383
        %v5385 = vpop.xlane.xlu0 %5384
        %v5386 = vmax.f32 %v5317, %v5319
        %5387 = vmax.xlane.f32.xlu0 %v5386
        %v5388 = vpop.xlane.xlu0 %5387
        %v5389 = vmax.f32 %v5323, %v5325
        %5390 = vmax.xlane.f32.xlu0 %v5389
        %v5391 = vpop.xlane.xlu0 %5390
        %v5392 = vmax.f32 %v5327, %v5329
        %5393 = vmax.xlane.f32.xlu0 %v5392
        %v5394 = vpop.xlane.xlu0 %5393
        %v5395 = vmax.f32 %v5333, %v5335
        %5396 = vmax.xlane.f32.xlu0 %v5395
        %v5397 = vpop.xlane.xlu0 %5396
        %v5398 = vmax.f32 %v5337, %v5339
        %5399 = vmax.xlane.f32.xlu0 %v5398
        %v5400 = vpop.xlane.xlu0 %5399
        %v5401 = vmax.f32 %v5343, %v5345
        %5402 = vmax.xlane.f32.xlu0 %v5401
        %v5403 = vpop.xlane.xlu0 %5402
        %v5404 = vmax.f32 %v5347, %v5349
        %5405 = vmax.xlane.f32.xlu0 %v5404
        %v5406 = vpop.xlane.xlu0 %5405
        %v5407 = vmax.f32 %v5353, %v5355
        %5408 = vmax.xlane.f32.xlu0 %v5407
        %v5409 = vpop.xlane.xlu0 %5408
        %v5410 = vmax.f32 %v5357, %v5359
        %5411 = vmax.xlane.f32.xlu0 %v5410
        %v5412 = vpop.xlane.xlu0 %5411
        %v5413 = vmax.f32 %v5363, %v5365
        %5414 = vmax.xlane.f32.xlu0 %v5413
        %v5415 = vpop.xlane.xlu0 %5414
        %v5416 = vmax.f32 %v5367, %v5369
        %5417 = vmax.xlane.f32.xlu0 %v5416
        %v5418 = vpop.xlane.xlu0 %5417
        %v5419 = vsub.f32 %v5293, %v5373
        %v5420 = vsub.f32 %v5295, %v5373
        %v5421 = vsub.f32 %v5297, %v5376
        %v5422 = vsub.f32 %v5299, %v5376
        %v5423 = vsub.f32 %v5303, %v5379
        %v5424 = vsub.f32 %v5305, %v5379
        %v5425 = vsub.f32 %v5307, %v5382
        %v5426 = vsub.f32 %v5309, %v5382
        %v5427 = vsub.f32 %v5313, %v5385
        %v5428 = vsub.f32 %v5315, %v5385
        %v5429 = vsub.f32 %v5317, %v5388
        %v5430 = vsub.f32 %v5319, %v5388
        %v5431 = vsub.f32 %v5323, %v5391
        %v5432 = vsub.f32 %v5325, %v5391
        %v5433 = vsub.f32 %v5327, %v5394
        %v5434 = vsub.f32 %v5329, %v5394
        %v5435 = vsub.f32 %v5333, %v5397
        %v5436 = vsub.f32 %v5335, %v5397
        %v5437 = vsub.f32 %v5337, %v5400
        %v5438 = vsub.f32 %v5339, %v5400
        %v5439 = vsub.f32 %v5343, %v5403
        %v5440 = vsub.f32 %v5345, %v5403
        %v5441 = vsub.f32 %v5347, %v5406
        %v5442 = vsub.f32 %v5349, %v5406
        %v5443 = vsub.f32 %v5353, %v5409
        %v5444 = vsub.f32 %v5355, %v5409
        %v5445 = vsub.f32 %v5357, %v5412
        %v5446 = vsub.f32 %v5359, %v5412
        %v5447 = vsub.f32 %v5363, %v5415
        %v5448 = vsub.f32 %v5365, %v5415
        %v5449 = vsub.f32 %v5367, %v5418
        %v5450 = vsub.f32 %v5369, %v5418
        %v5451 = vmul.f32 %v5419, 1.442695
        %v5452 = vpow.pop %v5451
        %v5453 = vmul.f32 %v5420, 1.442695
        %v5454 = vpow.pop %v5453
        %v5455 = vmul.f32 %v5421, 1.442695
        %v5456 = vpow.pop %v5455
        %v5457 = vmul.f32 %v5422, 1.442695
        %v5458 = vpow.pop %v5457
        %v5459 = vmul.f32 %v5423, 1.442695
        %v5460 = vpow.pop %v5459
        %v5461 = vmul.f32 %v5424, 1.442695
        %v5462 = vpow.pop %v5461
        %v5463 = vmul.f32 %v5425, 1.442695
        %v5464 = vpow.pop %v5463
        %v5465 = vmul.f32 %v5426, 1.442695
        %v5466 = vpow.pop %v5465
        %v5467 = vmul.f32 %v5427, 1.442695
        %v5468 = vpow.pop %v5467
        %v5469 = vmul.f32 %v5428, 1.442695
        %v5470 = vpow.pop %v5469
        %v5471 = vmul.f32 %v5429, 1.442695
        %v5472 = vpow.pop %v5471
        %v5473 = vmul.f32 %v5430, 1.442695
        %v5474 = vpow.pop %v5473
        %v5475 = vmul.f32 %v5431, 1.442695
        %v5476 = vpow.pop %v5475
        %v5477 = vmul.f32 %v5432, 1.442695
        %v5478 = vpow.pop %v5477
        %v5479 = vmul.f32 %v5433, 1.442695
        %v5480 = vpow.pop %v5479
        %v5481 = vmul.f32 %v5434, 1.442695
        %v5482 = vpow.pop %v5481
        %v5483 = vmul.f32 %v5435, 1.442695
        %v5484 = vpow.pop %v5483
        %v5485 = vmul.f32 %v5436, 1.442695
        %v5486 = vpow.pop %v5485
        %v5487 = vmul.f32 %v5437, 1.442695
        %v5488 = vpow.pop %v5487
        %v5489 = vmul.f32 %v5438, 1.442695
        %v5490 = vpow.pop %v5489
        %v5491 = vmul.f32 %v5439, 1.442695
        %v5492 = vpow.pop %v5491
        %v5493 = vmul.f32 %v5440, 1.442695
        %v5494 = vpow.pop %v5493
        %v5495 = vmul.f32 %v5441, 1.442695
        %v5496 = vpow.pop %v5495
        %v5497 = vmul.f32 %v5442, 1.442695
        %v5498 = vpow.pop %v5497
        %v5499 = vmul.f32 %v5443, 1.442695
        %v5500 = vpow.pop %v5499
        %v5501 = vmul.f32 %v5444, 1.442695
        %v5502 = vpow.pop %v5501
        %v5503 = vmul.f32 %v5445, 1.442695
        %v5504 = vpow.pop %v5503
        %v5505 = vmul.f32 %v5446, 1.442695
        %v5506 = vpow.pop %v5505
        %v5507 = vmul.f32 %v5447, 1.442695
        %v5508 = vpow.pop %v5507
        %v5509 = vmul.f32 %v5448, 1.442695
        %v5510 = vpow.pop %v5509
        %v5511 = vmul.f32 %v5449, 1.442695
        %v5512 = vpow.pop %v5511
        %v5513 = vmul.f32 %v5450, 1.442695
        %v5514 = vpow.pop %v5513
        %v5515 = vadd.f32 %v5452, %v5454
        %5516 = vadd.xlane.f32.xlu0 %v5515
        %v5517 = vpop.xlane.xlu0 %5516
        %v5518 = vadd.f32 %v5456, %v5458
        %5519 = vadd.xlane.f32.xlu0 %v5518
        %v5520 = vpop.xlane.xlu0 %5519
        %v5521 = vadd.f32 %v5460, %v5462
        %5522 = vadd.xlane.f32.xlu0 %v5521
        %v5523 = vpop.xlane.xlu0 %5522
        %v5524 = vadd.f32 %v5464, %v5466
        %5525 = vadd.xlane.f32.xlu0 %v5524
        %v5526 = vpop.xlane.xlu0 %5525
        %v5527 = vadd.f32 %v5468, %v5470
        %5528 = vadd.xlane.f32.xlu0 %v5527
        %v5529 = vpop.xlane.xlu0 %5528
        %v5530 = vadd.f32 %v5472, %v5474
        %5531 = vadd.xlane.f32.xlu0 %v5530
        %v5532 = vpop.xlane.xlu0 %5531
        %v5533 = vadd.f32 %v5476, %v5478
        %5534 = vadd.xlane.f32.xlu0 %v5533
        %v5535 = vpop.xlane.xlu0 %5534
        %v5536 = vadd.f32 %v5480, %v5482
        %5537 = vadd.xlane.f32.xlu0 %v5536
        %v5538 = vpop.xlane.xlu0 %5537
        %v5539 = vadd.f32 %v5484, %v5486
        %5540 = vadd.xlane.f32.xlu0 %v5539
        %v5541 = vpop.xlane.xlu0 %5540
        %v5542 = vadd.f32 %v5488, %v5490
        %5543 = vadd.xlane.f32.xlu0 %v5542
        %v5544 = vpop.xlane.xlu0 %5543
        %v5545 = vadd.f32 %v5492, %v5494
        %5546 = vadd.xlane.f32.xlu0 %v5545
        %v5547 = vpop.xlane.xlu0 %5546
        %v5548 = vadd.f32 %v5496, %v5498
        %5549 = vadd.xlane.f32.xlu0 %v5548
        %v5550 = vpop.xlane.xlu0 %5549
        %v5551 = vadd.f32 %v5500, %v5502
        %5552 = vadd.xlane.f32.xlu0 %v5551
        %v5553 = vpop.xlane.xlu0 %5552
        %v5554 = vadd.f32 %v5504, %v5506
        %5555 = vadd.xlane.f32.xlu0 %v5554
        %v5556 = vpop.xlane.xlu0 %5555
        %v5557 = vadd.f32 %v5508, %v5510
        %5558 = vadd.xlane.f32.xlu0 %v5557
        %v5559 = vpop.xlane.xlu0 %5558
        %v5560 = vadd.f32 %v5512, %v5514
        %5561 = vadd.xlane.f32.xlu0 %v5560
        %v5562 = vpop.xlane.xlu0 %5561
        %v5563 = vrcp.pop %v5517
        %v5564 = vmul.f32 %v5452, %v5563
        %v5565 = vmul.f32 %v5454, %v5563
        %v5566 = vrcp.pop %v5520
        %v5567 = vmul.f32 %v5456, %v5566
        %v5568 = vmul.f32 %v5458, %v5566
        %v5569 = vrcp.pop %v5523
        %v5570 = vmul.f32 %v5460, %v5569
        %v5571 = vmul.f32 %v5462, %v5569
        %v5572 = vrcp.pop %v5526
        %v5573 = vmul.f32 %v5464, %v5572
        %v5574 = vmul.f32 %v5466, %v5572
        %v5575 = vrcp.pop %v5529
        %v5576 = vmul.f32 %v5468, %v5575
        %v5577 = vmul.f32 %v5470, %v5575
        %v5578 = vrcp.pop %v5532
        %v5579 = vmul.f32 %v5472, %v5578
        %v5580 = vmul.f32 %v5474, %v5578
        %v5581 = vrcp.pop %v5535
        %v5582 = vmul.f32 %v5476, %v5581
        %v5583 = vmul.f32 %v5478, %v5581
        %v5584 = vrcp.pop %v5538
        %v5585 = vmul.f32 %v5480, %v5584
        %v5586 = vmul.f32 %v5482, %v5584
        %v5587 = vrcp.pop %v5541
        %v5588 = vmul.f32 %v5484, %v5587
        %v5589 = vmul.f32 %v5486, %v5587
        %v5590 = vrcp.pop %v5544
        %v5591 = vmul.f32 %v5488, %v5590
        %v5592 = vmul.f32 %v5490, %v5590
        %v5593 = vrcp.pop %v5547
        %v5594 = vmul.f32 %v5492, %v5593
        %v5595 = vmul.f32 %v5494, %v5593
        %v5596 = vrcp.pop %v5550
        %v5597 = vmul.f32 %v5496, %v5596
        %v5598 = vmul.f32 %v5498, %v5596
        %v5599 = vrcp.pop %v5553
        %v5600 = vmul.f32 %v5500, %v5599
        %v5601 = vmul.f32 %v5502, %v5599
        %v5602 = vrcp.pop %v5556
        %v5603 = vmul.f32 %v5504, %v5602
        %v5604 = vmul.f32 %v5506, %v5602
        %v5605 = vrcp.pop %v5559
        %v5606 = vmul.f32 %v5508, %v5605
        %v5607 = vmul.f32 %v5510, %v5605
        %v5608 = vrcp.pop %v5562
        %v5609 = vmul.f32 %v5512, %v5608
        %v5610 = vmul.f32 %v5514, %v5608
        %v5611 = vpack.c.bf16 %v5567, %v5564
        %v5612 = vpack.c.bf16 %v5568, %v5565
        %v5613 = vpack.c.bf16 %v5573, %v5570
        %v5614 = vpack.c.bf16 %v5574, %v5571
        %v5615 = vpack.c.bf16 %v5579, %v5576
        %v5616 = vpack.c.bf16 %v5580, %v5577
        %v5617 = vpack.c.bf16 %v5585, %v5582
        %v5618 = vpack.c.bf16 %v5586, %v5583
        %v5619 = vpack.c.bf16 %v5591, %v5588
        %v5620 = vpack.c.bf16 %v5592, %v5589
        %v5621 = vpack.c.bf16 %v5597, %v5594
        %v5622 = vpack.c.bf16 %v5598, %v5595
        %v5623 = vpack.c.bf16 %v5603, %v5600
        %v5624 = vpack.c.bf16 %v5604, %v5601
        %v5625 = vpack.c.bf16 %v5609, %v5606
        %v5626 = vpack.c.bf16 %v5610, %v5607
        %5627 = vrot.lane.b32.xlu0 %v945, 32
        %v5628 = vpop.permute.xlu0 %5627
        %5629 = vrot.lane.b32.xlu0 %v946, 32
        %v5630 = vpop.permute.xlu0 %5629
        %5631 = vrot.lane.b32.xlu0 %v947, 32
        %v5632 = vpop.permute.xlu0 %5631
        %5633 = vrot.lane.b32.xlu0 %v948, 32
        %v5634 = vpop.permute.xlu0 %5633
        %5635 = vrot.lane.b32.xlu0 %v949, 32
        %v5636 = vpop.permute.xlu0 %5635
        %5637 = vrot.lane.b32.xlu0 %v950, 32
        %v5638 = vpop.permute.xlu0 %5637
        %5639 = vrot.lane.b32.xlu0 %v951, 32
        %v5640 = vpop.permute.xlu0 %5639
        %5641 = vrot.lane.b32.xlu0 %v952, 32
        %v5642 = vpop.permute.xlu0 %5641
        %5643 = vrot.lane.b32.xlu0 %v953, 32
        %v5644 = vpop.permute.xlu0 %5643
        %5645 = vrot.lane.b32.xlu0 %v954, 32
        %v5646 = vpop.permute.xlu0 %5645
        %5647 = vrot.lane.b32.xlu0 %v955, 32
        %v5648 = vpop.permute.xlu0 %5647
        %5649 = vrot.lane.b32.xlu0 %v956, 32
        %v5650 = vpop.permute.xlu0 %5649
        %5651 = vrot.lane.b32.xlu0 %v957, 32
        %v5652 = vpop.permute.xlu0 %5651
        %5653 = vrot.lane.b32.xlu0 %v958, 32
        %v5654 = vpop.permute.xlu0 %5653
        %5655 = vrot.lane.b32.xlu0 %v959, 32
        %v5656 = vpop.permute.xlu0 %5655
        %5657 = vrot.lane.b32.xlu0 %v960, 32
        %v5658 = vpop.permute.xlu0 %5657
        %5675 = vmatprep.subr.bf16.mxu0 0
        %5676 = vmatpush1.bf16.msra.mxu0 %v5628
        %5677 = vmatprep.subr.bf16.mxu0 0
        %5678 = vmatpush1.bf16.msra.mxu0 %v5630
        %5679 = vmatprep.subr.bf16.mxu0 0
        %5680 = vmatpush1.bf16.msra.mxu0 %v5632
        %5681 = vmatprep.subr.bf16.mxu0 0
        %5682 = vmatpush1.bf16.msra.mxu0 %v5634
        %5683 = vmatprep.subr.bf16.mxu0 0
        %5684 = vmatpush1.bf16.msra.mxu0 %v5636
        %5685 = vmatprep.subr.bf16.mxu0 0
        %5686 = vmatpush1.bf16.msra.mxu0 %v5638
        %5687 = vmatprep.subr.bf16.mxu0 0
        %5688 = vmatpush1.bf16.msra.mxu0 %v5640
        %5689 = vmatprep.subr.bf16.mxu0 0
        %5690 = vmatpush1.bf16.msra.mxu0 %v5642
        %5691 = vmatprep.subr.bf16.mxu0 0
        %5692 = vmatpush1.bf16.msra.mxu0 %v5644
        %5693 = vmatprep.subr.bf16.mxu0 0
        %5694 = vmatpush1.bf16.msra.mxu0 %v5646
        %5695 = vmatprep.subr.bf16.mxu0 0
        %5696 = vmatpush1.bf16.msra.mxu0 %v5648
        %5697 = vmatprep.subr.bf16.mxu0 0
        %5698 = vmatpush1.bf16.msra.mxu0 %v5650
        %5699 = vmatprep.subr.bf16.mxu0 0
        %5700 = vmatpush1.bf16.msra.mxu0 %v5652
        %5701 = vmatprep.subr.bf16.mxu0 0
        %5702 = vmatpush1.bf16.msra.mxu0 %v5654
        %5703 = vmatprep.subr.bf16.mxu0 0
        %5704 = vmatpush1.bf16.msra.mxu0 %v5656
        %5705 = vmatprep.subr.bf16.mxu0 0
        %5706 = vmatpush1.bf16.msra.mxu0 %v5658
        %5707 = vmatprep.mubr.bf16.mxu0 %v5612
        %5708 = vmatmul.mubr.bf16.gmra.mrb[0].mxu0 %v5611
        %v5709 = vpop.f32.mrb[0].mxu0
        %v5710 = vadd.f32 0.0, %v5709
        %v5711 = vpop.f32.mrb[0].mxu0
        %v5712 = vpop.f32.mrb[0].mxu0
        %v5713 = vadd.f32 0.0, %v5712
        %v5714 = vpop.f32.mrb[0].mxu0
        %5715 = vmatprep.mubr.bf16.mxu0 %v5614
        %5716 = vmatmul.mubr.bf16.gmra.mrb[0].mxu0 %v5613
        %v5717 = vpop.f32.mrb[0].mxu0
        %v5718 = vadd.f32 0.0, %v5717
        %v5719 = vpop.f32.mrb[0].mxu0
        %v5720 = vpop.f32.mrb[0].mxu0
        %v5721 = vadd.f32 0.0, %v5720
        %v5722 = vpop.f32.mrb[0].mxu0
        %5723 = vmatprep.mubr.bf16.mxu0 %v5616
        %5724 = vmatmul.mubr.bf16.gmra.mrb[0].mxu0 %v5615
        %v5725 = vpop.f32.mrb[0].mxu0
        %v5726 = vadd.f32 0.0, %v5725
        %v5727 = vpop.f32.mrb[0].mxu0
        %v5728 = vpop.f32.mrb[0].mxu0
        %v5729 = vadd.f32 0.0, %v5728
        %v5730 = vpop.f32.mrb[0].mxu0
        %5731 = vmatprep.mubr.bf16.mxu0 %v5618
        %5732 = vmatmul.mubr.bf16.gmra.mrb[0].mxu0 %v5617
        %v5733 = vpop.f32.mrb[0].mxu0
        %v5734 = vadd.f32 0.0, %v5733
        %v5735 = vpop.f32.mrb[0].mxu0
        %v5736 = vpop.f32.mrb[0].mxu0
        %v5737 = vadd.f32 0.0, %v5736
        %v5738 = vpop.f32.mrb[0].mxu0
        %5739 = vmatprep.mubr.bf16.mxu0 %v5620
        %5740 = vmatmul.mubr.bf16.gmra.mrb[0].mxu0 %v5619
        %v5741 = vpop.f32.mrb[0].mxu0
        %v5742 = vadd.f32 0.0, %v5741
        %v5743 = vpop.f32.mrb[0].mxu0
        %v5744 = vpop.f32.mrb[0].mxu0
        %v5745 = vadd.f32 0.0, %v5744
        %v5746 = vpop.f32.mrb[0].mxu0
        %5747 = vmatprep.mubr.bf16.mxu0 %v5622
        %5748 = vmatmul.mubr.bf16.gmra.mrb[0].mxu0 %v5621
        %v5749 = vpop.f32.mrb[0].mxu0
        %v5750 = vadd.f32 0.0, %v5749
        %v5751 = vpop.f32.mrb[0].mxu0
        %v5752 = vpop.f32.mrb[0].mxu0
        %v5753 = vadd.f32 0.0, %v5752
        %v5754 = vpop.f32.mrb[0].mxu0
        %5755 = vmatprep.mubr.bf16.mxu0 %v5624
        %5756 = vmatmul.mubr.bf16.gmra.mrb[0].mxu0 %v5623
        %v5757 = vpop.f32.mrb[0].mxu0
        %v5758 = vadd.f32 0.0, %v5757
        %v5759 = vpop.f32.mrb[0].mxu0
        %v5760 = vpop.f32.mrb[0].mxu0
        %v5761 = vadd.f32 0.0, %v5760
        %v5762 = vpop.f32.mrb[0].mxu0
        %5763 = vmatprep.mubr.bf16.mxu0 %v5626
        %5764 = vmatmul.mubr.bf16.gmra.mrb[0].mxu0 %v5625
        %v5765 = vpop.f32.mrb[0].mxu0
        %v5766 = vadd.f32 0.0, %v5765
        %v5767 = vpop.f32.mrb[0].mxu0
        %v5768 = vpop.f32.mrb[0].mxu0
        %v5769 = vadd.f32 0.0, %v5768
        %v5770 = vpop.f32.mrb[0].mxu0
        %5771 = vdwg.mxu0
        %5788 = vrot.lane.b32.xlu0 %v5710, 96
        %v5789 = vpop.permute.xlu0 %5788
        %5790 = vrot.lane.b32.xlu0 %v5713, 96
        %v5791 = vpop.permute.xlu0 %5790
        %5792 = vrot.lane.b32.xlu0 %v5718, 96
        %v5793 = vpop.permute.xlu0 %5792
        %5794 = vrot.lane.b32.xlu0 %v5721, 96
        %v5795 = vpop.permute.xlu0 %5794
        %5796 = vrot.lane.b32.xlu0 %v5726, 96
        %v5797 = vpop.permute.xlu0 %5796
        %5798 = vrot.lane.b32.xlu0 %v5729, 96
        %v5799 = vpop.permute.xlu0 %5798
        %5800 = vrot.lane.b32.xlu0 %v5734, 96
        %v5801 = vpop.permute.xlu0 %5800
        %5802 = vrot.lane.b32.xlu0 %v5737, 96
        %v5803 = vpop.permute.xlu0 %5802
        %5804 = vrot.lane.b32.xlu0 %v5742, 96
        %v5805 = vpop.permute.xlu0 %5804
        %5806 = vrot.lane.b32.xlu0 %v5745, 96
        %v5807 = vpop.permute.xlu0 %5806
        %5808 = vrot.lane.b32.xlu0 %v5750, 96
        %v5809 = vpop.permute.xlu0 %5808
        %5810 = vrot.lane.b32.xlu0 %v5753, 96
        %v5811 = vpop.permute.xlu0 %5810
        %5812 = vrot.lane.b32.xlu0 %v5758, 96
        %v5813 = vpop.permute.xlu0 %5812
        %5814 = vrot.lane.b32.xlu0 %v5761, 96
        %v5815 = vpop.permute.xlu0 %5814
        %5816 = vrot.lane.b32.xlu0 %v5766, 96
        %v5817 = vpop.permute.xlu0 %5816
        %5818 = vrot.lane.b32.xlu0 %v5769, 96
        %v5819 = vpop.permute.xlu0 %5818
        %vm5836 = vcmask 917248
        %5837 = vst.msk [vmem:[#allocation2] sm:$0xff] %vm5836, %v5789
        %5838 = vst.msk [vmem:[#allocation2 + $0x8] sm:$0xff] %vm5836, %v5791
        %5839 = vst.msk [vmem:[#allocation2 + $0x10] sm:$0xff] %vm5836, %v5793
        %5840 = vst.msk [vmem:[#allocation2 + $0x18] sm:$0xff] %vm5836, %v5795
        %5841 = vst.msk [vmem:[#allocation2 + $0x20] sm:$0xff] %vm5836, %v5797
        %5842 = vst.msk [vmem:[#allocation2 + $0x28] sm:$0xff] %vm5836, %v5799
        %5843 = vst.msk [vmem:[#allocation2 + $0x30] sm:$0xff] %vm5836, %v5801
        %5844 = vst.msk [vmem:[#allocation2 + $0x38] sm:$0xff] %vm5836, %v5803
        %5845 = vst.msk [vmem:[#allocation2 + $0x40] sm:$0xff] %vm5836, %v5805
        %5846 = vst.msk [vmem:[#allocation2 + $0x48] sm:$0xff] %vm5836, %v5807
        %5847 = vst.msk [vmem:[#allocation2 + $0x50] sm:$0xff] %vm5836, %v5809
        %5848 = vst.msk [vmem:[#allocation2 + $0x58] sm:$0xff] %vm5836, %v5811
        %5849 = vst.msk [vmem:[#allocation2 + $0x60] sm:$0xff] %vm5836, %v5813
        %5850 = vst.msk [vmem:[#allocation2 + $0x68] sm:$0xff] %vm5836, %v5815
        %5851 = vst.msk [vmem:[#allocation2 + $0x70] sm:$0xff] %vm5836, %v5817
        %5852 = vst.msk [vmem:[#allocation2 + $0x78] sm:$0xff] %vm5836, %v5819
        %5853 = vrot.lane.b32.xlu0 %v921, 16
        %v5854 = vpop.permute.xlu0 %5853
        %5855 = vrot.lane.b32.xlu0 %v922, 16
        %v5856 = vpop.permute.xlu0 %5855
        %5857 = vrot.lane.b32.xlu0 %v923, 16
        %v5858 = vpop.permute.xlu0 %5857
        %5859 = vrot.lane.b32.xlu0 %v924, 16
        %v5860 = vpop.permute.xlu0 %5859
        %5861 = vrot.lane.b32.xlu0 %v925, 16
        %v5862 = vpop.permute.xlu0 %5861
        %5863 = vrot.lane.b32.xlu0 %v926, 16
        %v5864 = vpop.permute.xlu0 %5863
        %5865 = vrot.lane.b32.xlu0 %v927, 16
        %v5866 = vpop.permute.xlu0 %5865
        %5867 = vrot.lane.b32.xlu0 %v928, 16
        %v5868 = vpop.permute.xlu0 %5867
        %5869 = vrot.lane.b32.xlu0 %v929, 16
        %v5870 = vpop.permute.xlu0 %5869
        %5871 = vrot.lane.b32.xlu0 %v930, 16
        %v5872 = vpop.permute.xlu0 %5871
        %5873 = vrot.lane.b32.xlu0 %v931, 16
        %v5874 = vpop.permute.xlu0 %5873
        %5875 = vrot.lane.b32.xlu0 %v932, 16
        %v5876 = vpop.permute.xlu0 %5875
        %5877 = vrot.lane.b32.xlu0 %v933, 16
        %v5878 = vpop.permute.xlu0 %5877
        %5879 = vrot.lane.b32.xlu0 %v934, 16
        %v5880 = vpop.permute.xlu0 %5879
        %5881 = vrot.lane.b32.xlu0 %v935, 16
        %v5882 = vpop.permute.xlu0 %5881
        %5883 = vrot.lane.b32.xlu0 %v936, 16
        %v5884 = vpop.permute.xlu0 %5883
        %5885 = vrot.lane.b32.xlu0 %v937, 16
        %v5886 = vpop.permute.xlu0 %5885
        %5887 = vrot.lane.b32.xlu0 %v938, 16
        %v5888 = vpop.permute.xlu0 %5887
        %5889 = vrot.lane.b32.xlu0 %v939, 16
        %v5890 = vpop.permute.xlu0 %5889
        %5891 = vrot.lane.b32.xlu0 %v940, 16
        %v5892 = vpop.permute.xlu0 %5891
        %5893 = vrot.lane.b32.xlu0 %v941, 16
        %v5894 = vpop.permute.xlu0 %5893
        %5895 = vrot.lane.b32.xlu0 %v942, 16
        %v5896 = vpop.permute.xlu0 %5895
        %5897 = vrot.lane.b32.xlu0 %v943, 16
        %v5898 = vpop.permute.xlu0 %5897
        %5899 = vrot.lane.b32.xlu0 %v944, 16
        %v5900 = vpop.permute.xlu0 %5899
        %v5902 = vsel %vm968, %v5854, 0
        %v5905 = vsel %vm968, %v5856, 0
        %v5908 = vsel %vm968, %v5858, 0
        %v5911 = vsel %vm968, %v5860, 0
        %v5914 = vsel %vm968, %v5862, 0
        %v5917 = vsel %vm968, %v5864, 0
        %v5920 = vsel %vm968, %v5866, 0
        %v5923 = vsel %vm968, %v5868, 0
        %v5926 = vsel %vm968, %v5870, 0
        %v5929 = vsel %vm968, %v5872, 0
        %v5932 = vsel %vm968, %v5874, 0
        %v5935 = vsel %vm968, %v5876, 0
        %v5938 = vsel %vm968, %v5878, 0
        %v5941 = vsel %vm968, %v5880, 0
        %v5944 = vsel %vm968, %v5882, 0
        %v5947 = vsel %vm968, %v5884, 0
        %v5950 = vsel %vm968, %v5886, 0
        %v5953 = vsel %vm968, %v5888, 0
        %v5956 = vsel %vm968, %v5890, 0
        %v5959 = vsel %vm968, %v5892, 0
        %v5962 = vsel %vm968, %v5894, 0
        %v5965 = vsel %vm968, %v5896, 0
        %v5968 = vsel %vm968, %v5898, 0
        %v5971 = vsel %vm968, %v5900, 0
        %5973 = vmatprep.subr.bf16.mxu0 0
        %5974 = vmatpush1.bf16.xpose.msra.mxu0 %v5926
        %5975 = vmatprep.subr.bf16.mxu0 0
        %5976 = vmatpush1.bf16.xpose.msra.mxu0 %v5929
        %5977 = vmatprep.subr.bf16.mxu0 0
        %5978 = vmatpush1.bf16.xpose.msra.mxu0 %v5932
        %5979 = vmatprep.subr.bf16.mxu0 0
        %5980 = vmatpush1.bf16.xpose.msra.mxu0 %v5935
        %5981 = vmatprep.subr.bf16.mxu0 0
        %5982 = vmatpush1.bf16.xpose.msra.mxu0 %v5938
        %5983 = vmatprep.subr.bf16.mxu0 0
        %5984 = vmatpush1.bf16.xpose.msra.mxu0 %v5941
        %5985 = vmatprep.subr.bf16.mxu0 0
        %5986 = vmatpush1.bf16.xpose.msra.mxu0 %v5944
        %5987 = vmatprep.subr.bf16.mxu0 0
        %5988 = vmatpush1.bf16.xpose.msra.mxu0 %v5947
        %5989 = vmatprep.subr.bf16.mxu0 0
        %5990 = vmatpush1.bf16.xpose.msra.mxu0 %v5950
        %5991 = vmatprep.subr.bf16.mxu0 0
        %5992 = vmatpush1.bf16.xpose.msra.mxu0 %v5953
        %5993 = vmatprep.subr.bf16.mxu0 0
        %5994 = vmatpush1.bf16.xpose.msra.mxu0 %v5956
        %5995 = vmatprep.subr.bf16.mxu0 0
        %5996 = vmatpush1.bf16.xpose.msra.mxu0 %v5959
        %5997 = vmatprep.subr.bf16.mxu0 0
        %5998 = vmatpush1.bf16.xpose.msra.mxu0 %v5962
        %5999 = vmatprep.subr.bf16.mxu0 0
        %6000 = vmatpush1.bf16.xpose.msra.mxu0 %v5965
        %6001 = vmatprep.subr.bf16.mxu0 0
        %6002 = vmatpush1.bf16.xpose.msra.mxu0 %v5968
        %6003 = vmatprep.subr.bf16.mxu0 0
        %6004 = vmatpush1.bf16.xpose.msra.mxu0 %v5971
        %6005 = vmatprep.mubr.bf16.mxu0 0
        %6006 = vmatmul.mubr.bf16.gmra.mrb[0].mxu0 %v5902
        %v6007 = vpop.f32.mrb[0].mxu0
        %v6008 = vadd.f32 %v966, %v6007
        %v6009 = vpop.f32.mrb[0].mxu0
        %v6010 = vadd.f32 %v967, %v6009
        %v6011 = vpop.f32.mrb[0].mxu0
        %v6012 = vadd.f32 %v966, %v6011
        %v6013 = vpop.f32.mrb[0].mxu0
        %v6014 = vadd.f32 %v967, %v6013
        %6015 = vmatprep.mubr.bf16.mxu0 0
        %6016 = vmatmul.mubr.bf16.gmra.mrb[0].mxu0 %v5905
        %v6017 = vpop.f32.mrb[0].mxu0
        %v6018 = vadd.f32 %v966, %v6017
        %v6019 = vpop.f32.mrb[0].mxu0
        %v6020 = vadd.f32 %v967, %v6019
        %v6021 = vpop.f32.mrb[0].mxu0
        %v6022 = vadd.f32 %v966, %v6021
        %v6023 = vpop.f32.mrb[0].mxu0
        %v6024 = vadd.f32 %v967, %v6023
        %6025 = vmatprep.mubr.bf16.mxu0 0
        %6026 = vmatmul.mubr.bf16.gmra.mrb[0].mxu0 %v5908
        %v6027 = vpop.f32.mrb[0].mxu0
        %v6028 = vadd.f32 %v966, %v6027
        %v6029 = vpop.f32.mrb[0].mxu0
        %v6030 = vadd.f32 %v967, %v6029
        %v6031 = vpop.f32.mrb[0].mxu0
        %v6032 = vadd.f32 %v966, %v6031
        %v6033 = vpop.f32.mrb[0].mxu0
        %v6034 = vadd.f32 %v967, %v6033
        %6035 = vmatprep.mubr.bf16.mxu0 0
        %6036 = vmatmul.mubr.bf16.gmra.mrb[0].mxu0 %v5911
        %v6037 = vpop.f32.mrb[0].mxu0
        %v6038 = vadd.f32 %v966, %v6037
        %v6039 = vpop.f32.mrb[0].mxu0
        %v6040 = vadd.f32 %v967, %v6039
        %v6041 = vpop.f32.mrb[0].mxu0
        %v6042 = vadd.f32 %v966, %v6041
        %v6043 = vpop.f32.mrb[0].mxu0
        %v6044 = vadd.f32 %v967, %v6043
        %6045 = vmatprep.mubr.bf16.mxu0 0
        %6046 = vmatmul.mubr.bf16.gmra.mrb[0].mxu0 %v5914
        %v6047 = vpop.f32.mrb[0].mxu0
        %v6048 = vadd.f32 %v966, %v6047
        %v6049 = vpop.f32.mrb[0].mxu0
        %v6050 = vadd.f32 %v967, %v6049
        %v6051 = vpop.f32.mrb[0].mxu0
        %v6052 = vadd.f32 %v966, %v6051
        %v6053 = vpop.f32.mrb[0].mxu0
        %v6054 = vadd.f32 %v967, %v6053
        %6055 = vmatprep.mubr.bf16.mxu0 0
        %6056 = vmatmul.mubr.bf16.gmra.mrb[0].mxu0 %v5917
        %v6057 = vpop.f32.mrb[0].mxu0
        %v6058 = vadd.f32 %v966, %v6057
        %v6059 = vpop.f32.mrb[0].mxu0
        %v6060 = vadd.f32 %v967, %v6059
        %v6061 = vpop.f32.mrb[0].mxu0
        %v6062 = vadd.f32 %v966, %v6061
        %v6063 = vpop.f32.mrb[0].mxu0
        %v6064 = vadd.f32 %v967, %v6063
        %6065 = vmatprep.mubr.bf16.mxu0 0
        %6066 = vmatmul.mubr.bf16.gmra.mrb[0].mxu0 %v5920
        %v6067 = vpop.f32.mrb[0].mxu0
        %v6068 = vadd.f32 %v966, %v6067
        %v6069 = vpop.f32.mrb[0].mxu0
        %v6070 = vadd.f32 %v967, %v6069
        %v6071 = vpop.f32.mrb[0].mxu0
        %v6072 = vadd.f32 %v966, %v6071
        %v6073 = vpop.f32.mrb[0].mxu0
        %v6074 = vadd.f32 %v967, %v6073
        %6075 = vmatprep.mubr.bf16.mxu0 0
        %6076 = vmatmul.mubr.bf16.gmra.mrb[0].mxu0 %v5923
        %v6077 = vpop.f32.mrb[0].mxu0
        %v6078 = vadd.f32 %v966, %v6077
        %v6079 = vpop.f32.mrb[0].mxu0
        %v6080 = vadd.f32 %v967, %v6079
        %v6081 = vpop.f32.mrb[0].mxu0
        %v6082 = vadd.f32 %v966, %v6081
        %v6083 = vpop.f32.mrb[0].mxu0
        %v6084 = vadd.f32 %v967, %v6083
        %6085 = vdwg.mxu0
        %v6086 = vmax.f32 %v6008, %v6010
        %6087 = vmax.xlane.f32.xlu0 %v6086
        %v6088 = vpop.xlane.xlu0 %6087
        %v6089 = vmax.f32 %v6012, %v6014
        %6090 = vmax.xlane.f32.xlu0 %v6089
        %v6091 = vpop.xlane.xlu0 %6090
        %v6092 = vmax.f32 %v6018, %v6020
        %6093 = vmax.xlane.f32.xlu0 %v6092
        %v6094 = vpop.xlane.xlu0 %6093
        %v6095 = vmax.f32 %v6022, %v6024
        %6096 = vmax.xlane.f32.xlu0 %v6095
        %v6097 = vpop.xlane.xlu0 %6096
        %v6098 = vmax.f32 %v6028, %v6030
        %6099 = vmax.xlane.f32.xlu0 %v6098
        %v6100 = vpop.xlane.xlu0 %6099
        %v6101 = vmax.f32 %v6032, %v6034
        %6102 = vmax.xlane.f32.xlu0 %v6101
        %v6103 = vpop.xlane.xlu0 %6102
        %v6104 = vmax.f32 %v6038, %v6040
        %6105 = vmax.xlane.f32.xlu0 %v6104
        %v6106 = vpop.xlane.xlu0 %6105
        %v6107 = vmax.f32 %v6042, %v6044
        %6108 = vmax.xlane.f32.xlu0 %v6107
        %v6109 = vpop.xlane.xlu0 %6108
        %v6110 = vmax.f32 %v6048, %v6050
        %6111 = vmax.xlane.f32.xlu0 %v6110
        %v6112 = vpop.xlane.xlu0 %6111
        %v6113 = vmax.f32 %v6052, %v6054
        %6114 = vmax.xlane.f32.xlu0 %v6113
        %v6115 = vpop.xlane.xlu0 %6114
        %v6116 = vmax.f32 %v6058, %v6060
        %6117 = vmax.xlane.f32.xlu0 %v6116
        %v6118 = vpop.xlane.xlu0 %6117
        %v6119 = vmax.f32 %v6062, %v6064
        %6120 = vmax.xlane.f32.xlu0 %v6119
        %v6121 = vpop.xlane.xlu0 %6120
        %v6122 = vmax.f32 %v6068, %v6070
        %6123 = vmax.xlane.f32.xlu0 %v6122
        %v6124 = vpop.xlane.xlu0 %6123
        %v6125 = vmax.f32 %v6072, %v6074
        %6126 = vmax.xlane.f32.xlu0 %v6125
        %v6127 = vpop.xlane.xlu0 %6126
        %v6128 = vmax.f32 %v6078, %v6080
        %6129 = vmax.xlane.f32.xlu0 %v6128
        %v6130 = vpop.xlane.xlu0 %6129
        %v6131 = vmax.f32 %v6082, %v6084
        %6132 = vmax.xlane.f32.xlu0 %v6131
        %v6133 = vpop.xlane.xlu0 %6132
        %v6134 = vsub.f32 %v6008, %v6088
        %v6135 = vsub.f32 %v6010, %v6088
        %v6136 = vsub.f32 %v6012, %v6091
        %v6137 = vsub.f32 %v6014, %v6091
        %v6138 = vsub.f32 %v6018, %v6094
        %v6139 = vsub.f32 %v6020, %v6094
        %v6140 = vsub.f32 %v6022, %v6097
        %v6141 = vsub.f32 %v6024, %v6097
        %v6142 = vsub.f32 %v6028, %v6100
        %v6143 = vsub.f32 %v6030, %v6100
        %v6144 = vsub.f32 %v6032, %v6103
        %v6145 = vsub.f32 %v6034, %v6103
        %v6146 = vsub.f32 %v6038, %v6106
        %v6147 = vsub.f32 %v6040, %v6106
        %v6148 = vsub.f32 %v6042, %v6109
        %v6149 = vsub.f32 %v6044, %v6109
        %v6150 = vsub.f32 %v6048, %v6112
        %v6151 = vsub.f32 %v6050, %v6112
        %v6152 = vsub.f32 %v6052, %v6115
        %v6153 = vsub.f32 %v6054, %v6115
        %v6154 = vsub.f32 %v6058, %v6118
        %v6155 = vsub.f32 %v6060, %v6118
        %v6156 = vsub.f32 %v6062, %v6121
        %v6157 = vsub.f32 %v6064, %v6121
        %v6158 = vsub.f32 %v6068, %v6124
        %v6159 = vsub.f32 %v6070, %v6124
        %v6160 = vsub.f32 %v6072, %v6127
        %v6161 = vsub.f32 %v6074, %v6127
        %v6162 = vsub.f32 %v6078, %v6130
        %v6163 = vsub.f32 %v6080, %v6130
        %v6164 = vsub.f32 %v6082, %v6133
        %v6165 = vsub.f32 %v6084, %v6133
        %v6166 = vmul.f32 %v6134, 1.442695
        %v6167 = vpow.pop %v6166
        %v6168 = vmul.f32 %v6135, 1.442695
        %v6169 = vpow.pop %v6168
        %v6170 = vmul.f32 %v6136, 1.442695
        %v6171 = vpow.pop %v6170
        %v6172 = vmul.f32 %v6137, 1.442695
        %v6173 = vpow.pop %v6172
        %v6174 = vmul.f32 %v6138, 1.442695
        %v6175 = vpow.pop %v6174
        %v6176 = vmul.f32 %v6139, 1.442695
        %v6177 = vpow.pop %v6176
        %v6178 = vmul.f32 %v6140, 1.442695
        %v6179 = vpow.pop %v6178
        %v6180 = vmul.f32 %v6141, 1.442695
        %v6181 = vpow.pop %v6180
        %v6182 = vmul.f32 %v6142, 1.442695
        %v6183 = vpow.pop %v6182
        %v6184 = vmul.f32 %v6143, 1.442695
        %v6185 = vpow.pop %v6184
        %v6186 = vmul.f32 %v6144, 1.442695
        %v6187 = vpow.pop %v6186
        %v6188 = vmul.f32 %v6145, 1.442695
        %v6189 = vpow.pop %v6188
        %v6190 = vmul.f32 %v6146, 1.442695
        %v6191 = vpow.pop %v6190
        %v6192 = vmul.f32 %v6147, 1.442695
        %v6193 = vpow.pop %v6192
        %v6194 = vmul.f32 %v6148, 1.442695
        %v6195 = vpow.pop %v6194
        %v6196 = vmul.f32 %v6149, 1.442695
        %v6197 = vpow.pop %v6196
        %v6198 = vmul.f32 %v6150, 1.442695
        %v6199 = vpow.pop %v6198
        %v6200 = vmul.f32 %v6151, 1.442695
        %v6201 = vpow.pop %v6200
        %v6202 = vmul.f32 %v6152, 1.442695
        %v6203 = vpow.pop %v6202
        %v6204 = vmul.f32 %v6153, 1.442695
        %v6205 = vpow.pop %v6204
        %v6206 = vmul.f32 %v6154, 1.442695
        %v6207 = vpow.pop %v6206
        %v6208 = vmul.f32 %v6155, 1.442695
        %v6209 = vpow.pop %v6208
        %v6210 = vmul.f32 %v6156, 1.442695
        %v6211 = vpow.pop %v6210
        %v6212 = vmul.f32 %v6157, 1.442695
        %v6213 = vpow.pop %v6212
        %v6214 = vmul.f32 %v6158, 1.442695
        %v6215 = vpow.pop %v6214
        %v6216 = vmul.f32 %v6159, 1.442695
        %v6217 = vpow.pop %v6216
        %v6218 = vmul.f32 %v6160, 1.442695
        %v6219 = vpow.pop %v6218
        %v6220 = vmul.f32 %v6161, 1.442695
        %v6221 = vpow.pop %v6220
        %v6222 = vmul.f32 %v6162, 1.442695
        %v6223 = vpow.pop %v6222
        %v6224 = vmul.f32 %v6163, 1.442695
        %v6225 = vpow.pop %v6224
        %v6226 = vmul.f32 %v6164, 1.442695
        %v6227 = vpow.pop %v6226
        %v6228 = vmul.f32 %v6165, 1.442695
        %v6229 = vpow.pop %v6228
        %v6230 = vadd.f32 %v6167, %v6169
        %6231 = vadd.xlane.f32.xlu0 %v6230
        %v6232 = vpop.xlane.xlu0 %6231
        %v6233 = vadd.f32 %v6171, %v6173
        %6234 = vadd.xlane.f32.xlu0 %v6233
        %v6235 = vpop.xlane.xlu0 %6234
        %v6236 = vadd.f32 %v6175, %v6177
        %6237 = vadd.xlane.f32.xlu0 %v6236
        %v6238 = vpop.xlane.xlu0 %6237
        %v6239 = vadd.f32 %v6179, %v6181
        %6240 = vadd.xlane.f32.xlu0 %v6239
        %v6241 = vpop.xlane.xlu0 %6240
        %v6242 = vadd.f32 %v6183, %v6185
        %6243 = vadd.xlane.f32.xlu0 %v6242
        %v6244 = vpop.xlane.xlu0 %6243
        %v6245 = vadd.f32 %v6187, %v6189
        %6246 = vadd.xlane.f32.xlu0 %v6245
        %v6247 = vpop.xlane.xlu0 %6246
        %v6248 = vadd.f32 %v6191, %v6193
        %6249 = vadd.xlane.f32.xlu0 %v6248
        %v6250 = vpop.xlane.xlu0 %6249
        %v6251 = vadd.f32 %v6195, %v6197
        %6252 = vadd.xlane.f32.xlu0 %v6251
        %v6253 = vpop.xlane.xlu0 %6252
        %v6254 = vadd.f32 %v6199, %v6201
        %6255 = vadd.xlane.f32.xlu0 %v6254
        %v6256 = vpop.xlane.xlu0 %6255
        %v6257 = vadd.f32 %v6203, %v6205
        %6258 = vadd.xlane.f32.xlu0 %v6257
        %v6259 = vpop.xlane.xlu0 %6258
        %v6260 = vadd.f32 %v6207, %v6209
        %6261 = vadd.xlane.f32.xlu0 %v6260
        %v6262 = vpop.xlane.xlu0 %6261
        %v6263 = vadd.f32 %v6211, %v6213
        %6264 = vadd.xlane.f32.xlu0 %v6263
        %v6265 = vpop.xlane.xlu0 %6264
        %v6266 = vadd.f32 %v6215, %v6217
        %6267 = vadd.xlane.f32.xlu0 %v6266
        %v6268 = vpop.xlane.xlu0 %6267
        %v6269 = vadd.f32 %v6219, %v6221
        %6270 = vadd.xlane.f32.xlu0 %v6269
        %v6271 = vpop.xlane.xlu0 %6270
        %v6272 = vadd.f32 %v6223, %v6225
        %6273 = vadd.xlane.f32.xlu0 %v6272
        %v6274 = vpop.xlane.xlu0 %6273
        %v6275 = vadd.f32 %v6227, %v6229
        %6276 = vadd.xlane.f32.xlu0 %v6275
        %v6277 = vpop.xlane.xlu0 %6276
        %v6278 = vrcp.pop %v6232
        %v6279 = vmul.f32 %v6167, %v6278
        %v6280 = vmul.f32 %v6169, %v6278
        %v6281 = vrcp.pop %v6235
        %v6282 = vmul.f32 %v6171, %v6281
        %v6283 = vmul.f32 %v6173, %v6281
        %v6284 = vrcp.pop %v6238
        %v6285 = vmul.f32 %v6175, %v6284
        %v6286 = vmul.f32 %v6177, %v6284
        %v6287 = vrcp.pop %v6241
        %v6288 = vmul.f32 %v6179, %v6287
        %v6289 = vmul.f32 %v6181, %v6287
        %v6290 = vrcp.pop %v6244
        %v6291 = vmul.f32 %v6183, %v6290
        %v6292 = vmul.f32 %v6185, %v6290
        %v6293 = vrcp.pop %v6247
        %v6294 = vmul.f32 %v6187, %v6293
        %v6295 = vmul.f32 %v6189, %v6293
        %v6296 = vrcp.pop %v6250
        %v6297 = vmul.f32 %v6191, %v6296
        %v6298 = vmul.f32 %v6193, %v6296
        %v6299 = vrcp.pop %v6253
        %v6300 = vmul.f32 %v6195, %v6299
        %v6301 = vmul.f32 %v6197, %v6299
        %v6302 = vrcp.pop %v6256
        %v6303 = vmul.f32 %v6199, %v6302
        %v6304 = vmul.f32 %v6201, %v6302
        %v6305 = vrcp.pop %v6259
        %v6306 = vmul.f32 %v6203, %v6305
        %v6307 = vmul.f32 %v6205, %v6305
        %v6308 = vrcp.pop %v6262
        %v6309 = vmul.f32 %v6207, %v6308
        %v6310 = vmul.f32 %v6209, %v6308
        %v6311 = vrcp.pop %v6265
        %v6312 = vmul.f32 %v6211, %v6311
        %v6313 = vmul.f32 %v6213, %v6311
        %v6314 = vrcp.pop %v6268
        %v6315 = vmul.f32 %v6215, %v6314
        %v6316 = vmul.f32 %v6217, %v6314
        %v6317 = vrcp.pop %v6271
        %v6318 = vmul.f32 %v6219, %v6317
        %v6319 = vmul.f32 %v6221, %v6317
        %v6320 = vrcp.pop %v6274
        %v6321 = vmul.f32 %v6223, %v6320
        %v6322 = vmul.f32 %v6225, %v6320
        %v6323 = vrcp.pop %v6277
        %v6324 = vmul.f32 %v6227, %v6323
        %v6325 = vmul.f32 %v6229, %v6323
        %v6326 = vpack.c.bf16 %v6282, %v6279
        %v6327 = vpack.c.bf16 %v6283, %v6280
        %v6328 = vpack.c.bf16 %v6288, %v6285
        %v6329 = vpack.c.bf16 %v6289, %v6286
        %v6330 = vpack.c.bf16 %v6294, %v6291
        %v6331 = vpack.c.bf16 %v6295, %v6292
        %v6332 = vpack.c.bf16 %v6300, %v6297
        %v6333 = vpack.c.bf16 %v6301, %v6298
        %v6334 = vpack.c.bf16 %v6306, %v6303
        %v6335 = vpack.c.bf16 %v6307, %v6304
        %v6336 = vpack.c.bf16 %v6312, %v6309
        %v6337 = vpack.c.bf16 %v6313, %v6310
        %v6338 = vpack.c.bf16 %v6318, %v6315
        %v6339 = vpack.c.bf16 %v6319, %v6316
        %v6340 = vpack.c.bf16 %v6324, %v6321
        %v6341 = vpack.c.bf16 %v6325, %v6322
        %6342 = vrot.lane.b32.xlu0 %v945, 16
        %v6343 = vpop.permute.xlu0 %6342
        %6344 = vrot.lane.b32.xlu0 %v946, 16
        %v6345 = vpop.permute.xlu0 %6344
        %6346 = vrot.lane.b32.xlu0 %v947, 16
        %v6347 = vpop.permute.xlu0 %6346
        %6348 = vrot.lane.b32.xlu0 %v948, 16
        %v6349 = vpop.permute.xlu0 %6348
        %6350 = vrot.lane.b32.xlu0 %v949, 16
        %v6351 = vpop.permute.xlu0 %6350
        %6352 = vrot.lane.b32.xlu0 %v950, 16
        %v6353 = vpop.permute.xlu0 %6352
        %6354 = vrot.lane.b32.xlu0 %v951, 16
        %v6355 = vpop.permute.xlu0 %6354
        %6356 = vrot.lane.b32.xlu0 %v952, 16
        %v6357 = vpop.permute.xlu0 %6356
        %6358 = vrot.lane.b32.xlu0 %v953, 16
        %v6359 = vpop.permute.xlu0 %6358
        %6360 = vrot.lane.b32.xlu0 %v954, 16
        %v6361 = vpop.permute.xlu0 %6360
        %6362 = vrot.lane.b32.xlu0 %v955, 16
        %v6363 = vpop.permute.xlu0 %6362
        %6364 = vrot.lane.b32.xlu0 %v956, 16
        %v6365 = vpop.permute.xlu0 %6364
        %6366 = vrot.lane.b32.xlu0 %v957, 16
        %v6367 = vpop.permute.xlu0 %6366
        %6368 = vrot.lane.b32.xlu0 %v958, 16
        %v6369 = vpop.permute.xlu0 %6368
        %6370 = vrot.lane.b32.xlu0 %v959, 16
        %v6371 = vpop.permute.xlu0 %6370
        %6372 = vrot.lane.b32.xlu0 %v960, 16
        %v6373 = vpop.permute.xlu0 %6372
        %6390 = vmatprep.subr.bf16.mxu0 0
        %6391 = vmatpush1.bf16.msra.mxu0 %v6343
        %6392 = vmatprep.subr.bf16.mxu0 0
        %6393 = vmatpush1.bf16.msra.mxu0 %v6345
        %6394 = vmatprep.subr.bf16.mxu0 0
        %6395 = vmatpush1.bf16.msra.mxu0 %v6347
        %6396 = vmatprep.subr.bf16.mxu0 0
        %6397 = vmatpush1.bf16.msra.mxu0 %v6349
        %6398 = vmatprep.subr.bf16.mxu0 0
        %6399 = vmatpush1.bf16.msra.mxu0 %v6351
        %6400 = vmatprep.subr.bf16.mxu0 0
        %6401 = vmatpush1.bf16.msra.mxu0 %v6353
        %6402 = vmatprep.subr.bf16.mxu0 0
        %6403 = vmatpush1.bf16.msra.mxu0 %v6355
        %6404 = vmatprep.subr.bf16.mxu0 0
        %6405 = vmatpush1.bf16.msra.mxu0 %v6357
        %6406 = vmatprep.subr.bf16.mxu0 0
        %6407 = vmatpush1.bf16.msra.mxu0 %v6359
        %6408 = vmatprep.subr.bf16.mxu0 0
        %6409 = vmatpush1.bf16.msra.mxu0 %v6361
        %6410 = vmatprep.subr.bf16.mxu0 0
        %6411 = vmatpush1.bf16.msra.mxu0 %v6363
        %6412 = vmatprep.subr.bf16.mxu0 0
        %6413 = vmatpush1.bf16.msra.mxu0 %v6365
        %6414 = vmatprep.subr.bf16.mxu0 0
        %6415 = vmatpush1.bf16.msra.mxu0 %v6367
        %6416 = vmatprep.subr.bf16.mxu0 0
        %6417 = vmatpush1.bf16.msra.mxu0 %v6369
        %6418 = vmatprep.subr.bf16.mxu0 0
        %6419 = vmatpush1.bf16.msra.mxu0 %v6371
        %6420 = vmatprep.subr.bf16.mxu0 0
        %6421 = vmatpush1.bf16.msra.mxu0 %v6373
        %6422 = vmatprep.mubr.bf16.mxu0 %v6327
        %6423 = vmatmul.mubr.bf16.gmra.mrb[0].mxu0 %v6326
        %v6424 = vpop.f32.mrb[0].mxu0
        %v6425 = vadd.f32 0.0, %v6424
        %v6426 = vpop.f32.mrb[0].mxu0
        %v6427 = vpop.f32.mrb[0].mxu0
        %v6428 = vadd.f32 0.0, %v6427
        %v6429 = vpop.f32.mrb[0].mxu0
        %6430 = vmatprep.mubr.bf16.mxu0 %v6329
        %6431 = vmatmul.mubr.bf16.gmra.mrb[0].mxu0 %v6328
        %v6432 = vpop.f32.mrb[0].mxu0
        %v6433 = vadd.f32 0.0, %v6432
        %v6434 = vpop.f32.mrb[0].mxu0
        %v6435 = vpop.f32.mrb[0].mxu0
        %v6436 = vadd.f32 0.0, %v6435
        %v6437 = vpop.f32.mrb[0].mxu0
        %6438 = vmatprep.mubr.bf16.mxu0 %v6331
        %6439 = vmatmul.mubr.bf16.gmra.mrb[0].mxu0 %v6330
        %v6440 = vpop.f32.mrb[0].mxu0
        %v6441 = vadd.f32 0.0, %v6440
        %v6442 = vpop.f32.mrb[0].mxu0
        %v6443 = vpop.f32.mrb[0].mxu0
        %v6444 = vadd.f32 0.0, %v6443
        %v6445 = vpop.f32.mrb[0].mxu0
        %6446 = vmatprep.mubr.bf16.mxu0 %v6333
        %6447 = vmatmul.mubr.bf16.gmra.mrb[0].mxu0 %v6332
        %v6448 = vpop.f32.mrb[0].mxu0
        %v6449 = vadd.f32 0.0, %v6448
        %v6450 = vpop.f32.mrb[0].mxu0
        %v6451 = vpop.f32.mrb[0].mxu0
        %v6452 = vadd.f32 0.0, %v6451
        %v6453 = vpop.f32.mrb[0].mxu0
        %6454 = vmatprep.mubr.bf16.mxu0 %v6335
        %6455 = vmatmul.mubr.bf16.gmra.mrb[0].mxu0 %v6334
        %v6456 = vpop.f32.mrb[0].mxu0
        %v6457 = vadd.f32 0.0, %v6456
        %v6458 = vpop.f32.mrb[0].mxu0
        %v6459 = vpop.f32.mrb[0].mxu0
        %v6460 = vadd.f32 0.0, %v6459
        %v6461 = vpop.f32.mrb[0].mxu0
        %6462 = vmatprep.mubr.bf16.mxu0 %v6337
        %6463 = vmatmul.mubr.bf16.gmra.mrb[0].mxu0 %v6336
        %v6464 = vpop.f32.mrb[0].mxu0
        %v6465 = vadd.f32 0.0, %v6464
        %v6466 = vpop.f32.mrb[0].mxu0
        %v6467 = vpop.f32.mrb[0].mxu0
        %v6468 = vadd.f32 0.0, %v6467
        %v6469 = vpop.f32.mrb[0].mxu0
        %6470 = vmatprep.mubr.bf16.mxu0 %v6339
        %6471 = vmatmul.mubr.bf16.gmra.mrb[0].mxu0 %v6338
        %v6472 = vpop.f32.mrb[0].mxu0
        %v6473 = vadd.f32 0.0, %v6472
        %v6474 = vpop.f32.mrb[0].mxu0
        %v6475 = vpop.f32.mrb[0].mxu0
        %v6476 = vadd.f32 0.0, %v6475
        %v6477 = vpop.f32.mrb[0].mxu0
        %6478 = vmatprep.mubr.bf16.mxu0 %v6341
        %6479 = vmatmul.mubr.bf16.gmra.mrb[0].mxu0 %v6340
        %v6480 = vpop.f32.mrb[0].mxu0
        %v6481 = vadd.f32 0.0, %v6480
        %v6482 = vpop.f32.mrb[0].mxu0
        %v6483 = vpop.f32.mrb[0].mxu0
        %v6484 = vadd.f32 0.0, %v6483
        %v6485 = vpop.f32.mrb[0].mxu0
        %6486 = vdwg.mxu0
        %6503 = vrot.lane.b32.xlu0 %v6425, 112
        %v6504 = vpop.permute.xlu0 %6503
        %6505 = vrot.lane.b32.xlu0 %v6428, 112
        %v6506 = vpop.permute.xlu0 %6505
        %6507 = vrot.lane.b32.xlu0 %v6433, 112
        %v6508 = vpop.permute.xlu0 %6507
        %6509 = vrot.lane.b32.xlu0 %v6436, 112
        %v6510 = vpop.permute.xlu0 %6509
        %6511 = vrot.lane.b32.xlu0 %v6441, 112
        %v6512 = vpop.permute.xlu0 %6511
        %6513 = vrot.lane.b32.xlu0 %v6444, 112
        %v6514 = vpop.permute.xlu0 %6513
        %6515 = vrot.lane.b32.xlu0 %v6449, 112
        %v6516 = vpop.permute.xlu0 %6515
        %6517 = vrot.lane.b32.xlu0 %v6452, 112
        %v6518 = vpop.permute.xlu0 %6517
        %6519 = vrot.lane.b32.xlu0 %v6457, 112
        %v6520 = vpop.permute.xlu0 %6519
        %6521 = vrot.lane.b32.xlu0 %v6460, 112
        %v6522 = vpop.permute.xlu0 %6521
        %6523 = vrot.lane.b32.xlu0 %v6465, 112
        %v6524 = vpop.permute.xlu0 %6523
        %6525 = vrot.lane.b32.xlu0 %v6468, 112
        %v6526 = vpop.permute.xlu0 %6525
        %6527 = vrot.lane.b32.xlu0 %v6473, 112
        %v6528 = vpop.permute.xlu0 %6527
        %6529 = vrot.lane.b32.xlu0 %v6476, 112
        %v6530 = vpop.permute.xlu0 %6529
        %6531 = vrot.lane.b32.xlu0 %v6481, 112
        %v6532 = vpop.permute.xlu0 %6531
        %6533 = vrot.lane.b32.xlu0 %v6484, 112
        %v6534 = vpop.permute.xlu0 %6533
        %vm6551 = vcmask 1048448
        %6552 = vst.msk [vmem:[#allocation2] sm:$0xff] %vm6551, %v6504
        %6553 = vst.msk [vmem:[#allocation2 + $0x8] sm:$0xff] %vm6551, %v6506
        %6554 = vst.msk [vmem:[#allocation2 + $0x10] sm:$0xff] %vm6551, %v6508
        %6555 = vst.msk [vmem:[#allocation2 + $0x18] sm:$0xff] %vm6551, %v6510
        %6556 = vst.msk [vmem:[#allocation2 + $0x20] sm:$0xff] %vm6551, %v6512
        %6557 = vst.msk [vmem:[#allocation2 + $0x28] sm:$0xff] %vm6551, %v6514
        %6558 = vst.msk [vmem:[#allocation2 + $0x30] sm:$0xff] %vm6551, %v6516
        %6559 = vst.msk [vmem:[#allocation2 + $0x38] sm:$0xff] %vm6551, %v6518
        %6560 = vst.msk [vmem:[#allocation2 + $0x40] sm:$0xff] %vm6551, %v6520
        %6561 = vst.msk [vmem:[#allocation2 + $0x48] sm:$0xff] %vm6551, %v6522
        %6562 = vst.msk [vmem:[#allocation2 + $0x50] sm:$0xff] %vm6551, %v6524
        %6563 = vst.msk [vmem:[#allocation2 + $0x58] sm:$0xff] %vm6551, %v6526
        %6564 = vst.msk [vmem:[#allocation2 + $0x60] sm:$0xff] %vm6551, %v6528
        %6565 = vst.msk [vmem:[#allocation2 + $0x68] sm:$0xff] %vm6551, %v6530
        %6566 = vst.msk [vmem:[#allocation2 + $0x70] sm:$0xff] %vm6551, %v6532
        %6567 = vst.msk [vmem:[#allocation2 + $0x78] sm:$0xff] %vm6551, %v6534
        %v6568 = vld [vmem:[#allocation2] sm:$0xff]
        %v6569 = vld [vmem:[#allocation2 + $0x8] sm:$0xff]
        %v6570 = vld [vmem:[#allocation2 + $0x10] sm:$0xff]
        %v6571 = vld [vmem:[#allocation2 + $0x18] sm:$0xff]
        %v6572 = vld [vmem:[#allocation2 + $0x20] sm:$0xff]
        %v6573 = vld [vmem:[#allocation2 + $0x28] sm:$0xff]
        %v6574 = vld [vmem:[#allocation2 + $0x30] sm:$0xff]
        %v6575 = vld [vmem:[#allocation2 + $0x38] sm:$0xff]
        %v6576 = vld [vmem:[#allocation2 + $0x40] sm:$0xff]
        %v6577 = vld [vmem:[#allocation2 + $0x48] sm:$0xff]
        %v6578 = vld [vmem:[#allocation2 + $0x50] sm:$0xff]
        %v6579 = vld [vmem:[#allocation2 + $0x58] sm:$0xff]
        %v6580 = vld [vmem:[#allocation2 + $0x60] sm:$0xff]
        %v6581 = vld [vmem:[#allocation2 + $0x68] sm:$0xff]
        %v6582 = vld [vmem:[#allocation2 + $0x70] sm:$0xff]
        %v6583 = vld [vmem:[#allocation2 + $0x78] sm:$0xff]
        %v6584 = vpack.c.bf16 %v6569, %v6568
        %v6585 = vpack.c.bf16 %v6571, %v6570
        %v6586 = vpack.c.bf16 %v6573, %v6572
        %v6587 = vpack.c.bf16 %v6575, %v6574
        %v6588 = vpack.c.bf16 %v6577, %v6576
        %v6589 = vpack.c.bf16 %v6579, %v6578
        %v6590 = vpack.c.bf16 %v6581, %v6580
        %v6591 = vpack.c.bf16 %v6583, %v6582
        %v6592 = vld [vmem:[#allocation9] sm:$0xf]
        %v6593 = vld [vmem:[#allocation9 + $0x4] sm:$0xf]
        %v6594 = vld [vmem:[#allocation9 + $0x8] sm:$0xf]
        %v6595 = vld [vmem:[#allocation9 + $0xc] sm:$0xf]
        %v6596 = vld [vmem:[#allocation9 + $0x10] sm:$0xf]
        %v6597 = vld [vmem:[#allocation9 + $0x14] sm:$0xf]
        %v6598 = vld [vmem:[#allocation9 + $0x18] sm:$0xf]
        %v6599 = vld [vmem:[#allocation9 + $0x1c] sm:$0xf]
        %v6600 = vld [vmem:[#allocation9 + $0x20] sm:$0xf]
        %v6601 = vld [vmem:[#allocation9 + $0x24] sm:$0xf]
        %v6602 = vld [vmem:[#allocation9 + $0x28] sm:$0xf]
        %v6603 = vld [vmem:[#allocation9 + $0x2c] sm:$0xf]
        %v6604 = vld [vmem:[#allocation9 + $0x30] sm:$0xf]
        %v6605 = vld [vmem:[#allocation9 + $0x34] sm:$0xf]
        %v6606 = vld [vmem:[#allocation9 + $0x38] sm:$0xf]
        %v6607 = vld [vmem:[#allocation9 + $0x3c] sm:$0xf]
        %v6608 = vld [vmem:[#allocation14 + $0x2] ss:$0 sm:$0xff]
        %v6625 = vunpack.c.l.b16 %v6592
        %v6626 = vunpack.c.l.b16 %v6593
        %v6627 = vunpack.c.l.b16 %v6594
        %v6628 = vunpack.c.l.b16 %v6595
        %v6629 = vunpack.c.l.b16 %v6596
        %v6630 = vunpack.c.l.b16 %v6597
        %v6631 = vunpack.c.l.b16 %v6598
        %v6632 = vunpack.c.l.b16 %v6599
        %v6633 = vunpack.c.l.b16 %v6600
        %v6634 = vunpack.c.l.b16 %v6601
        %v6635 = vunpack.c.l.b16 %v6602
        %v6636 = vunpack.c.l.b16 %v6603
        %v6637 = vunpack.c.l.b16 %v6604
        %v6638 = vunpack.c.l.b16 %v6605
        %v6639 = vunpack.c.l.b16 %v6606
        %v6640 = vunpack.c.l.b16 %v6607
        %v6641 = vpack.c.b16 %v6626, %v6625
        %v6642 = vpack.c.b16 %v6628, %v6627
        %v6643 = vpack.c.b16 %v6630, %v6629
        %v6644 = vpack.c.b16 %v6632, %v6631
        %v6645 = vpack.c.b16 %v6634, %v6633
        %v6646 = vpack.c.b16 %v6636, %v6635
        %v6647 = vpack.c.b16 %v6638, %v6637
        %v6648 = vpack.c.b16 %v6640, %v6639
        %6657 = vmatprep.subr.bf16.mxu0 0
        %6658 = vmatpush1.bf16.msra.mxu0 %v6641
        %6659 = vmatprep.subr.bf16.mxu0 0
        %6660 = vmatpush1.bf16.msra.mxu0 %v6642
        %6661 = vmatprep.subr.bf16.mxu0 0
        %6662 = vmatpush1.bf16.msra.mxu0 %v6643
        %6663 = vmatprep.subr.bf16.mxu0 0
        %6664 = vmatpush1.bf16.msra.mxu0 %v6644
        %6665 = vmatprep.subr.bf16.mxu0 0
        %6666 = vmatpush1.bf16.msra.mxu0 %v6645
        %6667 = vmatprep.subr.bf16.mxu0 0
        %6668 = vmatpush1.bf16.msra.mxu0 %v6646
        %6669 = vmatprep.subr.bf16.mxu0 0
        %6670 = vmatpush1.bf16.msra.mxu0 %v6647
        %6671 = vmatprep.subr.bf16.mxu0 0
        %6672 = vmatpush1.bf16.msra.mxu0 %v6648
        %6673 = vmatprep.subr.bf16.mxu0 0
        %6674 = vmatpush1.bf16.msra.mxu0 0
        %6675 = vmatprep.subr.bf16.mxu0 0
        %6676 = vmatpush1.bf16.msra.mxu0 0
        %6677 = vmatprep.subr.bf16.mxu0 0
        %6678 = vmatpush1.bf16.msra.mxu0 0
        %6679 = vmatprep.subr.bf16.mxu0 0
        %6680 = vmatpush1.bf16.msra.mxu0 0
        %6681 = vmatprep.subr.bf16.mxu0 0
        %6682 = vmatpush1.bf16.msra.mxu0 0
        %6683 = vmatprep.subr.bf16.mxu0 0
        %6684 = vmatpush1.bf16.msra.mxu0 0
        %6685 = vmatprep.subr.bf16.mxu0 0
        %6686 = vmatpush1.bf16.msra.mxu0 0
        %6687 = vmatprep.subr.bf16.mxu0 0
        %6688 = vmatpush1.bf16.msra.mxu0 0
        %6689 = vmatprep.mubr.bf16.mxu0 0
        %6690 = vmatmul.mubr.bf16.gmra.mrb[0].mxu0 %v6584
        %v6691 = vpop.f32.mrb[0].mxu0
        %v6692 = vadd.f32 %v6608, %v6691
        %v6693 = vpop.f32.mrb[0].mxu0
        %v6694 = vpop.f32.mrb[0].mxu0
        %v6695 = vadd.f32 %v6608, %v6694
        %v6696 = vpop.f32.mrb[0].mxu0
        %6697 = vmatprep.mubr.bf16.mxu0 0
        %6698 = vmatmul.mubr.bf16.gmra.mrb[0].mxu0 %v6585
        %v6699 = vpop.f32.mrb[0].mxu0
        %v6700 = vadd.f32 %v6608, %v6699
        %v6701 = vpop.f32.mrb[0].mxu0
        %v6702 = vpop.f32.mrb[0].mxu0
        %v6703 = vadd.f32 %v6608, %v6702
        %v6704 = vpop.f32.mrb[0].mxu0
        %6705 = vmatprep.mubr.bf16.mxu0 0
        %6706 = vmatmul.mubr.bf16.gmra.mrb[0].mxu0 %v6586
        %v6707 = vpop.f32.mrb[0].mxu0
        %v6708 = vadd.f32 %v6608, %v6707
        %v6709 = vpop.f32.mrb[0].mxu0
        %v6710 = vpop.f32.mrb[0].mxu0
        %v6711 = vadd.f32 %v6608, %v6710
        %v6712 = vpop.f32.mrb[0].mxu0
        %6713 = vmatprep.mubr.bf16.mxu0 0
        %6714 = vmatmul.mubr.bf16.gmra.mrb[0].mxu0 %v6587
        %v6715 = vpop.f32.mrb[0].mxu0
        %v6716 = vadd.f32 %v6608, %v6715
        %v6717 = vpop.f32.mrb[0].mxu0
        %v6718 = vpop.f32.mrb[0].mxu0
        %v6719 = vadd.f32 %v6608, %v6718
        %v6720 = vpop.f32.mrb[0].mxu0
        %6721 = vmatprep.mubr.bf16.mxu0 0
        %6722 = vmatmul.mubr.bf16.gmra.mrb[0].mxu0 %v6588
        %v6723 = vpop.f32.mrb[0].mxu0
        %v6724 = vadd.f32 %v6608, %v6723
        %v6725 = vpop.f32.mrb[0].mxu0
        %v6726 = vpop.f32.mrb[0].mxu0
        %v6727 = vadd.f32 %v6608, %v6726
        %v6728 = vpop.f32.mrb[0].mxu0
        %6729 = vmatprep.mubr.bf16.mxu0 0
        %6730 = vmatmul.mubr.bf16.gmra.mrb[0].mxu0 %v6589
        %v6731 = vpop.f32.mrb[0].mxu0
        %v6732 = vadd.f32 %v6608, %v6731
        %v6733 = vpop.f32.mrb[0].mxu0
        %v6734 = vpop.f32.mrb[0].mxu0
        %v6735 = vadd.f32 %v6608, %v6734
        %v6736 = vpop.f32.mrb[0].mxu0
        %6737 = vmatprep.mubr.bf16.mxu0 0
        %6738 = vmatmul.mubr.bf16.gmra.mrb[0].mxu0 %v6590
        %v6739 = vpop.f32.mrb[0].mxu0
        %v6740 = vadd.f32 %v6608, %v6739
        %v6741 = vpop.f32.mrb[0].mxu0
        %v6742 = vpop.f32.mrb[0].mxu0
        %v6743 = vadd.f32 %v6608, %v6742
        %v6744 = vpop.f32.mrb[0].mxu0
        %6745 = vmatprep.mubr.bf16.mxu0 0
        %6746 = vmatmul.mubr.bf16.gmra.mrb[0].mxu0 %v6591
        %v6747 = vpop.f32.mrb[0].mxu0
        %v6748 = vadd.f32 %v6608, %v6747
        %v6749 = vpop.f32.mrb[0].mxu0
        %v6750 = vpop.f32.mrb[0].mxu0
        %v6751 = vadd.f32 %v6608, %v6750
        %v6752 = vpop.f32.mrb[0].mxu0
        %6753 = vdwg.mxu0
        %v6754 = vadd.f32 %v385, %v6692
        %v6755 = vadd.f32 %v386, %v6695
        %v6756 = vadd.f32 %v387, %v6700
        %v6757 = vadd.f32 %v388, %v6703
        %v6758 = vadd.f32 %v389, %v6708
        %v6759 = vadd.f32 %v390, %v6711
        %v6760 = vadd.f32 %v391, %v6716
        %v6761 = vadd.f32 %v392, %v6719
        %v6762 = vadd.f32 %v393, %v6724
        %v6763 = vadd.f32 %v394, %v6727
        %v6764 = vadd.f32 %v395, %v6732
        %v6765 = vadd.f32 %v396, %v6735
        %v6766 = vadd.f32 %v397, %v6740
        %v6767 = vadd.f32 %v398, %v6743
        %v6768 = vadd.f32 %v399, %v6748
        %v6769 = vadd.f32 %v400, %v6751
        %v6770 = vld [vmem:[#allocation14 + $0x4] ss:$0 sm:$0xff]
        %v6771 = vmul.f32 %v6754, %v6770
        %v6772 = vmul.f32 %v6755, %v6770
        %v6773 = vmul.f32 %v6756, %v6770
        %v6774 = vmul.f32 %v6757, %v6770
        %v6775 = vmul.f32 %v6758, %v6770
        %v6776 = vmul.f32 %v6759, %v6770
        %v6777 = vmul.f32 %v6760, %v6770
        %v6778 = vmul.f32 %v6761, %v6770
        %v6779 = vmul.f32 %v6762, %v6770
        %v6780 = vmul.f32 %v6763, %v6770
        %v6781 = vmul.f32 %v6764, %v6770
        %v6782 = vmul.f32 %v6765, %v6770
        %v6783 = vmul.f32 %v6766, %v6770
        %v6784 = vmul.f32 %v6767, %v6770
        %v6785 = vmul.f32 %v6768, %v6770
        %v6786 = vmul.f32 %v6769, %v6770
        %v6787 = vld [vmem:[#allocation14 + $0x5] ss:$0 sm:$0xff]
        %v6788 = vadd.f32 %v6771, %v6787
        %v6789 = vadd.f32 %v6772, %v6787
        %v6790 = vadd.f32 %v6773, %v6787
        %v6791 = vadd.f32 %v6774, %v6787
        %v6792 = vadd.f32 %v6775, %v6787
        %v6793 = vadd.f32 %v6776, %v6787
        %v6794 = vadd.f32 %v6777, %v6787
        %v6795 = vadd.f32 %v6778, %v6787
        %v6796 = vadd.f32 %v6779, %v6787
        %v6797 = vadd.f32 %v6780, %v6787
        %v6798 = vadd.f32 %v6781, %v6787
        %v6799 = vadd.f32 %v6782, %v6787
        %v6800 = vadd.f32 %v6783, %v6787
        %v6801 = vadd.f32 %v6784, %v6787
        %v6802 = vadd.f32 %v6785, %v6787
        %v6803 = vadd.f32 %v6786, %v6787
        %v6804 = vpack.c.bf16 %v6789, %v6788
        %v6805 = vpack.c.bf16 %v6791, %v6790
        %v6806 = vpack.c.bf16 %v6793, %v6792
        %v6807 = vpack.c.bf16 %v6795, %v6794
        %v6808 = vpack.c.bf16 %v6797, %v6796
        %v6809 = vpack.c.bf16 %v6799, %v6798
        %v6810 = vpack.c.bf16 %v6801, %v6800
        %v6811 = vpack.c.bf16 %v6803, %v6802
        %v6812 = vld [vmem:[#allocation11] sm:$0xff]
        %v6813 = vld [vmem:[#allocation11 + $0x8] sm:$0xff]
        %v6814 = vld [vmem:[#allocation11 + $0x10] sm:$0xff]
        %v6815 = vld [vmem:[#allocation11 + $0x18] sm:$0xff]
        %v6816 = vld [vmem:[#allocation11 + $0x20] sm:$0xff]
        %v6817 = vld [vmem:[#allocation11 + $0x28] sm:$0xff]
        %v6818 = vld [vmem:[#allocation11 + $0x30] sm:$0xff]
        %v6819 = vld [vmem:[#allocation11 + $0x38] sm:$0xff]
        %v6820 = vld [vmem:[#allocation11 + $0x40] sm:$0xff]
        %v6821 = vld [vmem:[#allocation11 + $0x48] sm:$0xff]
        %v6822 = vld [vmem:[#allocation11 + $0x50] sm:$0xff]
        %v6823 = vld [vmem:[#allocation11 + $0x58] sm:$0xff]
        %v6824 = vld [vmem:[#allocation11 + $0x60] sm:$0xff]
        %v6825 = vld [vmem:[#allocation11 + $0x68] sm:$0xff]
        %v6826 = vld [vmem:[#allocation11 + $0x70] sm:$0xff]
        %v6827 = vld [vmem:[#allocation11 + $0x78] sm:$0xff]
        %s6828 = scalar_lea.vmem [#allocation14], 1
        %v6829 = vld [vmem:[%s6828] ss:$8 sm:$0x3]
        %v6831 = vlaneseq
        %v6832 = vshrl.u32 %v6831, 7
        %v6833 = vsub.s32 0, %v6832
        %v6834 = vrot.slane %v6829, %v6833
        %v6835 = vlaneseq
        %v6836 = vshrl.u32 %v6835, 7
        %v6837 = vsub.s32 1, %v6836
        %v6838 = vrot.slane %v6829, %v6837
        %v6857 = vunpack.c.l.b16 %v6812
        %v6858 = vunpack.c.h.b16 %v6812
        %v6859 = vunpack.c.l.b16 %v6813
        %v6860 = vunpack.c.h.b16 %v6813
        %v6861 = vunpack.c.l.b16 %v6814
        %v6862 = vunpack.c.h.b16 %v6814
        %v6863 = vunpack.c.l.b16 %v6815
        %v6864 = vunpack.c.h.b16 %v6815
        %v6865 = vunpack.c.l.b16 %v6816
        %v6866 = vunpack.c.h.b16 %v6816
        %v6867 = vunpack.c.l.b16 %v6817
        %v6868 = vunpack.c.h.b16 %v6817
        %v6869 = vunpack.c.l.b16 %v6818
        %v6870 = vunpack.c.h.b16 %v6818
        %v6871 = vunpack.c.l.b16 %v6819
        %v6872 = vunpack.c.h.b16 %v6819
        %v6873 = vunpack.c.l.b16 %v6820
        %v6874 = vunpack.c.h.b16 %v6820
        %v6875 = vunpack.c.l.b16 %v6821
        %v6876 = vunpack.c.h.b16 %v6821
        %v6877 = vunpack.c.l.b16 %v6822
        %v6878 = vunpack.c.h.b16 %v6822
        %v6879 = vunpack.c.l.b16 %v6823
        %v6880 = vunpack.c.h.b16 %v6823
        %v6881 = vunpack.c.l.b16 %v6824
        %v6882 = vunpack.c.h.b16 %v6824
        %v6883 = vunpack.c.l.b16 %v6825
        %v6884 = vunpack.c.h.b16 %v6825
        %v6885 = vunpack.c.l.b16 %v6826
        %v6886 = vunpack.c.h.b16 %v6826
        %v6887 = vunpack.c.l.b16 %v6827
        %v6888 = vunpack.c.h.b16 %v6827
        %v6889 = vpack.c.b16 %v6859, %v6857
        %v6890 = vpack.c.b16 %v6860, %v6858
        %v6891 = vpack.c.b16 %v6863, %v6861
        %v6892 = vpack.c.b16 %v6864, %v6862
        %v6893 = vpack.c.b16 %v6867, %v6865
        %v6894 = vpack.c.b16 %v6868, %v6866
        %v6895 = vpack.c.b16 %v6871, %v6869
        %v6896 = vpack.c.b16 %v6872, %v6870
        %v6897 = vpack.c.b16 %v6875, %v6873
        %v6898 = vpack.c.b16 %v6876, %v6874
        %v6899 = vpack.c.b16 %v6879, %v6877
        %v6900 = vpack.c.b16 %v6880, %v6878
        %v6901 = vpack.c.b16 %v6883, %v6881
        %v6902 = vpack.c.b16 %v6884, %v6882
        %v6903 = vpack.c.b16 %v6887, %v6885
        %v6904 = vpack.c.b16 %v6888, %v6886
        %6921 = vmatprep.subr.bf16.mxu0 %v6890
        %6922 = vmatpush1.bf16.msra.mxu0 %v6889
        %6923 = vmatprep.subr.bf16.mxu0 %v6892
        %6924 = vmatpush1.bf16.msra.mxu0 %v6891
        %6925 = vmatprep.subr.bf16.mxu0 %v6894
        %6926 = vmatpush1.bf16.msra.mxu0 %v6893
        %6927 = vmatprep.subr.bf16.mxu0 %v6896
        %6928 = vmatpush1.bf16.msra.mxu0 %v6895
        %6929 = vmatprep.subr.bf16.mxu0 %v6898
        %6930 = vmatpush1.bf16.msra.mxu0 %v6897
        %6931 = vmatprep.subr.bf16.mxu0 %v6900
        %6932 = vmatpush1.bf16.msra.mxu0 %v6899
        %6933 = vmatprep.subr.bf16.mxu0 %v6902
        %6934 = vmatpush1.bf16.msra.mxu0 %v6901
        %6935 = vmatprep.subr.bf16.mxu0 %v6904
        %6936 = vmatpush1.bf16.msra.mxu0 %v6903
        %6937 = vmatprep.subr.bf16.mxu0 0
        %6938 = vmatpush1.bf16.msra.mxu0 0
        %6939 = vmatprep.subr.bf16.mxu0 0
        %6940 = vmatpush1.bf16.msra.mxu0 0
        %6941 = vmatprep.subr.bf16.mxu0 0
        %6942 = vmatpush1.bf16.msra.mxu0 0
        %6943 = vmatprep.subr.bf16.mxu0 0
        %6944 = vmatpush1.bf16.msra.mxu0 0
        %6945 = vmatprep.subr.bf16.mxu0 0
        %6946 = vmatpush1.bf16.msra.mxu0 0
        %6947 = vmatprep.subr.bf16.mxu0 0
        %6948 = vmatpush1.bf16.msra.mxu0 0
        %6949 = vmatprep.subr.bf16.mxu0 0
        %6950 = vmatpush1.bf16.msra.mxu0 0
        %6951 = vmatprep.subr.bf16.mxu0 0
        %6952 = vmatpush1.bf16.msra.mxu0 0
        %6953 = vmatprep.mubr.bf16.mxu0 0
        %6954 = vmatmul.mubr.bf16.gmra.mrb[0].mxu0 %v6804
        %v6955 = vpop.f32.mrb[0].mxu0
        %v6956 = vadd.f32 %v6834, %v6955
        %v6957 = vpop.f32.mrb[0].mxu0
        %v6958 = vadd.f32 %v6838, %v6957
        %v6959 = vpop.f32.mrb[0].mxu0
        %v6960 = vadd.f32 %v6834, %v6959
        %v6961 = vpop.f32.mrb[0].mxu0
        %v6962 = vadd.f32 %v6838, %v6961
        %6963 = vmatprep.mubr.bf16.mxu0 0
        %6964 = vmatmul.mubr.bf16.gmra.mrb[0].mxu0 %v6805
        %v6965 = vpop.f32.mrb[0].mxu0
        %v6966 = vadd.f32 %v6834, %v6965
        %v6967 = vpop.f32.mrb[0].mxu0
        %v6968 = vadd.f32 %v6838, %v6967
        %v6969 = vpop.f32.mrb[0].mxu0
        %v6970 = vadd.f32 %v6834, %v6969
        %v6971 = vpop.f32.mrb[0].mxu0
        %v6972 = vadd.f32 %v6838, %v6971
        %6973 = vmatprep.mubr.bf16.mxu0 0
        %6974 = vmatmul.mubr.bf16.gmra.mrb[0].mxu0 %v6806
        %v6975 = vpop.f32.mrb[0].mxu0
        %v6976 = vadd.f32 %v6834, %v6975
        %v6977 = vpop.f32.mrb[0].mxu0
        %v6978 = vadd.f32 %v6838, %v6977
        %v6979 = vpop.f32.mrb[0].mxu0
        %v6980 = vadd.f32 %v6834, %v6979
        %v6981 = vpop.f32.mrb[0].mxu0
        %v6982 = vadd.f32 %v6838, %v6981
        %6983 = vmatprep.mubr.bf16.mxu0 0
        %6984 = vmatmul.mubr.bf16.gmra.mrb[0].mxu0 %v6807
        %v6985 = vpop.f32.mrb[0].mxu0
        %v6986 = vadd.f32 %v6834, %v6985
        %v6987 = vpop.f32.mrb[0].mxu0
        %v6988 = vadd.f32 %v6838, %v6987
        %v6989 = vpop.f32.mrb[0].mxu0
        %v6990 = vadd.f32 %v6834, %v6989
        %v6991 = vpop.f32.mrb[0].mxu0
        %v6992 = vadd.f32 %v6838, %v6991
        %6993 = vmatprep.mubr.bf16.mxu0 0
        %6994 = vmatmul.mubr.bf16.gmra.mrb[0].mxu0 %v6808
        %v6995 = vpop.f32.mrb[0].mxu0
        %v6996 = vadd.f32 %v6834, %v6995
        %v6997 = vpop.f32.mrb[0].mxu0
        %v6998 = vadd.f32 %v6838, %v6997
        %v6999 = vpop.f32.mrb[0].mxu0
        %v7000 = vadd.f32 %v6834, %v6999
        %v7001 = vpop.f32.mrb[0].mxu0
        %v7002 = vadd.f32 %v6838, %v7001
        %7003 = vmatprep.mubr.bf16.mxu0 0
        %7004 = vmatmul.mubr.bf16.gmra.mrb[0].mxu0 %v6809
        %v7005 = vpop.f32.mrb[0].mxu0
        %v7006 = vadd.f32 %v6834, %v7005
        %v7007 = vpop.f32.mrb[0].mxu0
        %v7008 = vadd.f32 %v6838, %v7007
        %v7009 = vpop.f32.mrb[0].mxu0
        %v7010 = vadd.f32 %v6834, %v7009
        %v7011 = vpop.f32.mrb[0].mxu0
        %v7012 = vadd.f32 %v6838, %v7011
        %7013 = vmatprep.mubr.bf16.mxu0 0
        %7014 = vmatmul.mubr.bf16.gmra.mrb[0].mxu0 %v6810
        %v7015 = vpop.f32.mrb[0].mxu0
        %v7016 = vadd.f32 %v6834, %v7015
        %v7017 = vpop.f32.mrb[0].mxu0
        %v7018 = vadd.f32 %v6838, %v7017
        %v7019 = vpop.f32.mrb[0].mxu0
        %v7020 = vadd.f32 %v6834, %v7019
        %v7021 = vpop.f32.mrb[0].mxu0
        %v7022 = vadd.f32 %v6838, %v7021
        %7023 = vmatprep.mubr.bf16.mxu0 0
        %7024 = vmatmul.mubr.bf16.gmra.mrb[0].mxu0 %v6811
        %v7025 = vpop.f32.mrb[0].mxu0
        %v7026 = vadd.f32 %v6834, %v7025
        %v7027 = vpop.f32.mrb[0].mxu0
        %v7028 = vadd.f32 %v6838, %v7027
        %v7029 = vpop.f32.mrb[0].mxu0
        %v7030 = vadd.f32 %v6834, %v7029
        %v7031 = vpop.f32.mrb[0].mxu0
        %v7032 = vadd.f32 %v6838, %v7031
        %7033 = vdwg.mxu0
        %v7034 = vmax.f32 %v6956, 0.0
        %v7035 = vmax.f32 %v6958, 0.0
        %v7036 = vmax.f32 %v6960, 0.0
        %v7037 = vmax.f32 %v6962, 0.0
        %v7038 = vmax.f32 %v6966, 0.0
        %v7039 = vmax.f32 %v6968, 0.0
        %v7040 = vmax.f32 %v6970, 0.0
        %v7041 = vmax.f32 %v6972, 0.0
        %v7042 = vmax.f32 %v6976, 0.0
        %v7043 = vmax.f32 %v6978, 0.0
        %v7044 = vmax.f32 %v6980, 0.0
        %v7045 = vmax.f32 %v6982, 0.0
        %v7046 = vmax.f32 %v6986, 0.0
        %v7047 = vmax.f32 %v6988, 0.0
        %v7048 = vmax.f32 %v6990, 0.0
        %v7049 = vmax.f32 %v6992, 0.0
        %v7050 = vmax.f32 %v6996, 0.0
        %v7051 = vmax.f32 %v6998, 0.0
        %v7052 = vmax.f32 %v7000, 0.0
        %v7053 = vmax.f32 %v7002, 0.0
        %v7054 = vmax.f32 %v7006, 0.0
        %v7055 = vmax.f32 %v7008, 0.0
        %v7056 = vmax.f32 %v7010, 0.0
        %v7057 = vmax.f32 %v7012, 0.0
        %v7058 = vmax.f32 %v7016, 0.0
        %v7059 = vmax.f32 %v7018, 0.0
        %v7060 = vmax.f32 %v7020, 0.0
        %v7061 = vmax.f32 %v7022, 0.0
        %v7062 = vmax.f32 %v7026, 0.0
        %v7063 = vmax.f32 %v7028, 0.0
        %v7064 = vmax.f32 %v7030, 0.0
        %v7065 = vmax.f32 %v7032, 0.0
        %v7066 = vpack.c.bf16 %v7036, %v7034
        %v7067 = vpack.c.bf16 %v7037, %v7035
        %v7068 = vpack.c.bf16 %v7040, %v7038
        %v7069 = vpack.c.bf16 %v7041, %v7039
        %v7070 = vpack.c.bf16 %v7044, %v7042
        %v7071 = vpack.c.bf16 %v7045, %v7043
        %v7072 = vpack.c.bf16 %v7048, %v7046
        %v7073 = vpack.c.bf16 %v7049, %v7047
        %v7074 = vpack.c.bf16 %v7052, %v7050
        %v7075 = vpack.c.bf16 %v7053, %v7051
        %v7076 = vpack.c.bf16 %v7056, %v7054
        %v7077 = vpack.c.bf16 %v7057, %v7055
        %v7078 = vpack.c.bf16 %v7060, %v7058
        %v7079 = vpack.c.bf16 %v7061, %v7059
        %v7080 = vpack.c.bf16 %v7064, %v7062
        %v7081 = vpack.c.bf16 %v7065, %v7063
        %v7082 = vld [vmem:[#allocation12] sm:$0xf]
        %v7083 = vld [vmem:[#allocation12 + $0x4] sm:$0xf]
        %v7084 = vld [vmem:[#allocation12 + $0x8] sm:$0xf]
        %v7085 = vld [vmem:[#allocation12 + $0xc] sm:$0xf]
        %v7086 = vld [vmem:[#allocation12 + $0x10] sm:$0xf]
        %v7087 = vld [vmem:[#allocation12 + $0x14] sm:$0xf]
        %v7088 = vld [vmem:[#allocation12 + $0x18] sm:$0xf]
        %v7089 = vld [vmem:[#allocation12 + $0x1c] sm:$0xf]
        %v7090 = vld [vmem:[#allocation12 + $0x20] sm:$0xf]
        %v7091 = vld [vmem:[#allocation12 + $0x24] sm:$0xf]
        %v7092 = vld [vmem:[#allocation12 + $0x28] sm:$0xf]
        %v7093 = vld [vmem:[#allocation12 + $0x2c] sm:$0xf]
        %v7094 = vld [vmem:[#allocation12 + $0x30] sm:$0xf]
        %v7095 = vld [vmem:[#allocation12 + $0x34] sm:$0xf]
        %v7096 = vld [vmem:[#allocation12 + $0x38] sm:$0xf]
        %v7097 = vld [vmem:[#allocation12 + $0x3c] sm:$0xf]
        %v7098 = vld [vmem:[#allocation12 + $0x40] sm:$0xf]
        %v7099 = vld [vmem:[#allocation12 + $0x44] sm:$0xf]
        %v7100 = vld [vmem:[#allocation12 + $0x48] sm:$0xf]
        %v7101 = vld [vmem:[#allocation12 + $0x4c] sm:$0xf]
        %v7102 = vld [vmem:[#allocation12 + $0x50] sm:$0xf]
        %v7103 = vld [vmem:[#allocation12 + $0x54] sm:$0xf]
        %v7104 = vld [vmem:[#allocation12 + $0x58] sm:$0xf]
        %v7105 = vld [vmem:[#allocation12 + $0x5c] sm:$0xf]
        %v7106 = vld [vmem:[#allocation12 + $0x60] sm:$0xf]
        %v7107 = vld [vmem:[#allocation12 + $0x64] sm:$0xf]
        %v7108 = vld [vmem:[#allocation12 + $0x68] sm:$0xf]
        %v7109 = vld [vmem:[#allocation12 + $0x6c] sm:$0xf]
        %v7110 = vld [vmem:[#allocation12 + $0x70] sm:$0xf]
        %v7111 = vld [vmem:[#allocation12 + $0x74] sm:$0xf]
        %v7112 = vld [vmem:[#allocation12 + $0x78] sm:$0xf]
        %v7113 = vld [vmem:[#allocation12 + $0x7c] sm:$0xf]
        %v7114 = vld [vmem:[#allocation14 + $0x3] ss:$0 sm:$0xff]
        %v7147 = vunpack.c.l.b16 %v7082
        %v7148 = vunpack.c.l.b16 %v7083
        %v7149 = vunpack.c.l.b16 %v7084
        %v7150 = vunpack.c.l.b16 %v7085
        %v7151 = vunpack.c.l.b16 %v7086
        %v7152 = vunpack.c.l.b16 %v7087
        %v7153 = vunpack.c.l.b16 %v7088
        %v7154 = vunpack.c.l.b16 %v7089
        %v7155 = vunpack.c.l.b16 %v7090
        %v7156 = vunpack.c.l.b16 %v7091
        %v7157 = vunpack.c.l.b16 %v7092
        %v7158 = vunpack.c.l.b16 %v7093
        %v7159 = vunpack.c.l.b16 %v7094
        %v7160 = vunpack.c.l.b16 %v7095
        %v7161 = vunpack.c.l.b16 %v7096
        %v7162 = vunpack.c.l.b16 %v7097
        %v7163 = vunpack.c.l.b16 %v7098
        %v7164 = vunpack.c.l.b16 %v7099
        %v7165 = vunpack.c.l.b16 %v7100
        %v7166 = vunpack.c.l.b16 %v7101
        %v7167 = vunpack.c.l.b16 %v7102
        %v7168 = vunpack.c.l.b16 %v7103
        %v7169 = vunpack.c.l.b16 %v7104
        %v7170 = vunpack.c.l.b16 %v7105
        %v7171 = vunpack.c.l.b16 %v7106
        %v7172 = vunpack.c.l.b16 %v7107
        %v7173 = vunpack.c.l.b16 %v7108
        %v7174 = vunpack.c.l.b16 %v7109
        %v7175 = vunpack.c.l.b16 %v7110
        %v7176 = vunpack.c.l.b16 %v7111
        %v7177 = vunpack.c.l.b16 %v7112
        %v7178 = vunpack.c.l.b16 %v7113
        %v7179 = vpack.c.b16 %v7148, %v7147
        %v7180 = vpack.c.b16 %v7150, %v7149
        %v7181 = vpack.c.b16 %v7152, %v7151
        %v7182 = vpack.c.b16 %v7154, %v7153
        %v7183 = vpack.c.b16 %v7156, %v7155
        %v7184 = vpack.c.b16 %v7158, %v7157
        %v7185 = vpack.c.b16 %v7160, %v7159
        %v7186 = vpack.c.b16 %v7162, %v7161
        %v7187 = vpack.c.b16 %v7164, %v7163
        %v7188 = vpack.c.b16 %v7166, %v7165
        %v7189 = vpack.c.b16 %v7168, %v7167
        %v7190 = vpack.c.b16 %v7170, %v7169
        %v7191 = vpack.c.b16 %v7172, %v7171
        %v7192 = vpack.c.b16 %v7174, %v7173
        %v7193 = vpack.c.b16 %v7176, %v7175
        %v7194 = vpack.c.b16 %v7178, %v7177
        %7211 = vmatprep.subr.bf16.mxu0 0
        %7212 = vmatpush1.bf16.msra.mxu0 %v7179
        %7213 = vmatprep.subr.bf16.mxu0 0
        %7214 = vmatpush1.bf16.msra.mxu0 %v7180
        %7215 = vmatprep.subr.bf16.mxu0 0
        %7216 = vmatpush1.bf16.msra.mxu0 %v7181
        %7217 = vmatprep.subr.bf16.mxu0 0
        %7218 = vmatpush1.bf16.msra.mxu0 %v7182
        %7219 = vmatprep.subr.bf16.mxu0 0
        %7220 = vmatpush1.bf16.msra.mxu0 %v7183
        %7221 = vmatprep.subr.bf16.mxu0 0
        %7222 = vmatpush1.bf16.msra.mxu0 %v7184
        %7223 = vmatprep.subr.bf16.mxu0 0
        %7224 = vmatpush1.bf16.msra.mxu0 %v7185
        %7225 = vmatprep.subr.bf16.mxu0 0
        %7226 = vmatpush1.bf16.msra.mxu0 %v7186
        %7227 = vmatprep.subr.bf16.mxu0 0
        %7228 = vmatpush1.bf16.msra.mxu0 %v7187
        %7229 = vmatprep.subr.bf16.mxu0 0
        %7230 = vmatpush1.bf16.msra.mxu0 %v7188
        %7231 = vmatprep.subr.bf16.mxu0 0
        %7232 = vmatpush1.bf16.msra.mxu0 %v7189
        %7233 = vmatprep.subr.bf16.mxu0 0
        %7234 = vmatpush1.bf16.msra.mxu0 %v7190
        %7235 = vmatprep.subr.bf16.mxu0 0
        %7236 = vmatpush1.bf16.msra.mxu0 %v7191
        %7237 = vmatprep.subr.bf16.mxu0 0
        %7238 = vmatpush1.bf16.msra.mxu0 %v7192
        %7239 = vmatprep.subr.bf16.mxu0 0
        %7240 = vmatpush1.bf16.msra.mxu0 %v7193
        %7241 = vmatprep.subr.bf16.mxu0 0
        %7242 = vmatpush1.bf16.msra.mxu0 %v7194
        %7243 = vmatprep.mubr.bf16.mxu0 %v7067
        %7244 = vmatmul.mubr.bf16.gmra.mrb[0].mxu0 %v7066
        %v7245 = vpop.f32.mrb[0].mxu0
        %v7246 = vadd.f32 %v7114, %v7245
        %v7247 = vpop.f32.mrb[0].mxu0
        %v7248 = vpop.f32.mrb[0].mxu0
        %v7249 = vadd.f32 %v7114, %v7248
        %v7250 = vpop.f32.mrb[0].mxu0
        %7251 = vmatprep.mubr.bf16.mxu0 %v7069
        %7252 = vmatmul.mubr.bf16.gmra.mrb[0].mxu0 %v7068
        %v7253 = vpop.f32.mrb[0].mxu0
        %v7254 = vadd.f32 %v7114, %v7253
        %v7255 = vpop.f32.mrb[0].mxu0
        %v7256 = vpop.f32.mrb[0].mxu0
        %v7257 = vadd.f32 %v7114, %v7256
        %v7258 = vpop.f32.mrb[0].mxu0
        %7259 = vmatprep.mubr.bf16.mxu0 %v7071
        %7260 = vmatmul.mubr.bf16.gmra.mrb[0].mxu0 %v7070
        %v7261 = vpop.f32.mrb[0].mxu0
        %v7262 = vadd.f32 %v7114, %v7261
        %v7263 = vpop.f32.mrb[0].mxu0
        %v7264 = vpop.f32.mrb[0].mxu0
        %v7265 = vadd.f32 %v7114, %v7264
        %v7266 = vpop.f32.mrb[0].mxu0
        %7267 = vmatprep.mubr.bf16.mxu0 %v7073
        %7268 = vmatmul.mubr.bf16.gmra.mrb[0].mxu0 %v7072
        %v7269 = vpop.f32.mrb[0].mxu0
        %v7270 = vadd.f32 %v7114, %v7269
        %v7271 = vpop.f32.mrb[0].mxu0
        %v7272 = vpop.f32.mrb[0].mxu0
        %v7273 = vadd.f32 %v7114, %v7272
        %v7274 = vpop.f32.mrb[0].mxu0
        %7275 = vmatprep.mubr.bf16.mxu0 %v7075
        %7276 = vmatmul.mubr.bf16.gmra.mrb[0].mxu0 %v7074
        %v7277 = vpop.f32.mrb[0].mxu0
        %v7278 = vadd.f32 %v7114, %v7277
        %v7279 = vpop.f32.mrb[0].mxu0
        %v7280 = vpop.f32.mrb[0].mxu0
        %v7281 = vadd.f32 %v7114, %v7280
        %v7282 = vpop.f32.mrb[0].mxu0
        %7283 = vmatprep.mubr.bf16.mxu0 %v7077
        %7284 = vmatmul.mubr.bf16.gmra.mrb[0].mxu0 %v7076
        %v7285 = vpop.f32.mrb[0].mxu0
        %v7286 = vadd.f32 %v7114, %v7285
        %v7287 = vpop.f32.mrb[0].mxu0
        %v7288 = vpop.f32.mrb[0].mxu0
        %v7289 = vadd.f32 %v7114, %v7288
        %v7290 = vpop.f32.mrb[0].mxu0
        %7291 = vmatprep.mubr.bf16.mxu0 %v7079
        %7292 = vmatmul.mubr.bf16.gmra.mrb[0].mxu0 %v7078
        %v7293 = vpop.f32.mrb[0].mxu0
        %v7294 = vadd.f32 %v7114, %v7293
        %v7295 = vpop.f32.mrb[0].mxu0
        %v7296 = vpop.f32.mrb[0].mxu0
        %v7297 = vadd.f32 %v7114, %v7296
        %v7298 = vpop.f32.mrb[0].mxu0
        %7299 = vmatprep.mubr.bf16.mxu0 %v7081
        %7300 = vmatmul.mubr.bf16.gmra.mrb[0].mxu0 %v7080
        %v7301 = vpop.f32.mrb[0].mxu0
        %v7302 = vadd.f32 %v7114, %v7301
        %v7303 = vpop.f32.mrb[0].mxu0
        %v7304 = vpop.f32.mrb[0].mxu0
        %v7305 = vadd.f32 %v7114, %v7304
        %v7306 = vpop.f32.mrb[0].mxu0
        %7307 = vdwg.mxu0
        %v7308 = vadd.f32 %v6788, %v7246
        %v7309 = vadd.f32 %v6789, %v7249
        %v7310 = vadd.f32 %v6790, %v7254
        %v7311 = vadd.f32 %v6791, %v7257
        %v7312 = vadd.f32 %v6792, %v7262
        %v7313 = vadd.f32 %v6793, %v7265
        %v7314 = vadd.f32 %v6794, %v7270
        %v7315 = vadd.f32 %v6795, %v7273
        %v7316 = vadd.f32 %v6796, %v7278
        %v7317 = vadd.f32 %v6797, %v7281
        %v7318 = vadd.f32 %v6798, %v7286
        %v7319 = vadd.f32 %v6799, %v7289
        %v7320 = vadd.f32 %v6800, %v7294
        %v7321 = vadd.f32 %v6801, %v7297
        %v7322 = vadd.f32 %v6802, %v7302
        %v7323 = vadd.f32 %v6803, %v7305
        %v7324 = vld [vmem:[#allocation14 + $0x6] ss:$0 sm:$0xff]
        %v7325 = vmul.f32 %v7308, %v7324
        %v7326 = vmul.f32 %v7309, %v7324
        %v7327 = vmul.f32 %v7310, %v7324
        %v7328 = vmul.f32 %v7311, %v7324
        %v7329 = vmul.f32 %v7312, %v7324
        %v7330 = vmul.f32 %v7313, %v7324
        %v7331 = vmul.f32 %v7314, %v7324
        %v7332 = vmul.f32 %v7315, %v7324
        %v7333 = vmul.f32 %v7316, %v7324
        %v7334 = vmul.f32 %v7317, %v7324
        %v7335 = vmul.f32 %v7318, %v7324
        %v7336 = vmul.f32 %v7319, %v7324
        %v7337 = vmul.f32 %v7320, %v7324
        %v7338 = vmul.f32 %v7321, %v7324
        %v7339 = vmul.f32 %v7322, %v7324
        %v7340 = vmul.f32 %v7323, %v7324
        %v7341 = vld [vmem:[#allocation14 + $0x7] ss:$0 sm:$0xff]
        %v7342 = vadd.f32 %v7325, %v7341
        %v7343 = vadd.f32 %v7326, %v7341
        %v7344 = vadd.f32 %v7327, %v7341
        %v7345 = vadd.f32 %v7328, %v7341
        %v7346 = vadd.f32 %v7329, %v7341
        %v7347 = vadd.f32 %v7330, %v7341
        %v7348 = vadd.f32 %v7331, %v7341
        %v7349 = vadd.f32 %v7332, %v7341
        %v7350 = vadd.f32 %v7333, %v7341
        %v7351 = vadd.f32 %v7334, %v7341
        %v7352 = vadd.f32 %v7335, %v7341
        %v7353 = vadd.f32 %v7336, %v7341
        %v7354 = vadd.f32 %v7337, %v7341
        %v7355 = vadd.f32 %v7338, %v7341
        %v7356 = vadd.f32 %v7339, %v7341
        %v7357 = vadd.f32 %v7340, %v7341
        %7358 = vst [vmem:[%s381] sm:$0xff] %v7342
        %7359 = vst [vmem:[%s381 + $0x8] sm:$0xff] %v7343
        %7360 = vst [vmem:[%s381 + $0x10] sm:$0xff] %v7344
        %7361 = vst [vmem:[%s381 + $0x18] sm:$0xff] %v7345
        %7362 = vst [vmem:[%s381 + $0x20] sm:$0xff] %v7346
        %7363 = vst [vmem:[%s381 + $0x28] sm:$0xff] %v7347
        %7364 = vst [vmem:[%s381 + $0x30] sm:$0xff] %v7348
        %7365 = vst [vmem:[%s381 + $0x38] sm:$0xff] %v7349
        %7366 = vst [vmem:[%s381 + $0x40] sm:$0xff] %v7350
        %7367 = vst [vmem:[%s381 + $0x48] sm:$0xff] %v7351
        %7368 = vst [vmem:[%s381 + $0x50] sm:$0xff] %v7352
        %7369 = vst [vmem:[%s381 + $0x58] sm:$0xff] %v7353
        %7370 = vst [vmem:[%s381 + $0x60] sm:$0xff] %v7354
        %7371 = vst [vmem:[%s381 + $0x68] sm:$0xff] %v7355
        %7372 = vst [vmem:[%s381 + $0x70] sm:$0xff] %v7356
        %7373 = vst [vmem:[%s381 + $0x78] sm:$0xff] %v7357
        %s7374 = sand.u32 %s187, 1
        %s7375 = scalar_lea.sflag [#allocation5], %s7374
        %s7376 = sand.u32 %s187, 1
        %s7377 = smul.addr %s7376, 128
        %s7378 = scalar_lea.vmem [#allocation15], %s7377
        // Predicated region
        $region77: #{tpu_custom_call.1} parent=47 // pred_check
          %p7379 = pneg %p197
        $region78: #{tpu_custom_call.1} parent=47 // pred_check_branch
          %7381 = sbr.rel (%p7379) target = $region80
        $region79: #{tpu_custom_call.1} parent=47 // pred_region
          %s7382 = smul.u32 16, %s27
          %s7384 = ssub.s32 2048, 2048
          %7385 = vsyncadd %s7375, %s7384
          %s7386 = smul.addr %s7382, 128
          %s7387 = scalar_lea.hbm %s7, %s7386
          %s7388 = sshll.u32 %s7378, 4
          %s7389 = int_to_ptr.vmem [resolvable:$true] %s7388
          %7394 = dma.vmem_to_hbm [thread:$0]  %s7389, 2048, %s7387, %s7375, 128, 128, 8
        $region80: #{tpu_custom_call.1} parent=47 // pred_fallthru
          _
      $region48: #{tpu_custom_call.1} parent=5 // pred_fallthru
        _
      %p7395 = scmp.le.s32.totalorder 2, %s22
      // Predicated region
      $region81: #{tpu_custom_call.1} parent=5 // pred_check
        %p7396 = pneg %p7395
      $region82: #{tpu_custom_call.1} parent=5 // pred_check_branch
        %7398 = sbr.rel (%p7396) target = $region84
      $region83: #{tpu_custom_call.1} parent=5 // pred_region
        %s7399 = ssub.s32 %s22, 2
        // Predicated region
        $region85: #{tpu_custom_call.1} parent=83 // pred_check
          %p7400 = pneg %p203
        $region86: #{tpu_custom_call.1} parent=83 // pred_check_branch
          %7402 = sbr.rel (%p7400) target = $region88
        $region87: #{tpu_custom_call.1} parent=83 // pred_region
          %s7403 = sand.u32 %s188, 1
          %s7404 = scalar_lea.sflag [#allocation5], %s7403
          %s7405 = sand.u32 %s188, 1
          %s7406 = smul.addr %s7405, 128
          %s7407 = scalar_lea.vmem [#allocation15], %s7406
          %7408 = dma.done %s7404, 2048
        $region88: #{tpu_custom_call.1} parent=83 // pred_fallthru
          _
      $region84: #{tpu_custom_call.1} parent=5 // pred_fallthru
        _
    $region6: #{tpu_custom_call.1} parent=1 // loop_footer
      %s26 = sadd.s32 1, %s22
    $region7: #{tpu_custom_call.1} parent=1 // loop_footer_branch
      %21 = sbr.rel target = $region3
    $region8: #{tpu_custom_call.1} parent=1 // loop_exit
      _
    %7409 = vsyncpa [#allocation4], 1
    %s7410 = scalar_lea.sflag [#allocation4], 1
    %7411 = vsyncpa %s7410, 1
    %7412 = vsyncpa [#allocation7], 1
    %7413 = vsyncpa [#allocation10], 1
    %7414 = vsyncpa [#allocation13], 1
    %7415 = vsyncpa [#allocation5], 1
    %s7416 = scalar_lea.sflag [#allocation5], 1
    %7417 = vsyncpa %s7416, 1

</llo_original>
